<compile_context>
chip_gen: v7x
topology: tpu7x:2x2x1
jax: 0.10.0
libtpu: 0.0.40
codegen_flags: <defaults>
</compile_context>

<pallas_src>
import functools
import math

import jax
import jax.numpy as jnp
import numpy as np
from jax.experimental import pallas as pl
from jax.experimental.pallas import tpu as pltpu


_COMPILER_PARAMS = pltpu.CompilerParams(
    # batch axis -> megacore "parallel" (v7x: one batch element per TC),
    # time-tile axis -> "arbitrary" so the resident input block is not refetched.
    dimension_semantics=("parallel", "arbitrary"),
    # Sized for v7x (64 MiB physical VMEM); v5e/v6e have extra headroom.
    vmem_limit_bytes=48 * 1024 * 1024,
)


def _round_up(x, m):
    return (x + m - 1) // m * m


def _pick_time_tile(t_out, tile_t):
    """Time tile (multiple of 8) and number of tiles covering t_out rows."""
    tt = min(_round_up(t_out, 8), max(8, _round_up(tile_t, 8)))
    return tt, pl.cdiv(t_out, tt)


# ---------------------------------------------------------------------------
# Kernel 1: generic fused (pre-ReLU) -> Conv1d (im2col + single MXU matmul)
#           -> +bias -> (post-ReLU).   Grid = (batch, time-tile).
# ---------------------------------------------------------------------------
def _conv1d_kernel(x_ref, w_ref, b_ref, o_ref, *, K, dilation, tile_t,
                   pre_relu, post_relu, compute_dtype):
    t0 = pl.multiple_of(pl.program_id(1) * tile_t, tile_t)
    # Gather the K dilated taps into one (tile_t, K*Cin) im2col tile.
    taps = [x_ref[0, pl.ds(t0 + k * dilation, tile_t), :] for k in range(K)]
    xi = taps[0] if K == 1 else jnp.concatenate(taps, axis=-1)
    if pre_relu:
        xi = jnp.maximum(xi, 0.0)      # relu(0)=0 -> relu-after-pad == pad-after-relu
    acc = jnp.dot(xi.astype(compute_dtype), w_ref[...],
                  preferred_element_type=jnp.float32)     # single MXU contraction
    acc = acc + b_ref[...]             # (1, Cout) broadcast, f32
    if post_relu:
        acc = jnp.maximum(acc, 0.0)
    o_ref[0] = acc.astype(o_ref.dtype)


def conv1d_pallas(x_nlc, w, b, *, K, dilation, padding, pre_relu=False,
                  post_relu=False, tile_t=256, compute_dtype=jnp.float32,
                  pad_cout_to=None):
    """x_nlc: (N, T, Cin); w: (K, Cin, Cout); b: (Cout,) -> (N, T_out, Cout)."""
    N, T, Cin = x_nlc.shape
    Kw, Cin_w, Cout = w.shape
    assert Kw == K and Cin_w == Cin
    T_out = T + 2 * padding - dilation * (K - 1)
    tt, n_tiles = _pick_time_tile(T_out, tile_t)
    T_out_pad = tt * n_tiles

    # Lane-dense store path for tiny channel counts (e.g. the final width->3
    # projection): pad Cout to a multiple of 128 with zero columns, slice later.
    cout_k = Cout
    if pad_cout_to is not None and Cout % pad_cout_to != 0:
        cout_k = _round_up(Cout, pad_cout_to)
        w = jnp.pad(w, ((0, 0), (0, 0), (0, cout_k - Cout)))
        b = jnp.pad(b, ((0, cout_k - Cout),))

    # Zero-pad the time axis so every in-kernel window read stays in bounds
    # (conv padding on the left, conv padding + tile remainder on the right).
    need = T_out_pad + dilation * (K - 1)
    x_pad = jnp.pad(x_nlc, ((0, 0), (padding, need - T - padding), (0, 0)))
    Lp = x_pad.shape[1]

    w2d = w.reshape(K * Cin, cout_k).astype(compute_dtype)   # im2col weight
    b2d = b.reshape(1, cout_k).astype(jnp.float32)

    kernel = functools.partial(
        _conv1d_kernel, K=K, dilation=dilation, tile_t=tt,
        pre_relu=pre_relu, post_relu=post_relu, compute_dtype=compute_dtype)

    y = pl.pallas_call(
        kernel,
        out_shape=jax.ShapeDtypeStruct((N, T_out_pad, cout_k), x_nlc.dtype),
        grid=(N, n_tiles),
        in_specs=[
            # Full (padded) sequence stays resident in VMEM across time tiles.
            pl.BlockSpec((1, Lp, Cin), lambda n, t: (n, 0, 0)),
            # Constant operands (fetched once; constant index_map).
            # NOTE(perf): could be single-buffered via pipeline_mode=pl.Buffered(1)
            # to reclaim ~3 MiB/conv of VMEM at width=512.
            pl.BlockSpec((K * Cin, cout_k), lambda n, t: (0, 0)),
            pl.BlockSpec((1, cout_k), lambda n, t: (0, 0)),
        ],
        out_specs=pl.BlockSpec((1, tt, cout_k), lambda n, t: (n, t, 0)),
        compiler_params=_COMPILER_PARAMS,
    )(x_pad, w2d, b2d)

    if T_out_pad != T_out:
        y = y[:, :T_out, :]
    if cout_k != Cout:
        y = y[:, :, :Cout]
    return y


# ---------------------------------------------------------------------------
# Kernel 2: fused ResConv1DBlock (norm=None, activation='relu'):
#     out = x + conv1x1(relu(conv3_dilated(relu(x))))
# The h1 intermediate never leaves VMEM/vregs; both weights live in VMEM.
# ---------------------------------------------------------------------------
def _resblock_kernel(x_ref, w1_ref, b1_ref, w2_ref, b2_ref, o_ref, *,
                     dilation, tile_t, compute_dtype):
    t0 = pl.multiple_of(pl.program_id(1) * tile_t, tile_t)
    taps = [x_ref[0, pl.ds(t0 + k * dilation, tile_t), :] for k in range(3)]
    xi = jnp.maximum(jnp.concatenate(taps, axis=-1), 0.0)       # pre-ReLU + im2col
    h1 = jnp.dot(xi.astype(compute_dtype), w1_ref[...],
                 preferred_element_type=jnp.float32) + b1_ref[...]
    h1 = jnp.maximum(h1, 0.0)                                   # pre-ReLU of conv2
    y = jnp.dot(h1.astype(compute_dtype), w2_ref[...],
                preferred_element_type=jnp.float32) + b2_ref[...]
    res = x_ref[0, pl.ds(t0 + dilation, tile_t), :]             # un-activated residual
    o_ref[0] = (y + res).astype(o_ref.dtype)


def resblock_pallas(x_nlc, w1, b1, w2, b2, *, dilation, tile_t=256,
                    compute_dtype=jnp.float32):
    N, T, C = x_nlc.shape
    tt, n_tiles = _pick_time_tile(T, tile_t)
    T_pad_out = tt * n_tiles
    need = T_pad_out + 2 * dilation
    x_pad = jnp.pad(x_nlc, ((0, 0), (dilation, need - T - dilation), (0, 0)))
    Lp = x_pad.shape[1]

    w1m = w1.reshape(3 * C, C).astype(compute_dtype)
    w2m = w2.reshape(C, C).astype(compute_dtype)
    b1m = b1.reshape(1, C).astype(jnp.float32)
    b2m = b2.reshape(1, C).astype(jnp.float32)

    kernel = functools.partial(_resblock_kernel, dilation=dilation, tile_t=tt,
                               compute_dtype=compute_dtype)
    y = pl.pallas_call(
        kernel,
        out_shape=jax.ShapeDtypeStruct((N, T_pad_out, C), x_nlc.dtype),
        grid=(N, n_tiles),
        in_specs=[
            pl.BlockSpec((1, Lp, C), lambda n, t: (n, 0, 0)),
            pl.BlockSpec((3 * C, C), lambda n, t: (0, 0)),
            pl.BlockSpec((1, C), lambda n, t: (0, 0)),
            pl.BlockSpec((C, C), lambda n, t: (0, 0)),
            pl.BlockSpec((1, C), lambda n, t: (0, 0)),
        ],
        out_specs=pl.BlockSpec((1, tt, C), lambda n, t: (n, t, 0)),
        compiler_params=_COMPILER_PARAMS,
    )(x_pad, w1m, b1m, w2m, b2m)
    if T_pad_out != T:
        y = y[:, :T, :]
    return y


# ---------------------------------------------------------------------------
# nn.Upsample(scale_factor=2, 'nearest') + Conv1d(C, C, 3, 1, 1), fused by
# folding the repeat into the weights.  With x_pad1 = zero-pad(x, 1):
#     y[2s]   = x_pad1[s]   @ w0        + x_pad1[s+1] @ (w1 + w2) + b
#     y[2s+1] = x_pad1[s+1] @ (w0 + w1) + x_pad1[s+2] @ w2        + b
# i.e. a single K=3/pad=1 conv over x with (3, Cin, 2*Cout) weights whose
# (N, T, 2*Cout) output reshapes contiguously (free) to (N, 2*T, Cout).
# ---------------------------------------------------------------------------
def upsample2x_conv_pallas(x_nlc, w, b, *, tile_t=256, compute_dtype=jnp.float32):
    K, Cin, Cout = w.shape
    assert K == 3
    zeros = jnp.zeros_like(w[0])
    wf = jnp.stack([
        jnp.concatenate([w[0], zeros], axis=-1),
        jnp.concatenate([w[1] + w[2], w[0] + w[1]], axis=-1),
        jnp.concatenate([zeros, w[2]], axis=-1),
    ], axis=0)                                        # (3, Cin, 2*Cout)
    bf = jnp.concatenate([b, b], axis=0)              # (2*Cout,)
    N, T, _ = x_nlc.shape
    y = conv1d_pallas(x_nlc, wf, bf, K=3, dilation=1, padding=1,
                      tile_t=tile_t, compute_dtype=compute_dtype)
    return y.reshape(N, 2 * T, Cout)                  # interleave even/odd (contiguous)


# ---------------------------------------------------------------------------
# Decoder forward: Pallas path.
# ---------------------------------------------------------------------------
def decoder_forward_pallas(x_nlc, params, *, down_t, depth, growth,
                           tile_t=256, compute_dtype=jnp.float32):
    dils = [growth ** d for d in range(depth)][::-1]      # reverse_dilation=True
    p = params['in_conv']
    h = conv1d_pallas(x_nlc, p['w'], p['b'], K=3, dilation=1, padding=1,
                      post_relu=True, tile_t=tile_t, compute_dtype=compute_dtype)
    for i in range(down_t):
        for j, d in enumerate(dils):
            pb = params[f'res_{i}_{j}']
            h = resblock_pallas(h, pb['c1']['w'], pb['c1']['b'],
                                pb['c2']['w'], pb['c2']['b'],
                                dilation=d, tile_t=tile_t,
                                compute_dtype=compute_dtype)
        pu = params[f'up_{i}']
        h = upsample2x_conv_pallas(h, pu['w'], pu['b'], tile_t=tile_t,
                                   compute_dtype=compute_dtype)
    p1 = params['post1']
    h = conv1d_pallas(h, p1['w'], p1['b'], K=1, dilation=1, padding=1,
                      post_relu=True, tile_t=tile_t, compute_dtype=compute_dtype)
    p2 = params['post2']
    # Lane-dense final projection (Cout=3 padded to 128, sliced back).
    h = conv1d_pallas(h, p2['w'], p2['b'], K=1, dilation=1, padding=1,
                      tile_t=tile_t, compute_dtype=compute_dtype, pad_cout_to=128)
    return h


# ---------------------------------------------------------------------------
# Pure-JAX reference (original module structure, lax.conv_general_dilated).
# ---------------------------------------------------------------------------
def conv1d_ref(x_nlc, w, b, *, dilation, padding, pre_relu=False,
               post_relu=False, compute_dtype=jnp.float32):
    x = jnp.maximum(x_nlc, 0.0) if pre_relu else x_nlc
    y = jax.lax.conv_general_dilated(
        x.astype(compute_dtype), w.astype(compute_dtype),
        window_strides=(1,), padding=[(padding, padding)],
        rhs_dilation=(dilation,),
        dimension_numbers=('NWC', 'WIO', 'NWC'),
        preferred_element_type=jnp.float32)
    y = y + b[None, None, :]
    if post_relu:
        y = jnp.maximum(y, 0.0)
    return y


def resblock_ref(x, w1, b1, w2, b2, *, dilation, compute_dtype=jnp.float32):
    h = conv1d_ref(x, w1, b1, dilation=dilation, padding=dilation,
                   pre_relu=True, compute_dtype=compute_dtype)
    h = conv1d_ref(h, w2, b2, dilation=1, padding=0,
                   pre_relu=True, compute_dtype=compute_dtype)
    return h + x


def decoder_forward_ref(x_nlc, params, *, down_t, depth, growth,
                        compute_dtype=jnp.float32):
    dils = [growth ** d for d in range(depth)][::-1]
    p = params['in_conv']
    h = conv1d_ref(x_nlc, p['w'], p['b'], dilation=1, padding=1,
                   post_relu=True, compute_dtype=compute_dtype)
    for i in range(down_t):
        for j, d in enumerate(dils):
            pb = params[f'res_{i}_{j}']
            h = resblock_ref(h, pb['c1']['w'], pb['c1']['b'],
                             pb['c2']['w'], pb['c2']['b'],
                             dilation=d, compute_dtype=compute_dtype)
        h = jnp.repeat(h, 2, axis=1)                  # Upsample(2, 'nearest')
        pu = params[f'up_{i}']
        h = conv1d_ref(h, pu['w'], pu['b'], dilation=1, padding=1,
                       compute_dtype=compute_dtype)
    p1 = params['post1']
    h = conv1d_ref(h, p1['w'], p1['b'], dilation=1, padding=1,
                   post_relu=True, compute_dtype=compute_dtype)
    p2 = params['post2']
    h = conv1d_ref(h, p2['w'], p2['b'], dilation=1, padding=1,
                   compute_dtype=compute_dtype)
    return h


# ---------------------------------------------------------------------------
# Deterministic parameter init (PyTorch Conv1d-style uniform bounds).
# ---------------------------------------------------------------------------
def init_conv(key, K, cin, cout):
    kw, kb = jax.random.split(key)
    bound = 1.0 / math.sqrt(cin * K)
    w = jax.random.uniform(kw, (K, cin, cout), jnp.float32, -bound, bound)
    b = jax.random.uniform(kb, (cout,), jnp.float32, -bound, bound)
    return {'w': w, 'b': b}


def init_params(key, *, input_emb_width, output_emb_width, width, down_t, depth):
    params = {}
    key, k = jax.random.split(key)
    params['in_conv'] = init_conv(k, 3, output_emb_width, width)
    for i in range(down_t):
        for j in range(depth):
            key, k1, k2 = jax.random.split(key, 3)
            params[f'res_{i}_{j}'] = {
                'c1': init_conv(k1, 3, width, width),
                'c2': init_conv(k2, 1, width, width),
            }
        key, k = jax.random.split(key)
        params[f'up_{i}'] = init_conv(k, 3, width, width)
    key, k1, k2 = jax.random.split(key, 3)
    params['post1'] = init_conv(k1, 1, width, width)
    params['post2'] = init_conv(k2, 1, width, input_emb_width)
    return params


if __name__ == "__main__":
    # Small shapes consistent with the module (production: width=512, T larger).
    N = 2
    T = 8
    input_emb_width = 3
    output_emb_width = 32   # scaled-down stand-in for 512
    width = 32              # scaled-down stand-in for 512
    down_t = 3
    depth = 3
    growth = 3
    tile_t = 16             # tiny tile so the demo exercises the multi-tile grid;
                            # use ~256 at production width=512 / larger T.
    # NOTE(perf): for v5e at production the channel dims (512) are already
    # multiples of 128; the demo's 32-channel stand-in is not padded.

    key = jax.random.PRNGKey(0)
    key, kp, kx = jax.random.split(key, 3)
    params = init_params(kp, input_emb_width=input_emb_width,
                         output_emb_width=output_emb_width,
                         width=width, down_t=down_t, depth=depth)

    # Input in PyTorch NCL layout: (N, output_emb_width, T)
    x_ncl = jax.random.normal(kx, (N, output_emb_width, T), jnp.float32)
    x_nlc = jnp.transpose(x_ncl, (0, 2, 1))   # NCL -> NLC for the kernels

    @jax.jit
    def run_f32(x, p):
        y = decoder_forward_pallas(x, p, down_t=down_t, depth=depth, growth=growth,
                                   tile_t=tile_t, compute_dtype=jnp.float32)
        return jnp.transpose(y, (0, 2, 1))    # back to PyTorch NCL

    @jax.jit
    def run_bf16(x, p):
        y = decoder_forward_pallas(x, p, down_t=down_t, depth=depth, growth=growth,
                                   tile_t=tile_t, compute_dtype=jnp.bfloat16)
        return jnp.transpose(y, (0, 2, 1))

    out_f32 = jax.block_until_ready(run_f32(x_nlc, params))
    expected_shape = (N, input_emb_width, T * (2 ** down_t) + 4)
    assert out_f32.shape == expected_shape, (out_f32.shape, expected_shape)

    # Strict f32 check against the original-structure lax reference.
    ref_f32 = jnp.transpose(
        decoder_forward_ref(x_nlc, params, down_t=down_t, depth=depth,
                            growth=growth, compute_dtype=jnp.float32), (0, 2, 1))
    np.testing.assert_allclose(np.asarray(out_f32), np.asarray(ref_f32),
                               rtol=1e-4, atol=1e-4)

    # bf16-matmul path (MXU bf16, f32 accumulation) vs a matching bf16 reference.
    out_bf16 = jax.block_until_ready(run_bf16(x_nlc, params))
    ref_bf16 = jnp.transpose(
        decoder_forward_ref(x_nlc, params, down_t=down_t, depth=depth,
                            growth=growth, compute_dtype=jnp.bfloat16), (0, 2, 1))
    np.testing.assert_allclose(np.asarray(out_bf16), np.asarray(ref_bf16),
                               rtol=5e-2, atol=5e-3)

    print("KERNEL_OK")
</pallas_src>

<mosaic_0001>
module attributes {stable_mosaic.version = 11 : i64} {
  func.func @_conv1d_kernel(%arg0: i32, %arg1: i32, %arg2: memref<1x10x32xf32, #tpu.memory_space<vmem>>, %arg3: memref<96x32xf32, #tpu.memory_space<vmem>>, %arg4: memref<1x32xf32, #tpu.memory_space<vmem>>, %arg5: memref<1x8x32xf32, #tpu.memory_space<vmem>>) attributes {dimension_semantics = [#tpu.dimension_semantics<parallel>, #tpu.dimension_semantics<arbitrary>], iteration_bounds = array<i64: 2, 1>, scalar_prefetch = 0 : i64, scratch_operands = 0 : i64, tpu.core_type = #tpu.core_type<tc>, window_params = [{transform_indices = @transform_0, window_bounds = array<i64: 1, 10, 32>}, {pipeline_mode = #tpu.pipeline_mode<synchronous>, transform_indices = @transform_1, window_bounds = array<i64: 96, 32>}, {pipeline_mode = #tpu.pipeline_mode<synchronous>, transform_indices = @transform_2, window_bounds = array<i64: 1, 32>}, {transform_indices = @transform_3, window_bounds = array<i64: 1, 8, 32>}]} {
    %c8_i32 = arith.constant 8 : i32
    %0 = arith.muli %arg1, %c8_i32 : i32
    %1 = tpu.assume_multiple %0, 8 : i32
    %c0_i32 = arith.constant 0 : i32
    %2 = arith.addi %1, %c0_i32 : i32
    %c0 = arith.constant 0 : index
    %3 = arith.index_cast %2 : i32 to index
    %c0_0 = arith.constant 0 : index
    %4 = vector.load %arg2[%c0, %3, %c0_0] : memref<1x10x32xf32, #tpu.memory_space<vmem>>, vector<1x8x32xf32>
    %5 = vector.shape_cast %4 : vector<1x8x32xf32> to vector<8x32xf32>
    %c1_i32 = arith.constant 1 : i32
    %6 = arith.addi %1, %c1_i32 : i32
    %c0_1 = arith.constant 0 : index
    %7 = arith.index_cast %6 : i32 to index
    %c0_2 = arith.constant 0 : index
    %8 = vector.load %arg2[%c0_1, %7, %c0_2] : memref<1x10x32xf32, #tpu.memory_space<vmem>>, vector<1x8x32xf32>
    %9 = vector.shape_cast %8 : vector<1x8x32xf32> to vector<8x32xf32>
    %c2_i32 = arith.constant 2 : i32
    %10 = arith.addi %1, %c2_i32 : i32
    %c0_3 = arith.constant 0 : index
    %11 = arith.index_cast %10 : i32 to index
    %c0_4 = arith.constant 0 : index
    %12 = vector.load %arg2[%c0_3, %11, %c0_4] : memref<1x10x32xf32, #tpu.memory_space<vmem>>, vector<1x8x32xf32>
    %13 = vector.shape_cast %12 : vector<1x8x32xf32> to vector<8x32xf32>
    %14 = tpu.concatenate %5, %9, %13 in 1 : vector<8x32xf32>, vector<8x32xf32>, vector<8x32xf32> -> vector<8x96xf32>
    %c0_5 = arith.constant 0 : index
    %c0_6 = arith.constant 0 : index
    %15 = vector.load %arg3[%c0_5, %c0_6] : memref<96x32xf32, #tpu.memory_space<vmem>>, vector<96x32xf32>
    %cst = arith.constant dense<0.000000e+00> : vector<8x32xf32>
    %16 = tpu.matmul %14, %15, %cst {dimension_numbers = #tpu.dot_dimension_numbers<[1], [0], [0], [1], [0, 0, 1, 1], [], []>} : vector<8x96xf32>, vector<96x32xf32>, vector<8x32xf32> -> vector<8x32xf32>
    %c0_7 = arith.constant 0 : index
    %c0_8 = arith.constant 0 : index
    %17 = vector.load %arg4[%c0_7, %c0_8] : memref<1x32xf32, #tpu.memory_space<vmem>>, vector<1x32xf32>
    %18 = vector.broadcast %17 : vector<1x32xf32> to vector<8x32xf32>
    %19 = arith.addf %16, %18 : vector<8x32xf32>
    %cst_9 = arith.constant 0.000000e+00 : f32
    %20 = vector.broadcast %cst_9 : f32 to vector<8x32xf32>
    %21 = arith.maximumf %19, %20 : vector<8x32xf32>
    %c0_10 = arith.constant 0 : index
    %c0_11 = arith.constant 0 : index
    %c0_12 = arith.constant 0 : index
    %22 = vector.load %arg5[%c0_10, %c0_11, %c0_12] : memref<1x8x32xf32, #tpu.memory_space<vmem>>, vector<1x8x32xf32>
    %23 = vector.shape_cast %22 : vector<1x8x32xf32> to vector<8x32xf32>
    %24 = vector.shape_cast %21 : vector<8x32xf32> to vector<1x8x32xf32>
    tpu.vector_store %arg5[%c0_10, %c0_11, %c0_12], %24 {strides = array<i32>} : memref<1x8x32xf32, #tpu.memory_space<vmem>>, vector<1x8x32xf32>,
    return
  }
  func.func @transform_0(%arg0: i32, %arg1: i32) -> (i32, i32, i32) {
    %c0_i32 = arith.constant 0 : i32
    %c0_i32_0 = arith.constant 0 : i32
    %c0_i32_1 = arith.constant 0 : i32
    return %arg0, %c0_i32, %c0_i32_0 : i32, i32, i32
  }
  func.func @transform_1(%arg0: i32, %arg1: i32) -> (i32, i32) {
    %c0_i32 = arith.constant 0 : i32
    %c0_i32_0 = arith.constant 0 : i32
    %c0_i32_1 = arith.constant 0 : i32
    return %c0_i32, %c0_i32_0 : i32, i32
  }
  func.func @transform_2(%arg0: i32, %arg1: i32) -> (i32, i32) {
    %c0_i32 = arith.constant 0 : i32
    %c0_i32_0 = arith.constant 0 : i32
    %c0_i32_1 = arith.constant 0 : i32
    return %c0_i32, %c0_i32_0 : i32, i32
  }
  func.func @transform_3(%arg0: i32, %arg1: i32) -> (i32, i32, i32) {
    %c0_i32 = arith.constant 0 : i32
    %c0_i32_0 = arith.constant 0 : i32
    return %arg0, %arg1, %c0_i32 : i32, i32, i32
  }
}

module attributes {stable_mosaic.version = 11 : i64} {
  func.func @_resblock_kernel(%arg0: i32, %arg1: i32, %arg2: memref<1x26x32xf32, #tpu.memory_space<vmem>>, %arg3: memref<96x32xf32, #tpu.memory_space<vmem>>, %arg4: memref<1x32xf32, #tpu.memory_space<vmem>>, %arg5: memref<32x32xf32, #tpu.memory_space<vmem>>, %arg6: memref<1x32xf32, #tpu.memory_space<vmem>>, %arg7: memref<1x8x32xf32, #tpu.memory_space<vmem>>) attributes {dimension_semantics = [#tpu.dimension_semantics<parallel>, #tpu.dimension_semantics<arbitrary>], iteration_bounds = array<i64: 2, 1>, scalar_prefetch = 0 : i64, scratch_operands = 0 : i64, tpu.core_type = #tpu.core_type<tc>, window_params = [{transform_indices = @transform_0, window_bounds = array<i64: 1, 26, 32>}, {pipeline_mode = #tpu.pipeline_mode<synchronous>, transform_indices = @transform_1, window_bounds = array<i64: 96, 32>}, {pipeline_mode = #tpu.pipeline_mode<synchronous>, transform_indices = @transform_2, window_bounds = array<i64: 1, 32>}, {pipeline_mode = #tpu.pipeline_mode<synchronous>, transform_indices = @transform_3, window_bounds = array<i64: 32, 32>}, {pipeline_mode = #tpu.pipeline_mode<synchronous>, transform_indices = @transform_4, window_bounds = array<i64: 1, 32>}, {transform_indices = @transform_5, window_bounds = array<i64: 1, 8, 32>}]} {
    %c8_i32 = arith.constant 8 : i32
    %0 = arith.muli %arg1, %c8_i32 : i32
    %1 = tpu.assume_multiple %0, 8 : i32
    %c0_i32 = arith.constant 0 : i32
    %2 = arith.addi %1, %c0_i32 : i32
    %c0 = arith.constant 0 : index
    %3 = arith.index_cast %2 : i32 to index
    %c0_0 = arith.constant 0 : index
    %4 = vector.load %arg2[%c0, %3, %c0_0] : memref<1x26x32xf32, #tpu.memory_space<vmem>>, vector<1x8x32xf32>
    %5 = vector.shape_cast %4 : vector<1x8x32xf32> to vector<8x32xf32>
    %c9_i32 = arith.constant 9 : i32
    %6 = arith.addi %1, %c9_i32 : i32
    %c0_1 = arith.constant 0 : index
    %7 = arith.index_cast %6 : i32 to index
    %c0_2 = arith.constant 0 : index
    %8 = vector.load %arg2[%c0_1, %7, %c0_2] : memref<1x26x32xf32, #tpu.memory_space<vmem>>, vector<1x8x32xf32>
    %9 = vector.shape_cast %8 : vector<1x8x32xf32> to vector<8x32xf32>
    %c18_i32 = arith.constant 18 : i32
    %10 = arith.addi %1, %c18_i32 : i32
    %c0_3 = arith.constant 0 : index
    %11 = arith.index_cast %10 : i32 to index
    %c0_4 = arith.constant 0 : index
    %12 = vector.load %arg2[%c0_3, %11, %c0_4] : memref<1x26x32xf32, #tpu.memory_space<vmem>>, vector<1x8x32xf32>
    %13 = vector.shape_cast %12 : vector<1x8x32xf32> to vector<8x32xf32>
    %14 = tpu.concatenate %5, %9, %13 in 1 : vector<8x32xf32>, vector<8x32xf32>, vector<8x32xf32> -> vector<8x96xf32>
    %cst = arith.constant 0.000000e+00 : f32
    %15 = vector.broadcast %cst : f32 to vector<8x96xf32>
    %16 = arith.maximumf %14, %15 : vector<8x96xf32>
    %c0_5 = arith.constant 0 : index
    %c0_6 = arith.constant 0 : index
    %17 = vector.load %arg3[%c0_5, %c0_6] : memref<96x32xf32, #tpu.memory_space<vmem>>, vector<96x32xf32>
    %cst_7 = arith.constant dense<0.000000e+00> : vector<8x32xf32>
    %18 = tpu.matmul %16, %17, %cst_7 {dimension_numbers = #tpu.dot_dimension_numbers<[1], [0], [0], [1], [0, 0, 1, 1], [], []>} : vector<8x96xf32>, vector<96x32xf32>, vector<8x32xf32> -> vector<8x32xf32>
    %c0_8 = arith.constant 0 : index
    %c0_9 = arith.constant 0 : index
    %19 = vector.load %arg4[%c0_8, %c0_9] : memref<1x32xf32, #tpu.memory_space<vmem>>, vector<1x32xf32>
    %20 = vector.broadcast %19 : vector<1x32xf32> to vector<8x32xf32>
    %21 = arith.addf %18, %20 : vector<8x32xf32>
    %cst_10 = arith.constant 0.000000e+00 : f32
    %22 = vector.broadcast %cst_10 : f32 to vector<8x32xf32>
    %23 = arith.maximumf %21, %22 : vector<8x32xf32>
    %c0_11 = arith.constant 0 : index
    %c0_12 = arith.constant 0 : index
    %24 = vector.load %arg5[%c0_11, %c0_12] : memref<32x32xf32, #tpu.memory_space<vmem>>, vector<32x32xf32>
    %cst_13 = arith.constant dense<0.000000e+00> : vector<8x32xf32>
    %25 = tpu.matmul %23, %24, %cst_13 {dimension_numbers = #tpu.dot_dimension_numbers<[1], [0], [0], [1], [0, 0, 1, 1], [], []>} : vector<8x32xf32>, vector<32x32xf32>, vector<8x32xf32> -> vector<8x32xf32>
    %c0_14 = arith.constant 0 : index
    %c0_15 = arith.constant 0 : index
    %26 = vector.load %arg6[%c0_14, %c0_15] : memref<1x32xf32, #tpu.memory_space<vmem>>, vector<1x32xf32>
    %27 = vector.broadcast %26 : vector<1x32xf32> to vector<8x32xf32>
    %28 = arith.addf %25, %27 : vector<8x32xf32>
    %c9_i32_16 = arith.constant 9 : i32
    %29 = arith.addi %1, %c9_i32_16 : i32
    %c0_17 = arith.constant 0 : index
    %30 = arith.index_cast %29 : i32 to index
    %c0_18 = arith.constant 0 : index
    %31 = vector.load %arg2[%c0_17, %30, %c0_18] : memref<1x26x32xf32, #tpu.memory_space<vmem>>, vector<1x8x32xf32>
    %32 = vector.shape_cast %31 : vector<1x8x32xf32> to vector<8x32xf32>
    %33 = arith.addf %28, %32 : vector<8x32xf32>
    %c0_19 = arith.constant 0 : index
    %c0_20 = arith.constant 0 : index
    %c0_21 = arith.constant 0 : index
    %34 = vector.load %arg7[%c0_19, %c0_20, %c0_21] : memref<1x8x32xf32, #tpu.memory_space<vmem>>, vector<1x8x32xf32>
    %35 = vector.shape_cast %34 : vector<1x8x32xf32> to vector<8x32xf32>
    %36 = vector.shape_cast %33 : vector<8x32xf32> to vector<1x8x32xf32>
    tpu.vector_store %arg7[%c0_19, %c0_20, %c0_21], %36 {strides = array<i32>} : memref<1x8x32xf32, #tpu.memory_space<vmem>>, vector<1x8x32xf32>,
    return
  }
  func.func @transform_0(%arg0: i32, %arg1: i32) -> (i32, i32, i32) {
    %c0_i32 = arith.constant 0 : i32
    %c0_i32_0 = arith.constant 0 : i32
    %c0_i32_1 = arith.constant 0 : i32
    return %arg0, %c0_i32, %c0_i32_0 : i32, i32, i32
  }
  func.func @transform_1(%arg0: i32, %arg1: i32) -> (i32, i32) {
    %c0_i32 = arith.constant 0 : i32
    %c0_i32_0 = arith.constant 0 : i32
    %c0_i32_1 = arith.constant 0 : i32
    return %c0_i32, %c0_i32_0 : i32, i32
  }
  func.func @transform_2(%arg0: i32, %arg1: i32) -> (i32, i32) {
    %c0_i32 = arith.constant 0 : i32
    %c0_i32_0 = arith.constant 0 : i32
    %c0_i32_1 = arith.constant 0 : i32
    return %c0_i32, %c0_i32_0 : i32, i32
  }
  func.func @transform_3(%arg0: i32, %arg1: i32) -> (i32, i32) {
    %c0_i32 = arith.constant 0 : i32
    %c0_i32_0 = arith.constant 0 : i32
    %c0_i32_1 = arith.constant 0 : i32
    return %c0_i32, %c0_i32_0 : i32, i32
  }
  func.func @transform_4(%arg0: i32, %arg1: i32) -> (i32, i32) {
    %c0_i32 = arith.constant 0 : i32
    %c0_i32_0 = arith.constant 0 : i32
    %c0_i32_1 = arith.constant 0 : i32
    return %c0_i32, %c0_i32_0 : i32, i32
  }
  func.func @transform_5(%arg0: i32, %arg1: i32) -> (i32, i32, i32) {
    %c0_i32 = arith.constant 0 : i32
    %c0_i32_0 = arith.constant 0 : i32
    return %arg0, %arg1, %c0_i32 : i32, i32, i32
  }
}

module attributes {stable_mosaic.version = 11 : i64} {
  func.func @_resblock_kernel(%arg0: i32, %arg1: i32, %arg2: memref<1x14x32xf32, #tpu.memory_space<vmem>>, %arg3: memref<96x32xf32, #tpu.memory_space<vmem>>, %arg4: memref<1x32xf32, #tpu.memory_space<vmem>>, %arg5: memref<32x32xf32, #tpu.memory_space<vmem>>, %arg6: memref<1x32xf32, #tpu.memory_space<vmem>>, %arg7: memref<1x8x32xf32, #tpu.memory_space<vmem>>) attributes {dimension_semantics = [#tpu.dimension_semantics<parallel>, #tpu.dimension_semantics<arbitrary>], iteration_bounds = array<i64: 2, 1>, scalar_prefetch = 0 : i64, scratch_operands = 0 : i64, tpu.core_type = #tpu.core_type<tc>, window_params = [{transform_indices = @transform_0, window_bounds = array<i64: 1, 14, 32>}, {pipeline_mode = #tpu.pipeline_mode<synchronous>, transform_indices = @transform_1, window_bounds = array<i64: 96, 32>}, {pipeline_mode = #tpu.pipeline_mode<synchronous>, transform_indices = @transform_2, window_bounds = array<i64: 1, 32>}, {pipeline_mode = #tpu.pipeline_mode<synchronous>, transform_indices = @transform_3, window_bounds = array<i64: 32, 32>}, {pipeline_mode = #tpu.pipeline_mode<synchronous>, transform_indices = @transform_4, window_bounds = array<i64: 1, 32>}, {transform_indices = @transform_5, window_bounds = array<i64: 1, 8, 32>}]} {
    %c8_i32 = arith.constant 8 : i32
    %0 = arith.muli %arg1, %c8_i32 : i32
    %1 = tpu.assume_multiple %0, 8 : i32
    %c0_i32 = arith.constant 0 : i32
    %2 = arith.addi %1, %c0_i32 : i32
    %c0 = arith.constant 0 : index
    %3 = arith.index_cast %2 : i32 to index
    %c0_0 = arith.constant 0 : index
    %4 = vector.load %arg2[%c0, %3, %c0_0] : memref<1x14x32xf32, #tpu.memory_space<vmem>>, vector<1x8x32xf32>
    %5 = vector.shape_cast %4 : vector<1x8x32xf32> to vector<8x32xf32>
    %c3_i32 = arith.constant 3 : i32
    %6 = arith.addi %1, %c3_i32 : i32
    %c0_1 = arith.constant 0 : index
    %7 = arith.index_cast %6 : i32 to index
    %c0_2 = arith.constant 0 : index
    %8 = vector.load %arg2[%c0_1, %7, %c0_2] : memref<1x14x32xf32, #tpu.memory_space<vmem>>, vector<1x8x32xf32>
    %9 = vector.shape_cast %8 : vector<1x8x32xf32> to vector<8x32xf32>
    %c6_i32 = arith.constant 6 : i32
    %10 = arith.addi %1, %c6_i32 : i32
    %c0_3 = arith.constant 0 : index
    %11 = arith.index_cast %10 : i32 to index
    %c0_4 = arith.constant 0 : index
    %12 = vector.load %arg2[%c0_3, %11, %c0_4] : memref<1x14x32xf32, #tpu.memory_space<vmem>>, vector<1x8x32xf32>
    %13 = vector.shape_cast %12 : vector<1x8x32xf32> to vector<8x32xf32>
    %14 = tpu.concatenate %5, %9, %13 in 1 : vector<8x32xf32>, vector<8x32xf32>, vector<8x32xf32> -> vector<8x96xf32>
    %cst = arith.constant 0.000000e+00 : f32
    %15 = vector.broadcast %cst : f32 to vector<8x96xf32>
    %16 = arith.maximumf %14, %15 : vector<8x96xf32>
    %c0_5 = arith.constant 0 : index
    %c0_6 = arith.constant 0 : index
    %17 = vector.load %arg3[%c0_5, %c0_6] : memref<96x32xf32, #tpu.memory_space<vmem>>, vector<96x32xf32>
    %cst_7 = arith.constant dense<0.000000e+00> : vector<8x32xf32>
    %18 = tpu.matmul %16, %17, %cst_7 {dimension_numbers = #tpu.dot_dimension_numbers<[1], [0], [0], [1], [0, 0, 1, 1], [], []>} : vector<8x96xf32>, vector<96x32xf32>, vector<8x32xf32> -> vector<8x32xf32>
    %c0_8 = arith.constant 0 : index
    %c0_9 = arith.constant 0 : index
    %19 = vector.load %arg4[%c0_8, %c0_9] : memref<1x32xf32, #tpu.memory_space<vmem>>, vector<1x32xf32>
    %20 = vector.broadcast %19 : vector<1x32xf32> to vector<8x32xf32>
    %21 = arith.addf %18, %20 : vector<8x32xf32>
    %cst_10 = arith.constant 0.000000e+00 : f32
    %22 = vector.broadcast %cst_10 : f32 to vector<8x32xf32>
    %23 = arith.maximumf %21, %22 : vector<8x32xf32>
    %c0_11 = arith.constant 0 : index
    %c0_12 = arith.constant 0 : index
    %24 = vector.load %arg5[%c0_11, %c0_12] : memref<32x32xf32, #tpu.memory_space<vmem>>, vector<32x32xf32>
    %cst_13 = arith.constant dense<0.000000e+00> : vector<8x32xf32>
    %25 = tpu.matmul %23, %24, %cst_13 {dimension_numbers = #tpu.dot_dimension_numbers<[1], [0], [0], [1], [0, 0, 1, 1], [], []>} : vector<8x32xf32>, vector<32x32xf32>, vector<8x32xf32> -> vector<8x32xf32>
    %c0_14 = arith.constant 0 : index
    %c0_15 = arith.constant 0 : index
    %26 = vector.load %arg6[%c0_14, %c0_15] : memref<1x32xf32, #tpu.memory_space<vmem>>, vector<1x32xf32>
    %27 = vector.broadcast %26 : vector<1x32xf32> to vector<8x32xf32>
    %28 = arith.addf %25, %27 : vector<8x32xf32>
    %c3_i32_16 = arith.constant 3 : i32
    %29 = arith.addi %1, %c3_i32_16 : i32
    %c0_17 = arith.constant 0 : index
    %30 = arith.index_cast %29 : i32 to index
    %c0_18 = arith.constant 0 : index
    %31 = vector.load %arg2[%c0_17, %30, %c0_18] : memref<1x14x32xf32, #tpu.memory_space<vmem>>, vector<1x8x32xf32>
    %32 = vector.shape_cast %31 : vector<1x8x32xf32> to vector<8x32xf32>
    %33 = arith.addf %28, %32 : vector<8x32xf32>
    %c0_19 = arith.constant 0 : index
    %c0_20 = arith.constant 0 : index
    %c0_21 = arith.constant 0 : index
    %34 = vector.load %arg7[%c0_19, %c0_20, %c0_21] : memref<1x8x32xf32, #tpu.memory_space<vmem>>, vector<1x8x32xf32>
    %35 = vector.shape_cast %34 : vector<1x8x32xf32> to vector<8x32xf32>
    %36 = vector.shape_cast %33 : vector<8x32xf32> to vector<1x8x32xf32>
    tpu.vector_store %arg7[%c0_19, %c0_20, %c0_21], %36 {strides = array<i32>} : memref<1x8x32xf32, #tpu.memory_space<vmem>>, vector<1x8x32xf32>,
    return
  }
  func.func @transform_0(%arg0: i32, %arg1: i32) -> (i32, i32, i32) {
    %c0_i32 = arith.constant 0 : i32
    %c0_i32_0 = arith.constant 0 : i32
    %c0_i32_1 = arith.constant 0 : i32
    return %arg0, %c0_i32, %c0_i32_0 : i32, i32, i32
  }
  func.func @transform_1(%arg0: i32, %arg1: i32) -> (i32, i32) {
    %c0_i32 = arith.constant 0 : i32
    %c0_i32_0 = arith.constant 0 : i32
    %c0_i32_1 = arith.constant 0 : i32
    return %c0_i32, %c0_i32_0 : i32, i32
  }
  func.func @transform_2(%arg0: i32, %arg1: i32) -> (i32, i32) {
    %c0_i32 = arith.constant 0 : i32
    %c0_i32_0 = arith.constant 0 : i32
    %c0_i32_1 = arith.constant 0 : i32
    return %c0_i32, %c0_i32_0 : i32, i32
  }
  func.func @transform_3(%arg0: i32, %arg1: i32) -> (i32, i32) {
    %c0_i32 = arith.constant 0 : i32
    %c0_i32_0 = arith.constant 0 : i32
    %c0_i32_1 = arith.constant 0 : i32
    return %c0_i32, %c0_i32_0 : i32, i32
  }
  func.func @transform_4(%arg0: i32, %arg1: i32) -> (i32, i32) {
    %c0_i32 = arith.constant 0 : i32
    %c0_i32_0 = arith.constant 0 : i32
    %c0_i32_1 = arith.constant 0 : i32
    return %c0_i32, %c0_i32_0 : i32, i32
  }
  func.func @transform_5(%arg0: i32, %arg1: i32) -> (i32, i32, i32) {
    %c0_i32 = arith.constant 0 : i32
    %c0_i32_0 = arith.constant 0 : i32
    return %arg0, %arg1, %c0_i32 : i32, i32, i32
  }
}

module attributes {stable_mosaic.version = 11 : i64} {
  func.func @_resblock_kernel(%arg0: i32, %arg1: i32, %arg2: memref<1x10x32xf32, #tpu.memory_space<vmem>>, %arg3: memref<96x32xf32, #tpu.memory_space<vmem>>, %arg4: memref<1x32xf32, #tpu.memory_space<vmem>>, %arg5: memref<32x32xf32, #tpu.memory_space<vmem>>, %arg6: memref<1x32xf32, #tpu.memory_space<vmem>>, %arg7: memref<1x8x32xf32, #tpu.memory_space<vmem>>) attributes {dimension_semantics = [#tpu.dimension_semantics<parallel>, #tpu.dimension_semantics<arbitrary>], iteration_bounds = array<i64: 2, 1>, scalar_prefetch = 0 : i64, scratch_operands = 0 : i64, tpu.core_type = #tpu.core_type<tc>, window_params = [{transform_indices = @transform_0, window_bounds = array<i64: 1, 10, 32>}, {pipeline_mode = #tpu.pipeline_mode<synchronous>, transform_indices = @transform_1, window_bounds = array<i64: 96, 32>}, {pipeline_mode = #tpu.pipeline_mode<synchronous>, transform_indices = @transform_2, window_bounds = array<i64: 1, 32>}, {pipeline_mode = #tpu.pipeline_mode<synchronous>, transform_indices = @transform_3, window_bounds = array<i64: 32, 32>}, {pipeline_mode = #tpu.pipeline_mode<synchronous>, transform_indices = @transform_4, window_bounds = array<i64: 1, 32>}, {transform_indices = @transform_5, window_bounds = array<i64: 1, 8, 32>}]} {
    %c8_i32 = arith.constant 8 : i32
    %0 = arith.muli %arg1, %c8_i32 : i32
    %1 = tpu.assume_multiple %0, 8 : i32
    %c0_i32 = arith.constant 0 : i32
    %2 = arith.addi %1, %c0_i32 : i32
    %c0 = arith.constant 0 : index
    %3 = arith.index_cast %2 : i32 to index
    %c0_0 = arith.constant 0 : index
    %4 = vector.load %arg2[%c0, %3, %c0_0] : memref<1x10x32xf32, #tpu.memory_space<vmem>>, vector<1x8x32xf32>
    %5 = vector.shape_cast %4 : vector<1x8x32xf32> to vector<8x32xf32>
    %c1_i32 = arith.constant 1 : i32
    %6 = arith.addi %1, %c1_i32 : i32
    %c0_1 = arith.constant 0 : index
    %7 = arith.index_cast %6 : i32 to index
    %c0_2 = arith.constant 0 : index
    %8 = vector.load %arg2[%c0_1, %7, %c0_2] : memref<1x10x32xf32, #tpu.memory_space<vmem>>, vector<1x8x32xf32>
    %9 = vector.shape_cast %8 : vector<1x8x32xf32> to vector<8x32xf32>
    %c2_i32 = arith.constant 2 : i32
    %10 = arith.addi %1, %c2_i32 : i32
    %c0_3 = arith.constant 0 : index
    %11 = arith.index_cast %10 : i32 to index
    %c0_4 = arith.constant 0 : index
    %12 = vector.load %arg2[%c0_3, %11, %c0_4] : memref<1x10x32xf32, #tpu.memory_space<vmem>>, vector<1x8x32xf32>
    %13 = vector.shape_cast %12 : vector<1x8x32xf32> to vector<8x32xf32>
    %14 = tpu.concatenate %5, %9, %13 in 1 : vector<8x32xf32>, vector<8x32xf32>, vector<8x32xf32> -> vector<8x96xf32>
    %cst = arith.constant 0.000000e+00 : f32
    %15 = vector.broadcast %cst : f32 to vector<8x96xf32>
    %16 = arith.maximumf %14, %15 : vector<8x96xf32>
    %c0_5 = arith.constant 0 : index
    %c0_6 = arith.constant 0 : index
    %17 = vector.load %arg3[%c0_5, %c0_6] : memref<96x32xf32, #tpu.memory_space<vmem>>, vector<96x32xf32>
    %cst_7 = arith.constant dense<0.000000e+00> : vector<8x32xf32>
    %18 = tpu.matmul %16, %17, %cst_7 {dimension_numbers = #tpu.dot_dimension_numbers<[1], [0], [0], [1], [0, 0, 1, 1], [], []>} : vector<8x96xf32>, vector<96x32xf32>, vector<8x32xf32> -> vector<8x32xf32>
    %c0_8 = arith.constant 0 : index
    %c0_9 = arith.constant 0 : index
    %19 = vector.load %arg4[%c0_8, %c0_9] : memref<1x32xf32, #tpu.memory_space<vmem>>, vector<1x32xf32>
    %20 = vector.broadcast %19 : vector<1x32xf32> to vector<8x32xf32>
    %21 = arith.addf %18, %20 : vector<8x32xf32>
    %cst_10 = arith.constant 0.000000e+00 : f32
    %22 = vector.broadcast %cst_10 : f32 to vector<8x32xf32>
    %23 = arith.maximumf %21, %22 : vector<8x32xf32>
    %c0_11 = arith.constant 0 : index
    %c0_12 = arith.constant 0 : index
    %24 = vector.load %arg5[%c0_11, %c0_12] : memref<32x32xf32, #tpu.memory_space<vmem>>, vector<32x32xf32>
    %cst_13 = arith.constant dense<0.000000e+00> : vector<8x32xf32>
    %25 = tpu.matmul %23, %24, %cst_13 {dimension_numbers = #tpu.dot_dimension_numbers<[1], [0], [0], [1], [0, 0, 1, 1], [], []>} : vector<8x32xf32>, vector<32x32xf32>, vector<8x32xf32> -> vector<8x32xf32>
    %c0_14 = arith.constant 0 : index
    %c0_15 = arith.constant 0 : index
    %26 = vector.load %arg6[%c0_14, %c0_15] : memref<1x32xf32, #tpu.memory_space<vmem>>, vector<1x32xf32>
    %27 = vector.broadcast %26 : vector<1x32xf32> to vector<8x32xf32>
    %28 = arith.addf %25, %27 : vector<8x32xf32>
    %c1_i32_16 = arith.constant 1 : i32
    %29 = arith.addi %1, %c1_i32_16 : i32
    %c0_17 = arith.constant 0 : index
    %30 = arith.index_cast %29 : i32 to index
    %c0_18 = arith.constant 0 : index
    %31 = vector.load %arg2[%c0_17, %30, %c0_18] : memref<1x10x32xf32, #tpu.memory_space<vmem>>, vector<1x8x32xf32>
    %32 = vector.shape_cast %31 : vector<1x8x32xf32> to vector<8x32xf32>
    %33 = arith.addf %28, %32 : vector<8x32xf32>
    %c0_19 = arith.constant 0 : index
    %c0_20 = arith.constant 0 : index
    %c0_21 = arith.constant 0 : index
    %34 = vector.load %arg7[%c0_19, %c0_20, %c0_21] : memref<1x8x32xf32, #tpu.memory_space<vmem>>, vector<1x8x32xf32>
    %35 = vector.shape_cast %34 : vector<1x8x32xf32> to vector<8x32xf32>
    %36 = vector.shape_cast %33 : vector<8x32xf32> to vector<1x8x32xf32>
    tpu.vector_store %arg7[%c0_19, %c0_20, %c0_21], %36 {strides = array<i32>} : memref<1x8x32xf32, #tpu.memory_space<vmem>>, vector<1x8x32xf32>,
    return
  }
  func.func @transform_0(%arg0: i32, %arg1: i32) -> (i32, i32, i32) {
    %c0_i32 = arith.constant 0 : i32
    %c0_i32_0 = arith.constant 0 : i32
    %c0_i32_1 = arith.constant 0 : i32
    return %arg0, %c0_i32, %c0_i32_0 : i32, i32, i32
  }
  func.func @transform_1(%arg0: i32, %arg1: i32) -> (i32, i32) {
    %c0_i32 = arith.constant 0 : i32
    %c0_i32_0 = arith.constant 0 : i32
    %c0_i32_1 = arith.constant 0 : i32
    return %c0_i32, %c0_i32_0 : i32, i32
  }
  func.func @transform_2(%arg0: i32, %arg1: i32) -> (i32, i32) {
    %c0_i32 = arith.constant 0 : i32
    %c0_i32_0 = arith.constant 0 : i32
    %c0_i32_1 = arith.constant 0 : i32
    return %c0_i32, %c0_i32_0 : i32, i32
  }
  func.func @transform_3(%arg0: i32, %arg1: i32) -> (i32, i32) {
    %c0_i32 = arith.constant 0 : i32
    %c0_i32_0 = arith.constant 0 : i32
    %c0_i32_1 = arith.constant 0 : i32
    return %c0_i32, %c0_i32_0 : i32, i32
  }
  func.func @transform_4(%arg0: i32, %arg1: i32) -> (i32, i32) {
    %c0_i32 = arith.constant 0 : i32
    %c0_i32_0 = arith.constant 0 : i32
    %c0_i32_1 = arith.constant 0 : i32
    return %c0_i32, %c0_i32_0 : i32, i32
  }
  func.func @transform_5(%arg0: i32, %arg1: i32) -> (i32, i32, i32) {
    %c0_i32 = arith.constant 0 : i32
    %c0_i32_0 = arith.constant 0 : i32
    return %arg0, %arg1, %c0_i32 : i32, i32, i32
  }
}

module attributes {stable_mosaic.version = 11 : i64} {
  func.func @_conv1d_kernel(%arg0: i32, %arg1: i32, %arg2: memref<1x10x32xf32, #tpu.memory_space<vmem>>, %arg3: memref<96x64xf32, #tpu.memory_space<vmem>>, %arg4: memref<1x64xf32, #tpu.memory_space<vmem>>, %arg5: memref<1x8x64xf32, #tpu.memory_space<vmem>>) attributes {dimension_semantics = [#tpu.dimension_semantics<parallel>, #tpu.dimension_semantics<arbitrary>], iteration_bounds = array<i64: 2, 1>, scalar_prefetch = 0 : i64, scratch_operands = 0 : i64, tpu.core_type = #tpu.core_type<tc>, window_params = [{transform_indices = @transform_0, window_bounds = array<i64: 1, 10, 32>}, {pipeline_mode = #tpu.pipeline_mode<synchronous>, transform_indices = @transform_1, window_bounds = array<i64: 96, 64>}, {pipeline_mode = #tpu.pipeline_mode<synchronous>, transform_indices = @transform_2, window_bounds = array<i64: 1, 64>}, {transform_indices = @transform_3, window_bounds = array<i64: 1, 8, 64>}]} {
    %c8_i32 = arith.constant 8 : i32
    %0 = arith.muli %arg1, %c8_i32 : i32
    %1 = tpu.assume_multiple %0, 8 : i32
    %c0_i32 = arith.constant 0 : i32
    %2 = arith.addi %1, %c0_i32 : i32
    %c0 = arith.constant 0 : index
    %3 = arith.index_cast %2 : i32 to index
    %c0_0 = arith.constant 0 : index
    %4 = vector.load %arg2[%c0, %3, %c0_0] : memref<1x10x32xf32, #tpu.memory_space<vmem>>, vector<1x8x32xf32>
    %5 = vector.shape_cast %4 : vector<1x8x32xf32> to vector<8x32xf32>
    %c1_i32 = arith.constant 1 : i32
    %6 = arith.addi %1, %c1_i32 : i32
    %c0_1 = arith.constant 0 : index
    %7 = arith.index_cast %6 : i32 to index
    %c0_2 = arith.constant 0 : index
    %8 = vector.load %arg2[%c0_1, %7, %c0_2] : memref<1x10x32xf32, #tpu.memory_space<vmem>>, vector<1x8x32xf32>
    %9 = vector.shape_cast %8 : vector<1x8x32xf32> to vector<8x32xf32>
    %c2_i32 = arith.constant 2 : i32
    %10 = arith.addi %1, %c2_i32 : i32
    %c0_3 = arith.constant 0 : index
    %11 = arith.index_cast %10 : i32 to index
    %c0_4 = arith.constant 0 : index
    %12 = vector.load %arg2[%c0_3, %11, %c0_4] : memref<1x10x32xf32, #tpu.memory_space<vmem>>, vector<1x8x32xf32>
    %13 = vector.shape_cast %12 : vector<1x8x32xf32> to vector<8x32xf32>
    %14 = tpu.concatenate %5, %9, %13 in 1 : vector<8x32xf32>, vector<8x32xf32>, vector<8x32xf32> -> vector<8x96xf32>
    %c0_5 = arith.constant 0 : index
    %c0_6 = arith.constant 0 : index
    %15 = vector.load %arg3[%c0_5, %c0_6] : memref<96x64xf32, #tpu.memory_space<vmem>>, vector<96x64xf32>
    %cst = arith.constant dense<0.000000e+00> : vector<8x64xf32>
    %16 = tpu.matmul %14, %15, %cst {dimension_numbers = #tpu.dot_dimension_numbers<[1], [0], [0], [1], [0, 0, 1, 1], [], []>} : vector<8x96xf32>, vector<96x64xf32>, vector<8x64xf32> -> vector<8x64xf32>
    %c0_7 = arith.constant 0 : index
    %c0_8 = arith.constant 0 : index
    %17 = vector.load %arg4[%c0_7, %c0_8] : memref<1x64xf32, #tpu.memory_space<vmem>>, vector<1x64xf32>
    %18 = vector.broadcast %17 : vector<1x64xf32> to vector<8x64xf32>
    %19 = arith.addf %16, %18 : vector<8x64xf32>
    %c0_9 = arith.constant 0 : index
    %c0_10 = arith.constant 0 : index
    %c0_11 = arith.constant 0 : index
    %20 = vector.load %arg5[%c0_9, %c0_10, %c0_11] : memref<1x8x64xf32, #tpu.memory_space<vmem>>, vector<1x8x64xf32>
    %21 = vector.shape_cast %20 : vector<1x8x64xf32> to vector<8x64xf32>
    %22 = vector.shape_cast %19 : vector<8x64xf32> to vector<1x8x64xf32>
    tpu.vector_store %arg5[%c0_9, %c0_10, %c0_11], %22 {strides = array<i32>} : memref<1x8x64xf32, #tpu.memory_space<vmem>>, vector<1x8x64xf32>,
    return
  }
  func.func @transform_0(%arg0: i32, %arg1: i32) -> (i32, i32, i32) {
    %c0_i32 = arith.constant 0 : i32
    %c0_i32_0 = arith.constant 0 : i32
    %c0_i32_1 = arith.constant 0 : i32
    return %arg0, %c0_i32, %c0_i32_0 : i32, i32, i32
  }
  func.func @transform_1(%arg0: i32, %arg1: i32) -> (i32, i32) {
    %c0_i32 = arith.constant 0 : i32
    %c0_i32_0 = arith.constant 0 : i32
    %c0_i32_1 = arith.constant 0 : i32
    return %c0_i32, %c0_i32_0 : i32, i32
  }
  func.func @transform_2(%arg0: i32, %arg1: i32) -> (i32, i32) {
    %c0_i32 = arith.constant 0 : i32
    %c0_i32_0 = arith.constant 0 : i32
    %c0_i32_1 = arith.constant 0 : i32
    return %c0_i32, %c0_i32_0 : i32, i32
  }
  func.func @transform_3(%arg0: i32, %arg1: i32) -> (i32, i32, i32) {
    %c0_i32 = arith.constant 0 : i32
    %c0_i32_0 = arith.constant 0 : i32
    return %arg0, %arg1, %c0_i32 : i32, i32, i32
  }
}

module attributes {stable_mosaic.version = 11 : i64} {
  func.func @_resblock_kernel(%arg0: i32, %arg1: i32, %arg2: memref<1x22x32xf32, #tpu.memory_space<vmem>>, %arg3: memref<96x32xf32, #tpu.memory_space<vmem>>, %arg4: memref<1x32xf32, #tpu.memory_space<vmem>>, %arg5: memref<32x32xf32, #tpu.memory_space<vmem>>, %arg6: memref<1x32xf32, #tpu.memory_space<vmem>>, %arg7: memref<1x16x32xf32, #tpu.memory_space<vmem>>) attributes {dimension_semantics = [#tpu.dimension_semantics<parallel>, #tpu.dimension_semantics<arbitrary>], iteration_bounds = array<i64: 2, 1>, scalar_prefetch = 0 : i64, scratch_operands = 0 : i64, tpu.core_type = #tpu.core_type<tc>, window_params = [{transform_indices = @transform_0, window_bounds = array<i64: 1, 22, 32>}, {pipeline_mode = #tpu.pipeline_mode<synchronous>, transform_indices = @transform_1, window_bounds = array<i64: 96, 32>}, {pipeline_mode = #tpu.pipeline_mode<synchronous>, transform_indices = @transform_2, window_bounds = array<i64: 1, 32>}, {pipeline_mode = #tpu.pipeline_mode<synchronous>, transform_indices = @transform_3, window_bounds = array<i64: 32, 32>}, {pipeline_mode = #tpu.pipeline_mode<synchronous>, transform_indices = @transform_4, window_bounds = array<i64: 1, 32>}, {transform_indices = @transform_5, window_bounds = array<i64: 1, 16, 32>}]} {
    %c16_i32 = arith.constant 16 : i32
    %0 = arith.muli %arg1, %c16_i32 : i32
    %1 = tpu.assume_multiple %0, 16 : i32
    %c0_i32 = arith.constant 0 : i32
    %2 = arith.addi %1, %c0_i32 : i32
    %c0 = arith.constant 0 : index
    %3 = arith.index_cast %2 : i32 to index
    %c0_0 = arith.constant 0 : index
    %4 = vector.load %arg2[%c0, %3, %c0_0] : memref<1x22x32xf32, #tpu.memory_space<vmem>>, vector<1x16x32xf32>
    %5 = vector.shape_cast %4 : vector<1x16x32xf32> to vector<16x32xf32>
    %c3_i32 = arith.constant 3 : i32
    %6 = arith.addi %1, %c3_i32 : i32
    %c0_1 = arith.constant 0 : index
    %7 = arith.index_cast %6 : i32 to index
    %c0_2 = arith.constant 0 : index
    %8 = vector.load %arg2[%c0_1, %7, %c0_2] : memref<1x22x32xf32, #tpu.memory_space<vmem>>, vector<1x16x32xf32>
    %9 = vector.shape_cast %8 : vector<1x16x32xf32> to vector<16x32xf32>
    %c6_i32 = arith.constant 6 : i32
    %10 = arith.addi %1, %c6_i32 : i32
    %c0_3 = arith.constant 0 : index
    %11 = arith.index_cast %10 : i32 to index
    %c0_4 = arith.constant 0 : index
    %12 = vector.load %arg2[%c0_3, %11, %c0_4] : memref<1x22x32xf32, #tpu.memory_space<vmem>>, vector<1x16x32xf32>
    %13 = vector.shape_cast %12 : vector<1x16x32xf32> to vector<16x32xf32>
    %14 = tpu.concatenate %5, %9, %13 in 1 : vector<16x32xf32>, vector<16x32xf32>, vector<16x32xf32> -> vector<16x96xf32>
    %cst = arith.constant 0.000000e+00 : f32
    %15 = vector.broadcast %cst : f32 to vector<16x96xf32>
    %16 = arith.maximumf %14, %15 : vector<16x96xf32>
    %c0_5 = arith.constant 0 : index
    %c0_6 = arith.constant 0 : index
    %17 = vector.load %arg3[%c0_5, %c0_6] : memref<96x32xf32, #tpu.memory_space<vmem>>, vector<96x32xf32>
    %cst_7 = arith.constant dense<0.000000e+00> : vector<16x32xf32>
    %18 = tpu.matmul %16, %17, %cst_7 {dimension_numbers = #tpu.dot_dimension_numbers<[1], [0], [0], [1], [0, 0, 1, 1], [], []>} : vector<16x96xf32>, vector<96x32xf32>, vector<16x32xf32> -> vector<16x32xf32>
    %c0_8 = arith.constant 0 : index
    %c0_9 = arith.constant 0 : index
    %19 = vector.load %arg4[%c0_8, %c0_9] : memref<1x32xf32, #tpu.memory_space<vmem>>, vector<1x32xf32>
    %20 = vector.broadcast %19 : vector<1x32xf32> to vector<16x32xf32>
    %21 = arith.addf %18, %20 : vector<16x32xf32>
    %cst_10 = arith.constant 0.000000e+00 : f32
    %22 = vector.broadcast %cst_10 : f32 to vector<16x32xf32>
    %23 = arith.maximumf %21, %22 : vector<16x32xf32>
    %c0_11 = arith.constant 0 : index
    %c0_12 = arith.constant 0 : index
    %24 = vector.load %arg5[%c0_11, %c0_12] : memref<32x32xf32, #tpu.memory_space<vmem>>, vector<32x32xf32>
    %cst_13 = arith.constant dense<0.000000e+00> : vector<16x32xf32>
    %25 = tpu.matmul %23, %24, %cst_13 {dimension_numbers = #tpu.dot_dimension_numbers<[1], [0], [0], [1], [0, 0, 1, 1], [], []>} : vector<16x32xf32>, vector<32x32xf32>, vector<16x32xf32> -> vector<16x32xf32>
    %c0_14 = arith.constant 0 : index
    %c0_15 = arith.constant 0 : index
    %26 = vector.load %arg6[%c0_14, %c0_15] : memref<1x32xf32, #tpu.memory_space<vmem>>, vector<1x32xf32>
    %27 = vector.broadcast %26 : vector<1x32xf32> to vector<16x32xf32>
    %28 = arith.addf %25, %27 : vector<16x32xf32>
    %c3_i32_16 = arith.constant 3 : i32
    %29 = arith.addi %1, %c3_i32_16 : i32
    %c0_17 = arith.constant 0 : index
    %30 = arith.index_cast %29 : i32 to index
    %c0_18 = arith.constant 0 : index
    %31 = vector.load %arg2[%c0_17, %30, %c0_18] : memref<1x22x32xf32, #tpu.memory_space<vmem>>, vector<1x16x32xf32>
    %32 = vector.shape_cast %31 : vector<1x16x32xf32> to vector<16x32xf32>
    %33 = arith.addf %28, %32 : vector<16x32xf32>
    %c0_19 = arith.constant 0 : index
    %c0_20 = arith.constant 0 : index
    %c0_21 = arith.constant 0 : index
    %34 = vector.load %arg7[%c0_19, %c0_20, %c0_21] : memref<1x16x32xf32, #tpu.memory_space<vmem>>, vector<1x16x32xf32>
    %35 = vector.shape_cast %34 : vector<1x16x32xf32> to vector<16x32xf32>
    %36 = vector.shape_cast %33 : vector<16x32xf32> to vector<1x16x32xf32>
    tpu.vector_store %arg7[%c0_19, %c0_20, %c0_21], %36 {strides = array<i32>} : memref<1x16x32xf32, #tpu.memory_space<vmem>>, vector<1x16x32xf32>,
    return
  }
  func.func @transform_0(%arg0: i32, %arg1: i32) -> (i32, i32, i32) {
    %c0_i32 = arith.constant 0 : i32
    %c0_i32_0 = arith.constant 0 : i32
    %c0_i32_1 = arith.constant 0 : i32
    return %arg0, %c0_i32, %c0_i32_0 : i32, i32, i32
  }
  func.func @transform_1(%arg0: i32, %arg1: i32) -> (i32, i32) {
    %c0_i32 = arith.constant 0 : i32
    %c0_i32_0 = arith.constant 0 : i32
    %c0_i32_1 = arith.constant 0 : i32
    return %c0_i32, %c0_i32_0 : i32, i32
  }
  func.func @transform_2(%arg0: i32, %arg1: i32) -> (i32, i32) {
    %c0_i32 = arith.constant 0 : i32
    %c0_i32_0 = arith.constant 0 : i32
    %c0_i32_1 = arith.constant 0 : i32
    return %c0_i32, %c0_i32_0 : i32, i32
  }
  func.func @transform_3(%arg0: i32, %arg1: i32) -> (i32, i32) {
    %c0_i32 = arith.constant 0 : i32
    %c0_i32_0 = arith.constant 0 : i32
    %c0_i32_1 = arith.constant 0 : i32
    return %c0_i32, %c0_i32_0 : i32, i32
  }
  func.func @transform_4(%arg0: i32, %arg1: i32) -> (i32, i32) {
    %c0_i32 = arith.constant 0 : i32
    %c0_i32_0 = arith.constant 0 : i32
    %c0_i32_1 = arith.constant 0 : i32
    return %c0_i32, %c0_i32_0 : i32, i32
  }
  func.func @transform_5(%arg0: i32, %arg1: i32) -> (i32, i32, i32) {
    %c0_i32 = arith.constant 0 : i32
    %c0_i32_0 = arith.constant 0 : i32
    return %arg0, %arg1, %c0_i32 : i32, i32, i32
  }
}

module attributes {stable_mosaic.version = 11 : i64} {
  func.func @_resblock_kernel(%arg0: i32, %arg1: i32, %arg2: memref<1x18x32xf32, #tpu.memory_space<vmem>>, %arg3: memref<96x32xf32, #tpu.memory_space<vmem>>, %arg4: memref<1x32xf32, #tpu.memory_space<vmem>>, %arg5: memref<32x32xf32, #tpu.memory_space<vmem>>, %arg6: memref<1x32xf32, #tpu.memory_space<vmem>>, %arg7: memref<1x16x32xf32, #tpu.memory_space<vmem>>) attributes {dimension_semantics = [#tpu.dimension_semantics<parallel>, #tpu.dimension_semantics<arbitrary>], iteration_bounds = array<i64: 2, 1>, scalar_prefetch = 0 : i64, scratch_operands = 0 : i64, tpu.core_type = #tpu.core_type<tc>, window_params = [{transform_indices = @transform_0, window_bounds = array<i64: 1, 18, 32>}, {pipeline_mode = #tpu.pipeline_mode<synchronous>, transform_indices = @transform_1, window_bounds = array<i64: 96, 32>}, {pipeline_mode = #tpu.pipeline_mode<synchronous>, transform_indices = @transform_2, window_bounds = array<i64: 1, 32>}, {pipeline_mode = #tpu.pipeline_mode<synchronous>, transform_indices = @transform_3, window_bounds = array<i64: 32, 32>}, {pipeline_mode = #tpu.pipeline_mode<synchronous>, transform_indices = @transform_4, window_bounds = array<i64: 1, 32>}, {transform_indices = @transform_5, window_bounds = array<i64: 1, 16, 32>}]} {
    %c16_i32 = arith.constant 16 : i32
    %0 = arith.muli %arg1, %c16_i32 : i32
    %1 = tpu.assume_multiple %0, 16 : i32
    %c0_i32 = arith.constant 0 : i32
    %2 = arith.addi %1, %c0_i32 : i32
    %c0 = arith.constant 0 : index
    %3 = arith.index_cast %2 : i32 to index
    %c0_0 = arith.constant 0 : index
    %4 = vector.load %arg2[%c0, %3, %c0_0] : memref<1x18x32xf32, #tpu.memory_space<vmem>>, vector<1x16x32xf32>
    %5 = vector.shape_cast %4 : vector<1x16x32xf32> to vector<16x32xf32>
    %c1_i32 = arith.constant 1 : i32
    %6 = arith.addi %1, %c1_i32 : i32
    %c0_1 = arith.constant 0 : index
    %7 = arith.index_cast %6 : i32 to index
    %c0_2 = arith.constant 0 : index
    %8 = vector.load %arg2[%c0_1, %7, %c0_2] : memref<1x18x32xf32, #tpu.memory_space<vmem>>, vector<1x16x32xf32>
    %9 = vector.shape_cast %8 : vector<1x16x32xf32> to vector<16x32xf32>
    %c2_i32 = arith.constant 2 : i32
    %10 = arith.addi %1, %c2_i32 : i32
    %c0_3 = arith.constant 0 : index
    %11 = arith.index_cast %10 : i32 to index
    %c0_4 = arith.constant 0 : index
    %12 = vector.load %arg2[%c0_3, %11, %c0_4] : memref<1x18x32xf32, #tpu.memory_space<vmem>>, vector<1x16x32xf32>
    %13 = vector.shape_cast %12 : vector<1x16x32xf32> to vector<16x32xf32>
    %14 = tpu.concatenate %5, %9, %13 in 1 : vector<16x32xf32>, vector<16x32xf32>, vector<16x32xf32> -> vector<16x96xf32>
    %cst = arith.constant 0.000000e+00 : f32
    %15 = vector.broadcast %cst : f32 to vector<16x96xf32>
    %16 = arith.maximumf %14, %15 : vector<16x96xf32>
    %c0_5 = arith.constant 0 : index
    %c0_6 = arith.constant 0 : index
    %17 = vector.load %arg3[%c0_5, %c0_6] : memref<96x32xf32, #tpu.memory_space<vmem>>, vector<96x32xf32>
    %cst_7 = arith.constant dense<0.000000e+00> : vector<16x32xf32>
    %18 = tpu.matmul %16, %17, %cst_7 {dimension_numbers = #tpu.dot_dimension_numbers<[1], [0], [0], [1], [0, 0, 1, 1], [], []>} : vector<16x96xf32>, vector<96x32xf32>, vector<16x32xf32> -> vector<16x32xf32>
    %c0_8 = arith.constant 0 : index
    %c0_9 = arith.constant 0 : index
    %19 = vector.load %arg4[%c0_8, %c0_9] : memref<1x32xf32, #tpu.memory_space<vmem>>, vector<1x32xf32>
    %20 = vector.broadcast %19 : vector<1x32xf32> to vector<16x32xf32>
    %21 = arith.addf %18, %20 : vector<16x32xf32>
    %cst_10 = arith.constant 0.000000e+00 : f32
    %22 = vector.broadcast %cst_10 : f32 to vector<16x32xf32>
    %23 = arith.maximumf %21, %22 : vector<16x32xf32>
    %c0_11 = arith.constant 0 : index
    %c0_12 = arith.constant 0 : index
    %24 = vector.load %arg5[%c0_11, %c0_12] : memref<32x32xf32, #tpu.memory_space<vmem>>, vector<32x32xf32>
    %cst_13 = arith.constant dense<0.000000e+00> : vector<16x32xf32>
    %25 = tpu.matmul %23, %24, %cst_13 {dimension_numbers = #tpu.dot_dimension_numbers<[1], [0], [0], [1], [0, 0, 1, 1], [], []>} : vector<16x32xf32>, vector<32x32xf32>, vector<16x32xf32> -> vector<16x32xf32>
    %c0_14 = arith.constant 0 : index
    %c0_15 = arith.constant 0 : index
    %26 = vector.load %arg6[%c0_14, %c0_15] : memref<1x32xf32, #tpu.memory_space<vmem>>, vector<1x32xf32>
    %27 = vector.broadcast %26 : vector<1x32xf32> to vector<16x32xf32>
    %28 = arith.addf %25, %27 : vector<16x32xf32>
    %c1_i32_16 = arith.constant 1 : i32
    %29 = arith.addi %1, %c1_i32_16 : i32
    %c0_17 = arith.constant 0 : index
    %30 = arith.index_cast %29 : i32 to index
    %c0_18 = arith.constant 0 : index
    %31 = vector.load %arg2[%c0_17, %30, %c0_18] : memref<1x18x32xf32, #tpu.memory_space<vmem>>, vector<1x16x32xf32>
    %32 = vector.shape_cast %31 : vector<1x16x32xf32> to vector<16x32xf32>
    %33 = arith.addf %28, %32 : vector<16x32xf32>
    %c0_19 = arith.constant 0 : index
    %c0_20 = arith.constant 0 : index
    %c0_21 = arith.constant 0 : index
    %34 = vector.load %arg7[%c0_19, %c0_20, %c0_21] : memref<1x16x32xf32, #tpu.memory_space<vmem>>, vector<1x16x32xf32>
    %35 = vector.shape_cast %34 : vector<1x16x32xf32> to vector<16x32xf32>
    %36 = vector.shape_cast %33 : vector<16x32xf32> to vector<1x16x32xf32>
    tpu.vector_store %arg7[%c0_19, %c0_20, %c0_21], %36 {strides = array<i32>} : memref<1x16x32xf32, #tpu.memory_space<vmem>>, vector<1x16x32xf32>,
    return
  }
  func.func @transform_0(%arg0: i32, %arg1: i32) -> (i32, i32, i32) {
    %c0_i32 = arith.constant 0 : i32
    %c0_i32_0 = arith.constant 0 : i32
    %c0_i32_1 = arith.constant 0 : i32
    return %arg0, %c0_i32, %c0_i32_0 : i32, i32, i32
  }
  func.func @transform_1(%arg0: i32, %arg1: i32) -> (i32, i32) {
    %c0_i32 = arith.constant 0 : i32
    %c0_i32_0 = arith.constant 0 : i32
    %c0_i32_1 = arith.constant 0 : i32
    return %c0_i32, %c0_i32_0 : i32, i32
  }
  func.func @transform_2(%arg0: i32, %arg1: i32) -> (i32, i32) {
    %c0_i32 = arith.constant 0 : i32
    %c0_i32_0 = arith.constant 0 : i32
    %c0_i32_1 = arith.constant 0 : i32
    return %c0_i32, %c0_i32_0 : i32, i32
  }
  func.func @transform_3(%arg0: i32, %arg1: i32) -> (i32, i32) {
    %c0_i32 = arith.constant 0 : i32
    %c0_i32_0 = arith.constant 0 : i32
    %c0_i32_1 = arith.constant 0 : i32
    return %c0_i32, %c0_i32_0 : i32, i32
  }
  func.func @transform_4(%arg0: i32, %arg1: i32) -> (i32, i32) {
    %c0_i32 = arith.constant 0 : i32
    %c0_i32_0 = arith.constant 0 : i32
    %c0_i32_1 = arith.constant 0 : i32
    return %c0_i32, %c0_i32_0 : i32, i32
  }
  func.func @transform_5(%arg0: i32, %arg1: i32) -> (i32, i32, i32) {
    %c0_i32 = arith.constant 0 : i32
    %c0_i32_0 = arith.constant 0 : i32
    return %arg0, %arg1, %c0_i32 : i32, i32, i32
  }
}

module attributes {stable_mosaic.version = 11 : i64} {
  func.func @_resblock_kernel(%arg0: i32, %arg1: i32, %arg2: memref<1x34x32xf32, #tpu.memory_space<vmem>>, %arg3: memref<96x32xf32, #tpu.memory_space<vmem>>, %arg4: memref<1x32xf32, #tpu.memory_space<vmem>>, %arg5: memref<32x32xf32, #tpu.memory_space<vmem>>, %arg6: memref<1x32xf32, #tpu.memory_space<vmem>>, %arg7: memref<1x16x32xf32, #tpu.memory_space<vmem>>) attributes {dimension_semantics = [#tpu.dimension_semantics<parallel>, #tpu.dimension_semantics<arbitrary>], iteration_bounds = array<i64: 2, 1>, scalar_prefetch = 0 : i64, scratch_operands = 0 : i64, tpu.core_type = #tpu.core_type<tc>, window_params = [{transform_indices = @transform_0, window_bounds = array<i64: 1, 34, 32>}, {pipeline_mode = #tpu.pipeline_mode<synchronous>, transform_indices = @transform_1, window_bounds = array<i64: 96, 32>}, {pipeline_mode = #tpu.pipeline_mode<synchronous>, transform_indices = @transform_2, window_bounds = array<i64: 1, 32>}, {pipeline_mode = #tpu.pipeline_mode<synchronous>, transform_indices = @transform_3, window_bounds = array<i64: 32, 32>}, {pipeline_mode = #tpu.pipeline_mode<synchronous>, transform_indices = @transform_4, window_bounds = array<i64: 1, 32>}, {transform_indices = @transform_5, window_bounds = array<i64: 1, 16, 32>}]} {
    %c16_i32 = arith.constant 16 : i32
    %0 = arith.muli %arg1, %c16_i32 : i32
    %1 = tpu.assume_multiple %0, 16 : i32
    %c0_i32 = arith.constant 0 : i32
    %2 = arith.addi %1, %c0_i32 : i32
    %c0 = arith.constant 0 : index
    %3 = arith.index_cast %2 : i32 to index
    %c0_0 = arith.constant 0 : index
    %4 = vector.load %arg2[%c0, %3, %c0_0] : memref<1x34x32xf32, #tpu.memory_space<vmem>>, vector<1x16x32xf32>
    %5 = vector.shape_cast %4 : vector<1x16x32xf32> to vector<16x32xf32>
    %c9_i32 = arith.constant 9 : i32
    %6 = arith.addi %1, %c9_i32 : i32
    %c0_1 = arith.constant 0 : index
    %7 = arith.index_cast %6 : i32 to index
    %c0_2 = arith.constant 0 : index
    %8 = vector.load %arg2[%c0_1, %7, %c0_2] : memref<1x34x32xf32, #tpu.memory_space<vmem>>, vector<1x16x32xf32>
    %9 = vector.shape_cast %8 : vector<1x16x32xf32> to vector<16x32xf32>
    %c18_i32 = arith.constant 18 : i32
    %10 = arith.addi %1, %c18_i32 : i32
    %c0_3 = arith.constant 0 : index
    %11 = arith.index_cast %10 : i32 to index
    %c0_4 = arith.constant 0 : index
    %12 = vector.load %arg2[%c0_3, %11, %c0_4] : memref<1x34x32xf32, #tpu.memory_space<vmem>>, vector<1x16x32xf32>
    %13 = vector.shape_cast %12 : vector<1x16x32xf32> to vector<16x32xf32>
    %14 = tpu.concatenate %5, %9, %13 in 1 : vector<16x32xf32>, vector<16x32xf32>, vector<16x32xf32> -> vector<16x96xf32>
    %cst = arith.constant 0.000000e+00 : f32
    %15 = vector.broadcast %cst : f32 to vector<16x96xf32>
    %16 = arith.maximumf %14, %15 : vector<16x96xf32>
    %c0_5 = arith.constant 0 : index
    %c0_6 = arith.constant 0 : index
    %17 = vector.load %arg3[%c0_5, %c0_6] : memref<96x32xf32, #tpu.memory_space<vmem>>, vector<96x32xf32>
    %cst_7 = arith.constant dense<0.000000e+00> : vector<16x32xf32>
    %18 = tpu.matmul %16, %17, %cst_7 {dimension_numbers = #tpu.dot_dimension_numbers<[1], [0], [0], [1], [0, 0, 1, 1], [], []>} : vector<16x96xf32>, vector<96x32xf32>, vector<16x32xf32> -> vector<16x32xf32>
    %c0_8 = arith.constant 0 : index
    %c0_9 = arith.constant 0 : index
    %19 = vector.load %arg4[%c0_8, %c0_9] : memref<1x32xf32, #tpu.memory_space<vmem>>, vector<1x32xf32>
    %20 = vector.broadcast %19 : vector<1x32xf32> to vector<16x32xf32>
    %21 = arith.addf %18, %20 : vector<16x32xf32>
    %cst_10 = arith.constant 0.000000e+00 : f32
    %22 = vector.broadcast %cst_10 : f32 to vector<16x32xf32>
    %23 = arith.maximumf %21, %22 : vector<16x32xf32>
    %c0_11 = arith.constant 0 : index
    %c0_12 = arith.constant 0 : index
    %24 = vector.load %arg5[%c0_11, %c0_12] : memref<32x32xf32, #tpu.memory_space<vmem>>, vector<32x32xf32>
    %cst_13 = arith.constant dense<0.000000e+00> : vector<16x32xf32>
    %25 = tpu.matmul %23, %24, %cst_13 {dimension_numbers = #tpu.dot_dimension_numbers<[1], [0], [0], [1], [0, 0, 1, 1], [], []>} : vector<16x32xf32>, vector<32x32xf32>, vector<16x32xf32> -> vector<16x32xf32>
    %c0_14 = arith.constant 0 : index
    %c0_15 = arith.constant 0 : index
    %26 = vector.load %arg6[%c0_14, %c0_15] : memref<1x32xf32, #tpu.memory_space<vmem>>, vector<1x32xf32>
    %27 = vector.broadcast %26 : vector<1x32xf32> to vector<16x32xf32>
    %28 = arith.addf %25, %27 : vector<16x32xf32>
    %c9_i32_16 = arith.constant 9 : i32
    %29 = arith.addi %1, %c9_i32_16 : i32
    %c0_17 = arith.constant 0 : index
    %30 = arith.index_cast %29 : i32 to index
    %c0_18 = arith.constant 0 : index
    %31 = vector.load %arg2[%c0_17, %30, %c0_18] : memref<1x34x32xf32, #tpu.memory_space<vmem>>, vector<1x16x32xf32>
    %32 = vector.shape_cast %31 : vector<1x16x32xf32> to vector<16x32xf32>
    %33 = arith.addf %28, %32 : vector<16x32xf32>
    %c0_19 = arith.constant 0 : index
    %c0_20 = arith.constant 0 : index
    %c0_21 = arith.constant 0 : index
    %34 = vector.load %arg7[%c0_19, %c0_20, %c0_21] : memref<1x16x32xf32, #tpu.memory_space<vmem>>, vector<1x16x32xf32>
    %35 = vector.shape_cast %34 : vector<1x16x32xf32> to vector<16x32xf32>
    %36 = vector.shape_cast %33 : vector<16x32xf32> to vector<1x16x32xf32>
    tpu.vector_store %arg7[%c0_19, %c0_20, %c0_21], %36 {strides = array<i32>} : memref<1x16x32xf32, #tpu.memory_space<vmem>>, vector<1x16x32xf32>,
    return
  }
  func.func @transform_0(%arg0: i32, %arg1: i32) -> (i32, i32, i32) {
    %c0_i32 = arith.constant 0 : i32
    %c0_i32_0 = arith.constant 0 : i32
    %c0_i32_1 = arith.constant 0 : i32
    return %arg0, %c0_i32, %c0_i32_0 : i32, i32, i32
  }
  func.func @transform_1(%arg0: i32, %arg1: i32) -> (i32, i32) {
    %c0_i32 = arith.constant 0 : i32
    %c0_i32_0 = arith.constant 0 : i32
    %c0_i32_1 = arith.constant 0 : i32
    return %c0_i32, %c0_i32_0 : i32, i32
  }
  func.func @transform_2(%arg0: i32, %arg1: i32) -> (i32, i32) {
    %c0_i32 = arith.constant 0 : i32
    %c0_i32_0 = arith.constant 0 : i32
    %c0_i32_1 = arith.constant 0 : i32
    return %c0_i32, %c0_i32_0 : i32, i32
  }
  func.func @transform_3(%arg0: i32, %arg1: i32) -> (i32, i32) {
    %c0_i32 = arith.constant 0 : i32
    %c0_i32_0 = arith.constant 0 : i32
    %c0_i32_1 = arith.constant 0 : i32
    return %c0_i32, %c0_i32_0 : i32, i32
  }
  func.func @transform_4(%arg0: i32, %arg1: i32) -> (i32, i32) {
    %c0_i32 = arith.constant 0 : i32
    %c0_i32_0 = arith.constant 0 : i32
    %c0_i32_1 = arith.constant 0 : i32
    return %c0_i32, %c0_i32_0 : i32, i32
  }
  func.func @transform_5(%arg0: i32, %arg1: i32) -> (i32, i32, i32) {
    %c0_i32 = arith.constant 0 : i32
    %c0_i32_0 = arith.constant 0 : i32
    return %arg0, %arg1, %c0_i32 : i32, i32, i32
  }
}

module attributes {stable_mosaic.version = 11 : i64} {
  func.func @_conv1d_kernel(%arg0: i32, %arg1: i32, %arg2: memref<1x18x32xf32, #tpu.memory_space<vmem>>, %arg3: memref<96x64xf32, #tpu.memory_space<vmem>>, %arg4: memref<1x64xf32, #tpu.memory_space<vmem>>, %arg5: memref<1x16x64xf32, #tpu.memory_space<vmem>>) attributes {dimension_semantics = [#tpu.dimension_semantics<parallel>, #tpu.dimension_semantics<arbitrary>], iteration_bounds = array<i64: 2, 1>, scalar_prefetch = 0 : i64, scratch_operands = 0 : i64, tpu.core_type = #tpu.core_type<tc>, window_params = [{transform_indices = @transform_0, window_bounds = array<i64: 1, 18, 32>}, {pipeline_mode = #tpu.pipeline_mode<synchronous>, transform_indices = @transform_1, window_bounds = array<i64: 96, 64>}, {pipeline_mode = #tpu.pipeline_mode<synchronous>, transform_indices = @transform_2, window_bounds = array<i64: 1, 64>}, {transform_indices = @transform_3, window_bounds = array<i64: 1, 16, 64>}]} {
    %c16_i32 = arith.constant 16 : i32
    %0 = arith.muli %arg1, %c16_i32 : i32
    %1 = tpu.assume_multiple %0, 16 : i32
    %c0_i32 = arith.constant 0 : i32
    %2 = arith.addi %1, %c0_i32 : i32
    %c0 = arith.constant 0 : index
    %3 = arith.index_cast %2 : i32 to index
    %c0_0 = arith.constant 0 : index
    %4 = vector.load %arg2[%c0, %3, %c0_0] : memref<1x18x32xf32, #tpu.memory_space<vmem>>, vector<1x16x32xf32>
    %5 = vector.shape_cast %4 : vector<1x16x32xf32> to vector<16x32xf32>
    %c1_i32 = arith.constant 1 : i32
    %6 = arith.addi %1, %c1_i32 : i32
    %c0_1 = arith.constant 0 : index
    %7 = arith.index_cast %6 : i32 to index
    %c0_2 = arith.constant 0 : index
    %8 = vector.load %arg2[%c0_1, %7, %c0_2] : memref<1x18x32xf32, #tpu.memory_space<vmem>>, vector<1x16x32xf32>
    %9 = vector.shape_cast %8 : vector<1x16x32xf32> to vector<16x32xf32>
    %c2_i32 = arith.constant 2 : i32
    %10 = arith.addi %1, %c2_i32 : i32
    %c0_3 = arith.constant 0 : index
    %11 = arith.index_cast %10 : i32 to index
    %c0_4 = arith.constant 0 : index
    %12 = vector.load %arg2[%c0_3, %11, %c0_4] : memref<1x18x32xf32, #tpu.memory_space<vmem>>, vector<1x16x32xf32>
    %13 = vector.shape_cast %12 : vector<1x16x32xf32> to vector<16x32xf32>
    %14 = tpu.concatenate %5, %9, %13 in 1 : vector<16x32xf32>, vector<16x32xf32>, vector<16x32xf32> -> vector<16x96xf32>
    %c0_5 = arith.constant 0 : index
    %c0_6 = arith.constant 0 : index
    %15 = vector.load %arg3[%c0_5, %c0_6] : memref<96x64xf32, #tpu.memory_space<vmem>>, vector<96x64xf32>
    %cst = arith.constant dense<0.000000e+00> : vector<16x64xf32>
    %16 = tpu.matmul %14, %15, %cst {dimension_numbers = #tpu.dot_dimension_numbers<[1], [0], [0], [1], [0, 0, 1, 1], [], []>} : vector<16x96xf32>, vector<96x64xf32>, vector<16x64xf32> -> vector<16x64xf32>
    %c0_7 = arith.constant 0 : index
    %c0_8 = arith.constant 0 : index
    %17 = vector.load %arg4[%c0_7, %c0_8] : memref<1x64xf32, #tpu.memory_space<vmem>>, vector<1x64xf32>
    %18 = vector.broadcast %17 : vector<1x64xf32> to vector<16x64xf32>
    %19 = arith.addf %16, %18 : vector<16x64xf32>
    %c0_9 = arith.constant 0 : index
    %c0_10 = arith.constant 0 : index
    %c0_11 = arith.constant 0 : index
    %20 = vector.load %arg5[%c0_9, %c0_10, %c0_11] : memref<1x16x64xf32, #tpu.memory_space<vmem>>, vector<1x16x64xf32>
    %21 = vector.shape_cast %20 : vector<1x16x64xf32> to vector<16x64xf32>
    %22 = vector.shape_cast %19 : vector<16x64xf32> to vector<1x16x64xf32>
    tpu.vector_store %arg5[%c0_9, %c0_10, %c0_11], %22 {strides = array<i32>} : memref<1x16x64xf32, #tpu.memory_space<vmem>>, vector<1x16x64xf32>,
    return
  }
  func.func @transform_0(%arg0: i32, %arg1: i32) -> (i32, i32, i32) {
    %c0_i32 = arith.constant 0 : i32
    %c0_i32_0 = arith.constant 0 : i32
    %c0_i32_1 = arith.constant 0 : i32
    return %arg0, %c0_i32, %c0_i32_0 : i32, i32, i32
  }
  func.func @transform_1(%arg0: i32, %arg1: i32) -> (i32, i32) {
    %c0_i32 = arith.constant 0 : i32
    %c0_i32_0 = arith.constant 0 : i32
    %c0_i32_1 = arith.constant 0 : i32
    return %c0_i32, %c0_i32_0 : i32, i32
  }
  func.func @transform_2(%arg0: i32, %arg1: i32) -> (i32, i32) {
    %c0_i32 = arith.constant 0 : i32
    %c0_i32_0 = arith.constant 0 : i32
    %c0_i32_1 = arith.constant 0 : i32
    return %c0_i32, %c0_i32_0 : i32, i32
  }
  func.func @transform_3(%arg0: i32, %arg1: i32) -> (i32, i32, i32) {
    %c0_i32 = arith.constant 0 : i32
    %c0_i32_0 = arith.constant 0 : i32
    return %arg0, %arg1, %c0_i32 : i32, i32, i32
  }
}

module attributes {stable_mosaic.version = 11 : i64} {
  func.func @_resblock_kernel(%arg0: i32, %arg1: i32, %arg2: memref<1x50x32xf32, #tpu.memory_space<vmem>>, %arg3: memref<96x32xf32, #tpu.memory_space<vmem>>, %arg4: memref<1x32xf32, #tpu.memory_space<vmem>>, %arg5: memref<32x32xf32, #tpu.memory_space<vmem>>, %arg6: memref<1x32xf32, #tpu.memory_space<vmem>>, %arg7: memref<1x16x32xf32, #tpu.memory_space<vmem>>) attributes {dimension_semantics = [#tpu.dimension_semantics<parallel>, #tpu.dimension_semantics<arbitrary>], iteration_bounds = array<i64: 2, 2>, scalar_prefetch = 0 : i64, scratch_operands = 0 : i64, tpu.core_type = #tpu.core_type<tc>, window_params = [{transform_indices = @transform_0, window_bounds = array<i64: 1, 50, 32>}, {pipeline_mode = #tpu.pipeline_mode<synchronous>, transform_indices = @transform_1, window_bounds = array<i64: 96, 32>}, {pipeline_mode = #tpu.pipeline_mode<synchronous>, transform_indices = @transform_2, window_bounds = array<i64: 1, 32>}, {pipeline_mode = #tpu.pipeline_mode<synchronous>, transform_indices = @transform_3, window_bounds = array<i64: 32, 32>}, {pipeline_mode = #tpu.pipeline_mode<synchronous>, transform_indices = @transform_4, window_bounds = array<i64: 1, 32>}, {transform_indices = @transform_5, window_bounds = array<i64: 1, 16, 32>}]} {
    %c16_i32 = arith.constant 16 : i32
    %0 = arith.muli %arg1, %c16_i32 : i32
    %1 = tpu.assume_multiple %0, 16 : i32
    %c0_i32 = arith.constant 0 : i32
    %2 = arith.addi %1, %c0_i32 : i32
    %c0 = arith.constant 0 : index
    %3 = arith.index_cast %2 : i32 to index
    %c0_0 = arith.constant 0 : index
    %4 = vector.load %arg2[%c0, %3, %c0_0] : memref<1x50x32xf32, #tpu.memory_space<vmem>>, vector<1x16x32xf32>
    %5 = vector.shape_cast %4 : vector<1x16x32xf32> to vector<16x32xf32>
    %c9_i32 = arith.constant 9 : i32
    %6 = arith.addi %1, %c9_i32 : i32
    %c0_1 = arith.constant 0 : index
    %7 = arith.index_cast %6 : i32 to index
    %c0_2 = arith.constant 0 : index
    %8 = vector.load %arg2[%c0_1, %7, %c0_2] : memref<1x50x32xf32, #tpu.memory_space<vmem>>, vector<1x16x32xf32>
    %9 = vector.shape_cast %8 : vector<1x16x32xf32> to vector<16x32xf32>
    %c18_i32 = arith.constant 18 : i32
    %10 = arith.addi %1, %c18_i32 : i32
    %c0_3 = arith.constant 0 : index
    %11 = arith.index_cast %10 : i32 to index
    %c0_4 = arith.constant 0 : index
    %12 = vector.load %arg2[%c0_3, %11, %c0_4] : memref<1x50x32xf32, #tpu.memory_space<vmem>>, vector<1x16x32xf32>
    %13 = vector.shape_cast %12 : vector<1x16x32xf32> to vector<16x32xf32>
    %14 = tpu.concatenate %5, %9, %13 in 1 : vector<16x32xf32>, vector<16x32xf32>, vector<16x32xf32> -> vector<16x96xf32>
    %cst = arith.constant 0.000000e+00 : f32
    %15 = vector.broadcast %cst : f32 to vector<16x96xf32>
    %16 = arith.maximumf %14, %15 : vector<16x96xf32>
    %c0_5 = arith.constant 0 : index
    %c0_6 = arith.constant 0 : index
    %17 = vector.load %arg3[%c0_5, %c0_6] : memref<96x32xf32, #tpu.memory_space<vmem>>, vector<96x32xf32>
    %cst_7 = arith.constant dense<0.000000e+00> : vector<16x32xf32>
    %18 = tpu.matmul %16, %17, %cst_7 {dimension_numbers = #tpu.dot_dimension_numbers<[1], [0], [0], [1], [0, 0, 1, 1], [], []>} : vector<16x96xf32>, vector<96x32xf32>, vector<16x32xf32> -> vector<16x32xf32>
    %c0_8 = arith.constant 0 : index
    %c0_9 = arith.constant 0 : index
    %19 = vector.load %arg4[%c0_8, %c0_9] : memref<1x32xf32, #tpu.memory_space<vmem>>, vector<1x32xf32>
    %20 = vector.broadcast %19 : vector<1x32xf32> to vector<16x32xf32>
    %21 = arith.addf %18, %20 : vector<16x32xf32>
    %cst_10 = arith.constant 0.000000e+00 : f32
    %22 = vector.broadcast %cst_10 : f32 to vector<16x32xf32>
    %23 = arith.maximumf %21, %22 : vector<16x32xf32>
    %c0_11 = arith.constant 0 : index
    %c0_12 = arith.constant 0 : index
    %24 = vector.load %arg5[%c0_11, %c0_12] : memref<32x32xf32, #tpu.memory_space<vmem>>, vector<32x32xf32>
    %cst_13 = arith.constant dense<0.000000e+00> : vector<16x32xf32>
    %25 = tpu.matmul %23, %24, %cst_13 {dimension_numbers = #tpu.dot_dimension_numbers<[1], [0], [0], [1], [0, 0, 1, 1], [], []>} : vector<16x32xf32>, vector<32x32xf32>, vector<16x32xf32> -> vector<16x32xf32>
    %c0_14 = arith.constant 0 : index
    %c0_15 = arith.constant 0 : index
    %26 = vector.load %arg6[%c0_14, %c0_15] : memref<1x32xf32, #tpu.memory_space<vmem>>, vector<1x32xf32>
    %27 = vector.broadcast %26 : vector<1x32xf32> to vector<16x32xf32>
    %28 = arith.addf %25, %27 : vector<16x32xf32>
    %c9_i32_16 = arith.constant 9 : i32
    %29 = arith.addi %1, %c9_i32_16 : i32
    %c0_17 = arith.constant 0 : index
    %30 = arith.index_cast %29 : i32 to index
    %c0_18 = arith.constant 0 : index
    %31 = vector.load %arg2[%c0_17, %30, %c0_18] : memref<1x50x32xf32, #tpu.memory_space<vmem>>, vector<1x16x32xf32>
    %32 = vector.shape_cast %31 : vector<1x16x32xf32> to vector<16x32xf32>
    %33 = arith.addf %28, %32 : vector<16x32xf32>
    %c0_19 = arith.constant 0 : index
    %c0_20 = arith.constant 0 : index
    %c0_21 = arith.constant 0 : index
    %34 = vector.load %arg7[%c0_19, %c0_20, %c0_21] : memref<1x16x32xf32, #tpu.memory_space<vmem>>, vector<1x16x32xf32>
    %35 = vector.shape_cast %34 : vector<1x16x32xf32> to vector<16x32xf32>
    %36 = vector.shape_cast %33 : vector<16x32xf32> to vector<1x16x32xf32>
    tpu.vector_store %arg7[%c0_19, %c0_20, %c0_21], %36 {strides = array<i32>} : memref<1x16x32xf32, #tpu.memory_space<vmem>>, vector<1x16x32xf32>,
    return
  }
  func.func @transform_0(%arg0: i32, %arg1: i32) -> (i32, i32, i32) {
    %c0_i32 = arith.constant 0 : i32
    %c0_i32_0 = arith.constant 0 : i32
    %c0_i32_1 = arith.constant 0 : i32
    return %arg0, %c0_i32, %c0_i32_0 : i32, i32, i32
  }
  func.func @transform_1(%arg0: i32, %arg1: i32) -> (i32, i32) {
    %c0_i32 = arith.constant 0 : i32
    %c0_i32_0 = arith.constant 0 : i32
    %c0_i32_1 = arith.constant 0 : i32
    return %c0_i32, %c0_i32_0 : i32, i32
  }
  func.func @transform_2(%arg0: i32, %arg1: i32) -> (i32, i32) {
    %c0_i32 = arith.constant 0 : i32
    %c0_i32_0 = arith.constant 0 : i32
    %c0_i32_1 = arith.constant 0 : i32
    return %c0_i32, %c0_i32_0 : i32, i32
  }
  func.func @transform_3(%arg0: i32, %arg1: i32) -> (i32, i32) {
    %c0_i32 = arith.constant 0 : i32
    %c0_i32_0 = arith.constant 0 : i32
    %c0_i32_1 = arith.constant 0 : i32
    return %c0_i32, %c0_i32_0 : i32, i32
  }
  func.func @transform_4(%arg0: i32, %arg1: i32) -> (i32, i32) {
    %c0_i32 = arith.constant 0 : i32
    %c0_i32_0 = arith.constant 0 : i32
    %c0_i32_1 = arith.constant 0 : i32
    return %c0_i32, %c0_i32_0 : i32, i32
  }
  func.func @transform_5(%arg0: i32, %arg1: i32) -> (i32, i32, i32) {
    %c0_i32 = arith.constant 0 : i32
    %c0_i32_0 = arith.constant 0 : i32
    return %arg0, %arg1, %c0_i32 : i32, i32, i32
  }
}

module attributes {stable_mosaic.version = 11 : i64} {
  func.func @_resblock_kernel(%arg0: i32, %arg1: i32, %arg2: memref<1x38x32xf32, #tpu.memory_space<vmem>>, %arg3: memref<96x32xf32, #tpu.memory_space<vmem>>, %arg4: memref<1x32xf32, #tpu.memory_space<vmem>>, %arg5: memref<32x32xf32, #tpu.memory_space<vmem>>, %arg6: memref<1x32xf32, #tpu.memory_space<vmem>>, %arg7: memref<1x16x32xf32, #tpu.memory_space<vmem>>) attributes {dimension_semantics = [#tpu.dimension_semantics<parallel>, #tpu.dimension_semantics<arbitrary>], iteration_bounds = array<i64: 2, 2>, scalar_prefetch = 0 : i64, scratch_operands = 0 : i64, tpu.core_type = #tpu.core_type<tc>, window_params = [{transform_indices = @transform_0, window_bounds = array<i64: 1, 38, 32>}, {pipeline_mode = #tpu.pipeline_mode<synchronous>, transform_indices = @transform_1, window_bounds = array<i64: 96, 32>}, {pipeline_mode = #tpu.pipeline_mode<synchronous>, transform_indices = @transform_2, window_bounds = array<i64: 1, 32>}, {pipeline_mode = #tpu.pipeline_mode<synchronous>, transform_indices = @transform_3, window_bounds = array<i64: 32, 32>}, {pipeline_mode = #tpu.pipeline_mode<synchronous>, transform_indices = @transform_4, window_bounds = array<i64: 1, 32>}, {transform_indices = @transform_5, window_bounds = array<i64: 1, 16, 32>}]} {
    %c16_i32 = arith.constant 16 : i32
    %0 = arith.muli %arg1, %c16_i32 : i32
    %1 = tpu.assume_multiple %0, 16 : i32
    %c0_i32 = arith.constant 0 : i32
    %2 = arith.addi %1, %c0_i32 : i32
    %c0 = arith.constant 0 : index
    %3 = arith.index_cast %2 : i32 to index
    %c0_0 = arith.constant 0 : index
    %4 = vector.load %arg2[%c0, %3, %c0_0] : memref<1x38x32xf32, #tpu.memory_space<vmem>>, vector<1x16x32xf32>
    %5 = vector.shape_cast %4 : vector<1x16x32xf32> to vector<16x32xf32>
    %c3_i32 = arith.constant 3 : i32
    %6 = arith.addi %1, %c3_i32 : i32
    %c0_1 = arith.constant 0 : index
    %7 = arith.index_cast %6 : i32 to index
    %c0_2 = arith.constant 0 : index
    %8 = vector.load %arg2[%c0_1, %7, %c0_2] : memref<1x38x32xf32, #tpu.memory_space<vmem>>, vector<1x16x32xf32>
    %9 = vector.shape_cast %8 : vector<1x16x32xf32> to vector<16x32xf32>
    %c6_i32 = arith.constant 6 : i32
    %10 = arith.addi %1, %c6_i32 : i32
    %c0_3 = arith.constant 0 : index
    %11 = arith.index_cast %10 : i32 to index
    %c0_4 = arith.constant 0 : index
    %12 = vector.load %arg2[%c0_3, %11, %c0_4] : memref<1x38x32xf32, #tpu.memory_space<vmem>>, vector<1x16x32xf32>
    %13 = vector.shape_cast %12 : vector<1x16x32xf32> to vector<16x32xf32>
    %14 = tpu.concatenate %5, %9, %13 in 1 : vector<16x32xf32>, vector<16x32xf32>, vector<16x32xf32> -> vector<16x96xf32>
    %cst = arith.constant 0.000000e+00 : f32
    %15 = vector.broadcast %cst : f32 to vector<16x96xf32>
    %16 = arith.maximumf %14, %15 : vector<16x96xf32>
    %c0_5 = arith.constant 0 : index
    %c0_6 = arith.constant 0 : index
    %17 = vector.load %arg3[%c0_5, %c0_6] : memref<96x32xf32, #tpu.memory_space<vmem>>, vector<96x32xf32>
    %cst_7 = arith.constant dense<0.000000e+00> : vector<16x32xf32>
    %18 = tpu.matmul %16, %17, %cst_7 {dimension_numbers = #tpu.dot_dimension_numbers<[1], [0], [0], [1], [0, 0, 1, 1], [], []>} : vector<16x96xf32>, vector<96x32xf32>, vector<16x32xf32> -> vector<16x32xf32>
    %c0_8 = arith.constant 0 : index
    %c0_9 = arith.constant 0 : index
    %19 = vector.load %arg4[%c0_8, %c0_9] : memref<1x32xf32, #tpu.memory_space<vmem>>, vector<1x32xf32>
    %20 = vector.broadcast %19 : vector<1x32xf32> to vector<16x32xf32>
    %21 = arith.addf %18, %20 : vector<16x32xf32>
    %cst_10 = arith.constant 0.000000e+00 : f32
    %22 = vector.broadcast %cst_10 : f32 to vector<16x32xf32>
    %23 = arith.maximumf %21, %22 : vector<16x32xf32>
    %c0_11 = arith.constant 0 : index
    %c0_12 = arith.constant 0 : index
    %24 = vector.load %arg5[%c0_11, %c0_12] : memref<32x32xf32, #tpu.memory_space<vmem>>, vector<32x32xf32>
    %cst_13 = arith.constant dense<0.000000e+00> : vector<16x32xf32>
    %25 = tpu.matmul %23, %24, %cst_13 {dimension_numbers = #tpu.dot_dimension_numbers<[1], [0], [0], [1], [0, 0, 1, 1], [], []>} : vector<16x32xf32>, vector<32x32xf32>, vector<16x32xf32> -> vector<16x32xf32>
    %c0_14 = arith.constant 0 : index
    %c0_15 = arith.constant 0 : index
    %26 = vector.load %arg6[%c0_14, %c0_15] : memref<1x32xf32, #tpu.memory_space<vmem>>, vector<1x32xf32>
    %27 = vector.broadcast %26 : vector<1x32xf32> to vector<16x32xf32>
    %28 = arith.addf %25, %27 : vector<16x32xf32>
    %c3_i32_16 = arith.constant 3 : i32
    %29 = arith.addi %1, %c3_i32_16 : i32
    %c0_17 = arith.constant 0 : index
    %30 = arith.index_cast %29 : i32 to index
    %c0_18 = arith.constant 0 : index
    %31 = vector.load %arg2[%c0_17, %30, %c0_18] : memref<1x38x32xf32, #tpu.memory_space<vmem>>, vector<1x16x32xf32>
    %32 = vector.shape_cast %31 : vector<1x16x32xf32> to vector<16x32xf32>
    %33 = arith.addf %28, %32 : vector<16x32xf32>
    %c0_19 = arith.constant 0 : index
    %c0_20 = arith.constant 0 : index
    %c0_21 = arith.constant 0 : index
    %34 = vector.load %arg7[%c0_19, %c0_20, %c0_21] : memref<1x16x32xf32, #tpu.memory_space<vmem>>, vector<1x16x32xf32>
    %35 = vector.shape_cast %34 : vector<1x16x32xf32> to vector<16x32xf32>
    %36 = vector.shape_cast %33 : vector<16x32xf32> to vector<1x16x32xf32>
    tpu.vector_store %arg7[%c0_19, %c0_20, %c0_21], %36 {strides = array<i32>} : memref<1x16x32xf32, #tpu.memory_space<vmem>>, vector<1x16x32xf32>,
    return
  }
  func.func @transform_0(%arg0: i32, %arg1: i32) -> (i32, i32, i32) {
    %c0_i32 = arith.constant 0 : i32
    %c0_i32_0 = arith.constant 0 : i32
    %c0_i32_1 = arith.constant 0 : i32
    return %arg0, %c0_i32, %c0_i32_0 : i32, i32, i32
  }
  func.func @transform_1(%arg0: i32, %arg1: i32) -> (i32, i32) {
    %c0_i32 = arith.constant 0 : i32
    %c0_i32_0 = arith.constant 0 : i32
    %c0_i32_1 = arith.constant 0 : i32
    return %c0_i32, %c0_i32_0 : i32, i32
  }
  func.func @transform_2(%arg0: i32, %arg1: i32) -> (i32, i32) {
    %c0_i32 = arith.constant 0 : i32
    %c0_i32_0 = arith.constant 0 : i32
    %c0_i32_1 = arith.constant 0 : i32
    return %c0_i32, %c0_i32_0 : i32, i32
  }
  func.func @transform_3(%arg0: i32, %arg1: i32) -> (i32, i32) {
    %c0_i32 = arith.constant 0 : i32
    %c0_i32_0 = arith.constant 0 : i32
    %c0_i32_1 = arith.constant 0 : i32
    return %c0_i32, %c0_i32_0 : i32, i32
  }
  func.func @transform_4(%arg0: i32, %arg1: i32) -> (i32, i32) {
    %c0_i32 = arith.constant 0 : i32
    %c0_i32_0 = arith.constant 0 : i32
    %c0_i32_1 = arith.constant 0 : i32
    return %c0_i32, %c0_i32_0 : i32, i32
  }
  func.func @transform_5(%arg0: i32, %arg1: i32) -> (i32, i32, i32) {
    %c0_i32 = arith.constant 0 : i32
    %c0_i32_0 = arith.constant 0 : i32
    return %arg0, %arg1, %c0_i32 : i32, i32, i32
  }
}

module attributes {stable_mosaic.version = 11 : i64} {
  func.func @_resblock_kernel(%arg0: i32, %arg1: i32, %arg2: memref<1x34x32xf32, #tpu.memory_space<vmem>>, %arg3: memref<96x32xf32, #tpu.memory_space<vmem>>, %arg4: memref<1x32xf32, #tpu.memory_space<vmem>>, %arg5: memref<32x32xf32, #tpu.memory_space<vmem>>, %arg6: memref<1x32xf32, #tpu.memory_space<vmem>>, %arg7: memref<1x16x32xf32, #tpu.memory_space<vmem>>) attributes {dimension_semantics = [#tpu.dimension_semantics<parallel>, #tpu.dimension_semantics<arbitrary>], iteration_bounds = array<i64: 2, 2>, scalar_prefetch = 0 : i64, scratch_operands = 0 : i64, tpu.core_type = #tpu.core_type<tc>, window_params = [{transform_indices = @transform_0, window_bounds = array<i64: 1, 34, 32>}, {pipeline_mode = #tpu.pipeline_mode<synchronous>, transform_indices = @transform_1, window_bounds = array<i64: 96, 32>}, {pipeline_mode = #tpu.pipeline_mode<synchronous>, transform_indices = @transform_2, window_bounds = array<i64: 1, 32>}, {pipeline_mode = #tpu.pipeline_mode<synchronous>, transform_indices = @transform_3, window_bounds = array<i64: 32, 32>}, {pipeline_mode = #tpu.pipeline_mode<synchronous>, transform_indices = @transform_4, window_bounds = array<i64: 1, 32>}, {transform_indices = @transform_5, window_bounds = array<i64: 1, 16, 32>}]} {
    %c16_i32 = arith.constant 16 : i32
    %0 = arith.muli %arg1, %c16_i32 : i32
    %1 = tpu.assume_multiple %0, 16 : i32
    %c0_i32 = arith.constant 0 : i32
    %2 = arith.addi %1, %c0_i32 : i32
    %c0 = arith.constant 0 : index
    %3 = arith.index_cast %2 : i32 to index
    %c0_0 = arith.constant 0 : index
    %4 = vector.load %arg2[%c0, %3, %c0_0] : memref<1x34x32xf32, #tpu.memory_space<vmem>>, vector<1x16x32xf32>
    %5 = vector.shape_cast %4 : vector<1x16x32xf32> to vector<16x32xf32>
    %c1_i32 = arith.constant 1 : i32
    %6 = arith.addi %1, %c1_i32 : i32
    %c0_1 = arith.constant 0 : index
    %7 = arith.index_cast %6 : i32 to index
    %c0_2 = arith.constant 0 : index
    %8 = vector.load %arg2[%c0_1, %7, %c0_2] : memref<1x34x32xf32, #tpu.memory_space<vmem>>, vector<1x16x32xf32>
    %9 = vector.shape_cast %8 : vector<1x16x32xf32> to vector<16x32xf32>
    %c2_i32 = arith.constant 2 : i32
    %10 = arith.addi %1, %c2_i32 : i32
    %c0_3 = arith.constant 0 : index
    %11 = arith.index_cast %10 : i32 to index
    %c0_4 = arith.constant 0 : index
    %12 = vector.load %arg2[%c0_3, %11, %c0_4] : memref<1x34x32xf32, #tpu.memory_space<vmem>>, vector<1x16x32xf32>
    %13 = vector.shape_cast %12 : vector<1x16x32xf32> to vector<16x32xf32>
    %14 = tpu.concatenate %5, %9, %13 in 1 : vector<16x32xf32>, vector<16x32xf32>, vector<16x32xf32> -> vector<16x96xf32>
    %cst = arith.constant 0.000000e+00 : f32
    %15 = vector.broadcast %cst : f32 to vector<16x96xf32>
    %16 = arith.maximumf %14, %15 : vector<16x96xf32>
    %c0_5 = arith.constant 0 : index
    %c0_6 = arith.constant 0 : index
    %17 = vector.load %arg3[%c0_5, %c0_6] : memref<96x32xf32, #tpu.memory_space<vmem>>, vector<96x32xf32>
    %cst_7 = arith.constant dense<0.000000e+00> : vector<16x32xf32>
    %18 = tpu.matmul %16, %17, %cst_7 {dimension_numbers = #tpu.dot_dimension_numbers<[1], [0], [0], [1], [0, 0, 1, 1], [], []>} : vector<16x96xf32>, vector<96x32xf32>, vector<16x32xf32> -> vector<16x32xf32>
    %c0_8 = arith.constant 0 : index
    %c0_9 = arith.constant 0 : index
    %19 = vector.load %arg4[%c0_8, %c0_9] : memref<1x32xf32, #tpu.memory_space<vmem>>, vector<1x32xf32>
    %20 = vector.broadcast %19 : vector<1x32xf32> to vector<16x32xf32>
    %21 = arith.addf %18, %20 : vector<16x32xf32>
    %cst_10 = arith.constant 0.000000e+00 : f32
    %22 = vector.broadcast %cst_10 : f32 to vector<16x32xf32>
    %23 = arith.maximumf %21, %22 : vector<16x32xf32>
    %c0_11 = arith.constant 0 : index
    %c0_12 = arith.constant 0 : index
    %24 = vector.load %arg5[%c0_11, %c0_12] : memref<32x32xf32, #tpu.memory_space<vmem>>, vector<32x32xf32>
    %cst_13 = arith.constant dense<0.000000e+00> : vector<16x32xf32>
    %25 = tpu.matmul %23, %24, %cst_13 {dimension_numbers = #tpu.dot_dimension_numbers<[1], [0], [0], [1], [0, 0, 1, 1], [], []>} : vector<16x32xf32>, vector<32x32xf32>, vector<16x32xf32> -> vector<16x32xf32>
    %c0_14 = arith.constant 0 : index
    %c0_15 = arith.constant 0 : index
    %26 = vector.load %arg6[%c0_14, %c0_15] : memref<1x32xf32, #tpu.memory_space<vmem>>, vector<1x32xf32>
    %27 = vector.broadcast %26 : vector<1x32xf32> to vector<16x32xf32>
    %28 = arith.addf %25, %27 : vector<16x32xf32>
    %c1_i32_16 = arith.constant 1 : i32
    %29 = arith.addi %1, %c1_i32_16 : i32
    %c0_17 = arith.constant 0 : index
    %30 = arith.index_cast %29 : i32 to index
    %c0_18 = arith.constant 0 : index
    %31 = vector.load %arg2[%c0_17, %30, %c0_18] : memref<1x34x32xf32, #tpu.memory_space<vmem>>, vector<1x16x32xf32>
    %32 = vector.shape_cast %31 : vector<1x16x32xf32> to vector<16x32xf32>
    %33 = arith.addf %28, %32 : vector<16x32xf32>
    %c0_19 = arith.constant 0 : index
    %c0_20 = arith.constant 0 : index
    %c0_21 = arith.constant 0 : index
    %34 = vector.load %arg7[%c0_19, %c0_20, %c0_21] : memref<1x16x32xf32, #tpu.memory_space<vmem>>, vector<1x16x32xf32>
    %35 = vector.shape_cast %34 : vector<1x16x32xf32> to vector<16x32xf32>
    %36 = vector.shape_cast %33 : vector<16x32xf32> to vector<1x16x32xf32>
    tpu.vector_store %arg7[%c0_19, %c0_20, %c0_21], %36 {strides = array<i32>} : memref<1x16x32xf32, #tpu.memory_space<vmem>>, vector<1x16x32xf32>,
    return
  }
  func.func @transform_0(%arg0: i32, %arg1: i32) -> (i32, i32, i32) {
    %c0_i32 = arith.constant 0 : i32
    %c0_i32_0 = arith.constant 0 : i32
    %c0_i32_1 = arith.constant 0 : i32
    return %arg0, %c0_i32, %c0_i32_0 : i32, i32, i32
  }
  func.func @transform_1(%arg0: i32, %arg1: i32) -> (i32, i32) {
    %c0_i32 = arith.constant 0 : i32
    %c0_i32_0 = arith.constant 0 : i32
    %c0_i32_1 = arith.constant 0 : i32
    return %c0_i32, %c0_i32_0 : i32, i32
  }
  func.func @transform_2(%arg0: i32, %arg1: i32) -> (i32, i32) {
    %c0_i32 = arith.constant 0 : i32
    %c0_i32_0 = arith.constant 0 : i32
    %c0_i32_1 = arith.constant 0 : i32
    return %c0_i32, %c0_i32_0 : i32, i32
  }
  func.func @transform_3(%arg0: i32, %arg1: i32) -> (i32, i32) {
    %c0_i32 = arith.constant 0 : i32
    %c0_i32_0 = arith.constant 0 : i32
    %c0_i32_1 = arith.constant 0 : i32
    return %c0_i32, %c0_i32_0 : i32, i32
  }
  func.func @transform_4(%arg0: i32, %arg1: i32) -> (i32, i32) {
    %c0_i32 = arith.constant 0 : i32
    %c0_i32_0 = arith.constant 0 : i32
    %c0_i32_1 = arith.constant 0 : i32
    return %c0_i32, %c0_i32_0 : i32, i32
  }
  func.func @transform_5(%arg0: i32, %arg1: i32) -> (i32, i32, i32) {
    %c0_i32 = arith.constant 0 : i32
    %c0_i32_0 = arith.constant 0 : i32
    return %arg0, %arg1, %c0_i32 : i32, i32, i32
  }
}

module attributes {stable_mosaic.version = 11 : i64} {
  func.func @_conv1d_kernel(%arg0: i32, %arg1: i32, %arg2: memref<1x34x32xf32, #tpu.memory_space<vmem>>, %arg3: memref<96x64xf32, #tpu.memory_space<vmem>>, %arg4: memref<1x64xf32, #tpu.memory_space<vmem>>, %arg5: memref<1x16x64xf32, #tpu.memory_space<vmem>>) attributes {dimension_semantics = [#tpu.dimension_semantics<parallel>, #tpu.dimension_semantics<arbitrary>], iteration_bounds = array<i64: 2, 2>, scalar_prefetch = 0 : i64, scratch_operands = 0 : i64, tpu.core_type = #tpu.core_type<tc>, window_params = [{transform_indices = @transform_0, window_bounds = array<i64: 1, 34, 32>}, {pipeline_mode = #tpu.pipeline_mode<synchronous>, transform_indices = @transform_1, window_bounds = array<i64: 96, 64>}, {pipeline_mode = #tpu.pipeline_mode<synchronous>, transform_indices = @transform_2, window_bounds = array<i64: 1, 64>}, {transform_indices = @transform_3, window_bounds = array<i64: 1, 16, 64>}]} {
    %c16_i32 = arith.constant 16 : i32
    %0 = arith.muli %arg1, %c16_i32 : i32
    %1 = tpu.assume_multiple %0, 16 : i32
    %c0_i32 = arith.constant 0 : i32
    %2 = arith.addi %1, %c0_i32 : i32
    %c0 = arith.constant 0 : index
    %3 = arith.index_cast %2 : i32 to index
    %c0_0 = arith.constant 0 : index
    %4 = vector.load %arg2[%c0, %3, %c0_0] : memref<1x34x32xf32, #tpu.memory_space<vmem>>, vector<1x16x32xf32>
    %5 = vector.shape_cast %4 : vector<1x16x32xf32> to vector<16x32xf32>
    %c1_i32 = arith.constant 1 : i32
    %6 = arith.addi %1, %c1_i32 : i32
    %c0_1 = arith.constant 0 : index
    %7 = arith.index_cast %6 : i32 to index
    %c0_2 = arith.constant 0 : index
    %8 = vector.load %arg2[%c0_1, %7, %c0_2] : memref<1x34x32xf32, #tpu.memory_space<vmem>>, vector<1x16x32xf32>
    %9 = vector.shape_cast %8 : vector<1x16x32xf32> to vector<16x32xf32>
    %c2_i32 = arith.constant 2 : i32
    %10 = arith.addi %1, %c2_i32 : i32
    %c0_3 = arith.constant 0 : index
    %11 = arith.index_cast %10 : i32 to index
    %c0_4 = arith.constant 0 : index
    %12 = vector.load %arg2[%c0_3, %11, %c0_4] : memref<1x34x32xf32, #tpu.memory_space<vmem>>, vector<1x16x32xf32>
    %13 = vector.shape_cast %12 : vector<1x16x32xf32> to vector<16x32xf32>
    %14 = tpu.concatenate %5, %9, %13 in 1 : vector<16x32xf32>, vector<16x32xf32>, vector<16x32xf32> -> vector<16x96xf32>
    %c0_5 = arith.constant 0 : index
    %c0_6 = arith.constant 0 : index
    %15 = vector.load %arg3[%c0_5, %c0_6] : memref<96x64xf32, #tpu.memory_space<vmem>>, vector<96x64xf32>
    %cst = arith.constant dense<0.000000e+00> : vector<16x64xf32>
    %16 = tpu.matmul %14, %15, %cst {dimension_numbers = #tpu.dot_dimension_numbers<[1], [0], [0], [1], [0, 0, 1, 1], [], []>} : vector<16x96xf32>, vector<96x64xf32>, vector<16x64xf32> -> vector<16x64xf32>
    %c0_7 = arith.constant 0 : index
    %c0_8 = arith.constant 0 : index
    %17 = vector.load %arg4[%c0_7, %c0_8] : memref<1x64xf32, #tpu.memory_space<vmem>>, vector<1x64xf32>
    %18 = vector.broadcast %17 : vector<1x64xf32> to vector<16x64xf32>
    %19 = arith.addf %16, %18 : vector<16x64xf32>
    %c0_9 = arith.constant 0 : index
    %c0_10 = arith.constant 0 : index
    %c0_11 = arith.constant 0 : index
    %20 = vector.load %arg5[%c0_9, %c0_10, %c0_11] : memref<1x16x64xf32, #tpu.memory_space<vmem>>, vector<1x16x64xf32>
    %21 = vector.shape_cast %20 : vector<1x16x64xf32> to vector<16x64xf32>
    %22 = vector.shape_cast %19 : vector<16x64xf32> to vector<1x16x64xf32>
    tpu.vector_store %arg5[%c0_9, %c0_10, %c0_11], %22 {strides = array<i32>} : memref<1x16x64xf32, #tpu.memory_space<vmem>>, vector<1x16x64xf32>,
    return
  }
  func.func @transform_0(%arg0: i32, %arg1: i32) -> (i32, i32, i32) {
    %c0_i32 = arith.constant 0 : i32
    %c0_i32_0 = arith.constant 0 : i32
    %c0_i32_1 = arith.constant 0 : i32
    return %arg0, %c0_i32, %c0_i32_0 : i32, i32, i32
  }
  func.func @transform_1(%arg0: i32, %arg1: i32) -> (i32, i32) {
    %c0_i32 = arith.constant 0 : i32
    %c0_i32_0 = arith.constant 0 : i32
    %c0_i32_1 = arith.constant 0 : i32
    return %c0_i32, %c0_i32_0 : i32, i32
  }
  func.func @transform_2(%arg0: i32, %arg1: i32) -> (i32, i32) {
    %c0_i32 = arith.constant 0 : i32
    %c0_i32_0 = arith.constant 0 : i32
    %c0_i32_1 = arith.constant 0 : i32
    return %c0_i32, %c0_i32_0 : i32, i32
  }
  func.func @transform_3(%arg0: i32, %arg1: i32) -> (i32, i32, i32) {
    %c0_i32 = arith.constant 0 : i32
    %c0_i32_0 = arith.constant 0 : i32
    return %arg0, %arg1, %c0_i32 : i32, i32, i32
  }
}

module attributes {stable_mosaic.version = 11 : i64} {
  func.func @_conv1d_kernel(%arg0: i32, %arg1: i32, %arg2: memref<1x80x32xf32, #tpu.memory_space<vmem>>, %arg3: memref<32x32xf32, #tpu.memory_space<vmem>>, %arg4: memref<1x32xf32, #tpu.memory_space<vmem>>, %arg5: memref<1x16x32xf32, #tpu.memory_space<vmem>>) attributes {dimension_semantics = [#tpu.dimension_semantics<parallel>, #tpu.dimension_semantics<arbitrary>], iteration_bounds = array<i64: 2, 5>, scalar_prefetch = 0 : i64, scratch_operands = 0 : i64, tpu.core_type = #tpu.core_type<tc>, window_params = [{transform_indices = @transform_0, window_bounds = array<i64: 1, 80, 32>}, {pipeline_mode = #tpu.pipeline_mode<synchronous>, transform_indices = @transform_1, window_bounds = array<i64: 32, 32>}, {pipeline_mode = #tpu.pipeline_mode<synchronous>, transform_indices = @transform_2, window_bounds = array<i64: 1, 32>}, {transform_indices = @transform_3, window_bounds = array<i64: 1, 16, 32>}]} {
    %c16_i32 = arith.constant 16 : i32
    %0 = arith.muli %arg1, %c16_i32 : i32
    %1 = tpu.assume_multiple %0, 16 : i32
    %c0_i32 = arith.constant 0 : i32
    %2 = arith.addi %1, %c0_i32 : i32
    %c0 = arith.constant 0 : index
    %3 = arith.index_cast %2 : i32 to index
    %c0_0 = arith.constant 0 : index
    %4 = vector.load %arg2[%c0, %3, %c0_0] : memref<1x80x32xf32, #tpu.memory_space<vmem>>, vector<1x16x32xf32>
    %5 = vector.shape_cast %4 : vector<1x16x32xf32> to vector<16x32xf32>
    %c0_1 = arith.constant 0 : index
    %c0_2 = arith.constant 0 : index
    %6 = vector.load %arg3[%c0_1, %c0_2] : memref<32x32xf32, #tpu.memory_space<vmem>>, vector<32x32xf32>
    %cst = arith.constant dense<0.000000e+00> : vector<16x32xf32>
    %7 = tpu.matmul %5, %6, %cst {dimension_numbers = #tpu.dot_dimension_numbers<[1], [0], [0], [1], [0, 0, 1, 1], [], []>} : vector<16x32xf32>, vector<32x32xf32>, vector<16x32xf32> -> vector<16x32xf32>
    %c0_3 = arith.constant 0 : index
    %c0_4 = arith.constant 0 : index
    %8 = vector.load %arg4[%c0_3, %c0_4] : memref<1x32xf32, #tpu.memory_space<vmem>>, vector<1x32xf32>
    %9 = vector.broadcast %8 : vector<1x32xf32> to vector<16x32xf32>
    %10 = arith.addf %7, %9 : vector<16x32xf32>
    %cst_5 = arith.constant 0.000000e+00 : f32
    %11 = vector.broadcast %cst_5 : f32 to vector<16x32xf32>
    %12 = arith.maximumf %10, %11 : vector<16x32xf32>
    %c0_6 = arith.constant 0 : index
    %c0_7 = arith.constant 0 : index
    %c0_8 = arith.constant 0 : index
    %13 = vector.load %arg5[%c0_6, %c0_7, %c0_8] : memref<1x16x32xf32, #tpu.memory_space<vmem>>, vector<1x16x32xf32>
    %14 = vector.shape_cast %13 : vector<1x16x32xf32> to vector<16x32xf32>
    %15 = vector.shape_cast %12 : vector<16x32xf32> to vector<1x16x32xf32>
    tpu.vector_store %arg5[%c0_6, %c0_7, %c0_8], %15 {strides = array<i32>} : memref<1x16x32xf32, #tpu.memory_space<vmem>>, vector<1x16x32xf32>,
    return
  }
  func.func @transform_0(%arg0: i32, %arg1: i32) -> (i32, i32, i32) {
    %c0_i32 = arith.constant 0 : i32
    %c0_i32_0 = arith.constant 0 : i32
    %c0_i32_1 = arith.constant 0 : i32
    return %arg0, %c0_i32, %c0_i32_0 : i32, i32, i32
  }
  func.func @transform_1(%arg0: i32, %arg1: i32) -> (i32, i32) {
    %c0_i32 = arith.constant 0 : i32
    %c0_i32_0 = arith.constant 0 : i32
    %c0_i32_1 = arith.constant 0 : i32
    return %c0_i32, %c0_i32_0 : i32, i32
  }
  func.func @transform_2(%arg0: i32, %arg1: i32) -> (i32, i32) {
    %c0_i32 = arith.constant 0 : i32
    %c0_i32_0 = arith.constant 0 : i32
    %c0_i32_1 = arith.constant 0 : i32
    return %c0_i32, %c0_i32_0 : i32, i32
  }
  func.func @transform_3(%arg0: i32, %arg1: i32) -> (i32, i32, i32) {
    %c0_i32 = arith.constant 0 : i32
    %c0_i32_0 = arith.constant 0 : i32
    return %arg0, %arg1, %c0_i32 : i32, i32, i32
  }
}

module attributes {stable_mosaic.version = 11 : i64} {
  func.func @_conv1d_kernel(%arg0: i32, %arg1: i32, %arg2: memref<1x80x32xf32, #tpu.memory_space<vmem>>, %arg3: memref<32x128xf32, #tpu.memory_space<vmem>>, %arg4: memref<1x128xf32, #tpu.memory_space<vmem>>, %arg5: memref<1x16x128xf32, #tpu.memory_space<vmem>>) attributes {dimension_semantics = [#tpu.dimension_semantics<parallel>, #tpu.dimension_semantics<arbitrary>], iteration_bounds = array<i64: 2, 5>, scalar_prefetch = 0 : i64, scratch_operands = 0 : i64, tpu.core_type = #tpu.core_type<tc>, window_params = [{transform_indices = @transform_0, window_bounds = array<i64: 1, 80, 32>}, {pipeline_mode = #tpu.pipeline_mode<synchronous>, transform_indices = @transform_1, window_bounds = array<i64: 32, 128>}, {pipeline_mode = #tpu.pipeline_mode<synchronous>, transform_indices = @transform_2, window_bounds = array<i64: 1, 128>}, {transform_indices = @transform_3, window_bounds = array<i64: 1, 16, 128>}]} {
    %c16_i32 = arith.constant 16 : i32
    %0 = arith.muli %arg1, %c16_i32 : i32
    %1 = tpu.assume_multiple %0, 16 : i32
    %c0_i32 = arith.constant 0 : i32
    %2 = arith.addi %1, %c0_i32 : i32
    %c0 = arith.constant 0 : index
    %3 = arith.index_cast %2 : i32 to index
    %c0_0 = arith.constant 0 : index
    %4 = vector.load %arg2[%c0, %3, %c0_0] : memref<1x80x32xf32, #tpu.memory_space<vmem>>, vector<1x16x32xf32>
    %5 = vector.shape_cast %4 : vector<1x16x32xf32> to vector<16x32xf32>
    %c0_1 = arith.constant 0 : index
    %c0_2 = arith.constant 0 : index
    %6 = vector.load %arg3[%c0_1, %c0_2] : memref<32x128xf32, #tpu.memory_space<vmem>>, vector<32x128xf32>
    %cst = arith.constant dense<0.000000e+00> : vector<16x128xf32>
    %7 = tpu.matmul %5, %6, %cst {dimension_numbers = #tpu.dot_dimension_numbers<[1], [0], [0], [1], [0, 0, 1, 1], [], []>} : vector<16x32xf32>, vector<32x128xf32>, vector<16x128xf32> -> vector<16x128xf32>
    %c0_3 = arith.constant 0 : index
    %c0_4 = arith.constant 0 : index
    %8 = vector.load %arg4[%c0_3, %c0_4] : memref<1x128xf32, #tpu.memory_space<vmem>>, vector<1x128xf32>
    %9 = vector.broadcast %8 : vector<1x128xf32> to vector<16x128xf32>
    %10 = arith.addf %7, %9 : vector<16x128xf32>
    %c0_5 = arith.constant 0 : index
    %c0_6 = arith.constant 0 : index
    %c0_7 = arith.constant 0 : index
    %11 = vector.load %arg5[%c0_5, %c0_6, %c0_7] : memref<1x16x128xf32, #tpu.memory_space<vmem>>, vector<1x16x128xf32>
    %12 = vector.shape_cast %11 : vector<1x16x128xf32> to vector<16x128xf32>
    %13 = vector.shape_cast %10 : vector<16x128xf32> to vector<1x16x128xf32>
    tpu.vector_store %arg5[%c0_5, %c0_6, %c0_7], %13 {strides = array<i32>} : memref<1x16x128xf32, #tpu.memory_space<vmem>>, vector<1x16x128xf32>,
    return
  }
  func.func @transform_0(%arg0: i32, %arg1: i32) -> (i32, i32, i32) {
    %c0_i32 = arith.constant 0 : i32
    %c0_i32_0 = arith.constant 0 : i32
    %c0_i32_1 = arith.constant 0 : i32
    return %arg0, %c0_i32, %c0_i32_0 : i32, i32, i32
  }
  func.func @transform_1(%arg0: i32, %arg1: i32) -> (i32, i32) {
    %c0_i32 = arith.constant 0 : i32
    %c0_i32_0 = arith.constant 0 : i32
    %c0_i32_1 = arith.constant 0 : i32
    return %c0_i32, %c0_i32_0 : i32, i32
  }
  func.func @transform_2(%arg0: i32, %arg1: i32) -> (i32, i32) {
    %c0_i32 = arith.constant 0 : i32
    %c0_i32_0 = arith.constant 0 : i32
    %c0_i32_1 = arith.constant 0 : i32
    return %c0_i32, %c0_i32_0 : i32, i32
  }
  func.func @transform_3(%arg0: i32, %arg1: i32) -> (i32, i32, i32) {
    %c0_i32 = arith.constant 0 : i32
    %c0_i32_0 = arith.constant 0 : i32
    return %arg0, %arg1, %c0_i32 : i32, i32, i32
  }
}

</mosaic_0001>

<llo_original>
// kernel: run_f32.16
$region0: #{run_f32.16}
  #allocation0 [shape = 'u32[]', space=smem, size = 0x4, offset = 0x4, fixed_abs, tag = 'smem constant byte address 0x4 - core index']
  #allocation1 [shape = 'u32[144,128]{1,0:T(1,128)}', space=vmem, size = 0x12000, scoped, tag = 'internal scratch']
  %s0 = inlined_call_operand.vmem [shape: f32[2,26,32], index: 0, kind: input, shape index: {}]
  %s1 = inlined_call_operand.vmem [shape: f32[96,32], index: 1, kind: input, shape index: {}]
  %s2 = inlined_call_operand.vmem [shape: f32[1,32], index: 2, kind: input, shape index: {}]
  %s3 = inlined_call_operand.vmem [shape: f32[32,32], index: 3, kind: input, shape index: {}]
  %s4 = inlined_call_operand.vmem [shape: f32[1,32], index: 4, kind: input, shape index: {}]
  %s5 = inlined_call_operand.vmem [shape: f32[2,8,32], index: 5, kind: output, shape index: {}]
  %s6 = sld [smem:[#allocation0]]
  $region53: #{run_f32.16} parent=0
    _
  %s8 = ssub.s32 1, %s6
  %s9 = scalar_select 0, %s8, %s6
  loop: start=0, step=1, limit=4
  $region2: #{run_f32.16} parent=0 // loop_pre_header
    _
  $region3: #{run_f32.16} parent=0 // loop_header
    %s11 = sphi 0, %s15
    %p12 = scmp.ge.s32.totalorder %s11, 4
    %s18 = sphi 0, %s30
    %s19 = sphi 0, %s26
    %s20 = sphi 0, %s18
    %s21 = sphi 0, %s19
    %s22 = sphi 0, %s20
    %s23 = sphi 0, %s21
    %s33 = sphi 0, %s35
    %s36 = sphi 0, %s33
    %s37 = sphi 0, %s36
    %s53 = sphi 0, %s37
    %s57 = sphi 0, %s57
    %s59 = sphi 0, %s57
    %s60 = sphi 0, %s59
    %s74 = sphi 0, %s60
    %s78 = sphi 0, %s78
    %s80 = sphi 0, %s78
    %s81 = sphi 0, %s80
    %s95 = sphi 0, %s81
    %s99 = sphi 0, %s99
    %s101 = sphi 0, %s99
    %s102 = sphi 0, %s101
    %s116 = sphi 0, %s102
    %s120 = sphi 0, %s120
    %s122 = sphi 0, %s120
    %s123 = sphi 0, %s122
    %s137 = sphi 0, %s123
    %s145 = sphi 0, %s147
    %s148 = sphi 0, %s145
    %s149 = sphi 0, %s148
    %s165 = sphi 0, %s149
  $region4: #{run_f32.16} parent=0 // loop_header_branch
    %14 = sbr.rel (%p12) target = $region8
  $region5: #{run_f32.16} parent=0 // loop_body
    %s16 = ssub.s32 %s11, 1
    %s17 = ssub.s32 %s11, 2
    %s24 = sadd.s32 1, %s19
    %p25 = scmp.ge.s32.totalorder %s24, 1
    %s26 = scalar_select %p25, 0, %s24
    %s27 = sadd.s32 1, %s18
    %s28 = scalar_select %p25, %s27, %s18
    %p29 = scmp.ge.s32.totalorder %s28, 2
    %s30 = scalar_select %p29, 0, %s28
    %s31 = ssub.s32 %s18, %s30
    %p32 = scmp.eq.s32.totalorder %s31, 0
    %s34 = sadd.s32 %s33, 1
    %s35 = scalar_select %p32, %s33, %s34
    %p38 = pneg %p32
    %p39 = scmp.eq.s32.totalorder %s11, 1
    %p40 = por %p38, %p39
    %p41 = scmp.ne.s32.totalorder %s33, %s36
    %p42 = scmp.eq.s32.totalorder %s11, 0
    %p43 = por %p41, %p42
    %p44 = scmp.ne.s32.totalorder %s33, %s36
    %p45 = scmp.eq.s32.totalorder %s16, 1
    %p46 = por %p44, %p45
    %p47 = scmp.ne.s32.totalorder %s36, %s37
    %p48 = scmp.eq.s32.totalorder %s16, 0
    %p49 = por %p47, %p48
    %p50 = scmp.ne.s32.totalorder %s36, %s37
    %p51 = scmp.eq.s32.totalorder %s17, 1
    %p52 = por %p50, %p51
    %p54 = scmp.ne.s32.totalorder %s37, %s53
    %p55 = scmp.eq.s32.totalorder %s17, 0
    %p56 = por %p54, %p55
    %s58 = sadd.s32 %s57, 1
    %p61 = scmp.eq.s32.totalorder %s11, 1
    %p62 = scmp.ne.s32.totalorder %s57, %s59
    %p63 = scmp.eq.s32.totalorder %s11, 0
    %p64 = por %p62, %p63
    %p65 = scmp.ne.s32.totalorder %s57, %s59
    %p66 = scmp.eq.s32.totalorder %s16, 1
    %p67 = por %p65, %p66
    %p68 = scmp.ne.s32.totalorder %s59, %s60
    %p69 = scmp.eq.s32.totalorder %s16, 0
    %p70 = por %p68, %p69
    %p71 = scmp.ne.s32.totalorder %s59, %s60
    %p72 = scmp.eq.s32.totalorder %s17, 1
    %p73 = por %p71, %p72
    %p75 = scmp.ne.s32.totalorder %s60, %s74
    %p76 = scmp.eq.s32.totalorder %s17, 0
    %p77 = por %p75, %p76
    %s79 = sadd.s32 %s78, 1
    %p82 = scmp.eq.s32.totalorder %s11, 1
    %p83 = scmp.ne.s32.totalorder %s78, %s80
    %p84 = scmp.eq.s32.totalorder %s11, 0
    %p85 = por %p83, %p84
    %p86 = scmp.ne.s32.totalorder %s78, %s80
    %p87 = scmp.eq.s32.totalorder %s16, 1
    %p88 = por %p86, %p87
    %p89 = scmp.ne.s32.totalorder %s80, %s81
    %p90 = scmp.eq.s32.totalorder %s16, 0
    %p91 = por %p89, %p90
    %p92 = scmp.ne.s32.totalorder %s80, %s81
    %p93 = scmp.eq.s32.totalorder %s17, 1
    %p94 = por %p92, %p93
    %p96 = scmp.ne.s32.totalorder %s81, %s95
    %p97 = scmp.eq.s32.totalorder %s17, 0
    %p98 = por %p96, %p97
    %s100 = sadd.s32 %s99, 1
    %p103 = scmp.eq.s32.totalorder %s11, 1
    %p104 = scmp.ne.s32.totalorder %s99, %s101
    %p105 = scmp.eq.s32.totalorder %s11, 0
    %p106 = por %p104, %p105
    %p107 = scmp.ne.s32.totalorder %s99, %s101
    %p108 = scmp.eq.s32.totalorder %s16, 1
    %p109 = por %p107, %p108
    %p110 = scmp.ne.s32.totalorder %s101, %s102
    %p111 = scmp.eq.s32.totalorder %s16, 0
    %p112 = por %p110, %p111
    %p113 = scmp.ne.s32.totalorder %s101, %s102
    %p114 = scmp.eq.s32.totalorder %s17, 1
    %p115 = por %p113, %p114
    %p117 = scmp.ne.s32.totalorder %s102, %s116
    %p118 = scmp.eq.s32.totalorder %s17, 0
    %p119 = por %p117, %p118
    %s121 = sadd.s32 %s120, 1
    %p124 = scmp.eq.s32.totalorder %s11, 1
    %p125 = scmp.ne.s32.totalorder %s120, %s122
    %p126 = scmp.eq.s32.totalorder %s11, 0
    %p127 = por %p125, %p126
    %p128 = scmp.ne.s32.totalorder %s120, %s122
    %p129 = scmp.eq.s32.totalorder %s16, 1
    %p130 = por %p128, %p129
    %p131 = scmp.ne.s32.totalorder %s122, %s123
    %p132 = scmp.eq.s32.totalorder %s16, 0
    %p133 = por %p131, %p132
    %p134 = scmp.ne.s32.totalorder %s122, %s123
    %p135 = scmp.eq.s32.totalorder %s17, 1
    %p136 = por %p134, %p135
    %p138 = scmp.ne.s32.totalorder %s123, %s137
    %p139 = scmp.eq.s32.totalorder %s17, 0
    %p140 = por %p138, %p139
    %s141 = ssub.s32 %s18, %s30
    %s142 = ssub.s32 %s19, %s26
    %s143 = sor.u32 %s141, %s142
    %p144 = scmp.eq.s32.totalorder %s143, 0
    %s146 = sadd.s32 %s145, 1
    %s147 = scalar_select %p144, %s145, %s146
    %p150 = pneg %p144
    %p151 = scmp.eq.s32.totalorder %s11, 1
    %p152 = por %p150, %p151
    %p153 = scmp.ne.s32.totalorder %s145, %s148
    %p154 = scmp.eq.s32.totalorder %s11, 0
    %p155 = por %p153, %p154
    %p156 = scmp.ne.s32.totalorder %s145, %s148
    %p157 = scmp.eq.s32.totalorder %s16, 1
    %p158 = por %p156, %p157
    %p159 = scmp.ne.s32.totalorder %s148, %s149
    %p160 = scmp.eq.s32.totalorder %s16, 0
    %p161 = por %p159, %p160
    %p162 = scmp.ne.s32.totalorder %s148, %s149
    %p163 = scmp.eq.s32.totalorder %s17, 1
    %p164 = por %p162, %p163
    %p166 = scmp.ne.s32.totalorder %s149, %s165
    %p167 = scmp.eq.s32.totalorder %s17, 0
    %p168 = por %p166, %p167
    %p169 = scmp.le.s32.totalorder 1, %s11
    %p170 = scmp.lt.s32.totalorder %s11, 3
    %p171 = pnand %p169, %p170
    %p172 = pneg %p171
    // Predicated region
    $region9: #{run_f32.16} parent=5 // pred_check
      _
    $region10: #{run_f32.16} parent=5 // pred_check_branch
      %174 = sbr.rel (%p171) target = $region12
    $region11: #{run_f32.16} parent=5 // pred_region
      %s175 = ssub.s32 %s11, 1
      // Predicated region
      $region13: #{run_f32.16} parent=11 // pred_check
        %p176 = pneg %p70
      $region14: #{run_f32.16} parent=11 // pred_check_branch
        %178 = sbr.rel (%p176) target = $region16
      $region15: #{run_f32.16} parent=11 // pred_region
        _
      $region16: #{run_f32.16} parent=11 // pred_fallthru
        _
      // Predicated region
      $region17: #{run_f32.16} parent=11 // pred_check
        %p179 = pneg %p91
      $region18: #{run_f32.16} parent=11 // pred_check_branch
        %181 = sbr.rel (%p179) target = $region20
      $region19: #{run_f32.16} parent=11 // pred_region
        _
      $region20: #{run_f32.16} parent=11 // pred_fallthru
        _
      // Predicated region
      $region21: #{run_f32.16} parent=11 // pred_check
        %p182 = pneg %p112
      $region22: #{run_f32.16} parent=11 // pred_check_branch
        %184 = sbr.rel (%p182) target = $region24
      $region23: #{run_f32.16} parent=11 // pred_region
        _
      $region24: #{run_f32.16} parent=11 // pred_fallthru
        _
      // Predicated region
      $region25: #{run_f32.16} parent=11 // pred_check
        %p185 = pneg %p133
      $region26: #{run_f32.16} parent=11 // pred_check_branch
        %187 = sbr.rel (%p185) target = $region28
      $region27: #{run_f32.16} parent=11 // pred_region
        _
      $region28: #{run_f32.16} parent=11 // pred_fallthru
        _
    $region12: #{run_f32.16} parent=5 // pred_fallthru
      _
    %p188 = scmp.lt.s32.totalorder %s11, 2
    // Predicated region
    $region29: #{run_f32.16} parent=5 // pred_check
      %p189 = pneg %p188
    $region30: #{run_f32.16} parent=5 // pred_check_branch
      %191 = sbr.rel (%p189) target = $region32
    $region31: #{run_f32.16} parent=5 // pred_region
      // Predicated region
      $region33: #{run_f32.16} parent=31 // pred_check
        %p192 = pneg %p43
      $region34: #{run_f32.16} parent=31 // pred_check_branch
        %194 = sbr.rel (%p192) target = $region36
      $region35: #{run_f32.16} parent=31 // pred_region
        %p195 = scmp.lt.s32.totalorder %s18, 1
        %s196 = scalar_select %p195, %s18, 1
        %s197 = smul.addr %s196, 4
        %s198 = smul.addr %s197, 8
        %s199 = scalar_lea.vmem %s0, %s198
      $region36: #{run_f32.16} parent=31 // pred_fallthru
        _
    $region32: #{run_f32.16} parent=5 // pred_fallthru
      _
    %p200 = scmp.le.s32.totalorder 1, %s11
    %p201 = scmp.lt.s32.totalorder %s11, 3
    %p202 = pnand %p200, %p201
    %p203 = pneg %p202
    // Predicated region
    $region37: #{run_f32.16} parent=5 // pred_check
      _
    $region38: #{run_f32.16} parent=5 // pred_check_branch
      %205 = sbr.rel (%p202) target = $region40
    $region39: #{run_f32.16} parent=5 // pred_region
      %s206 = ssub.s32 %s11, 1
      %p207 = scmp.lt.s32.totalorder %s20, 1
      %s208 = scalar_select %p207, %s20, 1
      %s209 = smul.addr %s208, 4
      %s210 = smul.addr %s209, 8
      %s211 = scalar_lea.vmem %s0, %s210
      %p212 = pneg %p49
      %p213 = pneg %p46
      %p214 = pneg %p70
      %p215 = pneg %p67
      %p216 = pneg %p91
      %p217 = pneg %p88
      %p218 = pneg %p112
      %p219 = pneg %p109
      %p220 = pneg %p133
      %p221 = pneg %p130
      %p222 = pneg %p161
      %p223 = pneg %p158
      %p224 = scmp.lt.s32.totalorder %s20, 1
      %s225 = scalar_select %p224, %s20, 1
      %p226 = scmp.lt.s32.totalorder %s21, 0
      %s227 = scalar_select %p226, %s21, 0
      %s228 = sadd.s32 %s227, %s225
      %s229 = smul.addr %s228, 8
      %s230 = scalar_lea.vmem %s5, %s229
      %p231 = scmp.lt.s32.totalorder %s20, 1
      %s232 = scalar_select %p231, %s20, 1
      %s233 = smul.addr %s232, 4
      %s234 = smul.addr %s233, 8
      %s235 = scalar_lea.vmem %s0, %s234
      %p236 = scmp.lt.s32.totalorder %s20, 1
      %s237 = scalar_select %p236, %s20, 1
      %p238 = scmp.lt.s32.totalorder %s21, 0
      %s239 = scalar_select %p238, %s21, 0
      %s240 = sadd.s32 %s239, %s237
      %s241 = smul.addr %s240, 8
      %s242 = scalar_lea.vmem %s5, %s241
      %s243 = smul.u32 %s21, 8
      %s244 = scalar_lea.vmem %s235, %s243
      %v245 = vld [vmem:[%s244] sm:$0xff]
      %s246 = sadd.s32 %s243, 9
      %s247 = scalar_lea.vmem %s235, %s246
      %v248 = vld [vmem:[%s247] sm:$0xff]
      %s249 = sadd.s32 %s243, 18
      %s250 = scalar_lea.vmem %s235, %s249
      %v251 = vld [vmem:[%s250] sm:$0xff]
      %253 = vrot.lane.b32.xlu0 %v248, 32
      %v254 = vpop.permute.xlu0 %253
      %257 = vrot.lane.b32.xlu0 %v251, 64
      %v258 = vpop.permute.xlu0 %257
      %vm260 = vcmask 261120
      %v261 = vsel %vm260, %v245, %v254
      %vm262 = vcmask 523264
      %v263 = vsel %vm262, %v261, %v258
      %v264 = vmax.f32 %v263, 0.0
      %v265 = vld [vmem:[%s1] sm:$0xff]
      %v266 = vld [vmem:[%s1 + $0x8] sm:$0xff]
      %v267 = vld [vmem:[%s1 + $0x10] sm:$0xff]
      %v268 = vld [vmem:[%s1 + $0x18] sm:$0xff]
      %v269 = vld [vmem:[%s1 + $0x20] sm:$0xff]
      %v270 = vld [vmem:[%s1 + $0x28] sm:$0xff]
      %v271 = vld [vmem:[%s1 + $0x30] sm:$0xff]
      %v272 = vld [vmem:[%s1 + $0x38] sm:$0xff]
      %v273 = vld [vmem:[%s1 + $0x40] sm:$0xff]
      %v274 = vld [vmem:[%s1 + $0x48] sm:$0xff]
      %v275 = vld [vmem:[%s1 + $0x50] sm:$0xff]
      %v276 = vld [vmem:[%s1 + $0x58] sm:$0xff]
      %v277 = vld [vmem:[%s2] sm:$0x1]
      %v279 = vlaneseq
      %v280 = vshrl.u32 %v279, 7
      %v281 = vsub.s32 0, %v280
      %v282 = vrot.slane %v277, %v281
      %vm284 = vcmask 785408
      %v286 = vsel %vm284, %v264, 0
      %288 = vmatprep.subr.mxu0 0.0
      %289 = vmatpush1.msra.mxu0 %v265
      %290 = vmatprep.subr.mxu0 0.0
      %291 = vmatpush1.msra.mxu0 %v266
      %292 = vmatprep.subr.mxu0 0.0
      %293 = vmatpush1.msra.mxu0 %v267
      %294 = vmatprep.subr.mxu0 0.0
      %295 = vmatpush1.msra.mxu0 %v268
      %296 = vmatprep.subr.mxu0 0.0
      %297 = vmatpush1.msra.mxu0 %v269
      %298 = vmatprep.subr.mxu0 0.0
      %299 = vmatpush1.msra.mxu0 %v270
      %300 = vmatprep.subr.mxu0 0.0
      %301 = vmatpush1.msra.mxu0 %v271
      %302 = vmatprep.subr.mxu0 0.0
      %303 = vmatpush1.msra.mxu0 %v272
      %304 = vmatprep.subr.mxu0 0.0
      %305 = vmatpush1.msra.mxu0 %v273
      %306 = vmatprep.subr.mxu0 0.0
      %307 = vmatpush1.msra.mxu0 %v274
      %308 = vmatprep.subr.mxu0 0.0
      %309 = vmatpush1.msra.mxu0 %v275
      %310 = vmatprep.subr.mxu0 0.0
      %311 = vmatpush1.msra.mxu0 %v276
      %312 = vmatprep.subr.mxu0 0.0
      %313 = vmatpush1.msra.mxu0 0.0
      %314 = vmatprep.subr.mxu0 0.0
      %315 = vmatpush1.msra.mxu0 0.0
      %316 = vmatprep.subr.mxu0 0.0
      %317 = vmatpush1.msra.mxu0 0.0
      %318 = vmatprep.subr.mxu0 0.0
      %319 = vmatpush1.msra.mxu0 0.0
      %320 = vmatprep.subr.mxu0 0.0
      %321 = vmatpush1.msra.mxu0 0.0
      %322 = vmatprep.subr.mxu0 0.0
      %323 = vmatpush1.msra.mxu0 0.0
      %324 = vmatprep.subr.mxu0 0.0
      %325 = vmatpush1.msra.mxu0 0.0
      %326 = vmatprep.subr.mxu0 0.0
      %327 = vmatpush1.msra.mxu0 0.0
      %328 = vmatprep.subr.mxu0 0.0
      %329 = vmatpush1.msra.mxu0 0.0
      %330 = vmatprep.subr.mxu0 0.0
      %331 = vmatpush1.msra.mxu0 0.0
      %332 = vmatprep.subr.mxu0 0.0
      %333 = vmatpush1.msra.mxu0 0.0
      %334 = vmatprep.subr.mxu0 0.0
      %335 = vmatpush1.msra.mxu0 0.0
      %336 = vmatprep.subr.mxu0 0.0
      %337 = vmatpush1.msra.mxu0 0.0
      %338 = vmatprep.subr.mxu0 0.0
      %339 = vmatpush1.msra.mxu0 0.0
      %340 = vmatprep.subr.mxu0 0.0
      %341 = vmatpush1.msra.mxu0 0.0
      %342 = vmatprep.subr.mxu0 0.0
      %343 = vmatpush1.msra.mxu0 0.0
      %344 = vmatprep.subr.mxu0 0.0
      %345 = vmatpush1.msra.mxu0 0.0
      %346 = vmatprep.subr.mxu0 0.0
      %347 = vmatpush1.msra.mxu0 0.0
      %348 = vmatprep.subr.mxu0 0.0
      %349 = vmatpush1.msra.mxu0 0.0
      %350 = vmatprep.subr.mxu0 0.0
      %351 = vmatpush1.msra.mxu0 0.0
      %352 = vmatprep.mubr.f32.mxu0 0.0
      %353 = vmatmul.mubr.f32.gmra.mrb[0].mxu0 %v286
      %v354 = vpop.f32.mrb[0].mxu0
      %v355 = vadd.f32 %v282, %v354
      %v356 = vpop.f32.mrb[0].mxu0
      %357 = vdwg.mxu0
      %v358 = vmax.f32 %v355, 0.0
      %v359 = vld [vmem:[%s3] sm:$0xff]
      %v360 = vld [vmem:[%s3 + $0x8] sm:$0xff]
      %v361 = vld [vmem:[%s3 + $0x10] sm:$0xff]
      %v362 = vld [vmem:[%s3 + $0x18] sm:$0xff]
      %v363 = vld [vmem:[%s4] sm:$0x1]
      %v365 = vlaneseq
      %v366 = vshrl.u32 %v365, 7
      %v367 = vsub.s32 0, %v366
      %v368 = vrot.slane %v363, %v367
      %v371 = vsel %vm260, %v358, 0
      %373 = vmatprep.subr.mxu0 0.0
      %374 = vmatpush1.msra.mxu0 %v359
      %375 = vmatprep.subr.mxu0 0.0
      %376 = vmatpush1.msra.mxu0 %v360
      %377 = vmatprep.subr.mxu0 0.0
      %378 = vmatpush1.msra.mxu0 %v361
      %379 = vmatprep.subr.mxu0 0.0
      %380 = vmatpush1.msra.mxu0 %v362
      %381 = vmatprep.subr.mxu0 0.0
      %382 = vmatpush1.msra.mxu0 0.0
      %383 = vmatprep.subr.mxu0 0.0
      %384 = vmatpush1.msra.mxu0 0.0
      %385 = vmatprep.subr.mxu0 0.0
      %386 = vmatpush1.msra.mxu0 0.0
      %387 = vmatprep.subr.mxu0 0.0
      %388 = vmatpush1.msra.mxu0 0.0
      %389 = vmatprep.subr.mxu0 0.0
      %390 = vmatpush1.msra.mxu0 0.0
      %391 = vmatprep.subr.mxu0 0.0
      %392 = vmatpush1.msra.mxu0 0.0
      %393 = vmatprep.subr.mxu0 0.0
      %394 = vmatpush1.msra.mxu0 0.0
      %395 = vmatprep.subr.mxu0 0.0
      %396 = vmatpush1.msra.mxu0 0.0
      %397 = vmatprep.subr.mxu0 0.0
      %398 = vmatpush1.msra.mxu0 0.0
      %399 = vmatprep.subr.mxu0 0.0
      %400 = vmatpush1.msra.mxu0 0.0
      %401 = vmatprep.subr.mxu0 0.0
      %402 = vmatpush1.msra.mxu0 0.0
      %403 = vmatprep.subr.mxu0 0.0
      %404 = vmatpush1.msra.mxu0 0.0
      %405 = vmatprep.subr.mxu0 0.0
      %406 = vmatpush1.msra.mxu0 0.0
      %407 = vmatprep.subr.mxu0 0.0
      %408 = vmatpush1.msra.mxu0 0.0
      %409 = vmatprep.subr.mxu0 0.0
      %410 = vmatpush1.msra.mxu0 0.0
      %411 = vmatprep.subr.mxu0 0.0
      %412 = vmatpush1.msra.mxu0 0.0
      %413 = vmatprep.subr.mxu0 0.0
      %414 = vmatpush1.msra.mxu0 0.0
      %415 = vmatprep.subr.mxu0 0.0
      %416 = vmatpush1.msra.mxu0 0.0
      %417 = vmatprep.subr.mxu0 0.0
      %418 = vmatpush1.msra.mxu0 0.0
      %419 = vmatprep.subr.mxu0 0.0
      %420 = vmatpush1.msra.mxu0 0.0
      %421 = vmatprep.subr.mxu0 0.0
      %422 = vmatpush1.msra.mxu0 0.0
      %423 = vmatprep.subr.mxu0 0.0
      %424 = vmatpush1.msra.mxu0 0.0
      %425 = vmatprep.subr.mxu0 0.0
      %426 = vmatpush1.msra.mxu0 0.0
      %427 = vmatprep.subr.mxu0 0.0
      %428 = vmatpush1.msra.mxu0 0.0
      %429 = vmatprep.subr.mxu0 0.0
      %430 = vmatpush1.msra.mxu0 0.0
      %431 = vmatprep.subr.mxu0 0.0
      %432 = vmatpush1.msra.mxu0 0.0
      %433 = vmatprep.subr.mxu0 0.0
      %434 = vmatpush1.msra.mxu0 0.0
      %435 = vmatprep.subr.mxu0 0.0
      %436 = vmatpush1.msra.mxu0 0.0
      %437 = vmatprep.mubr.f32.mxu0 0.0
      %438 = vmatmul.mubr.f32.gmra.mrb[0].mxu0 %v371
      %v439 = vpop.f32.mrb[0].mxu0
      %v440 = vadd.f32 %v368, %v439
      %v441 = vpop.f32.mrb[0].mxu0
      %442 = vdwg.mxu0
      %v443 = vadd.f32 %v440, %v248
      %444 = vst.msk [vmem:[%s242] sm:$0xff] %vm260, %v443
      %p445 = scmp.lt.s32.totalorder %s20, 1
      %s446 = scalar_select %p445, %s20, 1
      %p447 = scmp.lt.s32.totalorder %s21, 0
      %s448 = scalar_select %p447, %s21, 0
      %s449 = sadd.s32 %s448, %s446
      %s450 = smul.addr %s449, 8
      %s451 = scalar_lea.vmem %s5, %s450
      // Predicated region
      $region41: #{run_f32.16} parent=39 // pred_check
        %p452 = pneg %p158
      $region42: #{run_f32.16} parent=39 // pred_check_branch
        %454 = sbr.rel (%p452) target = $region44
      $region43: #{run_f32.16} parent=39 // pred_region
        _
      $region44: #{run_f32.16} parent=39 // pred_fallthru
        _
    $region40: #{run_f32.16} parent=5 // pred_fallthru
      _
    %p455 = scmp.le.s32.totalorder 2, %s11
    // Predicated region
    $region45: #{run_f32.16} parent=5 // pred_check
      %p456 = pneg %p455
    $region46: #{run_f32.16} parent=5 // pred_check_branch
      %458 = sbr.rel (%p456) target = $region48
    $region47: #{run_f32.16} parent=5 // pred_region
      %s459 = ssub.s32 %s11, 2
      // Predicated region
      $region49: #{run_f32.16} parent=47 // pred_check
        %p460 = pneg %p164
      $region50: #{run_f32.16} parent=47 // pred_check_branch
        %462 = sbr.rel (%p460) target = $region52
      $region51: #{run_f32.16} parent=47 // pred_region
        %p463 = scmp.lt.s32.totalorder %s22, 1
        %s464 = scalar_select %p463, %s22, 1
        %p465 = scmp.lt.s32.totalorder %s23, 0
        %s466 = scalar_select %p465, %s23, 0
        %s467 = sadd.s32 %s466, %s464
        %s468 = smul.addr %s467, 8
        %s469 = scalar_lea.vmem %s5, %s468
      $region52: #{run_f32.16} parent=47 // pred_fallthru
        _
    $region48: #{run_f32.16} parent=5 // pred_fallthru
      _
  $region6: #{run_f32.16} parent=0 // loop_footer
    %s15 = sadd.s32 1, %s11
  $region7: #{run_f32.16} parent=0 // loop_footer_branch
    %10 = sbr.rel target = $region3
  $region8: #{run_f32.16} parent=0 // loop_exit
    _

// kernel: run_f32.15
$region0: #{run_f32.15}
  #allocation0 [shape = 'u32[]', space=smem, size = 0x4, offset = 0x4, fixed_abs, tag = 'smem constant byte address 0x4 - core index']
  #allocation1 [shape = 'u32[144,128]{1,0:T(1,128)}', space=vmem, size = 0x12000, scoped, tag = 'internal scratch']
  %s0 = inlined_call_operand.vmem [shape: f32[2,10,32], index: 0, kind: input, shape index: {}]
  %s1 = inlined_call_operand.vmem [shape: f32[96,32], index: 1, kind: input, shape index: {}]
  %s2 = inlined_call_operand.vmem [shape: f32[1,32], index: 2, kind: input, shape index: {}]
  %s3 = inlined_call_operand.vmem [shape: f32[2,8,32], index: 3, kind: output, shape index: {}]
  %s4 = sld [smem:[#allocation0]]
  $region45: #{run_f32.15} parent=0
    _
  %s6 = ssub.s32 1, %s4
  %s7 = scalar_select 0, %s6, %s4
  loop: start=0, step=1, limit=4
  $region2: #{run_f32.15} parent=0 // loop_pre_header
    _
  $region3: #{run_f32.15} parent=0 // loop_header
    %s9 = sphi 0, %s13
    %p10 = scmp.ge.s32.totalorder %s9, 4
    %s16 = sphi 0, %s28
    %s17 = sphi 0, %s24
    %s18 = sphi 0, %s16
    %s19 = sphi 0, %s17
    %s20 = sphi 0, %s18
    %s21 = sphi 0, %s19
    %s31 = sphi 0, %s33
    %s34 = sphi 0, %s31
    %s35 = sphi 0, %s34
    %s51 = sphi 0, %s35
    %s55 = sphi 0, %s55
    %s57 = sphi 0, %s55
    %s58 = sphi 0, %s57
    %s72 = sphi 0, %s58
    %s76 = sphi 0, %s76
    %s78 = sphi 0, %s76
    %s79 = sphi 0, %s78
    %s93 = sphi 0, %s79
    %s101 = sphi 0, %s103
    %s104 = sphi 0, %s101
    %s105 = sphi 0, %s104
    %s121 = sphi 0, %s105
  $region4: #{run_f32.15} parent=0 // loop_header_branch
    %12 = sbr.rel (%p10) target = $region8
  $region5: #{run_f32.15} parent=0 // loop_body
    %s14 = ssub.s32 %s9, 1
    %s15 = ssub.s32 %s9, 2
    %s22 = sadd.s32 1, %s17
    %p23 = scmp.ge.s32.totalorder %s22, 1
    %s24 = scalar_select %p23, 0, %s22
    %s25 = sadd.s32 1, %s16
    %s26 = scalar_select %p23, %s25, %s16
    %p27 = scmp.ge.s32.totalorder %s26, 2
    %s28 = scalar_select %p27, 0, %s26
    %s29 = ssub.s32 %s16, %s28
    %p30 = scmp.eq.s32.totalorder %s29, 0
    %s32 = sadd.s32 %s31, 1
    %s33 = scalar_select %p30, %s31, %s32
    %p36 = pneg %p30
    %p37 = scmp.eq.s32.totalorder %s9, 1
    %p38 = por %p36, %p37
    %p39 = scmp.ne.s32.totalorder %s31, %s34
    %p40 = scmp.eq.s32.totalorder %s9, 0
    %p41 = por %p39, %p40
    %p42 = scmp.ne.s32.totalorder %s31, %s34
    %p43 = scmp.eq.s32.totalorder %s14, 1
    %p44 = por %p42, %p43
    %p45 = scmp.ne.s32.totalorder %s34, %s35
    %p46 = scmp.eq.s32.totalorder %s14, 0
    %p47 = por %p45, %p46
    %p48 = scmp.ne.s32.totalorder %s34, %s35
    %p49 = scmp.eq.s32.totalorder %s15, 1
    %p50 = por %p48, %p49
    %p52 = scmp.ne.s32.totalorder %s35, %s51
    %p53 = scmp.eq.s32.totalorder %s15, 0
    %p54 = por %p52, %p53
    %s56 = sadd.s32 %s55, 1
    %p59 = scmp.eq.s32.totalorder %s9, 1
    %p60 = scmp.ne.s32.totalorder %s55, %s57
    %p61 = scmp.eq.s32.totalorder %s9, 0
    %p62 = por %p60, %p61
    %p63 = scmp.ne.s32.totalorder %s55, %s57
    %p64 = scmp.eq.s32.totalorder %s14, 1
    %p65 = por %p63, %p64
    %p66 = scmp.ne.s32.totalorder %s57, %s58
    %p67 = scmp.eq.s32.totalorder %s14, 0
    %p68 = por %p66, %p67
    %p69 = scmp.ne.s32.totalorder %s57, %s58
    %p70 = scmp.eq.s32.totalorder %s15, 1
    %p71 = por %p69, %p70
    %p73 = scmp.ne.s32.totalorder %s58, %s72
    %p74 = scmp.eq.s32.totalorder %s15, 0
    %p75 = por %p73, %p74
    %s77 = sadd.s32 %s76, 1
    %p80 = scmp.eq.s32.totalorder %s9, 1
    %p81 = scmp.ne.s32.totalorder %s76, %s78
    %p82 = scmp.eq.s32.totalorder %s9, 0
    %p83 = por %p81, %p82
    %p84 = scmp.ne.s32.totalorder %s76, %s78
    %p85 = scmp.eq.s32.totalorder %s14, 1
    %p86 = por %p84, %p85
    %p87 = scmp.ne.s32.totalorder %s78, %s79
    %p88 = scmp.eq.s32.totalorder %s14, 0
    %p89 = por %p87, %p88
    %p90 = scmp.ne.s32.totalorder %s78, %s79
    %p91 = scmp.eq.s32.totalorder %s15, 1
    %p92 = por %p90, %p91
    %p94 = scmp.ne.s32.totalorder %s79, %s93
    %p95 = scmp.eq.s32.totalorder %s15, 0
    %p96 = por %p94, %p95
    %s97 = ssub.s32 %s16, %s28
    %s98 = ssub.s32 %s17, %s24
    %s99 = sor.u32 %s97, %s98
    %p100 = scmp.eq.s32.totalorder %s99, 0
    %s102 = sadd.s32 %s101, 1
    %s103 = scalar_select %p100, %s101, %s102
    %p106 = pneg %p100
    %p107 = scmp.eq.s32.totalorder %s9, 1
    %p108 = por %p106, %p107
    %p109 = scmp.ne.s32.totalorder %s101, %s104
    %p110 = scmp.eq.s32.totalorder %s9, 0
    %p111 = por %p109, %p110
    %p112 = scmp.ne.s32.totalorder %s101, %s104
    %p113 = scmp.eq.s32.totalorder %s14, 1
    %p114 = por %p112, %p113
    %p115 = scmp.ne.s32.totalorder %s104, %s105
    %p116 = scmp.eq.s32.totalorder %s14, 0
    %p117 = por %p115, %p116
    %p118 = scmp.ne.s32.totalorder %s104, %s105
    %p119 = scmp.eq.s32.totalorder %s15, 1
    %p120 = por %p118, %p119
    %p122 = scmp.ne.s32.totalorder %s105, %s121
    %p123 = scmp.eq.s32.totalorder %s15, 0
    %p124 = por %p122, %p123
    %p125 = scmp.le.s32.totalorder 1, %s9
    %p126 = scmp.lt.s32.totalorder %s9, 3
    %p127 = pnand %p125, %p126
    %p128 = pneg %p127
    // Predicated region
    $region9: #{run_f32.15} parent=5 // pred_check
      _
    $region10: #{run_f32.15} parent=5 // pred_check_branch
      %130 = sbr.rel (%p127) target = $region12
    $region11: #{run_f32.15} parent=5 // pred_region
      %s131 = ssub.s32 %s9, 1
      // Predicated region
      $region13: #{run_f32.15} parent=11 // pred_check
        %p132 = pneg %p68
      $region14: #{run_f32.15} parent=11 // pred_check_branch
        %134 = sbr.rel (%p132) target = $region16
      $region15: #{run_f32.15} parent=11 // pred_region
        _
      $region16: #{run_f32.15} parent=11 // pred_fallthru
        _
      // Predicated region
      $region17: #{run_f32.15} parent=11 // pred_check
        %p135 = pneg %p89
      $region18: #{run_f32.15} parent=11 // pred_check_branch
        %137 = sbr.rel (%p135) target = $region20
      $region19: #{run_f32.15} parent=11 // pred_region
        _
      $region20: #{run_f32.15} parent=11 // pred_fallthru
        _
    $region12: #{run_f32.15} parent=5 // pred_fallthru
      _
    %p138 = scmp.lt.s32.totalorder %s9, 2
    // Predicated region
    $region21: #{run_f32.15} parent=5 // pred_check
      %p139 = pneg %p138
    $region22: #{run_f32.15} parent=5 // pred_check_branch
      %141 = sbr.rel (%p139) target = $region24
    $region23: #{run_f32.15} parent=5 // pred_region
      // Predicated region
      $region25: #{run_f32.15} parent=23 // pred_check
        %p142 = pneg %p41
      $region26: #{run_f32.15} parent=23 // pred_check_branch
        %144 = sbr.rel (%p142) target = $region28
      $region27: #{run_f32.15} parent=23 // pred_region
        %p145 = scmp.lt.s32.totalorder %s16, 1
        %s146 = scalar_select %p145, %s16, 1
        %s147 = smul.addr %s146, 2
        %s148 = smul.addr %s147, 8
        %s149 = scalar_lea.vmem %s0, %s148
      $region28: #{run_f32.15} parent=23 // pred_fallthru
        _
    $region24: #{run_f32.15} parent=5 // pred_fallthru
      _
    %p150 = scmp.le.s32.totalorder 1, %s9
    %p151 = scmp.lt.s32.totalorder %s9, 3
    %p152 = pnand %p150, %p151
    %p153 = pneg %p152
    // Predicated region
    $region29: #{run_f32.15} parent=5 // pred_check
      _
    $region30: #{run_f32.15} parent=5 // pred_check_branch
      %155 = sbr.rel (%p152) target = $region32
    $region31: #{run_f32.15} parent=5 // pred_region
      %s156 = ssub.s32 %s9, 1
      %p157 = scmp.lt.s32.totalorder %s18, 1
      %s158 = scalar_select %p157, %s18, 1
      %s159 = smul.addr %s158, 2
      %s160 = smul.addr %s159, 8
      %s161 = scalar_lea.vmem %s0, %s160
      %p162 = pneg %p47
      %p163 = pneg %p44
      %p164 = pneg %p68
      %p165 = pneg %p65
      %p166 = pneg %p89
      %p167 = pneg %p86
      %p168 = pneg %p117
      %p169 = pneg %p114
      %p170 = scmp.lt.s32.totalorder %s18, 1
      %s171 = scalar_select %p170, %s18, 1
      %p172 = scmp.lt.s32.totalorder %s19, 0
      %s173 = scalar_select %p172, %s19, 0
      %s174 = sadd.s32 %s173, %s171
      %s175 = smul.addr %s174, 8
      %s176 = scalar_lea.vmem %s3, %s175
      %p177 = scmp.lt.s32.totalorder %s18, 1
      %s178 = scalar_select %p177, %s18, 1
      %s179 = smul.addr %s178, 2
      %s180 = smul.addr %s179, 8
      %s181 = scalar_lea.vmem %s0, %s180
      %p182 = scmp.lt.s32.totalorder %s18, 1
      %s183 = scalar_select %p182, %s18, 1
      %p184 = scmp.lt.s32.totalorder %s19, 0
      %s185 = scalar_select %p184, %s19, 0
      %s186 = sadd.s32 %s185, %s183
      %s187 = smul.addr %s186, 8
      %s188 = scalar_lea.vmem %s3, %s187
      %s189 = smul.u32 %s19, 8
      %s190 = scalar_lea.vmem %s181, %s189
      %v191 = vld [vmem:[%s190] sm:$0xff]
      %s192 = sadd.s32 %s189, 1
      %s193 = scalar_lea.vmem %s181, %s192
      %v194 = vld [vmem:[%s193] sm:$0xff]
      %s195 = sadd.s32 %s189, 2
      %s196 = scalar_lea.vmem %s181, %s195
      %v197 = vld [vmem:[%s196] sm:$0xff]
      %199 = vrot.lane.b32.xlu0 %v194, 32
      %v200 = vpop.permute.xlu0 %199
      %203 = vrot.lane.b32.xlu0 %v197, 64
      %v204 = vpop.permute.xlu0 %203
      %vm206 = vcmask 261120
      %v207 = vsel %vm206, %v191, %v200
      %vm208 = vcmask 523264
      %v209 = vsel %vm208, %v207, %v204
      %v210 = vld [vmem:[%s1] sm:$0xff]
      %v211 = vld [vmem:[%s1 + $0x8] sm:$0xff]
      %v212 = vld [vmem:[%s1 + $0x10] sm:$0xff]
      %v213 = vld [vmem:[%s1 + $0x18] sm:$0xff]
      %v214 = vld [vmem:[%s1 + $0x20] sm:$0xff]
      %v215 = vld [vmem:[%s1 + $0x28] sm:$0xff]
      %v216 = vld [vmem:[%s1 + $0x30] sm:$0xff]
      %v217 = vld [vmem:[%s1 + $0x38] sm:$0xff]
      %v218 = vld [vmem:[%s1 + $0x40] sm:$0xff]
      %v219 = vld [vmem:[%s1 + $0x48] sm:$0xff]
      %v220 = vld [vmem:[%s1 + $0x50] sm:$0xff]
      %v221 = vld [vmem:[%s1 + $0x58] sm:$0xff]
      %v222 = vld [vmem:[%s2] sm:$0x1]
      %v224 = vlaneseq
      %v225 = vshrl.u32 %v224, 7
      %v226 = vsub.s32 0, %v225
      %v227 = vrot.slane %v222, %v226
      %vm229 = vcmask 785408
      %v231 = vsel %vm229, %v209, 0
      %233 = vmatprep.subr.mxu0 0.0
      %234 = vmatpush1.msra.mxu0 %v210
      %235 = vmatprep.subr.mxu0 0.0
      %236 = vmatpush1.msra.mxu0 %v211
      %237 = vmatprep.subr.mxu0 0.0
      %238 = vmatpush1.msra.mxu0 %v212
      %239 = vmatprep.subr.mxu0 0.0
      %240 = vmatpush1.msra.mxu0 %v213
      %241 = vmatprep.subr.mxu0 0.0
      %242 = vmatpush1.msra.mxu0 %v214
      %243 = vmatprep.subr.mxu0 0.0
      %244 = vmatpush1.msra.mxu0 %v215
      %245 = vmatprep.subr.mxu0 0.0
      %246 = vmatpush1.msra.mxu0 %v216
      %247 = vmatprep.subr.mxu0 0.0
      %248 = vmatpush1.msra.mxu0 %v217
      %249 = vmatprep.subr.mxu0 0.0
      %250 = vmatpush1.msra.mxu0 %v218
      %251 = vmatprep.subr.mxu0 0.0
      %252 = vmatpush1.msra.mxu0 %v219
      %253 = vmatprep.subr.mxu0 0.0
      %254 = vmatpush1.msra.mxu0 %v220
      %255 = vmatprep.subr.mxu0 0.0
      %256 = vmatpush1.msra.mxu0 %v221
      %257 = vmatprep.subr.mxu0 0.0
      %258 = vmatpush1.msra.mxu0 0.0
      %259 = vmatprep.subr.mxu0 0.0
      %260 = vmatpush1.msra.mxu0 0.0
      %261 = vmatprep.subr.mxu0 0.0
      %262 = vmatpush1.msra.mxu0 0.0
      %263 = vmatprep.subr.mxu0 0.0
      %264 = vmatpush1.msra.mxu0 0.0
      %265 = vmatprep.subr.mxu0 0.0
      %266 = vmatpush1.msra.mxu0 0.0
      %267 = vmatprep.subr.mxu0 0.0
      %268 = vmatpush1.msra.mxu0 0.0
      %269 = vmatprep.subr.mxu0 0.0
      %270 = vmatpush1.msra.mxu0 0.0
      %271 = vmatprep.subr.mxu0 0.0
      %272 = vmatpush1.msra.mxu0 0.0
      %273 = vmatprep.subr.mxu0 0.0
      %274 = vmatpush1.msra.mxu0 0.0
      %275 = vmatprep.subr.mxu0 0.0
      %276 = vmatpush1.msra.mxu0 0.0
      %277 = vmatprep.subr.mxu0 0.0
      %278 = vmatpush1.msra.mxu0 0.0
      %279 = vmatprep.subr.mxu0 0.0
      %280 = vmatpush1.msra.mxu0 0.0
      %281 = vmatprep.subr.mxu0 0.0
      %282 = vmatpush1.msra.mxu0 0.0
      %283 = vmatprep.subr.mxu0 0.0
      %284 = vmatpush1.msra.mxu0 0.0
      %285 = vmatprep.subr.mxu0 0.0
      %286 = vmatpush1.msra.mxu0 0.0
      %287 = vmatprep.subr.mxu0 0.0
      %288 = vmatpush1.msra.mxu0 0.0
      %289 = vmatprep.subr.mxu0 0.0
      %290 = vmatpush1.msra.mxu0 0.0
      %291 = vmatprep.subr.mxu0 0.0
      %292 = vmatpush1.msra.mxu0 0.0
      %293 = vmatprep.subr.mxu0 0.0
      %294 = vmatpush1.msra.mxu0 0.0
      %295 = vmatprep.subr.mxu0 0.0
      %296 = vmatpush1.msra.mxu0 0.0
      %297 = vmatprep.mubr.f32.mxu0 0.0
      %298 = vmatmul.mubr.f32.gmra.mrb[0].mxu0 %v231
      %v299 = vpop.f32.mrb[0].mxu0
      %v300 = vadd.f32 %v227, %v299
      %v301 = vpop.f32.mrb[0].mxu0
      %302 = vdwg.mxu0
      %v303 = vmax.f32 %v300, 0.0
      %304 = vst.msk [vmem:[%s188] sm:$0xff] %vm206, %v303
      %p305 = scmp.lt.s32.totalorder %s18, 1
      %s306 = scalar_select %p305, %s18, 1
      %p307 = scmp.lt.s32.totalorder %s19, 0
      %s308 = scalar_select %p307, %s19, 0
      %s309 = sadd.s32 %s308, %s306
      %s310 = smul.addr %s309, 8
      %s311 = scalar_lea.vmem %s3, %s310
      // Predicated region
      $region33: #{run_f32.15} parent=31 // pred_check
        %p312 = pneg %p114
      $region34: #{run_f32.15} parent=31 // pred_check_branch
        %314 = sbr.rel (%p312) target = $region36
      $region35: #{run_f32.15} parent=31 // pred_region
        _
      $region36: #{run_f32.15} parent=31 // pred_fallthru
        _
    $region32: #{run_f32.15} parent=5 // pred_fallthru
      _
    %p315 = scmp.le.s32.totalorder 2, %s9
    // Predicated region
    $region37: #{run_f32.15} parent=5 // pred_check
      %p316 = pneg %p315
    $region38: #{run_f32.15} parent=5 // pred_check_branch
      %318 = sbr.rel (%p316) target = $region40
    $region39: #{run_f32.15} parent=5 // pred_region
      %s319 = ssub.s32 %s9, 2
      // Predicated region
      $region41: #{run_f32.15} parent=39 // pred_check
        %p320 = pneg %p120
      $region42: #{run_f32.15} parent=39 // pred_check_branch
        %322 = sbr.rel (%p320) target = $region44
      $region43: #{run_f32.15} parent=39 // pred_region
        %p323 = scmp.lt.s32.totalorder %s20, 1
        %s324 = scalar_select %p323, %s20, 1
        %p325 = scmp.lt.s32.totalorder %s21, 0
        %s326 = scalar_select %p325, %s21, 0
        %s327 = sadd.s32 %s326, %s324
        %s328 = smul.addr %s327, 8
        %s329 = scalar_lea.vmem %s3, %s328
      $region44: #{run_f32.15} parent=39 // pred_fallthru
        _
    $region40: #{run_f32.15} parent=5 // pred_fallthru
      _
  $region6: #{run_f32.15} parent=0 // loop_footer
    %s13 = sadd.s32 1, %s9
  $region7: #{run_f32.15} parent=0 // loop_footer_branch
    %8 = sbr.rel target = $region3
  $region8: #{run_f32.15} parent=0 // loop_exit
    _

// kernel: run_f32.18
$region0: #{run_f32.18}
  #allocation0 [shape = 'u32[]', space=smem, size = 0x4, offset = 0x4, fixed_abs, tag = 'smem constant byte address 0x4 - core index']
  #allocation1 [shape = 'u32[144,128]{1,0:T(1,128)}', space=vmem, size = 0x12000, scoped, tag = 'internal scratch']
  %s0 = inlined_call_operand.vmem [shape: f32[2,10,32], index: 0, kind: input, shape index: {}]
  %s1 = inlined_call_operand.vmem [shape: f32[96,32], index: 1, kind: input, shape index: {}]
  %s2 = inlined_call_operand.vmem [shape: f32[1,32], index: 2, kind: input, shape index: {}]
  %s3 = inlined_call_operand.vmem [shape: f32[32,32], index: 3, kind: input, shape index: {}]
  %s4 = inlined_call_operand.vmem [shape: f32[1,32], index: 4, kind: input, shape index: {}]
  %s5 = inlined_call_operand.vmem [shape: f32[2,8,32], index: 5, kind: output, shape index: {}]
  %s6 = sld [smem:[#allocation0]]
  $region53: #{run_f32.18} parent=0
    _
  %s8 = ssub.s32 1, %s6
  %s9 = scalar_select 0, %s8, %s6
  loop: start=0, step=1, limit=4
  $region2: #{run_f32.18} parent=0 // loop_pre_header
    _
  $region3: #{run_f32.18} parent=0 // loop_header
    %s11 = sphi 0, %s15
    %p12 = scmp.ge.s32.totalorder %s11, 4
    %s18 = sphi 0, %s30
    %s19 = sphi 0, %s26
    %s20 = sphi 0, %s18
    %s21 = sphi 0, %s19
    %s22 = sphi 0, %s20
    %s23 = sphi 0, %s21
    %s33 = sphi 0, %s35
    %s36 = sphi 0, %s33
    %s37 = sphi 0, %s36
    %s53 = sphi 0, %s37
    %s57 = sphi 0, %s57
    %s59 = sphi 0, %s57
    %s60 = sphi 0, %s59
    %s74 = sphi 0, %s60
    %s78 = sphi 0, %s78
    %s80 = sphi 0, %s78
    %s81 = sphi 0, %s80
    %s95 = sphi 0, %s81
    %s99 = sphi 0, %s99
    %s101 = sphi 0, %s99
    %s102 = sphi 0, %s101
    %s116 = sphi 0, %s102
    %s120 = sphi 0, %s120
    %s122 = sphi 0, %s120
    %s123 = sphi 0, %s122
    %s137 = sphi 0, %s123
    %s145 = sphi 0, %s147
    %s148 = sphi 0, %s145
    %s149 = sphi 0, %s148
    %s165 = sphi 0, %s149
  $region4: #{run_f32.18} parent=0 // loop_header_branch
    %14 = sbr.rel (%p12) target = $region8
  $region5: #{run_f32.18} parent=0 // loop_body
    %s16 = ssub.s32 %s11, 1
    %s17 = ssub.s32 %s11, 2
    %s24 = sadd.s32 1, %s19
    %p25 = scmp.ge.s32.totalorder %s24, 1
    %s26 = scalar_select %p25, 0, %s24
    %s27 = sadd.s32 1, %s18
    %s28 = scalar_select %p25, %s27, %s18
    %p29 = scmp.ge.s32.totalorder %s28, 2
    %s30 = scalar_select %p29, 0, %s28
    %s31 = ssub.s32 %s18, %s30
    %p32 = scmp.eq.s32.totalorder %s31, 0
    %s34 = sadd.s32 %s33, 1
    %s35 = scalar_select %p32, %s33, %s34
    %p38 = pneg %p32
    %p39 = scmp.eq.s32.totalorder %s11, 1
    %p40 = por %p38, %p39
    %p41 = scmp.ne.s32.totalorder %s33, %s36
    %p42 = scmp.eq.s32.totalorder %s11, 0
    %p43 = por %p41, %p42
    %p44 = scmp.ne.s32.totalorder %s33, %s36
    %p45 = scmp.eq.s32.totalorder %s16, 1
    %p46 = por %p44, %p45
    %p47 = scmp.ne.s32.totalorder %s36, %s37
    %p48 = scmp.eq.s32.totalorder %s16, 0
    %p49 = por %p47, %p48
    %p50 = scmp.ne.s32.totalorder %s36, %s37
    %p51 = scmp.eq.s32.totalorder %s17, 1
    %p52 = por %p50, %p51
    %p54 = scmp.ne.s32.totalorder %s37, %s53
    %p55 = scmp.eq.s32.totalorder %s17, 0
    %p56 = por %p54, %p55
    %s58 = sadd.s32 %s57, 1
    %p61 = scmp.eq.s32.totalorder %s11, 1
    %p62 = scmp.ne.s32.totalorder %s57, %s59
    %p63 = scmp.eq.s32.totalorder %s11, 0
    %p64 = por %p62, %p63
    %p65 = scmp.ne.s32.totalorder %s57, %s59
    %p66 = scmp.eq.s32.totalorder %s16, 1
    %p67 = por %p65, %p66
    %p68 = scmp.ne.s32.totalorder %s59, %s60
    %p69 = scmp.eq.s32.totalorder %s16, 0
    %p70 = por %p68, %p69
    %p71 = scmp.ne.s32.totalorder %s59, %s60
    %p72 = scmp.eq.s32.totalorder %s17, 1
    %p73 = por %p71, %p72
    %p75 = scmp.ne.s32.totalorder %s60, %s74
    %p76 = scmp.eq.s32.totalorder %s17, 0
    %p77 = por %p75, %p76
    %s79 = sadd.s32 %s78, 1
    %p82 = scmp.eq.s32.totalorder %s11, 1
    %p83 = scmp.ne.s32.totalorder %s78, %s80
    %p84 = scmp.eq.s32.totalorder %s11, 0
    %p85 = por %p83, %p84
    %p86 = scmp.ne.s32.totalorder %s78, %s80
    %p87 = scmp.eq.s32.totalorder %s16, 1
    %p88 = por %p86, %p87
    %p89 = scmp.ne.s32.totalorder %s80, %s81
    %p90 = scmp.eq.s32.totalorder %s16, 0
    %p91 = por %p89, %p90
    %p92 = scmp.ne.s32.totalorder %s80, %s81
    %p93 = scmp.eq.s32.totalorder %s17, 1
    %p94 = por %p92, %p93
    %p96 = scmp.ne.s32.totalorder %s81, %s95
    %p97 = scmp.eq.s32.totalorder %s17, 0
    %p98 = por %p96, %p97
    %s100 = sadd.s32 %s99, 1
    %p103 = scmp.eq.s32.totalorder %s11, 1
    %p104 = scmp.ne.s32.totalorder %s99, %s101
    %p105 = scmp.eq.s32.totalorder %s11, 0
    %p106 = por %p104, %p105
    %p107 = scmp.ne.s32.totalorder %s99, %s101
    %p108 = scmp.eq.s32.totalorder %s16, 1
    %p109 = por %p107, %p108
    %p110 = scmp.ne.s32.totalorder %s101, %s102
    %p111 = scmp.eq.s32.totalorder %s16, 0
    %p112 = por %p110, %p111
    %p113 = scmp.ne.s32.totalorder %s101, %s102
    %p114 = scmp.eq.s32.totalorder %s17, 1
    %p115 = por %p113, %p114
    %p117 = scmp.ne.s32.totalorder %s102, %s116
    %p118 = scmp.eq.s32.totalorder %s17, 0
    %p119 = por %p117, %p118
    %s121 = sadd.s32 %s120, 1
    %p124 = scmp.eq.s32.totalorder %s11, 1
    %p125 = scmp.ne.s32.totalorder %s120, %s122
    %p126 = scmp.eq.s32.totalorder %s11, 0
    %p127 = por %p125, %p126
    %p128 = scmp.ne.s32.totalorder %s120, %s122
    %p129 = scmp.eq.s32.totalorder %s16, 1
    %p130 = por %p128, %p129
    %p131 = scmp.ne.s32.totalorder %s122, %s123
    %p132 = scmp.eq.s32.totalorder %s16, 0
    %p133 = por %p131, %p132
    %p134 = scmp.ne.s32.totalorder %s122, %s123
    %p135 = scmp.eq.s32.totalorder %s17, 1
    %p136 = por %p134, %p135
    %p138 = scmp.ne.s32.totalorder %s123, %s137
    %p139 = scmp.eq.s32.totalorder %s17, 0
    %p140 = por %p138, %p139
    %s141 = ssub.s32 %s18, %s30
    %s142 = ssub.s32 %s19, %s26
    %s143 = sor.u32 %s141, %s142
    %p144 = scmp.eq.s32.totalorder %s143, 0
    %s146 = sadd.s32 %s145, 1
    %s147 = scalar_select %p144, %s145, %s146
    %p150 = pneg %p144
    %p151 = scmp.eq.s32.totalorder %s11, 1
    %p152 = por %p150, %p151
    %p153 = scmp.ne.s32.totalorder %s145, %s148
    %p154 = scmp.eq.s32.totalorder %s11, 0
    %p155 = por %p153, %p154
    %p156 = scmp.ne.s32.totalorder %s145, %s148
    %p157 = scmp.eq.s32.totalorder %s16, 1
    %p158 = por %p156, %p157
    %p159 = scmp.ne.s32.totalorder %s148, %s149
    %p160 = scmp.eq.s32.totalorder %s16, 0
    %p161 = por %p159, %p160
    %p162 = scmp.ne.s32.totalorder %s148, %s149
    %p163 = scmp.eq.s32.totalorder %s17, 1
    %p164 = por %p162, %p163
    %p166 = scmp.ne.s32.totalorder %s149, %s165
    %p167 = scmp.eq.s32.totalorder %s17, 0
    %p168 = por %p166, %p167
    %p169 = scmp.le.s32.totalorder 1, %s11
    %p170 = scmp.lt.s32.totalorder %s11, 3
    %p171 = pnand %p169, %p170
    %p172 = pneg %p171
    // Predicated region
    $region9: #{run_f32.18} parent=5 // pred_check
      _
    $region10: #{run_f32.18} parent=5 // pred_check_branch
      %174 = sbr.rel (%p171) target = $region12
    $region11: #{run_f32.18} parent=5 // pred_region
      %s175 = ssub.s32 %s11, 1
      // Predicated region
      $region13: #{run_f32.18} parent=11 // pred_check
        %p176 = pneg %p70
      $region14: #{run_f32.18} parent=11 // pred_check_branch
        %178 = sbr.rel (%p176) target = $region16
      $region15: #{run_f32.18} parent=11 // pred_region
        _
      $region16: #{run_f32.18} parent=11 // pred_fallthru
        _
      // Predicated region
      $region17: #{run_f32.18} parent=11 // pred_check
        %p179 = pneg %p91
      $region18: #{run_f32.18} parent=11 // pred_check_branch
        %181 = sbr.rel (%p179) target = $region20
      $region19: #{run_f32.18} parent=11 // pred_region
        _
      $region20: #{run_f32.18} parent=11 // pred_fallthru
        _
      // Predicated region
      $region21: #{run_f32.18} parent=11 // pred_check
        %p182 = pneg %p112
      $region22: #{run_f32.18} parent=11 // pred_check_branch
        %184 = sbr.rel (%p182) target = $region24
      $region23: #{run_f32.18} parent=11 // pred_region
        _
      $region24: #{run_f32.18} parent=11 // pred_fallthru
        _
      // Predicated region
      $region25: #{run_f32.18} parent=11 // pred_check
        %p185 = pneg %p133
      $region26: #{run_f32.18} parent=11 // pred_check_branch
        %187 = sbr.rel (%p185) target = $region28
      $region27: #{run_f32.18} parent=11 // pred_region
        _
      $region28: #{run_f32.18} parent=11 // pred_fallthru
        _
    $region12: #{run_f32.18} parent=5 // pred_fallthru
      _
    %p188 = scmp.lt.s32.totalorder %s11, 2
    // Predicated region
    $region29: #{run_f32.18} parent=5 // pred_check
      %p189 = pneg %p188
    $region30: #{run_f32.18} parent=5 // pred_check_branch
      %191 = sbr.rel (%p189) target = $region32
    $region31: #{run_f32.18} parent=5 // pred_region
      // Predicated region
      $region33: #{run_f32.18} parent=31 // pred_check
        %p192 = pneg %p43
      $region34: #{run_f32.18} parent=31 // pred_check_branch
        %194 = sbr.rel (%p192) target = $region36
      $region35: #{run_f32.18} parent=31 // pred_region
        %p195 = scmp.lt.s32.totalorder %s18, 1
        %s196 = scalar_select %p195, %s18, 1
        %s197 = smul.addr %s196, 2
        %s198 = smul.addr %s197, 8
        %s199 = scalar_lea.vmem %s0, %s198
      $region36: #{run_f32.18} parent=31 // pred_fallthru
        _
    $region32: #{run_f32.18} parent=5 // pred_fallthru
      _
    %p200 = scmp.le.s32.totalorder 1, %s11
    %p201 = scmp.lt.s32.totalorder %s11, 3
    %p202 = pnand %p200, %p201
    %p203 = pneg %p202
    // Predicated region
    $region37: #{run_f32.18} parent=5 // pred_check
      _
    $region38: #{run_f32.18} parent=5 // pred_check_branch
      %205 = sbr.rel (%p202) target = $region40
    $region39: #{run_f32.18} parent=5 // pred_region
      %s206 = ssub.s32 %s11, 1
      %p207 = scmp.lt.s32.totalorder %s20, 1
      %s208 = scalar_select %p207, %s20, 1
      %s209 = smul.addr %s208, 2
      %s210 = smul.addr %s209, 8
      %s211 = scalar_lea.vmem %s0, %s210
      %p212 = pneg %p49
      %p213 = pneg %p46
      %p214 = pneg %p70
      %p215 = pneg %p67
      %p216 = pneg %p91
      %p217 = pneg %p88
      %p218 = pneg %p112
      %p219 = pneg %p109
      %p220 = pneg %p133
      %p221 = pneg %p130
      %p222 = pneg %p161
      %p223 = pneg %p158
      %p224 = scmp.lt.s32.totalorder %s20, 1
      %s225 = scalar_select %p224, %s20, 1
      %p226 = scmp.lt.s32.totalorder %s21, 0
      %s227 = scalar_select %p226, %s21, 0
      %s228 = sadd.s32 %s227, %s225
      %s229 = smul.addr %s228, 8
      %s230 = scalar_lea.vmem %s5, %s229
      %p231 = scmp.lt.s32.totalorder %s20, 1
      %s232 = scalar_select %p231, %s20, 1
      %s233 = smul.addr %s232, 2
      %s234 = smul.addr %s233, 8
      %s235 = scalar_lea.vmem %s0, %s234
      %p236 = scmp.lt.s32.totalorder %s20, 1
      %s237 = scalar_select %p236, %s20, 1
      %p238 = scmp.lt.s32.totalorder %s21, 0
      %s239 = scalar_select %p238, %s21, 0
      %s240 = sadd.s32 %s239, %s237
      %s241 = smul.addr %s240, 8
      %s242 = scalar_lea.vmem %s5, %s241
      %s243 = smul.u32 %s21, 8
      %s244 = scalar_lea.vmem %s235, %s243
      %v245 = vld [vmem:[%s244] sm:$0xff]
      %s246 = sadd.s32 %s243, 1
      %s247 = scalar_lea.vmem %s235, %s246
      %v248 = vld [vmem:[%s247] sm:$0xff]
      %s249 = sadd.s32 %s243, 2
      %s250 = scalar_lea.vmem %s235, %s249
      %v251 = vld [vmem:[%s250] sm:$0xff]
      %253 = vrot.lane.b32.xlu0 %v248, 32
      %v254 = vpop.permute.xlu0 %253
      %257 = vrot.lane.b32.xlu0 %v251, 64
      %v258 = vpop.permute.xlu0 %257
      %vm260 = vcmask 261120
      %v261 = vsel %vm260, %v245, %v254
      %vm262 = vcmask 523264
      %v263 = vsel %vm262, %v261, %v258
      %v264 = vmax.f32 %v263, 0.0
      %v265 = vld [vmem:[%s1] sm:$0xff]
      %v266 = vld [vmem:[%s1 + $0x8] sm:$0xff]
      %v267 = vld [vmem:[%s1 + $0x10] sm:$0xff]
      %v268 = vld [vmem:[%s1 + $0x18] sm:$0xff]
      %v269 = vld [vmem:[%s1 + $0x20] sm:$0xff]
      %v270 = vld [vmem:[%s1 + $0x28] sm:$0xff]
      %v271 = vld [vmem:[%s1 + $0x30] sm:$0xff]
      %v272 = vld [vmem:[%s1 + $0x38] sm:$0xff]
      %v273 = vld [vmem:[%s1 + $0x40] sm:$0xff]
      %v274 = vld [vmem:[%s1 + $0x48] sm:$0xff]
      %v275 = vld [vmem:[%s1 + $0x50] sm:$0xff]
      %v276 = vld [vmem:[%s1 + $0x58] sm:$0xff]
      %v277 = vld [vmem:[%s2] sm:$0x1]
      %v279 = vlaneseq
      %v280 = vshrl.u32 %v279, 7
      %v281 = vsub.s32 0, %v280
      %v282 = vrot.slane %v277, %v281
      %vm284 = vcmask 785408
      %v286 = vsel %vm284, %v264, 0
      %288 = vmatprep.subr.mxu0 0.0
      %289 = vmatpush1.msra.mxu0 %v265
      %290 = vmatprep.subr.mxu0 0.0
      %291 = vmatpush1.msra.mxu0 %v266
      %292 = vmatprep.subr.mxu0 0.0
      %293 = vmatpush1.msra.mxu0 %v267
      %294 = vmatprep.subr.mxu0 0.0
      %295 = vmatpush1.msra.mxu0 %v268
      %296 = vmatprep.subr.mxu0 0.0
      %297 = vmatpush1.msra.mxu0 %v269
      %298 = vmatprep.subr.mxu0 0.0
      %299 = vmatpush1.msra.mxu0 %v270
      %300 = vmatprep.subr.mxu0 0.0
      %301 = vmatpush1.msra.mxu0 %v271
      %302 = vmatprep.subr.mxu0 0.0
      %303 = vmatpush1.msra.mxu0 %v272
      %304 = vmatprep.subr.mxu0 0.0
      %305 = vmatpush1.msra.mxu0 %v273
      %306 = vmatprep.subr.mxu0 0.0
      %307 = vmatpush1.msra.mxu0 %v274
      %308 = vmatprep.subr.mxu0 0.0
      %309 = vmatpush1.msra.mxu0 %v275
      %310 = vmatprep.subr.mxu0 0.0
      %311 = vmatpush1.msra.mxu0 %v276
      %312 = vmatprep.subr.mxu0 0.0
      %313 = vmatpush1.msra.mxu0 0.0
      %314 = vmatprep.subr.mxu0 0.0
      %315 = vmatpush1.msra.mxu0 0.0
      %316 = vmatprep.subr.mxu0 0.0
      %317 = vmatpush1.msra.mxu0 0.0
      %318 = vmatprep.subr.mxu0 0.0
      %319 = vmatpush1.msra.mxu0 0.0
      %320 = vmatprep.subr.mxu0 0.0
      %321 = vmatpush1.msra.mxu0 0.0
      %322 = vmatprep.subr.mxu0 0.0
      %323 = vmatpush1.msra.mxu0 0.0
      %324 = vmatprep.subr.mxu0 0.0
      %325 = vmatpush1.msra.mxu0 0.0
      %326 = vmatprep.subr.mxu0 0.0
      %327 = vmatpush1.msra.mxu0 0.0
      %328 = vmatprep.subr.mxu0 0.0
      %329 = vmatpush1.msra.mxu0 0.0
      %330 = vmatprep.subr.mxu0 0.0
      %331 = vmatpush1.msra.mxu0 0.0
      %332 = vmatprep.subr.mxu0 0.0
      %333 = vmatpush1.msra.mxu0 0.0
      %334 = vmatprep.subr.mxu0 0.0
      %335 = vmatpush1.msra.mxu0 0.0
      %336 = vmatprep.subr.mxu0 0.0
      %337 = vmatpush1.msra.mxu0 0.0
      %338 = vmatprep.subr.mxu0 0.0
      %339 = vmatpush1.msra.mxu0 0.0
      %340 = vmatprep.subr.mxu0 0.0
      %341 = vmatpush1.msra.mxu0 0.0
      %342 = vmatprep.subr.mxu0 0.0
      %343 = vmatpush1.msra.mxu0 0.0
      %344 = vmatprep.subr.mxu0 0.0
      %345 = vmatpush1.msra.mxu0 0.0
      %346 = vmatprep.subr.mxu0 0.0
      %347 = vmatpush1.msra.mxu0 0.0
      %348 = vmatprep.subr.mxu0 0.0
      %349 = vmatpush1.msra.mxu0 0.0
      %350 = vmatprep.subr.mxu0 0.0
      %351 = vmatpush1.msra.mxu0 0.0
      %352 = vmatprep.mubr.f32.mxu0 0.0
      %353 = vmatmul.mubr.f32.gmra.mrb[0].mxu0 %v286
      %v354 = vpop.f32.mrb[0].mxu0
      %v355 = vadd.f32 %v282, %v354
      %v356 = vpop.f32.mrb[0].mxu0
      %357 = vdwg.mxu0
      %v358 = vmax.f32 %v355, 0.0
      %v359 = vld [vmem:[%s3] sm:$0xff]
      %v360 = vld [vmem:[%s3 + $0x8] sm:$0xff]
      %v361 = vld [vmem:[%s3 + $0x10] sm:$0xff]
      %v362 = vld [vmem:[%s3 + $0x18] sm:$0xff]
      %v363 = vld [vmem:[%s4] sm:$0x1]
      %v365 = vlaneseq
      %v366 = vshrl.u32 %v365, 7
      %v367 = vsub.s32 0, %v366
      %v368 = vrot.slane %v363, %v367
      %v371 = vsel %vm260, %v358, 0
      %373 = vmatprep.subr.mxu0 0.0
      %374 = vmatpush1.msra.mxu0 %v359
      %375 = vmatprep.subr.mxu0 0.0
      %376 = vmatpush1.msra.mxu0 %v360
      %377 = vmatprep.subr.mxu0 0.0
      %378 = vmatpush1.msra.mxu0 %v361
      %379 = vmatprep.subr.mxu0 0.0
      %380 = vmatpush1.msra.mxu0 %v362
      %381 = vmatprep.subr.mxu0 0.0
      %382 = vmatpush1.msra.mxu0 0.0
      %383 = vmatprep.subr.mxu0 0.0
      %384 = vmatpush1.msra.mxu0 0.0
      %385 = vmatprep.subr.mxu0 0.0
      %386 = vmatpush1.msra.mxu0 0.0
      %387 = vmatprep.subr.mxu0 0.0
      %388 = vmatpush1.msra.mxu0 0.0
      %389 = vmatprep.subr.mxu0 0.0
      %390 = vmatpush1.msra.mxu0 0.0
      %391 = vmatprep.subr.mxu0 0.0
      %392 = vmatpush1.msra.mxu0 0.0
      %393 = vmatprep.subr.mxu0 0.0
      %394 = vmatpush1.msra.mxu0 0.0
      %395 = vmatprep.subr.mxu0 0.0
      %396 = vmatpush1.msra.mxu0 0.0
      %397 = vmatprep.subr.mxu0 0.0
      %398 = vmatpush1.msra.mxu0 0.0
      %399 = vmatprep.subr.mxu0 0.0
      %400 = vmatpush1.msra.mxu0 0.0
      %401 = vmatprep.subr.mxu0 0.0
      %402 = vmatpush1.msra.mxu0 0.0
      %403 = vmatprep.subr.mxu0 0.0
      %404 = vmatpush1.msra.mxu0 0.0
      %405 = vmatprep.subr.mxu0 0.0
      %406 = vmatpush1.msra.mxu0 0.0
      %407 = vmatprep.subr.mxu0 0.0
      %408 = vmatpush1.msra.mxu0 0.0
      %409 = vmatprep.subr.mxu0 0.0
      %410 = vmatpush1.msra.mxu0 0.0
      %411 = vmatprep.subr.mxu0 0.0
      %412 = vmatpush1.msra.mxu0 0.0
      %413 = vmatprep.subr.mxu0 0.0
      %414 = vmatpush1.msra.mxu0 0.0
      %415 = vmatprep.subr.mxu0 0.0
      %416 = vmatpush1.msra.mxu0 0.0
      %417 = vmatprep.subr.mxu0 0.0
      %418 = vmatpush1.msra.mxu0 0.0
      %419 = vmatprep.subr.mxu0 0.0
      %420 = vmatpush1.msra.mxu0 0.0
      %421 = vmatprep.subr.mxu0 0.0
      %422 = vmatpush1.msra.mxu0 0.0
      %423 = vmatprep.subr.mxu0 0.0
      %424 = vmatpush1.msra.mxu0 0.0
      %425 = vmatprep.subr.mxu0 0.0
      %426 = vmatpush1.msra.mxu0 0.0
      %427 = vmatprep.subr.mxu0 0.0
      %428 = vmatpush1.msra.mxu0 0.0
      %429 = vmatprep.subr.mxu0 0.0
      %430 = vmatpush1.msra.mxu0 0.0
      %431 = vmatprep.subr.mxu0 0.0
      %432 = vmatpush1.msra.mxu0 0.0
      %433 = vmatprep.subr.mxu0 0.0
      %434 = vmatpush1.msra.mxu0 0.0
      %435 = vmatprep.subr.mxu0 0.0
      %436 = vmatpush1.msra.mxu0 0.0
      %437 = vmatprep.mubr.f32.mxu0 0.0
      %438 = vmatmul.mubr.f32.gmra.mrb[0].mxu0 %v371
      %v439 = vpop.f32.mrb[0].mxu0
      %v440 = vadd.f32 %v368, %v439
      %v441 = vpop.f32.mrb[0].mxu0
      %442 = vdwg.mxu0
      %v443 = vadd.f32 %v440, %v248
      %444 = vst.msk [vmem:[%s242] sm:$0xff] %vm260, %v443
      %p445 = scmp.lt.s32.totalorder %s20, 1
      %s446 = scalar_select %p445, %s20, 1
      %p447 = scmp.lt.s32.totalorder %s21, 0
      %s448 = scalar_select %p447, %s21, 0
      %s449 = sadd.s32 %s448, %s446
      %s450 = smul.addr %s449, 8
      %s451 = scalar_lea.vmem %s5, %s450
      // Predicated region
      $region41: #{run_f32.18} parent=39 // pred_check
        %p452 = pneg %p158
      $region42: #{run_f32.18} parent=39 // pred_check_branch
        %454 = sbr.rel (%p452) target = $region44
      $region43: #{run_f32.18} parent=39 // pred_region
        _
      $region44: #{run_f32.18} parent=39 // pred_fallthru
        _
    $region40: #{run_f32.18} parent=5 // pred_fallthru
      _
    %p455 = scmp.le.s32.totalorder 2, %s11
    // Predicated region
    $region45: #{run_f32.18} parent=5 // pred_check
      %p456 = pneg %p455
    $region46: #{run_f32.18} parent=5 // pred_check_branch
      %458 = sbr.rel (%p456) target = $region48
    $region47: #{run_f32.18} parent=5 // pred_region
      %s459 = ssub.s32 %s11, 2
      // Predicated region
      $region49: #{run_f32.18} parent=47 // pred_check
        %p460 = pneg %p164
      $region50: #{run_f32.18} parent=47 // pred_check_branch
        %462 = sbr.rel (%p460) target = $region52
      $region51: #{run_f32.18} parent=47 // pred_region
        %p463 = scmp.lt.s32.totalorder %s22, 1
        %s464 = scalar_select %p463, %s22, 1
        %p465 = scmp.lt.s32.totalorder %s23, 0
        %s466 = scalar_select %p465, %s23, 0
        %s467 = sadd.s32 %s466, %s464
        %s468 = smul.addr %s467, 8
        %s469 = scalar_lea.vmem %s5, %s468
      $region52: #{run_f32.18} parent=47 // pred_fallthru
        _
    $region48: #{run_f32.18} parent=5 // pred_fallthru
      _
  $region6: #{run_f32.18} parent=0 // loop_footer
    %s15 = sadd.s32 1, %s11
  $region7: #{run_f32.18} parent=0 // loop_footer_branch
    %10 = sbr.rel target = $region3
  $region8: #{run_f32.18} parent=0 // loop_exit
    _

// kernel: run_f32.17
$region0: #{run_f32.17}
  #allocation0 [shape = 'u32[]', space=smem, size = 0x4, offset = 0x4, fixed_abs, tag = 'smem constant byte address 0x4 - core index']
  #allocation1 [shape = 'u32[144,128]{1,0:T(1,128)}', space=vmem, size = 0x12000, scoped, tag = 'internal scratch']
  %s0 = inlined_call_operand.vmem [shape: f32[2,14,32], index: 0, kind: input, shape index: {}]
  %s1 = inlined_call_operand.vmem [shape: f32[96,32], index: 1, kind: input, shape index: {}]
  %s2 = inlined_call_operand.vmem [shape: f32[1,32], index: 2, kind: input, shape index: {}]
  %s3 = inlined_call_operand.vmem [shape: f32[32,32], index: 3, kind: input, shape index: {}]
  %s4 = inlined_call_operand.vmem [shape: f32[1,32], index: 4, kind: input, shape index: {}]
  %s5 = inlined_call_operand.vmem [shape: f32[2,8,32], index: 5, kind: output, shape index: {}]
  %s6 = sld [smem:[#allocation0]]
  $region53: #{run_f32.17} parent=0
    _
  %s8 = ssub.s32 1, %s6
  %s9 = scalar_select 0, %s8, %s6
  loop: start=0, step=1, limit=4
  $region2: #{run_f32.17} parent=0 // loop_pre_header
    _
  $region3: #{run_f32.17} parent=0 // loop_header
    %s11 = sphi 0, %s15
    %p12 = scmp.ge.s32.totalorder %s11, 4
    %s18 = sphi 0, %s30
    %s19 = sphi 0, %s26
    %s20 = sphi 0, %s18
    %s21 = sphi 0, %s19
    %s22 = sphi 0, %s20
    %s23 = sphi 0, %s21
    %s33 = sphi 0, %s35
    %s36 = sphi 0, %s33
    %s37 = sphi 0, %s36
    %s53 = sphi 0, %s37
    %s57 = sphi 0, %s57
    %s59 = sphi 0, %s57
    %s60 = sphi 0, %s59
    %s74 = sphi 0, %s60
    %s78 = sphi 0, %s78
    %s80 = sphi 0, %s78
    %s81 = sphi 0, %s80
    %s95 = sphi 0, %s81
    %s99 = sphi 0, %s99
    %s101 = sphi 0, %s99
    %s102 = sphi 0, %s101
    %s116 = sphi 0, %s102
    %s120 = sphi 0, %s120
    %s122 = sphi 0, %s120
    %s123 = sphi 0, %s122
    %s137 = sphi 0, %s123
    %s145 = sphi 0, %s147
    %s148 = sphi 0, %s145
    %s149 = sphi 0, %s148
    %s165 = sphi 0, %s149
  $region4: #{run_f32.17} parent=0 // loop_header_branch
    %14 = sbr.rel (%p12) target = $region8
  $region5: #{run_f32.17} parent=0 // loop_body
    %s16 = ssub.s32 %s11, 1
    %s17 = ssub.s32 %s11, 2
    %s24 = sadd.s32 1, %s19
    %p25 = scmp.ge.s32.totalorder %s24, 1
    %s26 = scalar_select %p25, 0, %s24
    %s27 = sadd.s32 1, %s18
    %s28 = scalar_select %p25, %s27, %s18
    %p29 = scmp.ge.s32.totalorder %s28, 2
    %s30 = scalar_select %p29, 0, %s28
    %s31 = ssub.s32 %s18, %s30
    %p32 = scmp.eq.s32.totalorder %s31, 0
    %s34 = sadd.s32 %s33, 1
    %s35 = scalar_select %p32, %s33, %s34
    %p38 = pneg %p32
    %p39 = scmp.eq.s32.totalorder %s11, 1
    %p40 = por %p38, %p39
    %p41 = scmp.ne.s32.totalorder %s33, %s36
    %p42 = scmp.eq.s32.totalorder %s11, 0
    %p43 = por %p41, %p42
    %p44 = scmp.ne.s32.totalorder %s33, %s36
    %p45 = scmp.eq.s32.totalorder %s16, 1
    %p46 = por %p44, %p45
    %p47 = scmp.ne.s32.totalorder %s36, %s37
    %p48 = scmp.eq.s32.totalorder %s16, 0
    %p49 = por %p47, %p48
    %p50 = scmp.ne.s32.totalorder %s36, %s37
    %p51 = scmp.eq.s32.totalorder %s17, 1
    %p52 = por %p50, %p51
    %p54 = scmp.ne.s32.totalorder %s37, %s53
    %p55 = scmp.eq.s32.totalorder %s17, 0
    %p56 = por %p54, %p55
    %s58 = sadd.s32 %s57, 1
    %p61 = scmp.eq.s32.totalorder %s11, 1
    %p62 = scmp.ne.s32.totalorder %s57, %s59
    %p63 = scmp.eq.s32.totalorder %s11, 0
    %p64 = por %p62, %p63
    %p65 = scmp.ne.s32.totalorder %s57, %s59
    %p66 = scmp.eq.s32.totalorder %s16, 1
    %p67 = por %p65, %p66
    %p68 = scmp.ne.s32.totalorder %s59, %s60
    %p69 = scmp.eq.s32.totalorder %s16, 0
    %p70 = por %p68, %p69
    %p71 = scmp.ne.s32.totalorder %s59, %s60
    %p72 = scmp.eq.s32.totalorder %s17, 1
    %p73 = por %p71, %p72
    %p75 = scmp.ne.s32.totalorder %s60, %s74
    %p76 = scmp.eq.s32.totalorder %s17, 0
    %p77 = por %p75, %p76
    %s79 = sadd.s32 %s78, 1
    %p82 = scmp.eq.s32.totalorder %s11, 1
    %p83 = scmp.ne.s32.totalorder %s78, %s80
    %p84 = scmp.eq.s32.totalorder %s11, 0
    %p85 = por %p83, %p84
    %p86 = scmp.ne.s32.totalorder %s78, %s80
    %p87 = scmp.eq.s32.totalorder %s16, 1
    %p88 = por %p86, %p87
    %p89 = scmp.ne.s32.totalorder %s80, %s81
    %p90 = scmp.eq.s32.totalorder %s16, 0
    %p91 = por %p89, %p90
    %p92 = scmp.ne.s32.totalorder %s80, %s81
    %p93 = scmp.eq.s32.totalorder %s17, 1
    %p94 = por %p92, %p93
    %p96 = scmp.ne.s32.totalorder %s81, %s95
    %p97 = scmp.eq.s32.totalorder %s17, 0
    %p98 = por %p96, %p97
    %s100 = sadd.s32 %s99, 1
    %p103 = scmp.eq.s32.totalorder %s11, 1
    %p104 = scmp.ne.s32.totalorder %s99, %s101
    %p105 = scmp.eq.s32.totalorder %s11, 0
    %p106 = por %p104, %p105
    %p107 = scmp.ne.s32.totalorder %s99, %s101
    %p108 = scmp.eq.s32.totalorder %s16, 1
    %p109 = por %p107, %p108
    %p110 = scmp.ne.s32.totalorder %s101, %s102
    %p111 = scmp.eq.s32.totalorder %s16, 0
    %p112 = por %p110, %p111
    %p113 = scmp.ne.s32.totalorder %s101, %s102
    %p114 = scmp.eq.s32.totalorder %s17, 1
    %p115 = por %p113, %p114
    %p117 = scmp.ne.s32.totalorder %s102, %s116
    %p118 = scmp.eq.s32.totalorder %s17, 0
    %p119 = por %p117, %p118
    %s121 = sadd.s32 %s120, 1
    %p124 = scmp.eq.s32.totalorder %s11, 1
    %p125 = scmp.ne.s32.totalorder %s120, %s122
    %p126 = scmp.eq.s32.totalorder %s11, 0
    %p127 = por %p125, %p126
    %p128 = scmp.ne.s32.totalorder %s120, %s122
    %p129 = scmp.eq.s32.totalorder %s16, 1
    %p130 = por %p128, %p129
    %p131 = scmp.ne.s32.totalorder %s122, %s123
    %p132 = scmp.eq.s32.totalorder %s16, 0
    %p133 = por %p131, %p132
    %p134 = scmp.ne.s32.totalorder %s122, %s123
    %p135 = scmp.eq.s32.totalorder %s17, 1
    %p136 = por %p134, %p135
    %p138 = scmp.ne.s32.totalorder %s123, %s137
    %p139 = scmp.eq.s32.totalorder %s17, 0
    %p140 = por %p138, %p139
    %s141 = ssub.s32 %s18, %s30
    %s142 = ssub.s32 %s19, %s26
    %s143 = sor.u32 %s141, %s142
    %p144 = scmp.eq.s32.totalorder %s143, 0
    %s146 = sadd.s32 %s145, 1
    %s147 = scalar_select %p144, %s145, %s146
    %p150 = pneg %p144
    %p151 = scmp.eq.s32.totalorder %s11, 1
    %p152 = por %p150, %p151
    %p153 = scmp.ne.s32.totalorder %s145, %s148
    %p154 = scmp.eq.s32.totalorder %s11, 0
    %p155 = por %p153, %p154
    %p156 = scmp.ne.s32.totalorder %s145, %s148
    %p157 = scmp.eq.s32.totalorder %s16, 1
    %p158 = por %p156, %p157
    %p159 = scmp.ne.s32.totalorder %s148, %s149
    %p160 = scmp.eq.s32.totalorder %s16, 0
    %p161 = por %p159, %p160
    %p162 = scmp.ne.s32.totalorder %s148, %s149
    %p163 = scmp.eq.s32.totalorder %s17, 1
    %p164 = por %p162, %p163
    %p166 = scmp.ne.s32.totalorder %s149, %s165
    %p167 = scmp.eq.s32.totalorder %s17, 0
    %p168 = por %p166, %p167
    %p169 = scmp.le.s32.totalorder 1, %s11
    %p170 = scmp.lt.s32.totalorder %s11, 3
    %p171 = pnand %p169, %p170
    %p172 = pneg %p171
    // Predicated region
    $region9: #{run_f32.17} parent=5 // pred_check
      _
    $region10: #{run_f32.17} parent=5 // pred_check_branch
      %174 = sbr.rel (%p171) target = $region12
    $region11: #{run_f32.17} parent=5 // pred_region
      %s175 = ssub.s32 %s11, 1
      // Predicated region
      $region13: #{run_f32.17} parent=11 // pred_check
        %p176 = pneg %p70
      $region14: #{run_f32.17} parent=11 // pred_check_branch
        %178 = sbr.rel (%p176) target = $region16
      $region15: #{run_f32.17} parent=11 // pred_region
        _
      $region16: #{run_f32.17} parent=11 // pred_fallthru
        _
      // Predicated region
      $region17: #{run_f32.17} parent=11 // pred_check
        %p179 = pneg %p91
      $region18: #{run_f32.17} parent=11 // pred_check_branch
        %181 = sbr.rel (%p179) target = $region20
      $region19: #{run_f32.17} parent=11 // pred_region
        _
      $region20: #{run_f32.17} parent=11 // pred_fallthru
        _
      // Predicated region
      $region21: #{run_f32.17} parent=11 // pred_check
        %p182 = pneg %p112
      $region22: #{run_f32.17} parent=11 // pred_check_branch
        %184 = sbr.rel (%p182) target = $region24
      $region23: #{run_f32.17} parent=11 // pred_region
        _
      $region24: #{run_f32.17} parent=11 // pred_fallthru
        _
      // Predicated region
      $region25: #{run_f32.17} parent=11 // pred_check
        %p185 = pneg %p133
      $region26: #{run_f32.17} parent=11 // pred_check_branch
        %187 = sbr.rel (%p185) target = $region28
      $region27: #{run_f32.17} parent=11 // pred_region
        _
      $region28: #{run_f32.17} parent=11 // pred_fallthru
        _
    $region12: #{run_f32.17} parent=5 // pred_fallthru
      _
    %p188 = scmp.lt.s32.totalorder %s11, 2
    // Predicated region
    $region29: #{run_f32.17} parent=5 // pred_check
      %p189 = pneg %p188
    $region30: #{run_f32.17} parent=5 // pred_check_branch
      %191 = sbr.rel (%p189) target = $region32
    $region31: #{run_f32.17} parent=5 // pred_region
      // Predicated region
      $region33: #{run_f32.17} parent=31 // pred_check
        %p192 = pneg %p43
      $region34: #{run_f32.17} parent=31 // pred_check_branch
        %194 = sbr.rel (%p192) target = $region36
      $region35: #{run_f32.17} parent=31 // pred_region
        %p195 = scmp.lt.s32.totalorder %s18, 1
        %s196 = scalar_select %p195, %s18, 1
        %s197 = smul.addr %s196, 2
        %s198 = smul.addr %s197, 8
        %s199 = scalar_lea.vmem %s0, %s198
      $region36: #{run_f32.17} parent=31 // pred_fallthru
        _
    $region32: #{run_f32.17} parent=5 // pred_fallthru
      _
    %p200 = scmp.le.s32.totalorder 1, %s11
    %p201 = scmp.lt.s32.totalorder %s11, 3
    %p202 = pnand %p200, %p201
    %p203 = pneg %p202
    // Predicated region
    $region37: #{run_f32.17} parent=5 // pred_check
      _
    $region38: #{run_f32.17} parent=5 // pred_check_branch
      %205 = sbr.rel (%p202) target = $region40
    $region39: #{run_f32.17} parent=5 // pred_region
      %s206 = ssub.s32 %s11, 1
      %p207 = scmp.lt.s32.totalorder %s20, 1
      %s208 = scalar_select %p207, %s20, 1
      %s209 = smul.addr %s208, 2
      %s210 = smul.addr %s209, 8
      %s211 = scalar_lea.vmem %s0, %s210
      %p212 = pneg %p49
      %p213 = pneg %p46
      %p214 = pneg %p70
      %p215 = pneg %p67
      %p216 = pneg %p91
      %p217 = pneg %p88
      %p218 = pneg %p112
      %p219 = pneg %p109
      %p220 = pneg %p133
      %p221 = pneg %p130
      %p222 = pneg %p161
      %p223 = pneg %p158
      %p224 = scmp.lt.s32.totalorder %s20, 1
      %s225 = scalar_select %p224, %s20, 1
      %p226 = scmp.lt.s32.totalorder %s21, 0
      %s227 = scalar_select %p226, %s21, 0
      %s228 = sadd.s32 %s227, %s225
      %s229 = smul.addr %s228, 8
      %s230 = scalar_lea.vmem %s5, %s229
      %p231 = scmp.lt.s32.totalorder %s20, 1
      %s232 = scalar_select %p231, %s20, 1
      %s233 = smul.addr %s232, 2
      %s234 = smul.addr %s233, 8
      %s235 = scalar_lea.vmem %s0, %s234
      %p236 = scmp.lt.s32.totalorder %s20, 1
      %s237 = scalar_select %p236, %s20, 1
      %p238 = scmp.lt.s32.totalorder %s21, 0
      %s239 = scalar_select %p238, %s21, 0
      %s240 = sadd.s32 %s239, %s237
      %s241 = smul.addr %s240, 8
      %s242 = scalar_lea.vmem %s5, %s241
      %s243 = smul.u32 %s21, 8
      %s244 = scalar_lea.vmem %s235, %s243
      %v245 = vld [vmem:[%s244] sm:$0xff]
      %s246 = sadd.s32 %s243, 3
      %s247 = scalar_lea.vmem %s235, %s246
      %v248 = vld [vmem:[%s247] sm:$0xff]
      %s249 = sadd.s32 %s243, 6
      %s250 = scalar_lea.vmem %s235, %s249
      %v251 = vld [vmem:[%s250] sm:$0xff]
      %253 = vrot.lane.b32.xlu0 %v248, 32
      %v254 = vpop.permute.xlu0 %253
      %257 = vrot.lane.b32.xlu0 %v251, 64
      %v258 = vpop.permute.xlu0 %257
      %vm260 = vcmask 261120
      %v261 = vsel %vm260, %v245, %v254
      %vm262 = vcmask 523264
      %v263 = vsel %vm262, %v261, %v258
      %v264 = vmax.f32 %v263, 0.0
      %v265 = vld [vmem:[%s1] sm:$0xff]
      %v266 = vld [vmem:[%s1 + $0x8] sm:$0xff]
      %v267 = vld [vmem:[%s1 + $0x10] sm:$0xff]
      %v268 = vld [vmem:[%s1 + $0x18] sm:$0xff]
      %v269 = vld [vmem:[%s1 + $0x20] sm:$0xff]
      %v270 = vld [vmem:[%s1 + $0x28] sm:$0xff]
      %v271 = vld [vmem:[%s1 + $0x30] sm:$0xff]
      %v272 = vld [vmem:[%s1 + $0x38] sm:$0xff]
      %v273 = vld [vmem:[%s1 + $0x40] sm:$0xff]
      %v274 = vld [vmem:[%s1 + $0x48] sm:$0xff]
      %v275 = vld [vmem:[%s1 + $0x50] sm:$0xff]
      %v276 = vld [vmem:[%s1 + $0x58] sm:$0xff]
      %v277 = vld [vmem:[%s2] sm:$0x1]
      %v279 = vlaneseq
      %v280 = vshrl.u32 %v279, 7
      %v281 = vsub.s32 0, %v280
      %v282 = vrot.slane %v277, %v281
      %vm284 = vcmask 785408
      %v286 = vsel %vm284, %v264, 0
      %288 = vmatprep.subr.mxu0 0.0
      %289 = vmatpush1.msra.mxu0 %v265
      %290 = vmatprep.subr.mxu0 0.0
      %291 = vmatpush1.msra.mxu0 %v266
      %292 = vmatprep.subr.mxu0 0.0
      %293 = vmatpush1.msra.mxu0 %v267
      %294 = vmatprep.subr.mxu0 0.0
      %295 = vmatpush1.msra.mxu0 %v268
      %296 = vmatprep.subr.mxu0 0.0
      %297 = vmatpush1.msra.mxu0 %v269
      %298 = vmatprep.subr.mxu0 0.0
      %299 = vmatpush1.msra.mxu0 %v270
      %300 = vmatprep.subr.mxu0 0.0
      %301 = vmatpush1.msra.mxu0 %v271
      %302 = vmatprep.subr.mxu0 0.0
      %303 = vmatpush1.msra.mxu0 %v272
      %304 = vmatprep.subr.mxu0 0.0
      %305 = vmatpush1.msra.mxu0 %v273
      %306 = vmatprep.subr.mxu0 0.0
      %307 = vmatpush1.msra.mxu0 %v274
      %308 = vmatprep.subr.mxu0 0.0
      %309 = vmatpush1.msra.mxu0 %v275
      %310 = vmatprep.subr.mxu0 0.0
      %311 = vmatpush1.msra.mxu0 %v276
      %312 = vmatprep.subr.mxu0 0.0
      %313 = vmatpush1.msra.mxu0 0.0
      %314 = vmatprep.subr.mxu0 0.0
      %315 = vmatpush1.msra.mxu0 0.0
      %316 = vmatprep.subr.mxu0 0.0
      %317 = vmatpush1.msra.mxu0 0.0
      %318 = vmatprep.subr.mxu0 0.0
      %319 = vmatpush1.msra.mxu0 0.0
      %320 = vmatprep.subr.mxu0 0.0
      %321 = vmatpush1.msra.mxu0 0.0
      %322 = vmatprep.subr.mxu0 0.0
      %323 = vmatpush1.msra.mxu0 0.0
      %324 = vmatprep.subr.mxu0 0.0
      %325 = vmatpush1.msra.mxu0 0.0
      %326 = vmatprep.subr.mxu0 0.0
      %327 = vmatpush1.msra.mxu0 0.0
      %328 = vmatprep.subr.mxu0 0.0
      %329 = vmatpush1.msra.mxu0 0.0
      %330 = vmatprep.subr.mxu0 0.0
      %331 = vmatpush1.msra.mxu0 0.0
      %332 = vmatprep.subr.mxu0 0.0
      %333 = vmatpush1.msra.mxu0 0.0
      %334 = vmatprep.subr.mxu0 0.0
      %335 = vmatpush1.msra.mxu0 0.0
      %336 = vmatprep.subr.mxu0 0.0
      %337 = vmatpush1.msra.mxu0 0.0
      %338 = vmatprep.subr.mxu0 0.0
      %339 = vmatpush1.msra.mxu0 0.0
      %340 = vmatprep.subr.mxu0 0.0
      %341 = vmatpush1.msra.mxu0 0.0
      %342 = vmatprep.subr.mxu0 0.0
      %343 = vmatpush1.msra.mxu0 0.0
      %344 = vmatprep.subr.mxu0 0.0
      %345 = vmatpush1.msra.mxu0 0.0
      %346 = vmatprep.subr.mxu0 0.0
      %347 = vmatpush1.msra.mxu0 0.0
      %348 = vmatprep.subr.mxu0 0.0
      %349 = vmatpush1.msra.mxu0 0.0
      %350 = vmatprep.subr.mxu0 0.0
      %351 = vmatpush1.msra.mxu0 0.0
      %352 = vmatprep.mubr.f32.mxu0 0.0
      %353 = vmatmul.mubr.f32.gmra.mrb[0].mxu0 %v286
      %v354 = vpop.f32.mrb[0].mxu0
      %v355 = vadd.f32 %v282, %v354
      %v356 = vpop.f32.mrb[0].mxu0
      %357 = vdwg.mxu0
      %v358 = vmax.f32 %v355, 0.0
      %v359 = vld [vmem:[%s3] sm:$0xff]
      %v360 = vld [vmem:[%s3 + $0x8] sm:$0xff]
      %v361 = vld [vmem:[%s3 + $0x10] sm:$0xff]
      %v362 = vld [vmem:[%s3 + $0x18] sm:$0xff]
      %v363 = vld [vmem:[%s4] sm:$0x1]
      %v365 = vlaneseq
      %v366 = vshrl.u32 %v365, 7
      %v367 = vsub.s32 0, %v366
      %v368 = vrot.slane %v363, %v367
      %v371 = vsel %vm260, %v358, 0
      %373 = vmatprep.subr.mxu0 0.0
      %374 = vmatpush1.msra.mxu0 %v359
      %375 = vmatprep.subr.mxu0 0.0
      %376 = vmatpush1.msra.mxu0 %v360
      %377 = vmatprep.subr.mxu0 0.0
      %378 = vmatpush1.msra.mxu0 %v361
      %379 = vmatprep.subr.mxu0 0.0
      %380 = vmatpush1.msra.mxu0 %v362
      %381 = vmatprep.subr.mxu0 0.0
      %382 = vmatpush1.msra.mxu0 0.0
      %383 = vmatprep.subr.mxu0 0.0
      %384 = vmatpush1.msra.mxu0 0.0
      %385 = vmatprep.subr.mxu0 0.0
      %386 = vmatpush1.msra.mxu0 0.0
      %387 = vmatprep.subr.mxu0 0.0
      %388 = vmatpush1.msra.mxu0 0.0
      %389 = vmatprep.subr.mxu0 0.0
      %390 = vmatpush1.msra.mxu0 0.0
      %391 = vmatprep.subr.mxu0 0.0
      %392 = vmatpush1.msra.mxu0 0.0
      %393 = vmatprep.subr.mxu0 0.0
      %394 = vmatpush1.msra.mxu0 0.0
      %395 = vmatprep.subr.mxu0 0.0
      %396 = vmatpush1.msra.mxu0 0.0
      %397 = vmatprep.subr.mxu0 0.0
      %398 = vmatpush1.msra.mxu0 0.0
      %399 = vmatprep.subr.mxu0 0.0
      %400 = vmatpush1.msra.mxu0 0.0
      %401 = vmatprep.subr.mxu0 0.0
      %402 = vmatpush1.msra.mxu0 0.0
      %403 = vmatprep.subr.mxu0 0.0
      %404 = vmatpush1.msra.mxu0 0.0
      %405 = vmatprep.subr.mxu0 0.0
      %406 = vmatpush1.msra.mxu0 0.0
      %407 = vmatprep.subr.mxu0 0.0
      %408 = vmatpush1.msra.mxu0 0.0
      %409 = vmatprep.subr.mxu0 0.0
      %410 = vmatpush1.msra.mxu0 0.0
      %411 = vmatprep.subr.mxu0 0.0
      %412 = vmatpush1.msra.mxu0 0.0
      %413 = vmatprep.subr.mxu0 0.0
      %414 = vmatpush1.msra.mxu0 0.0
      %415 = vmatprep.subr.mxu0 0.0
      %416 = vmatpush1.msra.mxu0 0.0
      %417 = vmatprep.subr.mxu0 0.0
      %418 = vmatpush1.msra.mxu0 0.0
      %419 = vmatprep.subr.mxu0 0.0
      %420 = vmatpush1.msra.mxu0 0.0
      %421 = vmatprep.subr.mxu0 0.0
      %422 = vmatpush1.msra.mxu0 0.0
      %423 = vmatprep.subr.mxu0 0.0
      %424 = vmatpush1.msra.mxu0 0.0
      %425 = vmatprep.subr.mxu0 0.0
      %426 = vmatpush1.msra.mxu0 0.0
      %427 = vmatprep.subr.mxu0 0.0
      %428 = vmatpush1.msra.mxu0 0.0
      %429 = vmatprep.subr.mxu0 0.0
      %430 = vmatpush1.msra.mxu0 0.0
      %431 = vmatprep.subr.mxu0 0.0
      %432 = vmatpush1.msra.mxu0 0.0
      %433 = vmatprep.subr.mxu0 0.0
      %434 = vmatpush1.msra.mxu0 0.0
      %435 = vmatprep.subr.mxu0 0.0
      %436 = vmatpush1.msra.mxu0 0.0
      %437 = vmatprep.mubr.f32.mxu0 0.0
      %438 = vmatmul.mubr.f32.gmra.mrb[0].mxu0 %v371
      %v439 = vpop.f32.mrb[0].mxu0
      %v440 = vadd.f32 %v368, %v439
      %v441 = vpop.f32.mrb[0].mxu0
      %442 = vdwg.mxu0
      %v443 = vadd.f32 %v440, %v248
      %444 = vst.msk [vmem:[%s242] sm:$0xff] %vm260, %v443
      %p445 = scmp.lt.s32.totalorder %s20, 1
      %s446 = scalar_select %p445, %s20, 1
      %p447 = scmp.lt.s32.totalorder %s21, 0
      %s448 = scalar_select %p447, %s21, 0
      %s449 = sadd.s32 %s448, %s446
      %s450 = smul.addr %s449, 8
      %s451 = scalar_lea.vmem %s5, %s450
      // Predicated region
      $region41: #{run_f32.17} parent=39 // pred_check
        %p452 = pneg %p158
      $region42: #{run_f32.17} parent=39 // pred_check_branch
        %454 = sbr.rel (%p452) target = $region44
      $region43: #{run_f32.17} parent=39 // pred_region
        _
      $region44: #{run_f32.17} parent=39 // pred_fallthru
        _
    $region40: #{run_f32.17} parent=5 // pred_fallthru
      _
    %p455 = scmp.le.s32.totalorder 2, %s11
    // Predicated region
    $region45: #{run_f32.17} parent=5 // pred_check
      %p456 = pneg %p455
    $region46: #{run_f32.17} parent=5 // pred_check_branch
      %458 = sbr.rel (%p456) target = $region48
    $region47: #{run_f32.17} parent=5 // pred_region
      %s459 = ssub.s32 %s11, 2
      // Predicated region
      $region49: #{run_f32.17} parent=47 // pred_check
        %p460 = pneg %p164
      $region50: #{run_f32.17} parent=47 // pred_check_branch
        %462 = sbr.rel (%p460) target = $region52
      $region51: #{run_f32.17} parent=47 // pred_region
        %p463 = scmp.lt.s32.totalorder %s22, 1
        %s464 = scalar_select %p463, %s22, 1
        %p465 = scmp.lt.s32.totalorder %s23, 0
        %s466 = scalar_select %p465, %s23, 0
        %s467 = sadd.s32 %s466, %s464
        %s468 = smul.addr %s467, 8
        %s469 = scalar_lea.vmem %s5, %s468
      $region52: #{run_f32.17} parent=47 // pred_fallthru
        _
    $region48: #{run_f32.17} parent=5 // pred_fallthru
      _
  $region6: #{run_f32.17} parent=0 // loop_footer
    %s15 = sadd.s32 1, %s11
  $region7: #{run_f32.17} parent=0 // loop_footer_branch
    %10 = sbr.rel target = $region3
  $region8: #{run_f32.17} parent=0 // loop_exit
    _

// kernel: run_f32.19
$region0: #{run_f32.19}
  #allocation0 [shape = 'u32[]', space=smem, size = 0x4, offset = 0x4, fixed_abs, tag = 'smem constant byte address 0x4 - core index']
  #allocation1 [shape = 'u32[144,128]{1,0:T(1,128)}', space=vmem, size = 0x12000, scoped, tag = 'internal scratch']
  %s0 = inlined_call_operand.vmem [shape: f32[2,10,32], index: 0, kind: input, shape index: {}]
  %s1 = inlined_call_operand.vmem [shape: f32[96,64], index: 1, kind: input, shape index: {}]
  %s2 = inlined_call_operand.vmem [shape: f32[1,64], index: 2, kind: input, shape index: {}]
  %s3 = inlined_call_operand.vmem [shape: f32[2,8,64], index: 3, kind: output, shape index: {}]
  %s4 = sld [smem:[#allocation0]]
  $region45: #{run_f32.19} parent=0
    _
  %s6 = ssub.s32 1, %s4
  %s7 = scalar_select 0, %s6, %s4
  loop: start=0, step=1, limit=4
  $region2: #{run_f32.19} parent=0 // loop_pre_header
    _
  $region3: #{run_f32.19} parent=0 // loop_header
    %s9 = sphi 0, %s13
    %p10 = scmp.ge.s32.totalorder %s9, 4
    %s16 = sphi 0, %s28
    %s17 = sphi 0, %s24
    %s18 = sphi 0, %s16
    %s19 = sphi 0, %s17
    %s20 = sphi 0, %s18
    %s21 = sphi 0, %s19
    %s31 = sphi 0, %s33
    %s34 = sphi 0, %s31
    %s35 = sphi 0, %s34
    %s51 = sphi 0, %s35
    %s55 = sphi 0, %s55
    %s57 = sphi 0, %s55
    %s58 = sphi 0, %s57
    %s72 = sphi 0, %s58
    %s76 = sphi 0, %s76
    %s78 = sphi 0, %s76
    %s79 = sphi 0, %s78
    %s93 = sphi 0, %s79
    %s101 = sphi 0, %s103
    %s104 = sphi 0, %s101
    %s105 = sphi 0, %s104
    %s121 = sphi 0, %s105
  $region4: #{run_f32.19} parent=0 // loop_header_branch
    %12 = sbr.rel (%p10) target = $region8
  $region5: #{run_f32.19} parent=0 // loop_body
    %s14 = ssub.s32 %s9, 1
    %s15 = ssub.s32 %s9, 2
    %s22 = sadd.s32 1, %s17
    %p23 = scmp.ge.s32.totalorder %s22, 1
    %s24 = scalar_select %p23, 0, %s22
    %s25 = sadd.s32 1, %s16
    %s26 = scalar_select %p23, %s25, %s16
    %p27 = scmp.ge.s32.totalorder %s26, 2
    %s28 = scalar_select %p27, 0, %s26
    %s29 = ssub.s32 %s16, %s28
    %p30 = scmp.eq.s32.totalorder %s29, 0
    %s32 = sadd.s32 %s31, 1
    %s33 = scalar_select %p30, %s31, %s32
    %p36 = pneg %p30
    %p37 = scmp.eq.s32.totalorder %s9, 1
    %p38 = por %p36, %p37
    %p39 = scmp.ne.s32.totalorder %s31, %s34
    %p40 = scmp.eq.s32.totalorder %s9, 0
    %p41 = por %p39, %p40
    %p42 = scmp.ne.s32.totalorder %s31, %s34
    %p43 = scmp.eq.s32.totalorder %s14, 1
    %p44 = por %p42, %p43
    %p45 = scmp.ne.s32.totalorder %s34, %s35
    %p46 = scmp.eq.s32.totalorder %s14, 0
    %p47 = por %p45, %p46
    %p48 = scmp.ne.s32.totalorder %s34, %s35
    %p49 = scmp.eq.s32.totalorder %s15, 1
    %p50 = por %p48, %p49
    %p52 = scmp.ne.s32.totalorder %s35, %s51
    %p53 = scmp.eq.s32.totalorder %s15, 0
    %p54 = por %p52, %p53
    %s56 = sadd.s32 %s55, 1
    %p59 = scmp.eq.s32.totalorder %s9, 1
    %p60 = scmp.ne.s32.totalorder %s55, %s57
    %p61 = scmp.eq.s32.totalorder %s9, 0
    %p62 = por %p60, %p61
    %p63 = scmp.ne.s32.totalorder %s55, %s57
    %p64 = scmp.eq.s32.totalorder %s14, 1
    %p65 = por %p63, %p64
    %p66 = scmp.ne.s32.totalorder %s57, %s58
    %p67 = scmp.eq.s32.totalorder %s14, 0
    %p68 = por %p66, %p67
    %p69 = scmp.ne.s32.totalorder %s57, %s58
    %p70 = scmp.eq.s32.totalorder %s15, 1
    %p71 = por %p69, %p70
    %p73 = scmp.ne.s32.totalorder %s58, %s72
    %p74 = scmp.eq.s32.totalorder %s15, 0
    %p75 = por %p73, %p74
    %s77 = sadd.s32 %s76, 1
    %p80 = scmp.eq.s32.totalorder %s9, 1
    %p81 = scmp.ne.s32.totalorder %s76, %s78
    %p82 = scmp.eq.s32.totalorder %s9, 0
    %p83 = por %p81, %p82
    %p84 = scmp.ne.s32.totalorder %s76, %s78
    %p85 = scmp.eq.s32.totalorder %s14, 1
    %p86 = por %p84, %p85
    %p87 = scmp.ne.s32.totalorder %s78, %s79
    %p88 = scmp.eq.s32.totalorder %s14, 0
    %p89 = por %p87, %p88
    %p90 = scmp.ne.s32.totalorder %s78, %s79
    %p91 = scmp.eq.s32.totalorder %s15, 1
    %p92 = por %p90, %p91
    %p94 = scmp.ne.s32.totalorder %s79, %s93
    %p95 = scmp.eq.s32.totalorder %s15, 0
    %p96 = por %p94, %p95
    %s97 = ssub.s32 %s16, %s28
    %s98 = ssub.s32 %s17, %s24
    %s99 = sor.u32 %s97, %s98
    %p100 = scmp.eq.s32.totalorder %s99, 0
    %s102 = sadd.s32 %s101, 1
    %s103 = scalar_select %p100, %s101, %s102
    %p106 = pneg %p100
    %p107 = scmp.eq.s32.totalorder %s9, 1
    %p108 = por %p106, %p107
    %p109 = scmp.ne.s32.totalorder %s101, %s104
    %p110 = scmp.eq.s32.totalorder %s9, 0
    %p111 = por %p109, %p110
    %p112 = scmp.ne.s32.totalorder %s101, %s104
    %p113 = scmp.eq.s32.totalorder %s14, 1
    %p114 = por %p112, %p113
    %p115 = scmp.ne.s32.totalorder %s104, %s105
    %p116 = scmp.eq.s32.totalorder %s14, 0
    %p117 = por %p115, %p116
    %p118 = scmp.ne.s32.totalorder %s104, %s105
    %p119 = scmp.eq.s32.totalorder %s15, 1
    %p120 = por %p118, %p119
    %p122 = scmp.ne.s32.totalorder %s105, %s121
    %p123 = scmp.eq.s32.totalorder %s15, 0
    %p124 = por %p122, %p123
    %p125 = scmp.le.s32.totalorder 1, %s9
    %p126 = scmp.lt.s32.totalorder %s9, 3
    %p127 = pnand %p125, %p126
    %p128 = pneg %p127
    // Predicated region
    $region9: #{run_f32.19} parent=5 // pred_check
      _
    $region10: #{run_f32.19} parent=5 // pred_check_branch
      %130 = sbr.rel (%p127) target = $region12
    $region11: #{run_f32.19} parent=5 // pred_region
      %s131 = ssub.s32 %s9, 1
      // Predicated region
      $region13: #{run_f32.19} parent=11 // pred_check
        %p132 = pneg %p68
      $region14: #{run_f32.19} parent=11 // pred_check_branch
        %134 = sbr.rel (%p132) target = $region16
      $region15: #{run_f32.19} parent=11 // pred_region
        _
      $region16: #{run_f32.19} parent=11 // pred_fallthru
        _
      // Predicated region
      $region17: #{run_f32.19} parent=11 // pred_check
        %p135 = pneg %p89
      $region18: #{run_f32.19} parent=11 // pred_check_branch
        %137 = sbr.rel (%p135) target = $region20
      $region19: #{run_f32.19} parent=11 // pred_region
        _
      $region20: #{run_f32.19} parent=11 // pred_fallthru
        _
    $region12: #{run_f32.19} parent=5 // pred_fallthru
      _
    %p138 = scmp.lt.s32.totalorder %s9, 2
    // Predicated region
    $region21: #{run_f32.19} parent=5 // pred_check
      %p139 = pneg %p138
    $region22: #{run_f32.19} parent=5 // pred_check_branch
      %141 = sbr.rel (%p139) target = $region24
    $region23: #{run_f32.19} parent=5 // pred_region
      // Predicated region
      $region25: #{run_f32.19} parent=23 // pred_check
        %p142 = pneg %p41
      $region26: #{run_f32.19} parent=23 // pred_check_branch
        %144 = sbr.rel (%p142) target = $region28
      $region27: #{run_f32.19} parent=23 // pred_region
        %p145 = scmp.lt.s32.totalorder %s16, 1
        %s146 = scalar_select %p145, %s16, 1
        %s147 = smul.addr %s146, 2
        %s148 = smul.addr %s147, 8
        %s149 = scalar_lea.vmem %s0, %s148
      $region28: #{run_f32.19} parent=23 // pred_fallthru
        _
    $region24: #{run_f32.19} parent=5 // pred_fallthru
      _
    %p150 = scmp.le.s32.totalorder 1, %s9
    %p151 = scmp.lt.s32.totalorder %s9, 3
    %p152 = pnand %p150, %p151
    %p153 = pneg %p152
    // Predicated region
    $region29: #{run_f32.19} parent=5 // pred_check
      _
    $region30: #{run_f32.19} parent=5 // pred_check_branch
      %155 = sbr.rel (%p152) target = $region32
    $region31: #{run_f32.19} parent=5 // pred_region
      %s156 = ssub.s32 %s9, 1
      %p157 = scmp.lt.s32.totalorder %s18, 1
      %s158 = scalar_select %p157, %s18, 1
      %s159 = smul.addr %s158, 2
      %s160 = smul.addr %s159, 8
      %s161 = scalar_lea.vmem %s0, %s160
      %p162 = pneg %p47
      %p163 = pneg %p44
      %p164 = pneg %p68
      %p165 = pneg %p65
      %p166 = pneg %p89
      %p167 = pneg %p86
      %p168 = pneg %p117
      %p169 = pneg %p114
      %p170 = scmp.lt.s32.totalorder %s18, 1
      %s171 = scalar_select %p170, %s18, 1
      %p172 = scmp.lt.s32.totalorder %s19, 0
      %s173 = scalar_select %p172, %s19, 0
      %s174 = sadd.s32 %s173, %s171
      %s175 = smul.addr %s174, 8
      %s176 = scalar_lea.vmem %s3, %s175
      %p177 = scmp.lt.s32.totalorder %s18, 1
      %s178 = scalar_select %p177, %s18, 1
      %s179 = smul.addr %s178, 2
      %s180 = smul.addr %s179, 8
      %s181 = scalar_lea.vmem %s0, %s180
      %p182 = scmp.lt.s32.totalorder %s18, 1
      %s183 = scalar_select %p182, %s18, 1
      %p184 = scmp.lt.s32.totalorder %s19, 0
      %s185 = scalar_select %p184, %s19, 0
      %s186 = sadd.s32 %s185, %s183
      %s187 = smul.addr %s186, 8
      %s188 = scalar_lea.vmem %s3, %s187
      %s189 = smul.u32 %s19, 8
      %s190 = scalar_lea.vmem %s181, %s189
      %v191 = vld [vmem:[%s190] sm:$0xff]
      %s192 = sadd.s32 %s189, 1
      %s193 = scalar_lea.vmem %s181, %s192
      %v194 = vld [vmem:[%s193] sm:$0xff]
      %s195 = sadd.s32 %s189, 2
      %s196 = scalar_lea.vmem %s181, %s195
      %v197 = vld [vmem:[%s196] sm:$0xff]
      %199 = vrot.lane.b32.xlu0 %v194, 32
      %v200 = vpop.permute.xlu0 %199
      %203 = vrot.lane.b32.xlu0 %v197, 64
      %v204 = vpop.permute.xlu0 %203
      %vm206 = vcmask 261120
      %v207 = vsel %vm206, %v191, %v200
      %vm208 = vcmask 523264
      %v209 = vsel %vm208, %v207, %v204
      %v210 = vld [vmem:[%s1] sm:$0xff]
      %v211 = vld [vmem:[%s1 + $0x8] sm:$0xff]
      %v212 = vld [vmem:[%s1 + $0x10] sm:$0xff]
      %v213 = vld [vmem:[%s1 + $0x18] sm:$0xff]
      %v214 = vld [vmem:[%s1 + $0x20] sm:$0xff]
      %v215 = vld [vmem:[%s1 + $0x28] sm:$0xff]
      %v216 = vld [vmem:[%s1 + $0x30] sm:$0xff]
      %v217 = vld [vmem:[%s1 + $0x38] sm:$0xff]
      %v218 = vld [vmem:[%s1 + $0x40] sm:$0xff]
      %v219 = vld [vmem:[%s1 + $0x48] sm:$0xff]
      %v220 = vld [vmem:[%s1 + $0x50] sm:$0xff]
      %v221 = vld [vmem:[%s1 + $0x58] sm:$0xff]
      %v222 = vld [vmem:[%s2] sm:$0x1]
      %v224 = vlaneseq
      %v225 = vshrl.u32 %v224, 7
      %v226 = vsub.s32 0, %v225
      %v227 = vrot.slane %v222, %v226
      %vm229 = vcmask 785408
      %v231 = vsel %vm229, %v209, 0
      %233 = vmatprep.subr.mxu0 0.0
      %234 = vmatpush1.msra.mxu0 %v210
      %235 = vmatprep.subr.mxu0 0.0
      %236 = vmatpush1.msra.mxu0 %v211
      %237 = vmatprep.subr.mxu0 0.0
      %238 = vmatpush1.msra.mxu0 %v212
      %239 = vmatprep.subr.mxu0 0.0
      %240 = vmatpush1.msra.mxu0 %v213
      %241 = vmatprep.subr.mxu0 0.0
      %242 = vmatpush1.msra.mxu0 %v214
      %243 = vmatprep.subr.mxu0 0.0
      %244 = vmatpush1.msra.mxu0 %v215
      %245 = vmatprep.subr.mxu0 0.0
      %246 = vmatpush1.msra.mxu0 %v216
      %247 = vmatprep.subr.mxu0 0.0
      %248 = vmatpush1.msra.mxu0 %v217
      %249 = vmatprep.subr.mxu0 0.0
      %250 = vmatpush1.msra.mxu0 %v218
      %251 = vmatprep.subr.mxu0 0.0
      %252 = vmatpush1.msra.mxu0 %v219
      %253 = vmatprep.subr.mxu0 0.0
      %254 = vmatpush1.msra.mxu0 %v220
      %255 = vmatprep.subr.mxu0 0.0
      %256 = vmatpush1.msra.mxu0 %v221
      %257 = vmatprep.subr.mxu0 0.0
      %258 = vmatpush1.msra.mxu0 0.0
      %259 = vmatprep.subr.mxu0 0.0
      %260 = vmatpush1.msra.mxu0 0.0
      %261 = vmatprep.subr.mxu0 0.0
      %262 = vmatpush1.msra.mxu0 0.0
      %263 = vmatprep.subr.mxu0 0.0
      %264 = vmatpush1.msra.mxu0 0.0
      %265 = vmatprep.subr.mxu0 0.0
      %266 = vmatpush1.msra.mxu0 0.0
      %267 = vmatprep.subr.mxu0 0.0
      %268 = vmatpush1.msra.mxu0 0.0
      %269 = vmatprep.subr.mxu0 0.0
      %270 = vmatpush1.msra.mxu0 0.0
      %271 = vmatprep.subr.mxu0 0.0
      %272 = vmatpush1.msra.mxu0 0.0
      %273 = vmatprep.subr.mxu0 0.0
      %274 = vmatpush1.msra.mxu0 0.0
      %275 = vmatprep.subr.mxu0 0.0
      %276 = vmatpush1.msra.mxu0 0.0
      %277 = vmatprep.subr.mxu0 0.0
      %278 = vmatpush1.msra.mxu0 0.0
      %279 = vmatprep.subr.mxu0 0.0
      %280 = vmatpush1.msra.mxu0 0.0
      %281 = vmatprep.subr.mxu0 0.0
      %282 = vmatpush1.msra.mxu0 0.0
      %283 = vmatprep.subr.mxu0 0.0
      %284 = vmatpush1.msra.mxu0 0.0
      %285 = vmatprep.subr.mxu0 0.0
      %286 = vmatpush1.msra.mxu0 0.0
      %287 = vmatprep.subr.mxu0 0.0
      %288 = vmatpush1.msra.mxu0 0.0
      %289 = vmatprep.subr.mxu0 0.0
      %290 = vmatpush1.msra.mxu0 0.0
      %291 = vmatprep.subr.mxu0 0.0
      %292 = vmatpush1.msra.mxu0 0.0
      %293 = vmatprep.subr.mxu0 0.0
      %294 = vmatpush1.msra.mxu0 0.0
      %295 = vmatprep.subr.mxu0 0.0
      %296 = vmatpush1.msra.mxu0 0.0
      %297 = vmatprep.mubr.f32.mxu0 0.0
      %298 = vmatmul.mubr.f32.gmra.mrb[0].mxu0 %v231
      %v299 = vpop.f32.mrb[0].mxu0
      %v300 = vadd.f32 %v227, %v299
      %v301 = vpop.f32.mrb[0].mxu0
      %302 = vdwg.mxu0
      %303 = vst.msk [vmem:[%s188] sm:$0xff] %vm208, %v300
      %p304 = scmp.lt.s32.totalorder %s18, 1
      %s305 = scalar_select %p304, %s18, 1
      %p306 = scmp.lt.s32.totalorder %s19, 0
      %s307 = scalar_select %p306, %s19, 0
      %s308 = sadd.s32 %s307, %s305
      %s309 = smul.addr %s308, 8
      %s310 = scalar_lea.vmem %s3, %s309
      // Predicated region
      $region33: #{run_f32.19} parent=31 // pred_check
        %p311 = pneg %p114
      $region34: #{run_f32.19} parent=31 // pred_check_branch
        %313 = sbr.rel (%p311) target = $region36
      $region35: #{run_f32.19} parent=31 // pred_region
        _
      $region36: #{run_f32.19} parent=31 // pred_fallthru
        _
    $region32: #{run_f32.19} parent=5 // pred_fallthru
      _
    %p314 = scmp.le.s32.totalorder 2, %s9
    // Predicated region
    $region37: #{run_f32.19} parent=5 // pred_check
      %p315 = pneg %p314
    $region38: #{run_f32.19} parent=5 // pred_check_branch
      %317 = sbr.rel (%p315) target = $region40
    $region39: #{run_f32.19} parent=5 // pred_region
      %s318 = ssub.s32 %s9, 2
      // Predicated region
      $region41: #{run_f32.19} parent=39 // pred_check
        %p319 = pneg %p120
      $region42: #{run_f32.19} parent=39 // pred_check_branch
        %321 = sbr.rel (%p319) target = $region44
      $region43: #{run_f32.19} parent=39 // pred_region
        %p322 = scmp.lt.s32.totalorder %s20, 1
        %s323 = scalar_select %p322, %s20, 1
        %p324 = scmp.lt.s32.totalorder %s21, 0
        %s325 = scalar_select %p324, %s21, 0
        %s326 = sadd.s32 %s325, %s323
        %s327 = smul.addr %s326, 8
        %s328 = scalar_lea.vmem %s3, %s327
      $region44: #{run_f32.19} parent=39 // pred_fallthru
        _
    $region40: #{run_f32.19} parent=5 // pred_fallthru
      _
  $region6: #{run_f32.19} parent=0 // loop_footer
    %s13 = sadd.s32 1, %s9
  $region7: #{run_f32.19} parent=0 // loop_footer_branch
    %8 = sbr.rel target = $region3
  $region8: #{run_f32.19} parent=0 // loop_exit
    _

// kernel: run_f32.21
$region0: #{run_f32.21}
  #allocation0 [shape = 'u32[]', space=smem, size = 0x4, offset = 0x4, fixed_abs, tag = 'smem constant byte address 0x4 - core index']
  #allocation1 [shape = 'u32[144,128]{1,0:T(1,128)}', space=vmem, size = 0x12000, scoped, tag = 'internal scratch']
  %s0 = inlined_call_operand.vmem [shape: f32[2,22,32], index: 0, kind: input, shape index: {}]
  %s1 = inlined_call_operand.vmem [shape: f32[96,32], index: 1, kind: input, shape index: {}]
  %s2 = inlined_call_operand.vmem [shape: f32[1,32], index: 2, kind: input, shape index: {}]
  %s3 = inlined_call_operand.vmem [shape: f32[32,32], index: 3, kind: input, shape index: {}]
  %s4 = inlined_call_operand.vmem [shape: f32[1,32], index: 4, kind: input, shape index: {}]
  %s5 = inlined_call_operand.vmem [shape: f32[2,16,32], index: 5, kind: output, shape index: {}]
  %s6 = sld [smem:[#allocation0]]
  $region53: #{run_f32.21} parent=0
    _
  %s8 = ssub.s32 1, %s6
  %s9 = scalar_select 0, %s8, %s6
  loop: start=0, step=1, limit=4
  $region2: #{run_f32.21} parent=0 // loop_pre_header
    _
  $region3: #{run_f32.21} parent=0 // loop_header
    %s11 = sphi 0, %s15
    %p12 = scmp.ge.s32.totalorder %s11, 4
    %s18 = sphi 0, %s30
    %s19 = sphi 0, %s26
    %s20 = sphi 0, %s18
    %s21 = sphi 0, %s19
    %s22 = sphi 0, %s20
    %s23 = sphi 0, %s21
    %s33 = sphi 0, %s35
    %s36 = sphi 0, %s33
    %s37 = sphi 0, %s36
    %s53 = sphi 0, %s37
    %s57 = sphi 0, %s57
    %s59 = sphi 0, %s57
    %s60 = sphi 0, %s59
    %s74 = sphi 0, %s60
    %s78 = sphi 0, %s78
    %s80 = sphi 0, %s78
    %s81 = sphi 0, %s80
    %s95 = sphi 0, %s81
    %s99 = sphi 0, %s99
    %s101 = sphi 0, %s99
    %s102 = sphi 0, %s101
    %s116 = sphi 0, %s102
    %s120 = sphi 0, %s120
    %s122 = sphi 0, %s120
    %s123 = sphi 0, %s122
    %s137 = sphi 0, %s123
    %s145 = sphi 0, %s147
    %s148 = sphi 0, %s145
    %s149 = sphi 0, %s148
    %s165 = sphi 0, %s149
  $region4: #{run_f32.21} parent=0 // loop_header_branch
    %14 = sbr.rel (%p12) target = $region8
  $region5: #{run_f32.21} parent=0 // loop_body
    %s16 = ssub.s32 %s11, 1
    %s17 = ssub.s32 %s11, 2
    %s24 = sadd.s32 1, %s19
    %p25 = scmp.ge.s32.totalorder %s24, 1
    %s26 = scalar_select %p25, 0, %s24
    %s27 = sadd.s32 1, %s18
    %s28 = scalar_select %p25, %s27, %s18
    %p29 = scmp.ge.s32.totalorder %s28, 2
    %s30 = scalar_select %p29, 0, %s28
    %s31 = ssub.s32 %s18, %s30
    %p32 = scmp.eq.s32.totalorder %s31, 0
    %s34 = sadd.s32 %s33, 1
    %s35 = scalar_select %p32, %s33, %s34
    %p38 = pneg %p32
    %p39 = scmp.eq.s32.totalorder %s11, 1
    %p40 = por %p38, %p39
    %p41 = scmp.ne.s32.totalorder %s33, %s36
    %p42 = scmp.eq.s32.totalorder %s11, 0
    %p43 = por %p41, %p42
    %p44 = scmp.ne.s32.totalorder %s33, %s36
    %p45 = scmp.eq.s32.totalorder %s16, 1
    %p46 = por %p44, %p45
    %p47 = scmp.ne.s32.totalorder %s36, %s37
    %p48 = scmp.eq.s32.totalorder %s16, 0
    %p49 = por %p47, %p48
    %p50 = scmp.ne.s32.totalorder %s36, %s37
    %p51 = scmp.eq.s32.totalorder %s17, 1
    %p52 = por %p50, %p51
    %p54 = scmp.ne.s32.totalorder %s37, %s53
    %p55 = scmp.eq.s32.totalorder %s17, 0
    %p56 = por %p54, %p55
    %s58 = sadd.s32 %s57, 1
    %p61 = scmp.eq.s32.totalorder %s11, 1
    %p62 = scmp.ne.s32.totalorder %s57, %s59
    %p63 = scmp.eq.s32.totalorder %s11, 0
    %p64 = por %p62, %p63
    %p65 = scmp.ne.s32.totalorder %s57, %s59
    %p66 = scmp.eq.s32.totalorder %s16, 1
    %p67 = por %p65, %p66
    %p68 = scmp.ne.s32.totalorder %s59, %s60
    %p69 = scmp.eq.s32.totalorder %s16, 0
    %p70 = por %p68, %p69
    %p71 = scmp.ne.s32.totalorder %s59, %s60
    %p72 = scmp.eq.s32.totalorder %s17, 1
    %p73 = por %p71, %p72
    %p75 = scmp.ne.s32.totalorder %s60, %s74
    %p76 = scmp.eq.s32.totalorder %s17, 0
    %p77 = por %p75, %p76
    %s79 = sadd.s32 %s78, 1
    %p82 = scmp.eq.s32.totalorder %s11, 1
    %p83 = scmp.ne.s32.totalorder %s78, %s80
    %p84 = scmp.eq.s32.totalorder %s11, 0
    %p85 = por %p83, %p84
    %p86 = scmp.ne.s32.totalorder %s78, %s80
    %p87 = scmp.eq.s32.totalorder %s16, 1
    %p88 = por %p86, %p87
    %p89 = scmp.ne.s32.totalorder %s80, %s81
    %p90 = scmp.eq.s32.totalorder %s16, 0
    %p91 = por %p89, %p90
    %p92 = scmp.ne.s32.totalorder %s80, %s81
    %p93 = scmp.eq.s32.totalorder %s17, 1
    %p94 = por %p92, %p93
    %p96 = scmp.ne.s32.totalorder %s81, %s95
    %p97 = scmp.eq.s32.totalorder %s17, 0
    %p98 = por %p96, %p97
    %s100 = sadd.s32 %s99, 1
    %p103 = scmp.eq.s32.totalorder %s11, 1
    %p104 = scmp.ne.s32.totalorder %s99, %s101
    %p105 = scmp.eq.s32.totalorder %s11, 0
    %p106 = por %p104, %p105
    %p107 = scmp.ne.s32.totalorder %s99, %s101
    %p108 = scmp.eq.s32.totalorder %s16, 1
    %p109 = por %p107, %p108
    %p110 = scmp.ne.s32.totalorder %s101, %s102
    %p111 = scmp.eq.s32.totalorder %s16, 0
    %p112 = por %p110, %p111
    %p113 = scmp.ne.s32.totalorder %s101, %s102
    %p114 = scmp.eq.s32.totalorder %s17, 1
    %p115 = por %p113, %p114
    %p117 = scmp.ne.s32.totalorder %s102, %s116
    %p118 = scmp.eq.s32.totalorder %s17, 0
    %p119 = por %p117, %p118
    %s121 = sadd.s32 %s120, 1
    %p124 = scmp.eq.s32.totalorder %s11, 1
    %p125 = scmp.ne.s32.totalorder %s120, %s122
    %p126 = scmp.eq.s32.totalorder %s11, 0
    %p127 = por %p125, %p126
    %p128 = scmp.ne.s32.totalorder %s120, %s122
    %p129 = scmp.eq.s32.totalorder %s16, 1
    %p130 = por %p128, %p129
    %p131 = scmp.ne.s32.totalorder %s122, %s123
    %p132 = scmp.eq.s32.totalorder %s16, 0
    %p133 = por %p131, %p132
    %p134 = scmp.ne.s32.totalorder %s122, %s123
    %p135 = scmp.eq.s32.totalorder %s17, 1
    %p136 = por %p134, %p135
    %p138 = scmp.ne.s32.totalorder %s123, %s137
    %p139 = scmp.eq.s32.totalorder %s17, 0
    %p140 = por %p138, %p139
    %s141 = ssub.s32 %s18, %s30
    %s142 = ssub.s32 %s19, %s26
    %s143 = sor.u32 %s141, %s142
    %p144 = scmp.eq.s32.totalorder %s143, 0
    %s146 = sadd.s32 %s145, 1
    %s147 = scalar_select %p144, %s145, %s146
    %p150 = pneg %p144
    %p151 = scmp.eq.s32.totalorder %s11, 1
    %p152 = por %p150, %p151
    %p153 = scmp.ne.s32.totalorder %s145, %s148
    %p154 = scmp.eq.s32.totalorder %s11, 0
    %p155 = por %p153, %p154
    %p156 = scmp.ne.s32.totalorder %s145, %s148
    %p157 = scmp.eq.s32.totalorder %s16, 1
    %p158 = por %p156, %p157
    %p159 = scmp.ne.s32.totalorder %s148, %s149
    %p160 = scmp.eq.s32.totalorder %s16, 0
    %p161 = por %p159, %p160
    %p162 = scmp.ne.s32.totalorder %s148, %s149
    %p163 = scmp.eq.s32.totalorder %s17, 1
    %p164 = por %p162, %p163
    %p166 = scmp.ne.s32.totalorder %s149, %s165
    %p167 = scmp.eq.s32.totalorder %s17, 0
    %p168 = por %p166, %p167
    %p169 = scmp.le.s32.totalorder 1, %s11
    %p170 = scmp.lt.s32.totalorder %s11, 3
    %p171 = pnand %p169, %p170
    %p172 = pneg %p171
    // Predicated region
    $region9: #{run_f32.21} parent=5 // pred_check
      _
    $region10: #{run_f32.21} parent=5 // pred_check_branch
      %174 = sbr.rel (%p171) target = $region12
    $region11: #{run_f32.21} parent=5 // pred_region
      %s175 = ssub.s32 %s11, 1
      // Predicated region
      $region13: #{run_f32.21} parent=11 // pred_check
        %p176 = pneg %p70
      $region14: #{run_f32.21} parent=11 // pred_check_branch
        %178 = sbr.rel (%p176) target = $region16
      $region15: #{run_f32.21} parent=11 // pred_region
        _
      $region16: #{run_f32.21} parent=11 // pred_fallthru
        _
      // Predicated region
      $region17: #{run_f32.21} parent=11 // pred_check
        %p179 = pneg %p91
      $region18: #{run_f32.21} parent=11 // pred_check_branch
        %181 = sbr.rel (%p179) target = $region20
      $region19: #{run_f32.21} parent=11 // pred_region
        _
      $region20: #{run_f32.21} parent=11 // pred_fallthru
        _
      // Predicated region
      $region21: #{run_f32.21} parent=11 // pred_check
        %p182 = pneg %p112
      $region22: #{run_f32.21} parent=11 // pred_check_branch
        %184 = sbr.rel (%p182) target = $region24
      $region23: #{run_f32.21} parent=11 // pred_region
        _
      $region24: #{run_f32.21} parent=11 // pred_fallthru
        _
      // Predicated region
      $region25: #{run_f32.21} parent=11 // pred_check
        %p185 = pneg %p133
      $region26: #{run_f32.21} parent=11 // pred_check_branch
        %187 = sbr.rel (%p185) target = $region28
      $region27: #{run_f32.21} parent=11 // pred_region
        _
      $region28: #{run_f32.21} parent=11 // pred_fallthru
        _
    $region12: #{run_f32.21} parent=5 // pred_fallthru
      _
    %p188 = scmp.lt.s32.totalorder %s11, 2
    // Predicated region
    $region29: #{run_f32.21} parent=5 // pred_check
      %p189 = pneg %p188
    $region30: #{run_f32.21} parent=5 // pred_check_branch
      %191 = sbr.rel (%p189) target = $region32
    $region31: #{run_f32.21} parent=5 // pred_region
      // Predicated region
      $region33: #{run_f32.21} parent=31 // pred_check
        %p192 = pneg %p43
      $region34: #{run_f32.21} parent=31 // pred_check_branch
        %194 = sbr.rel (%p192) target = $region36
      $region35: #{run_f32.21} parent=31 // pred_region
        %p195 = scmp.lt.s32.totalorder %s18, 1
        %s196 = scalar_select %p195, %s18, 1
        %s197 = smul.addr %s196, 3
        %s198 = smul.addr %s197, 8
        %s199 = scalar_lea.vmem %s0, %s198
      $region36: #{run_f32.21} parent=31 // pred_fallthru
        _
    $region32: #{run_f32.21} parent=5 // pred_fallthru
      _
    %p200 = scmp.le.s32.totalorder 1, %s11
    %p201 = scmp.lt.s32.totalorder %s11, 3
    %p202 = pnand %p200, %p201
    %p203 = pneg %p202
    // Predicated region
    $region37: #{run_f32.21} parent=5 // pred_check
      _
    $region38: #{run_f32.21} parent=5 // pred_check_branch
      %205 = sbr.rel (%p202) target = $region40
    $region39: #{run_f32.21} parent=5 // pred_region
      %s206 = ssub.s32 %s11, 1
      %p207 = scmp.lt.s32.totalorder %s20, 1
      %s208 = scalar_select %p207, %s20, 1
      %s209 = smul.addr %s208, 3
      %s210 = smul.addr %s209, 8
      %s211 = scalar_lea.vmem %s0, %s210
      %p212 = pneg %p49
      %p213 = pneg %p46
      %p214 = pneg %p70
      %p215 = pneg %p67
      %p216 = pneg %p91
      %p217 = pneg %p88
      %p218 = pneg %p112
      %p219 = pneg %p109
      %p220 = pneg %p133
      %p221 = pneg %p130
      %p222 = pneg %p161
      %p223 = pneg %p158
      %s224 = smul.u32 2, %s21
      %p225 = scmp.lt.s32.totalorder %s20, 1
      %s226 = scalar_select %p225, %s20, 1
      %p227 = scmp.lt.s32.totalorder %s224, 1
      %s228 = scalar_select %p227, %s224, 1
      %s229 = smul.addr %s226, 2
      %s230 = sadd.s32 %s228, %s229
      %s231 = smul.addr %s230, 8
      %s232 = scalar_lea.vmem %s5, %s231
      %p233 = scmp.lt.s32.totalorder %s20, 1
      %s234 = scalar_select %p233, %s20, 1
      %s235 = smul.addr %s234, 3
      %s236 = smul.addr %s235, 8
      %s237 = scalar_lea.vmem %s0, %s236
      %s238 = smul.u32 2, %s21
      %p239 = scmp.lt.s32.totalorder %s20, 1
      %s240 = scalar_select %p239, %s20, 1
      %p241 = scmp.lt.s32.totalorder %s238, 1
      %s242 = scalar_select %p241, %s238, 1
      %s243 = smul.addr %s240, 2
      %s244 = sadd.s32 %s242, %s243
      %s245 = smul.addr %s244, 8
      %s246 = scalar_lea.vmem %s5, %s245
      %s247 = smul.u32 2, %s21
      %s248 = smul.u32 %s21, 16
      %s249 = scalar_lea.vmem %s237, %s248
      %v250 = vld [vmem:[%s249] sm:$0xff]
      %v251 = vld [vmem:[%s249 + $0x8] sm:$0xff]
      %s252 = sadd.s32 %s248, 3
      %s253 = scalar_lea.vmem %s237, %s252
      %v254 = vld [vmem:[%s253] sm:$0xff]
      %v255 = vld [vmem:[%s253 + $0x8] sm:$0xff]
      %s256 = sadd.s32 %s248, 6
      %s257 = scalar_lea.vmem %s237, %s256
      %v258 = vld [vmem:[%s257] sm:$0xff]
      %v259 = vld [vmem:[%s257 + $0x8] sm:$0xff]
      %262 = vrot.lane.b32.xlu0 %v254, 32
      %v263 = vpop.permute.xlu0 %262
      %264 = vrot.lane.b32.xlu0 %v255, 32
      %v265 = vpop.permute.xlu0 %264
      %270 = vrot.lane.b32.xlu0 %v258, 64
      %v271 = vpop.permute.xlu0 %270
      %272 = vrot.lane.b32.xlu0 %v259, 64
      %v273 = vpop.permute.xlu0 %272
      %vm276 = vcmask 261120
      %v277 = vsel %vm276, %v250, %v263
      %v278 = vsel %vm276, %v251, %v265
      %vm279 = vcmask 523264
      %v280 = vsel %vm279, %v277, %v271
      %v281 = vsel %vm279, %v278, %v273
      %v282 = vmax.f32 %v280, 0.0
      %v283 = vmax.f32 %v281, 0.0
      %v284 = vld [vmem:[%s1] sm:$0xff]
      %v285 = vld [vmem:[%s1 + $0x8] sm:$0xff]
      %v286 = vld [vmem:[%s1 + $0x10] sm:$0xff]
      %v287 = vld [vmem:[%s1 + $0x18] sm:$0xff]
      %v288 = vld [vmem:[%s1 + $0x20] sm:$0xff]
      %v289 = vld [vmem:[%s1 + $0x28] sm:$0xff]
      %v290 = vld [vmem:[%s1 + $0x30] sm:$0xff]
      %v291 = vld [vmem:[%s1 + $0x38] sm:$0xff]
      %v292 = vld [vmem:[%s1 + $0x40] sm:$0xff]
      %v293 = vld [vmem:[%s1 + $0x48] sm:$0xff]
      %v294 = vld [vmem:[%s1 + $0x50] sm:$0xff]
      %v295 = vld [vmem:[%s1 + $0x58] sm:$0xff]
      %v296 = vld [vmem:[%s2] sm:$0x1]
      %v298 = vlaneseq
      %v299 = vshrl.u32 %v298, 7
      %v300 = vsub.s32 0, %v299
      %v301 = vrot.slane %v296, %v300
      %vm303 = vcmask 785408
      %v305 = vsel %vm303, %v282, 0
      %v308 = vsel %vm303, %v283, 0
      %310 = vmatprep.subr.mxu0 0.0
      %311 = vmatpush1.msra.mxu0 %v284
      %312 = vmatprep.subr.mxu0 0.0
      %313 = vmatpush1.msra.mxu0 %v285
      %314 = vmatprep.subr.mxu0 0.0
      %315 = vmatpush1.msra.mxu0 %v286
      %316 = vmatprep.subr.mxu0 0.0
      %317 = vmatpush1.msra.mxu0 %v287
      %318 = vmatprep.subr.mxu0 0.0
      %319 = vmatpush1.msra.mxu0 %v288
      %320 = vmatprep.subr.mxu0 0.0
      %321 = vmatpush1.msra.mxu0 %v289
      %322 = vmatprep.subr.mxu0 0.0
      %323 = vmatpush1.msra.mxu0 %v290
      %324 = vmatprep.subr.mxu0 0.0
      %325 = vmatpush1.msra.mxu0 %v291
      %326 = vmatprep.subr.mxu0 0.0
      %327 = vmatpush1.msra.mxu0 %v292
      %328 = vmatprep.subr.mxu0 0.0
      %329 = vmatpush1.msra.mxu0 %v293
      %330 = vmatprep.subr.mxu0 0.0
      %331 = vmatpush1.msra.mxu0 %v294
      %332 = vmatprep.subr.mxu0 0.0
      %333 = vmatpush1.msra.mxu0 %v295
      %334 = vmatprep.subr.mxu0 0.0
      %335 = vmatpush1.msra.mxu0 0.0
      %336 = vmatprep.subr.mxu0 0.0
      %337 = vmatpush1.msra.mxu0 0.0
      %338 = vmatprep.subr.mxu0 0.0
      %339 = vmatpush1.msra.mxu0 0.0
      %340 = vmatprep.subr.mxu0 0.0
      %341 = vmatpush1.msra.mxu0 0.0
      %342 = vmatprep.subr.mxu0 0.0
      %343 = vmatpush1.msra.mxu0 0.0
      %344 = vmatprep.subr.mxu0 0.0
      %345 = vmatpush1.msra.mxu0 0.0
      %346 = vmatprep.subr.mxu0 0.0
      %347 = vmatpush1.msra.mxu0 0.0
      %348 = vmatprep.subr.mxu0 0.0
      %349 = vmatpush1.msra.mxu0 0.0
      %350 = vmatprep.subr.mxu0 0.0
      %351 = vmatpush1.msra.mxu0 0.0
      %352 = vmatprep.subr.mxu0 0.0
      %353 = vmatpush1.msra.mxu0 0.0
      %354 = vmatprep.subr.mxu0 0.0
      %355 = vmatpush1.msra.mxu0 0.0
      %356 = vmatprep.subr.mxu0 0.0
      %357 = vmatpush1.msra.mxu0 0.0
      %358 = vmatprep.subr.mxu0 0.0
      %359 = vmatpush1.msra.mxu0 0.0
      %360 = vmatprep.subr.mxu0 0.0
      %361 = vmatpush1.msra.mxu0 0.0
      %362 = vmatprep.subr.mxu0 0.0
      %363 = vmatpush1.msra.mxu0 0.0
      %364 = vmatprep.subr.mxu0 0.0
      %365 = vmatpush1.msra.mxu0 0.0
      %366 = vmatprep.subr.mxu0 0.0
      %367 = vmatpush1.msra.mxu0 0.0
      %368 = vmatprep.subr.mxu0 0.0
      %369 = vmatpush1.msra.mxu0 0.0
      %370 = vmatprep.subr.mxu0 0.0
      %371 = vmatpush1.msra.mxu0 0.0
      %372 = vmatprep.subr.mxu0 0.0
      %373 = vmatpush1.msra.mxu0 0.0
      %374 = vmatprep.mubr.f32.mxu0 0.0
      %375 = vmatmul.mubr.f32.gmra.mrb[0].mxu0 %v305
      %v376 = vpop.f32.mrb[0].mxu0
      %v377 = vadd.f32 %v301, %v376
      %v378 = vpop.f32.mrb[0].mxu0
      %379 = vmatprep.mubr.f32.mxu0 0.0
      %380 = vmatmul.mubr.f32.gmra.mrb[0].mxu0 %v308
      %v381 = vpop.f32.mrb[0].mxu0
      %v382 = vadd.f32 %v301, %v381
      %v383 = vpop.f32.mrb[0].mxu0
      %384 = vdwg.mxu0
      %v385 = vmax.f32 %v377, 0.0
      %v386 = vmax.f32 %v382, 0.0
      %v387 = vld [vmem:[%s3] sm:$0xff]
      %v388 = vld [vmem:[%s3 + $0x8] sm:$0xff]
      %v389 = vld [vmem:[%s3 + $0x10] sm:$0xff]
      %v390 = vld [vmem:[%s3 + $0x18] sm:$0xff]
      %v391 = vld [vmem:[%s4] sm:$0x1]
      %v393 = vlaneseq
      %v394 = vshrl.u32 %v393, 7
      %v395 = vsub.s32 0, %v394
      %v396 = vrot.slane %v391, %v395
      %v399 = vsel %vm276, %v385, 0
      %v402 = vsel %vm276, %v386, 0
      %404 = vmatprep.subr.mxu0 0.0
      %405 = vmatpush1.msra.mxu0 %v387
      %406 = vmatprep.subr.mxu0 0.0
      %407 = vmatpush1.msra.mxu0 %v388
      %408 = vmatprep.subr.mxu0 0.0
      %409 = vmatpush1.msra.mxu0 %v389
      %410 = vmatprep.subr.mxu0 0.0
      %411 = vmatpush1.msra.mxu0 %v390
      %412 = vmatprep.subr.mxu0 0.0
      %413 = vmatpush1.msra.mxu0 0.0
      %414 = vmatprep.subr.mxu0 0.0
      %415 = vmatpush1.msra.mxu0 0.0
      %416 = vmatprep.subr.mxu0 0.0
      %417 = vmatpush1.msra.mxu0 0.0
      %418 = vmatprep.subr.mxu0 0.0
      %419 = vmatpush1.msra.mxu0 0.0
      %420 = vmatprep.subr.mxu0 0.0
      %421 = vmatpush1.msra.mxu0 0.0
      %422 = vmatprep.subr.mxu0 0.0
      %423 = vmatpush1.msra.mxu0 0.0
      %424 = vmatprep.subr.mxu0 0.0
      %425 = vmatpush1.msra.mxu0 0.0
      %426 = vmatprep.subr.mxu0 0.0
      %427 = vmatpush1.msra.mxu0 0.0
      %428 = vmatprep.subr.mxu0 0.0
      %429 = vmatpush1.msra.mxu0 0.0
      %430 = vmatprep.subr.mxu0 0.0
      %431 = vmatpush1.msra.mxu0 0.0
      %432 = vmatprep.subr.mxu0 0.0
      %433 = vmatpush1.msra.mxu0 0.0
      %434 = vmatprep.subr.mxu0 0.0
      %435 = vmatpush1.msra.mxu0 0.0
      %436 = vmatprep.subr.mxu0 0.0
      %437 = vmatpush1.msra.mxu0 0.0
      %438 = vmatprep.subr.mxu0 0.0
      %439 = vmatpush1.msra.mxu0 0.0
      %440 = vmatprep.subr.mxu0 0.0
      %441 = vmatpush1.msra.mxu0 0.0
      %442 = vmatprep.subr.mxu0 0.0
      %443 = vmatpush1.msra.mxu0 0.0
      %444 = vmatprep.subr.mxu0 0.0
      %445 = vmatpush1.msra.mxu0 0.0
      %446 = vmatprep.subr.mxu0 0.0
      %447 = vmatpush1.msra.mxu0 0.0
      %448 = vmatprep.subr.mxu0 0.0
      %449 = vmatpush1.msra.mxu0 0.0
      %450 = vmatprep.subr.mxu0 0.0
      %451 = vmatpush1.msra.mxu0 0.0
      %452 = vmatprep.subr.mxu0 0.0
      %453 = vmatpush1.msra.mxu0 0.0
      %454 = vmatprep.subr.mxu0 0.0
      %455 = vmatpush1.msra.mxu0 0.0
      %456 = vmatprep.subr.mxu0 0.0
      %457 = vmatpush1.msra.mxu0 0.0
      %458 = vmatprep.subr.mxu0 0.0
      %459 = vmatpush1.msra.mxu0 0.0
      %460 = vmatprep.subr.mxu0 0.0
      %461 = vmatpush1.msra.mxu0 0.0
      %462 = vmatprep.subr.mxu0 0.0
      %463 = vmatpush1.msra.mxu0 0.0
      %464 = vmatprep.subr.mxu0 0.0
      %465 = vmatpush1.msra.mxu0 0.0
      %466 = vmatprep.subr.mxu0 0.0
      %467 = vmatpush1.msra.mxu0 0.0
      %468 = vmatprep.mubr.f32.mxu0 0.0
      %469 = vmatmul.mubr.f32.gmra.mrb[0].mxu0 %v399
      %v470 = vpop.f32.mrb[0].mxu0
      %v471 = vadd.f32 %v396, %v470
      %v472 = vpop.f32.mrb[0].mxu0
      %473 = vmatprep.mubr.f32.mxu0 0.0
      %474 = vmatmul.mubr.f32.gmra.mrb[0].mxu0 %v402
      %v475 = vpop.f32.mrb[0].mxu0
      %v476 = vadd.f32 %v396, %v475
      %v477 = vpop.f32.mrb[0].mxu0
      %478 = vdwg.mxu0
      %v479 = vadd.f32 %v471, %v254
      %v480 = vadd.f32 %v476, %v255
      %481 = vst.msk [vmem:[%s246] sm:$0xff] %vm276, %v479
      %482 = vst.msk [vmem:[%s246 + $0x8] sm:$0xff] %vm276, %v480
      %s483 = smul.u32 2, %s21
      %p484 = scmp.lt.s32.totalorder %s20, 1
      %s485 = scalar_select %p484, %s20, 1
      %p486 = scmp.lt.s32.totalorder %s483, 1
      %s487 = scalar_select %p486, %s483, 1
      %s488 = smul.addr %s485, 2
      %s489 = sadd.s32 %s487, %s488
      %s490 = smul.addr %s489, 8
      %s491 = scalar_lea.vmem %s5, %s490
      // Predicated region
      $region41: #{run_f32.21} parent=39 // pred_check
        %p492 = pneg %p158
      $region42: #{run_f32.21} parent=39 // pred_check_branch
        %494 = sbr.rel (%p492) target = $region44
      $region43: #{run_f32.21} parent=39 // pred_region
        %s495 = smul.u32 2, %s21
      $region44: #{run_f32.21} parent=39 // pred_fallthru
        _
    $region40: #{run_f32.21} parent=5 // pred_fallthru
      _
    %p496 = scmp.le.s32.totalorder 2, %s11
    // Predicated region
    $region45: #{run_f32.21} parent=5 // pred_check
      %p497 = pneg %p496
    $region46: #{run_f32.21} parent=5 // pred_check_branch
      %499 = sbr.rel (%p497) target = $region48
    $region47: #{run_f32.21} parent=5 // pred_region
      %s500 = ssub.s32 %s11, 2
      // Predicated region
      $region49: #{run_f32.21} parent=47 // pred_check
        %p501 = pneg %p164
      $region50: #{run_f32.21} parent=47 // pred_check_branch
        %503 = sbr.rel (%p501) target = $region52
      $region51: #{run_f32.21} parent=47 // pred_region
        %s504 = smul.u32 2, %s23
        %p505 = scmp.lt.s32.totalorder %s22, 1
        %s506 = scalar_select %p505, %s22, 1
        %p507 = scmp.lt.s32.totalorder %s504, 1
        %s508 = scalar_select %p507, %s504, 1
        %s509 = smul.addr %s506, 2
        %s510 = sadd.s32 %s508, %s509
        %s511 = smul.addr %s510, 8
        %s512 = scalar_lea.vmem %s5, %s511
      $region52: #{run_f32.21} parent=47 // pred_fallthru
        _
    $region48: #{run_f32.21} parent=5 // pred_fallthru
      _
  $region6: #{run_f32.21} parent=0 // loop_footer
    %s15 = sadd.s32 1, %s11
  $region7: #{run_f32.21} parent=0 // loop_footer_branch
    %10 = sbr.rel target = $region3
  $region8: #{run_f32.21} parent=0 // loop_exit
    _

// kernel: run_f32.22
$region0: #{run_f32.22}
  #allocation0 [shape = 'u32[]', space=smem, size = 0x4, offset = 0x4, fixed_abs, tag = 'smem constant byte address 0x4 - core index']
  #allocation1 [shape = 'u32[144,128]{1,0:T(1,128)}', space=vmem, size = 0x12000, scoped, tag = 'internal scratch']
  %s0 = inlined_call_operand.vmem [shape: f32[2,18,32], index: 0, kind: input, shape index: {}]
  %s1 = inlined_call_operand.vmem [shape: f32[96,32], index: 1, kind: input, shape index: {}]
  %s2 = inlined_call_operand.vmem [shape: f32[1,32], index: 2, kind: input, shape index: {}]
  %s3 = inlined_call_operand.vmem [shape: f32[32,32], index: 3, kind: input, shape index: {}]
  %s4 = inlined_call_operand.vmem [shape: f32[1,32], index: 4, kind: input, shape index: {}]
  %s5 = inlined_call_operand.vmem [shape: f32[2,16,32], index: 5, kind: output, shape index: {}]
  %s6 = sld [smem:[#allocation0]]
  $region53: #{run_f32.22} parent=0
    _
  %s8 = ssub.s32 1, %s6
  %s9 = scalar_select 0, %s8, %s6
  loop: start=0, step=1, limit=4
  $region2: #{run_f32.22} parent=0 // loop_pre_header
    _
  $region3: #{run_f32.22} parent=0 // loop_header
    %s11 = sphi 0, %s15
    %p12 = scmp.ge.s32.totalorder %s11, 4
    %s18 = sphi 0, %s30
    %s19 = sphi 0, %s26
    %s20 = sphi 0, %s18
    %s21 = sphi 0, %s19
    %s22 = sphi 0, %s20
    %s23 = sphi 0, %s21
    %s33 = sphi 0, %s35
    %s36 = sphi 0, %s33
    %s37 = sphi 0, %s36
    %s53 = sphi 0, %s37
    %s57 = sphi 0, %s57
    %s59 = sphi 0, %s57
    %s60 = sphi 0, %s59
    %s74 = sphi 0, %s60
    %s78 = sphi 0, %s78
    %s80 = sphi 0, %s78
    %s81 = sphi 0, %s80
    %s95 = sphi 0, %s81
    %s99 = sphi 0, %s99
    %s101 = sphi 0, %s99
    %s102 = sphi 0, %s101
    %s116 = sphi 0, %s102
    %s120 = sphi 0, %s120
    %s122 = sphi 0, %s120
    %s123 = sphi 0, %s122
    %s137 = sphi 0, %s123
    %s145 = sphi 0, %s147
    %s148 = sphi 0, %s145
    %s149 = sphi 0, %s148
    %s165 = sphi 0, %s149
  $region4: #{run_f32.22} parent=0 // loop_header_branch
    %14 = sbr.rel (%p12) target = $region8
  $region5: #{run_f32.22} parent=0 // loop_body
    %s16 = ssub.s32 %s11, 1
    %s17 = ssub.s32 %s11, 2
    %s24 = sadd.s32 1, %s19
    %p25 = scmp.ge.s32.totalorder %s24, 1
    %s26 = scalar_select %p25, 0, %s24
    %s27 = sadd.s32 1, %s18
    %s28 = scalar_select %p25, %s27, %s18
    %p29 = scmp.ge.s32.totalorder %s28, 2
    %s30 = scalar_select %p29, 0, %s28
    %s31 = ssub.s32 %s18, %s30
    %p32 = scmp.eq.s32.totalorder %s31, 0
    %s34 = sadd.s32 %s33, 1
    %s35 = scalar_select %p32, %s33, %s34
    %p38 = pneg %p32
    %p39 = scmp.eq.s32.totalorder %s11, 1
    %p40 = por %p38, %p39
    %p41 = scmp.ne.s32.totalorder %s33, %s36
    %p42 = scmp.eq.s32.totalorder %s11, 0
    %p43 = por %p41, %p42
    %p44 = scmp.ne.s32.totalorder %s33, %s36
    %p45 = scmp.eq.s32.totalorder %s16, 1
    %p46 = por %p44, %p45
    %p47 = scmp.ne.s32.totalorder %s36, %s37
    %p48 = scmp.eq.s32.totalorder %s16, 0
    %p49 = por %p47, %p48
    %p50 = scmp.ne.s32.totalorder %s36, %s37
    %p51 = scmp.eq.s32.totalorder %s17, 1
    %p52 = por %p50, %p51
    %p54 = scmp.ne.s32.totalorder %s37, %s53
    %p55 = scmp.eq.s32.totalorder %s17, 0
    %p56 = por %p54, %p55
    %s58 = sadd.s32 %s57, 1
    %p61 = scmp.eq.s32.totalorder %s11, 1
    %p62 = scmp.ne.s32.totalorder %s57, %s59
    %p63 = scmp.eq.s32.totalorder %s11, 0
    %p64 = por %p62, %p63
    %p65 = scmp.ne.s32.totalorder %s57, %s59
    %p66 = scmp.eq.s32.totalorder %s16, 1
    %p67 = por %p65, %p66
    %p68 = scmp.ne.s32.totalorder %s59, %s60
    %p69 = scmp.eq.s32.totalorder %s16, 0
    %p70 = por %p68, %p69
    %p71 = scmp.ne.s32.totalorder %s59, %s60
    %p72 = scmp.eq.s32.totalorder %s17, 1
    %p73 = por %p71, %p72
    %p75 = scmp.ne.s32.totalorder %s60, %s74
    %p76 = scmp.eq.s32.totalorder %s17, 0
    %p77 = por %p75, %p76
    %s79 = sadd.s32 %s78, 1
    %p82 = scmp.eq.s32.totalorder %s11, 1
    %p83 = scmp.ne.s32.totalorder %s78, %s80
    %p84 = scmp.eq.s32.totalorder %s11, 0
    %p85 = por %p83, %p84
    %p86 = scmp.ne.s32.totalorder %s78, %s80
    %p87 = scmp.eq.s32.totalorder %s16, 1
    %p88 = por %p86, %p87
    %p89 = scmp.ne.s32.totalorder %s80, %s81
    %p90 = scmp.eq.s32.totalorder %s16, 0
    %p91 = por %p89, %p90
    %p92 = scmp.ne.s32.totalorder %s80, %s81
    %p93 = scmp.eq.s32.totalorder %s17, 1
    %p94 = por %p92, %p93
    %p96 = scmp.ne.s32.totalorder %s81, %s95
    %p97 = scmp.eq.s32.totalorder %s17, 0
    %p98 = por %p96, %p97
    %s100 = sadd.s32 %s99, 1
    %p103 = scmp.eq.s32.totalorder %s11, 1
    %p104 = scmp.ne.s32.totalorder %s99, %s101
    %p105 = scmp.eq.s32.totalorder %s11, 0
    %p106 = por %p104, %p105
    %p107 = scmp.ne.s32.totalorder %s99, %s101
    %p108 = scmp.eq.s32.totalorder %s16, 1
    %p109 = por %p107, %p108
    %p110 = scmp.ne.s32.totalorder %s101, %s102
    %p111 = scmp.eq.s32.totalorder %s16, 0
    %p112 = por %p110, %p111
    %p113 = scmp.ne.s32.totalorder %s101, %s102
    %p114 = scmp.eq.s32.totalorder %s17, 1
    %p115 = por %p113, %p114
    %p117 = scmp.ne.s32.totalorder %s102, %s116
    %p118 = scmp.eq.s32.totalorder %s17, 0
    %p119 = por %p117, %p118
    %s121 = sadd.s32 %s120, 1
    %p124 = scmp.eq.s32.totalorder %s11, 1
    %p125 = scmp.ne.s32.totalorder %s120, %s122
    %p126 = scmp.eq.s32.totalorder %s11, 0
    %p127 = por %p125, %p126
    %p128 = scmp.ne.s32.totalorder %s120, %s122
    %p129 = scmp.eq.s32.totalorder %s16, 1
    %p130 = por %p128, %p129
    %p131 = scmp.ne.s32.totalorder %s122, %s123
    %p132 = scmp.eq.s32.totalorder %s16, 0
    %p133 = por %p131, %p132
    %p134 = scmp.ne.s32.totalorder %s122, %s123
    %p135 = scmp.eq.s32.totalorder %s17, 1
    %p136 = por %p134, %p135
    %p138 = scmp.ne.s32.totalorder %s123, %s137
    %p139 = scmp.eq.s32.totalorder %s17, 0
    %p140 = por %p138, %p139
    %s141 = ssub.s32 %s18, %s30
    %s142 = ssub.s32 %s19, %s26
    %s143 = sor.u32 %s141, %s142
    %p144 = scmp.eq.s32.totalorder %s143, 0
    %s146 = sadd.s32 %s145, 1
    %s147 = scalar_select %p144, %s145, %s146
    %p150 = pneg %p144
    %p151 = scmp.eq.s32.totalorder %s11, 1
    %p152 = por %p150, %p151
    %p153 = scmp.ne.s32.totalorder %s145, %s148
    %p154 = scmp.eq.s32.totalorder %s11, 0
    %p155 = por %p153, %p154
    %p156 = scmp.ne.s32.totalorder %s145, %s148
    %p157 = scmp.eq.s32.totalorder %s16, 1
    %p158 = por %p156, %p157
    %p159 = scmp.ne.s32.totalorder %s148, %s149
    %p160 = scmp.eq.s32.totalorder %s16, 0
    %p161 = por %p159, %p160
    %p162 = scmp.ne.s32.totalorder %s148, %s149
    %p163 = scmp.eq.s32.totalorder %s17, 1
    %p164 = por %p162, %p163
    %p166 = scmp.ne.s32.totalorder %s149, %s165
    %p167 = scmp.eq.s32.totalorder %s17, 0
    %p168 = por %p166, %p167
    %p169 = scmp.le.s32.totalorder 1, %s11
    %p170 = scmp.lt.s32.totalorder %s11, 3
    %p171 = pnand %p169, %p170
    %p172 = pneg %p171
    // Predicated region
    $region9: #{run_f32.22} parent=5 // pred_check
      _
    $region10: #{run_f32.22} parent=5 // pred_check_branch
      %174 = sbr.rel (%p171) target = $region12
    $region11: #{run_f32.22} parent=5 // pred_region
      %s175 = ssub.s32 %s11, 1
      // Predicated region
      $region13: #{run_f32.22} parent=11 // pred_check
        %p176 = pneg %p70
      $region14: #{run_f32.22} parent=11 // pred_check_branch
        %178 = sbr.rel (%p176) target = $region16
      $region15: #{run_f32.22} parent=11 // pred_region
        _
      $region16: #{run_f32.22} parent=11 // pred_fallthru
        _
      // Predicated region
      $region17: #{run_f32.22} parent=11 // pred_check
        %p179 = pneg %p91
      $region18: #{run_f32.22} parent=11 // pred_check_branch
        %181 = sbr.rel (%p179) target = $region20
      $region19: #{run_f32.22} parent=11 // pred_region
        _
      $region20: #{run_f32.22} parent=11 // pred_fallthru
        _
      // Predicated region
      $region21: #{run_f32.22} parent=11 // pred_check
        %p182 = pneg %p112
      $region22: #{run_f32.22} parent=11 // pred_check_branch
        %184 = sbr.rel (%p182) target = $region24
      $region23: #{run_f32.22} parent=11 // pred_region
        _
      $region24: #{run_f32.22} parent=11 // pred_fallthru
        _
      // Predicated region
      $region25: #{run_f32.22} parent=11 // pred_check
        %p185 = pneg %p133
      $region26: #{run_f32.22} parent=11 // pred_check_branch
        %187 = sbr.rel (%p185) target = $region28
      $region27: #{run_f32.22} parent=11 // pred_region
        _
      $region28: #{run_f32.22} parent=11 // pred_fallthru
        _
    $region12: #{run_f32.22} parent=5 // pred_fallthru
      _
    %p188 = scmp.lt.s32.totalorder %s11, 2
    // Predicated region
    $region29: #{run_f32.22} parent=5 // pred_check
      %p189 = pneg %p188
    $region30: #{run_f32.22} parent=5 // pred_check_branch
      %191 = sbr.rel (%p189) target = $region32
    $region31: #{run_f32.22} parent=5 // pred_region
      // Predicated region
      $region33: #{run_f32.22} parent=31 // pred_check
        %p192 = pneg %p43
      $region34: #{run_f32.22} parent=31 // pred_check_branch
        %194 = sbr.rel (%p192) target = $region36
      $region35: #{run_f32.22} parent=31 // pred_region
        %p195 = scmp.lt.s32.totalorder %s18, 1
        %s196 = scalar_select %p195, %s18, 1
        %s197 = smul.addr %s196, 3
        %s198 = smul.addr %s197, 8
        %s199 = scalar_lea.vmem %s0, %s198
      $region36: #{run_f32.22} parent=31 // pred_fallthru
        _
    $region32: #{run_f32.22} parent=5 // pred_fallthru
      _
    %p200 = scmp.le.s32.totalorder 1, %s11
    %p201 = scmp.lt.s32.totalorder %s11, 3
    %p202 = pnand %p200, %p201
    %p203 = pneg %p202
    // Predicated region
    $region37: #{run_f32.22} parent=5 // pred_check
      _
    $region38: #{run_f32.22} parent=5 // pred_check_branch
      %205 = sbr.rel (%p202) target = $region40
    $region39: #{run_f32.22} parent=5 // pred_region
      %s206 = ssub.s32 %s11, 1
      %p207 = scmp.lt.s32.totalorder %s20, 1
      %s208 = scalar_select %p207, %s20, 1
      %s209 = smul.addr %s208, 3
      %s210 = smul.addr %s209, 8
      %s211 = scalar_lea.vmem %s0, %s210
      %p212 = pneg %p49
      %p213 = pneg %p46
      %p214 = pneg %p70
      %p215 = pneg %p67
      %p216 = pneg %p91
      %p217 = pneg %p88
      %p218 = pneg %p112
      %p219 = pneg %p109
      %p220 = pneg %p133
      %p221 = pneg %p130
      %p222 = pneg %p161
      %p223 = pneg %p158
      %s224 = smul.u32 2, %s21
      %p225 = scmp.lt.s32.totalorder %s20, 1
      %s226 = scalar_select %p225, %s20, 1
      %p227 = scmp.lt.s32.totalorder %s224, 1
      %s228 = scalar_select %p227, %s224, 1
      %s229 = smul.addr %s226, 2
      %s230 = sadd.s32 %s228, %s229
      %s231 = smul.addr %s230, 8
      %s232 = scalar_lea.vmem %s5, %s231
      %p233 = scmp.lt.s32.totalorder %s20, 1
      %s234 = scalar_select %p233, %s20, 1
      %s235 = smul.addr %s234, 3
      %s236 = smul.addr %s235, 8
      %s237 = scalar_lea.vmem %s0, %s236
      %s238 = smul.u32 2, %s21
      %p239 = scmp.lt.s32.totalorder %s20, 1
      %s240 = scalar_select %p239, %s20, 1
      %p241 = scmp.lt.s32.totalorder %s238, 1
      %s242 = scalar_select %p241, %s238, 1
      %s243 = smul.addr %s240, 2
      %s244 = sadd.s32 %s242, %s243
      %s245 = smul.addr %s244, 8
      %s246 = scalar_lea.vmem %s5, %s245
      %s247 = smul.u32 2, %s21
      %s248 = smul.u32 %s21, 16
      %s249 = scalar_lea.vmem %s237, %s248
      %v250 = vld [vmem:[%s249] sm:$0xff]
      %v251 = vld [vmem:[%s249 + $0x8] sm:$0xff]
      %s252 = sadd.s32 %s248, 1
      %s253 = scalar_lea.vmem %s237, %s252
      %v254 = vld [vmem:[%s253] sm:$0xff]
      %v255 = vld [vmem:[%s253 + $0x8] sm:$0xff]
      %s256 = sadd.s32 %s248, 2
      %s257 = scalar_lea.vmem %s237, %s256
      %v258 = vld [vmem:[%s257] sm:$0xff]
      %v259 = vld [vmem:[%s257 + $0x8] sm:$0xff]
      %262 = vrot.lane.b32.xlu0 %v254, 32
      %v263 = vpop.permute.xlu0 %262
      %264 = vrot.lane.b32.xlu0 %v255, 32
      %v265 = vpop.permute.xlu0 %264
      %270 = vrot.lane.b32.xlu0 %v258, 64
      %v271 = vpop.permute.xlu0 %270
      %272 = vrot.lane.b32.xlu0 %v259, 64
      %v273 = vpop.permute.xlu0 %272
      %vm276 = vcmask 261120
      %v277 = vsel %vm276, %v250, %v263
      %v278 = vsel %vm276, %v251, %v265
      %vm279 = vcmask 523264
      %v280 = vsel %vm279, %v277, %v271
      %v281 = vsel %vm279, %v278, %v273
      %v282 = vmax.f32 %v280, 0.0
      %v283 = vmax.f32 %v281, 0.0
      %v284 = vld [vmem:[%s1] sm:$0xff]
      %v285 = vld [vmem:[%s1 + $0x8] sm:$0xff]
      %v286 = vld [vmem:[%s1 + $0x10] sm:$0xff]
      %v287 = vld [vmem:[%s1 + $0x18] sm:$0xff]
      %v288 = vld [vmem:[%s1 + $0x20] sm:$0xff]
      %v289 = vld [vmem:[%s1 + $0x28] sm:$0xff]
      %v290 = vld [vmem:[%s1 + $0x30] sm:$0xff]
      %v291 = vld [vmem:[%s1 + $0x38] sm:$0xff]
      %v292 = vld [vmem:[%s1 + $0x40] sm:$0xff]
      %v293 = vld [vmem:[%s1 + $0x48] sm:$0xff]
      %v294 = vld [vmem:[%s1 + $0x50] sm:$0xff]
      %v295 = vld [vmem:[%s1 + $0x58] sm:$0xff]
      %v296 = vld [vmem:[%s2] sm:$0x1]
      %v298 = vlaneseq
      %v299 = vshrl.u32 %v298, 7
      %v300 = vsub.s32 0, %v299
      %v301 = vrot.slane %v296, %v300
      %vm303 = vcmask 785408
      %v305 = vsel %vm303, %v282, 0
      %v308 = vsel %vm303, %v283, 0
      %310 = vmatprep.subr.mxu0 0.0
      %311 = vmatpush1.msra.mxu0 %v284
      %312 = vmatprep.subr.mxu0 0.0
      %313 = vmatpush1.msra.mxu0 %v285
      %314 = vmatprep.subr.mxu0 0.0
      %315 = vmatpush1.msra.mxu0 %v286
      %316 = vmatprep.subr.mxu0 0.0
      %317 = vmatpush1.msra.mxu0 %v287
      %318 = vmatprep.subr.mxu0 0.0
      %319 = vmatpush1.msra.mxu0 %v288
      %320 = vmatprep.subr.mxu0 0.0
      %321 = vmatpush1.msra.mxu0 %v289
      %322 = vmatprep.subr.mxu0 0.0
      %323 = vmatpush1.msra.mxu0 %v290
      %324 = vmatprep.subr.mxu0 0.0
      %325 = vmatpush1.msra.mxu0 %v291
      %326 = vmatprep.subr.mxu0 0.0
      %327 = vmatpush1.msra.mxu0 %v292
      %328 = vmatprep.subr.mxu0 0.0
      %329 = vmatpush1.msra.mxu0 %v293
      %330 = vmatprep.subr.mxu0 0.0
      %331 = vmatpush1.msra.mxu0 %v294
      %332 = vmatprep.subr.mxu0 0.0
      %333 = vmatpush1.msra.mxu0 %v295
      %334 = vmatprep.subr.mxu0 0.0
      %335 = vmatpush1.msra.mxu0 0.0
      %336 = vmatprep.subr.mxu0 0.0
      %337 = vmatpush1.msra.mxu0 0.0
      %338 = vmatprep.subr.mxu0 0.0
      %339 = vmatpush1.msra.mxu0 0.0
      %340 = vmatprep.subr.mxu0 0.0
      %341 = vmatpush1.msra.mxu0 0.0
      %342 = vmatprep.subr.mxu0 0.0
      %343 = vmatpush1.msra.mxu0 0.0
      %344 = vmatprep.subr.mxu0 0.0
      %345 = vmatpush1.msra.mxu0 0.0
      %346 = vmatprep.subr.mxu0 0.0
      %347 = vmatpush1.msra.mxu0 0.0
      %348 = vmatprep.subr.mxu0 0.0
      %349 = vmatpush1.msra.mxu0 0.0
      %350 = vmatprep.subr.mxu0 0.0
      %351 = vmatpush1.msra.mxu0 0.0
      %352 = vmatprep.subr.mxu0 0.0
      %353 = vmatpush1.msra.mxu0 0.0
      %354 = vmatprep.subr.mxu0 0.0
      %355 = vmatpush1.msra.mxu0 0.0
      %356 = vmatprep.subr.mxu0 0.0
      %357 = vmatpush1.msra.mxu0 0.0
      %358 = vmatprep.subr.mxu0 0.0
      %359 = vmatpush1.msra.mxu0 0.0
      %360 = vmatprep.subr.mxu0 0.0
      %361 = vmatpush1.msra.mxu0 0.0
      %362 = vmatprep.subr.mxu0 0.0
      %363 = vmatpush1.msra.mxu0 0.0
      %364 = vmatprep.subr.mxu0 0.0
      %365 = vmatpush1.msra.mxu0 0.0
      %366 = vmatprep.subr.mxu0 0.0
      %367 = vmatpush1.msra.mxu0 0.0
      %368 = vmatprep.subr.mxu0 0.0
      %369 = vmatpush1.msra.mxu0 0.0
      %370 = vmatprep.subr.mxu0 0.0
      %371 = vmatpush1.msra.mxu0 0.0
      %372 = vmatprep.subr.mxu0 0.0
      %373 = vmatpush1.msra.mxu0 0.0
      %374 = vmatprep.mubr.f32.mxu0 0.0
      %375 = vmatmul.mubr.f32.gmra.mrb[0].mxu0 %v305
      %v376 = vpop.f32.mrb[0].mxu0
      %v377 = vadd.f32 %v301, %v376
      %v378 = vpop.f32.mrb[0].mxu0
      %379 = vmatprep.mubr.f32.mxu0 0.0
      %380 = vmatmul.mubr.f32.gmra.mrb[0].mxu0 %v308
      %v381 = vpop.f32.mrb[0].mxu0
      %v382 = vadd.f32 %v301, %v381
      %v383 = vpop.f32.mrb[0].mxu0
      %384 = vdwg.mxu0
      %v385 = vmax.f32 %v377, 0.0
      %v386 = vmax.f32 %v382, 0.0
      %v387 = vld [vmem:[%s3] sm:$0xff]
      %v388 = vld [vmem:[%s3 + $0x8] sm:$0xff]
      %v389 = vld [vmem:[%s3 + $0x10] sm:$0xff]
      %v390 = vld [vmem:[%s3 + $0x18] sm:$0xff]
      %v391 = vld [vmem:[%s4] sm:$0x1]
      %v393 = vlaneseq
      %v394 = vshrl.u32 %v393, 7
      %v395 = vsub.s32 0, %v394
      %v396 = vrot.slane %v391, %v395
      %v399 = vsel %vm276, %v385, 0
      %v402 = vsel %vm276, %v386, 0
      %404 = vmatprep.subr.mxu0 0.0
      %405 = vmatpush1.msra.mxu0 %v387
      %406 = vmatprep.subr.mxu0 0.0
      %407 = vmatpush1.msra.mxu0 %v388
      %408 = vmatprep.subr.mxu0 0.0
      %409 = vmatpush1.msra.mxu0 %v389
      %410 = vmatprep.subr.mxu0 0.0
      %411 = vmatpush1.msra.mxu0 %v390
      %412 = vmatprep.subr.mxu0 0.0
      %413 = vmatpush1.msra.mxu0 0.0
      %414 = vmatprep.subr.mxu0 0.0
      %415 = vmatpush1.msra.mxu0 0.0
      %416 = vmatprep.subr.mxu0 0.0
      %417 = vmatpush1.msra.mxu0 0.0
      %418 = vmatprep.subr.mxu0 0.0
      %419 = vmatpush1.msra.mxu0 0.0
      %420 = vmatprep.subr.mxu0 0.0
      %421 = vmatpush1.msra.mxu0 0.0
      %422 = vmatprep.subr.mxu0 0.0
      %423 = vmatpush1.msra.mxu0 0.0
      %424 = vmatprep.subr.mxu0 0.0
      %425 = vmatpush1.msra.mxu0 0.0
      %426 = vmatprep.subr.mxu0 0.0
      %427 = vmatpush1.msra.mxu0 0.0
      %428 = vmatprep.subr.mxu0 0.0
      %429 = vmatpush1.msra.mxu0 0.0
      %430 = vmatprep.subr.mxu0 0.0
      %431 = vmatpush1.msra.mxu0 0.0
      %432 = vmatprep.subr.mxu0 0.0
      %433 = vmatpush1.msra.mxu0 0.0
      %434 = vmatprep.subr.mxu0 0.0
      %435 = vmatpush1.msra.mxu0 0.0
      %436 = vmatprep.subr.mxu0 0.0
      %437 = vmatpush1.msra.mxu0 0.0
      %438 = vmatprep.subr.mxu0 0.0
      %439 = vmatpush1.msra.mxu0 0.0
      %440 = vmatprep.subr.mxu0 0.0
      %441 = vmatpush1.msra.mxu0 0.0
      %442 = vmatprep.subr.mxu0 0.0
      %443 = vmatpush1.msra.mxu0 0.0
      %444 = vmatprep.subr.mxu0 0.0
      %445 = vmatpush1.msra.mxu0 0.0
      %446 = vmatprep.subr.mxu0 0.0
      %447 = vmatpush1.msra.mxu0 0.0
      %448 = vmatprep.subr.mxu0 0.0
      %449 = vmatpush1.msra.mxu0 0.0
      %450 = vmatprep.subr.mxu0 0.0
      %451 = vmatpush1.msra.mxu0 0.0
      %452 = vmatprep.subr.mxu0 0.0
      %453 = vmatpush1.msra.mxu0 0.0
      %454 = vmatprep.subr.mxu0 0.0
      %455 = vmatpush1.msra.mxu0 0.0
      %456 = vmatprep.subr.mxu0 0.0
      %457 = vmatpush1.msra.mxu0 0.0
      %458 = vmatprep.subr.mxu0 0.0
      %459 = vmatpush1.msra.mxu0 0.0
      %460 = vmatprep.subr.mxu0 0.0
      %461 = vmatpush1.msra.mxu0 0.0
      %462 = vmatprep.subr.mxu0 0.0
      %463 = vmatpush1.msra.mxu0 0.0
      %464 = vmatprep.subr.mxu0 0.0
      %465 = vmatpush1.msra.mxu0 0.0
      %466 = vmatprep.subr.mxu0 0.0
      %467 = vmatpush1.msra.mxu0 0.0
      %468 = vmatprep.mubr.f32.mxu0 0.0
      %469 = vmatmul.mubr.f32.gmra.mrb[0].mxu0 %v399
      %v470 = vpop.f32.mrb[0].mxu0
      %v471 = vadd.f32 %v396, %v470
      %v472 = vpop.f32.mrb[0].mxu0
      %473 = vmatprep.mubr.f32.mxu0 0.0
      %474 = vmatmul.mubr.f32.gmra.mrb[0].mxu0 %v402
      %v475 = vpop.f32.mrb[0].mxu0
      %v476 = vadd.f32 %v396, %v475
      %v477 = vpop.f32.mrb[0].mxu0
      %478 = vdwg.mxu0
      %v479 = vadd.f32 %v471, %v254
      %v480 = vadd.f32 %v476, %v255
      %481 = vst.msk [vmem:[%s246] sm:$0xff] %vm276, %v479
      %482 = vst.msk [vmem:[%s246 + $0x8] sm:$0xff] %vm276, %v480
      %s483 = smul.u32 2, %s21
      %p484 = scmp.lt.s32.totalorder %s20, 1
      %s485 = scalar_select %p484, %s20, 1
      %p486 = scmp.lt.s32.totalorder %s483, 1
      %s487 = scalar_select %p486, %s483, 1
      %s488 = smul.addr %s485, 2
      %s489 = sadd.s32 %s487, %s488
      %s490 = smul.addr %s489, 8
      %s491 = scalar_lea.vmem %s5, %s490
      // Predicated region
      $region41: #{run_f32.22} parent=39 // pred_check
        %p492 = pneg %p158
      $region42: #{run_f32.22} parent=39 // pred_check_branch
        %494 = sbr.rel (%p492) target = $region44
      $region43: #{run_f32.22} parent=39 // pred_region
        %s495 = smul.u32 2, %s21
      $region44: #{run_f32.22} parent=39 // pred_fallthru
        _
    $region40: #{run_f32.22} parent=5 // pred_fallthru
      _
    %p496 = scmp.le.s32.totalorder 2, %s11
    // Predicated region
    $region45: #{run_f32.22} parent=5 // pred_check
      %p497 = pneg %p496
    $region46: #{run_f32.22} parent=5 // pred_check_branch
      %499 = sbr.rel (%p497) target = $region48
    $region47: #{run_f32.22} parent=5 // pred_region
      %s500 = ssub.s32 %s11, 2
      // Predicated region
      $region49: #{run_f32.22} parent=47 // pred_check
        %p501 = pneg %p164
      $region50: #{run_f32.22} parent=47 // pred_check_branch
        %503 = sbr.rel (%p501) target = $region52
      $region51: #{run_f32.22} parent=47 // pred_region
        %s504 = smul.u32 2, %s23
        %p505 = scmp.lt.s32.totalorder %s22, 1
        %s506 = scalar_select %p505, %s22, 1
        %p507 = scmp.lt.s32.totalorder %s504, 1
        %s508 = scalar_select %p507, %s504, 1
        %s509 = smul.addr %s506, 2
        %s510 = sadd.s32 %s508, %s509
        %s511 = smul.addr %s510, 8
        %s512 = scalar_lea.vmem %s5, %s511
      $region52: #{run_f32.22} parent=47 // pred_fallthru
        _
    $region48: #{run_f32.22} parent=5 // pred_fallthru
      _
  $region6: #{run_f32.22} parent=0 // loop_footer
    %s15 = sadd.s32 1, %s11
  $region7: #{run_f32.22} parent=0 // loop_footer_branch
    %10 = sbr.rel target = $region3
  $region8: #{run_f32.22} parent=0 // loop_exit
    _

// kernel: run_f32.20
$region0: #{run_f32.20}
  #allocation0 [shape = 'u32[]', space=smem, size = 0x4, offset = 0x4, fixed_abs, tag = 'smem constant byte address 0x4 - core index']
  #allocation1 [shape = 'u32[144,128]{1,0:T(1,128)}', space=vmem, size = 0x12000, scoped, tag = 'internal scratch']
  %s0 = inlined_call_operand.vmem [shape: f32[2,34,32], index: 0, kind: input, shape index: {}]
  %s1 = inlined_call_operand.vmem [shape: f32[96,32], index: 1, kind: input, shape index: {}]
  %s2 = inlined_call_operand.vmem [shape: f32[1,32], index: 2, kind: input, shape index: {}]
  %s3 = inlined_call_operand.vmem [shape: f32[32,32], index: 3, kind: input, shape index: {}]
  %s4 = inlined_call_operand.vmem [shape: f32[1,32], index: 4, kind: input, shape index: {}]
  %s5 = inlined_call_operand.vmem [shape: f32[2,16,32], index: 5, kind: output, shape index: {}]
  %s6 = sld [smem:[#allocation0]]
  $region53: #{run_f32.20} parent=0
    _
  %s8 = ssub.s32 1, %s6
  %s9 = scalar_select 0, %s8, %s6
  loop: start=0, step=1, limit=4
  $region2: #{run_f32.20} parent=0 // loop_pre_header
    _
  $region3: #{run_f32.20} parent=0 // loop_header
    %s11 = sphi 0, %s15
    %p12 = scmp.ge.s32.totalorder %s11, 4
    %s18 = sphi 0, %s30
    %s19 = sphi 0, %s26
    %s20 = sphi 0, %s18
    %s21 = sphi 0, %s19
    %s22 = sphi 0, %s20
    %s23 = sphi 0, %s21
    %s33 = sphi 0, %s35
    %s36 = sphi 0, %s33
    %s37 = sphi 0, %s36
    %s53 = sphi 0, %s37
    %s57 = sphi 0, %s57
    %s59 = sphi 0, %s57
    %s60 = sphi 0, %s59
    %s74 = sphi 0, %s60
    %s78 = sphi 0, %s78
    %s80 = sphi 0, %s78
    %s81 = sphi 0, %s80
    %s95 = sphi 0, %s81
    %s99 = sphi 0, %s99
    %s101 = sphi 0, %s99
    %s102 = sphi 0, %s101
    %s116 = sphi 0, %s102
    %s120 = sphi 0, %s120
    %s122 = sphi 0, %s120
    %s123 = sphi 0, %s122
    %s137 = sphi 0, %s123
    %s145 = sphi 0, %s147
    %s148 = sphi 0, %s145
    %s149 = sphi 0, %s148
    %s165 = sphi 0, %s149
  $region4: #{run_f32.20} parent=0 // loop_header_branch
    %14 = sbr.rel (%p12) target = $region8
  $region5: #{run_f32.20} parent=0 // loop_body
    %s16 = ssub.s32 %s11, 1
    %s17 = ssub.s32 %s11, 2
    %s24 = sadd.s32 1, %s19
    %p25 = scmp.ge.s32.totalorder %s24, 1
    %s26 = scalar_select %p25, 0, %s24
    %s27 = sadd.s32 1, %s18
    %s28 = scalar_select %p25, %s27, %s18
    %p29 = scmp.ge.s32.totalorder %s28, 2
    %s30 = scalar_select %p29, 0, %s28
    %s31 = ssub.s32 %s18, %s30
    %p32 = scmp.eq.s32.totalorder %s31, 0
    %s34 = sadd.s32 %s33, 1
    %s35 = scalar_select %p32, %s33, %s34
    %p38 = pneg %p32
    %p39 = scmp.eq.s32.totalorder %s11, 1
    %p40 = por %p38, %p39
    %p41 = scmp.ne.s32.totalorder %s33, %s36
    %p42 = scmp.eq.s32.totalorder %s11, 0
    %p43 = por %p41, %p42
    %p44 = scmp.ne.s32.totalorder %s33, %s36
    %p45 = scmp.eq.s32.totalorder %s16, 1
    %p46 = por %p44, %p45
    %p47 = scmp.ne.s32.totalorder %s36, %s37
    %p48 = scmp.eq.s32.totalorder %s16, 0
    %p49 = por %p47, %p48
    %p50 = scmp.ne.s32.totalorder %s36, %s37
    %p51 = scmp.eq.s32.totalorder %s17, 1
    %p52 = por %p50, %p51
    %p54 = scmp.ne.s32.totalorder %s37, %s53
    %p55 = scmp.eq.s32.totalorder %s17, 0
    %p56 = por %p54, %p55
    %s58 = sadd.s32 %s57, 1
    %p61 = scmp.eq.s32.totalorder %s11, 1
    %p62 = scmp.ne.s32.totalorder %s57, %s59
    %p63 = scmp.eq.s32.totalorder %s11, 0
    %p64 = por %p62, %p63
    %p65 = scmp.ne.s32.totalorder %s57, %s59
    %p66 = scmp.eq.s32.totalorder %s16, 1
    %p67 = por %p65, %p66
    %p68 = scmp.ne.s32.totalorder %s59, %s60
    %p69 = scmp.eq.s32.totalorder %s16, 0
    %p70 = por %p68, %p69
    %p71 = scmp.ne.s32.totalorder %s59, %s60
    %p72 = scmp.eq.s32.totalorder %s17, 1
    %p73 = por %p71, %p72
    %p75 = scmp.ne.s32.totalorder %s60, %s74
    %p76 = scmp.eq.s32.totalorder %s17, 0
    %p77 = por %p75, %p76
    %s79 = sadd.s32 %s78, 1
    %p82 = scmp.eq.s32.totalorder %s11, 1
    %p83 = scmp.ne.s32.totalorder %s78, %s80
    %p84 = scmp.eq.s32.totalorder %s11, 0
    %p85 = por %p83, %p84
    %p86 = scmp.ne.s32.totalorder %s78, %s80
    %p87 = scmp.eq.s32.totalorder %s16, 1
    %p88 = por %p86, %p87
    %p89 = scmp.ne.s32.totalorder %s80, %s81
    %p90 = scmp.eq.s32.totalorder %s16, 0
    %p91 = por %p89, %p90
    %p92 = scmp.ne.s32.totalorder %s80, %s81
    %p93 = scmp.eq.s32.totalorder %s17, 1
    %p94 = por %p92, %p93
    %p96 = scmp.ne.s32.totalorder %s81, %s95
    %p97 = scmp.eq.s32.totalorder %s17, 0
    %p98 = por %p96, %p97
    %s100 = sadd.s32 %s99, 1
    %p103 = scmp.eq.s32.totalorder %s11, 1
    %p104 = scmp.ne.s32.totalorder %s99, %s101
    %p105 = scmp.eq.s32.totalorder %s11, 0
    %p106 = por %p104, %p105
    %p107 = scmp.ne.s32.totalorder %s99, %s101
    %p108 = scmp.eq.s32.totalorder %s16, 1
    %p109 = por %p107, %p108
    %p110 = scmp.ne.s32.totalorder %s101, %s102
    %p111 = scmp.eq.s32.totalorder %s16, 0
    %p112 = por %p110, %p111
    %p113 = scmp.ne.s32.totalorder %s101, %s102
    %p114 = scmp.eq.s32.totalorder %s17, 1
    %p115 = por %p113, %p114
    %p117 = scmp.ne.s32.totalorder %s102, %s116
    %p118 = scmp.eq.s32.totalorder %s17, 0
    %p119 = por %p117, %p118
    %s121 = sadd.s32 %s120, 1
    %p124 = scmp.eq.s32.totalorder %s11, 1
    %p125 = scmp.ne.s32.totalorder %s120, %s122
    %p126 = scmp.eq.s32.totalorder %s11, 0
    %p127 = por %p125, %p126
    %p128 = scmp.ne.s32.totalorder %s120, %s122
    %p129 = scmp.eq.s32.totalorder %s16, 1
    %p130 = por %p128, %p129
    %p131 = scmp.ne.s32.totalorder %s122, %s123
    %p132 = scmp.eq.s32.totalorder %s16, 0
    %p133 = por %p131, %p132
    %p134 = scmp.ne.s32.totalorder %s122, %s123
    %p135 = scmp.eq.s32.totalorder %s17, 1
    %p136 = por %p134, %p135
    %p138 = scmp.ne.s32.totalorder %s123, %s137
    %p139 = scmp.eq.s32.totalorder %s17, 0
    %p140 = por %p138, %p139
    %s141 = ssub.s32 %s18, %s30
    %s142 = ssub.s32 %s19, %s26
    %s143 = sor.u32 %s141, %s142
    %p144 = scmp.eq.s32.totalorder %s143, 0
    %s146 = sadd.s32 %s145, 1
    %s147 = scalar_select %p144, %s145, %s146
    %p150 = pneg %p144
    %p151 = scmp.eq.s32.totalorder %s11, 1
    %p152 = por %p150, %p151
    %p153 = scmp.ne.s32.totalorder %s145, %s148
    %p154 = scmp.eq.s32.totalorder %s11, 0
    %p155 = por %p153, %p154
    %p156 = scmp.ne.s32.totalorder %s145, %s148
    %p157 = scmp.eq.s32.totalorder %s16, 1
    %p158 = por %p156, %p157
    %p159 = scmp.ne.s32.totalorder %s148, %s149
    %p160 = scmp.eq.s32.totalorder %s16, 0
    %p161 = por %p159, %p160
    %p162 = scmp.ne.s32.totalorder %s148, %s149
    %p163 = scmp.eq.s32.totalorder %s17, 1
    %p164 = por %p162, %p163
    %p166 = scmp.ne.s32.totalorder %s149, %s165
    %p167 = scmp.eq.s32.totalorder %s17, 0
    %p168 = por %p166, %p167
    %p169 = scmp.le.s32.totalorder 1, %s11
    %p170 = scmp.lt.s32.totalorder %s11, 3
    %p171 = pnand %p169, %p170
    %p172 = pneg %p171
    // Predicated region
    $region9: #{run_f32.20} parent=5 // pred_check
      _
    $region10: #{run_f32.20} parent=5 // pred_check_branch
      %174 = sbr.rel (%p171) target = $region12
    $region11: #{run_f32.20} parent=5 // pred_region
      %s175 = ssub.s32 %s11, 1
      // Predicated region
      $region13: #{run_f32.20} parent=11 // pred_check
        %p176 = pneg %p70
      $region14: #{run_f32.20} parent=11 // pred_check_branch
        %178 = sbr.rel (%p176) target = $region16
      $region15: #{run_f32.20} parent=11 // pred_region
        _
      $region16: #{run_f32.20} parent=11 // pred_fallthru
        _
      // Predicated region
      $region17: #{run_f32.20} parent=11 // pred_check
        %p179 = pneg %p91
      $region18: #{run_f32.20} parent=11 // pred_check_branch
        %181 = sbr.rel (%p179) target = $region20
      $region19: #{run_f32.20} parent=11 // pred_region
        _
      $region20: #{run_f32.20} parent=11 // pred_fallthru
        _
      // Predicated region
      $region21: #{run_f32.20} parent=11 // pred_check
        %p182 = pneg %p112
      $region22: #{run_f32.20} parent=11 // pred_check_branch
        %184 = sbr.rel (%p182) target = $region24
      $region23: #{run_f32.20} parent=11 // pred_region
        _
      $region24: #{run_f32.20} parent=11 // pred_fallthru
        _
      // Predicated region
      $region25: #{run_f32.20} parent=11 // pred_check
        %p185 = pneg %p133
      $region26: #{run_f32.20} parent=11 // pred_check_branch
        %187 = sbr.rel (%p185) target = $region28
      $region27: #{run_f32.20} parent=11 // pred_region
        _
      $region28: #{run_f32.20} parent=11 // pred_fallthru
        _
    $region12: #{run_f32.20} parent=5 // pred_fallthru
      _
    %p188 = scmp.lt.s32.totalorder %s11, 2
    // Predicated region
    $region29: #{run_f32.20} parent=5 // pred_check
      %p189 = pneg %p188
    $region30: #{run_f32.20} parent=5 // pred_check_branch
      %191 = sbr.rel (%p189) target = $region32
    $region31: #{run_f32.20} parent=5 // pred_region
      // Predicated region
      $region33: #{run_f32.20} parent=31 // pred_check
        %p192 = pneg %p43
      $region34: #{run_f32.20} parent=31 // pred_check_branch
        %194 = sbr.rel (%p192) target = $region36
      $region35: #{run_f32.20} parent=31 // pred_region
        %p195 = scmp.lt.s32.totalorder %s18, 1
        %s196 = scalar_select %p195, %s18, 1
        %s197 = smul.addr %s196, 5
        %s198 = smul.addr %s197, 8
        %s199 = scalar_lea.vmem %s0, %s198
      $region36: #{run_f32.20} parent=31 // pred_fallthru
        _
    $region32: #{run_f32.20} parent=5 // pred_fallthru
      _
    %p200 = scmp.le.s32.totalorder 1, %s11
    %p201 = scmp.lt.s32.totalorder %s11, 3
    %p202 = pnand %p200, %p201
    %p203 = pneg %p202
    // Predicated region
    $region37: #{run_f32.20} parent=5 // pred_check
      _
    $region38: #{run_f32.20} parent=5 // pred_check_branch
      %205 = sbr.rel (%p202) target = $region40
    $region39: #{run_f32.20} parent=5 // pred_region
      %s206 = ssub.s32 %s11, 1
      %p207 = scmp.lt.s32.totalorder %s20, 1
      %s208 = scalar_select %p207, %s20, 1
      %s209 = smul.addr %s208, 5
      %s210 = smul.addr %s209, 8
      %s211 = scalar_lea.vmem %s0, %s210
      %p212 = pneg %p49
      %p213 = pneg %p46
      %p214 = pneg %p70
      %p215 = pneg %p67
      %p216 = pneg %p91
      %p217 = pneg %p88
      %p218 = pneg %p112
      %p219 = pneg %p109
      %p220 = pneg %p133
      %p221 = pneg %p130
      %p222 = pneg %p161
      %p223 = pneg %p158
      %s224 = smul.u32 2, %s21
      %p225 = scmp.lt.s32.totalorder %s20, 1
      %s226 = scalar_select %p225, %s20, 1
      %p227 = scmp.lt.s32.totalorder %s224, 1
      %s228 = scalar_select %p227, %s224, 1
      %s229 = smul.addr %s226, 2
      %s230 = sadd.s32 %s228, %s229
      %s231 = smul.addr %s230, 8
      %s232 = scalar_lea.vmem %s5, %s231
      %p233 = scmp.lt.s32.totalorder %s20, 1
      %s234 = scalar_select %p233, %s20, 1
      %s235 = smul.addr %s234, 5
      %s236 = smul.addr %s235, 8
      %s237 = scalar_lea.vmem %s0, %s236
      %s238 = smul.u32 2, %s21
      %p239 = scmp.lt.s32.totalorder %s20, 1
      %s240 = scalar_select %p239, %s20, 1
      %p241 = scmp.lt.s32.totalorder %s238, 1
      %s242 = scalar_select %p241, %s238, 1
      %s243 = smul.addr %s240, 2
      %s244 = sadd.s32 %s242, %s243
      %s245 = smul.addr %s244, 8
      %s246 = scalar_lea.vmem %s5, %s245
      %s247 = smul.u32 2, %s21
      %s248 = smul.u32 %s21, 16
      %s249 = scalar_lea.vmem %s237, %s248
      %v250 = vld [vmem:[%s249] sm:$0xff]
      %v251 = vld [vmem:[%s249 + $0x8] sm:$0xff]
      %s252 = sadd.s32 %s248, 9
      %s253 = scalar_lea.vmem %s237, %s252
      %v254 = vld [vmem:[%s253] sm:$0xff]
      %v255 = vld [vmem:[%s253 + $0x8] sm:$0xff]
      %s256 = sadd.s32 %s248, 18
      %s257 = scalar_lea.vmem %s237, %s256
      %v258 = vld [vmem:[%s257] sm:$0xff]
      %v259 = vld [vmem:[%s257 + $0x8] sm:$0xff]
      %262 = vrot.lane.b32.xlu0 %v254, 32
      %v263 = vpop.permute.xlu0 %262
      %264 = vrot.lane.b32.xlu0 %v255, 32
      %v265 = vpop.permute.xlu0 %264
      %270 = vrot.lane.b32.xlu0 %v258, 64
      %v271 = vpop.permute.xlu0 %270
      %272 = vrot.lane.b32.xlu0 %v259, 64
      %v273 = vpop.permute.xlu0 %272
      %vm276 = vcmask 261120
      %v277 = vsel %vm276, %v250, %v263
      %v278 = vsel %vm276, %v251, %v265
      %vm279 = vcmask 523264
      %v280 = vsel %vm279, %v277, %v271
      %v281 = vsel %vm279, %v278, %v273
      %v282 = vmax.f32 %v280, 0.0
      %v283 = vmax.f32 %v281, 0.0
      %v284 = vld [vmem:[%s1] sm:$0xff]
      %v285 = vld [vmem:[%s1 + $0x8] sm:$0xff]
      %v286 = vld [vmem:[%s1 + $0x10] sm:$0xff]
      %v287 = vld [vmem:[%s1 + $0x18] sm:$0xff]
      %v288 = vld [vmem:[%s1 + $0x20] sm:$0xff]
      %v289 = vld [vmem:[%s1 + $0x28] sm:$0xff]
      %v290 = vld [vmem:[%s1 + $0x30] sm:$0xff]
      %v291 = vld [vmem:[%s1 + $0x38] sm:$0xff]
      %v292 = vld [vmem:[%s1 + $0x40] sm:$0xff]
      %v293 = vld [vmem:[%s1 + $0x48] sm:$0xff]
      %v294 = vld [vmem:[%s1 + $0x50] sm:$0xff]
      %v295 = vld [vmem:[%s1 + $0x58] sm:$0xff]
      %v296 = vld [vmem:[%s2] sm:$0x1]
      %v298 = vlaneseq
      %v299 = vshrl.u32 %v298, 7
      %v300 = vsub.s32 0, %v299
      %v301 = vrot.slane %v296, %v300
      %vm303 = vcmask 785408
      %v305 = vsel %vm303, %v282, 0
      %v308 = vsel %vm303, %v283, 0
      %310 = vmatprep.subr.mxu0 0.0
      %311 = vmatpush1.msra.mxu0 %v284
      %312 = vmatprep.subr.mxu0 0.0
      %313 = vmatpush1.msra.mxu0 %v285
      %314 = vmatprep.subr.mxu0 0.0
      %315 = vmatpush1.msra.mxu0 %v286
      %316 = vmatprep.subr.mxu0 0.0
      %317 = vmatpush1.msra.mxu0 %v287
      %318 = vmatprep.subr.mxu0 0.0
      %319 = vmatpush1.msra.mxu0 %v288
      %320 = vmatprep.subr.mxu0 0.0
      %321 = vmatpush1.msra.mxu0 %v289
      %322 = vmatprep.subr.mxu0 0.0
      %323 = vmatpush1.msra.mxu0 %v290
      %324 = vmatprep.subr.mxu0 0.0
      %325 = vmatpush1.msra.mxu0 %v291
      %326 = vmatprep.subr.mxu0 0.0
      %327 = vmatpush1.msra.mxu0 %v292
      %328 = vmatprep.subr.mxu0 0.0
      %329 = vmatpush1.msra.mxu0 %v293
      %330 = vmatprep.subr.mxu0 0.0
      %331 = vmatpush1.msra.mxu0 %v294
      %332 = vmatprep.subr.mxu0 0.0
      %333 = vmatpush1.msra.mxu0 %v295
      %334 = vmatprep.subr.mxu0 0.0
      %335 = vmatpush1.msra.mxu0 0.0
      %336 = vmatprep.subr.mxu0 0.0
      %337 = vmatpush1.msra.mxu0 0.0
      %338 = vmatprep.subr.mxu0 0.0
      %339 = vmatpush1.msra.mxu0 0.0
      %340 = vmatprep.subr.mxu0 0.0
      %341 = vmatpush1.msra.mxu0 0.0
      %342 = vmatprep.subr.mxu0 0.0
      %343 = vmatpush1.msra.mxu0 0.0
      %344 = vmatprep.subr.mxu0 0.0
      %345 = vmatpush1.msra.mxu0 0.0
      %346 = vmatprep.subr.mxu0 0.0
      %347 = vmatpush1.msra.mxu0 0.0
      %348 = vmatprep.subr.mxu0 0.0
      %349 = vmatpush1.msra.mxu0 0.0
      %350 = vmatprep.subr.mxu0 0.0
      %351 = vmatpush1.msra.mxu0 0.0
      %352 = vmatprep.subr.mxu0 0.0
      %353 = vmatpush1.msra.mxu0 0.0
      %354 = vmatprep.subr.mxu0 0.0
      %355 = vmatpush1.msra.mxu0 0.0
      %356 = vmatprep.subr.mxu0 0.0
      %357 = vmatpush1.msra.mxu0 0.0
      %358 = vmatprep.subr.mxu0 0.0
      %359 = vmatpush1.msra.mxu0 0.0
      %360 = vmatprep.subr.mxu0 0.0
      %361 = vmatpush1.msra.mxu0 0.0
      %362 = vmatprep.subr.mxu0 0.0
      %363 = vmatpush1.msra.mxu0 0.0
      %364 = vmatprep.subr.mxu0 0.0
      %365 = vmatpush1.msra.mxu0 0.0
      %366 = vmatprep.subr.mxu0 0.0
      %367 = vmatpush1.msra.mxu0 0.0
      %368 = vmatprep.subr.mxu0 0.0
      %369 = vmatpush1.msra.mxu0 0.0
      %370 = vmatprep.subr.mxu0 0.0
      %371 = vmatpush1.msra.mxu0 0.0
      %372 = vmatprep.subr.mxu0 0.0
      %373 = vmatpush1.msra.mxu0 0.0
      %374 = vmatprep.mubr.f32.mxu0 0.0
      %375 = vmatmul.mubr.f32.gmra.mrb[0].mxu0 %v305
      %v376 = vpop.f32.mrb[0].mxu0
      %v377 = vadd.f32 %v301, %v376
      %v378 = vpop.f32.mrb[0].mxu0
      %379 = vmatprep.mubr.f32.mxu0 0.0
      %380 = vmatmul.mubr.f32.gmra.mrb[0].mxu0 %v308
      %v381 = vpop.f32.mrb[0].mxu0
      %v382 = vadd.f32 %v301, %v381
      %v383 = vpop.f32.mrb[0].mxu0
      %384 = vdwg.mxu0
      %v385 = vmax.f32 %v377, 0.0
      %v386 = vmax.f32 %v382, 0.0
      %v387 = vld [vmem:[%s3] sm:$0xff]
      %v388 = vld [vmem:[%s3 + $0x8] sm:$0xff]
      %v389 = vld [vmem:[%s3 + $0x10] sm:$0xff]
      %v390 = vld [vmem:[%s3 + $0x18] sm:$0xff]
      %v391 = vld [vmem:[%s4] sm:$0x1]
      %v393 = vlaneseq
      %v394 = vshrl.u32 %v393, 7
      %v395 = vsub.s32 0, %v394
      %v396 = vrot.slane %v391, %v395
      %v399 = vsel %vm276, %v385, 0
      %v402 = vsel %vm276, %v386, 0
      %404 = vmatprep.subr.mxu0 0.0
      %405 = vmatpush1.msra.mxu0 %v387
      %406 = vmatprep.subr.mxu0 0.0
      %407 = vmatpush1.msra.mxu0 %v388
      %408 = vmatprep.subr.mxu0 0.0
      %409 = vmatpush1.msra.mxu0 %v389
      %410 = vmatprep.subr.mxu0 0.0
      %411 = vmatpush1.msra.mxu0 %v390
      %412 = vmatprep.subr.mxu0 0.0
      %413 = vmatpush1.msra.mxu0 0.0
      %414 = vmatprep.subr.mxu0 0.0
      %415 = vmatpush1.msra.mxu0 0.0
      %416 = vmatprep.subr.mxu0 0.0
      %417 = vmatpush1.msra.mxu0 0.0
      %418 = vmatprep.subr.mxu0 0.0
      %419 = vmatpush1.msra.mxu0 0.0
      %420 = vmatprep.subr.mxu0 0.0
      %421 = vmatpush1.msra.mxu0 0.0
      %422 = vmatprep.subr.mxu0 0.0
      %423 = vmatpush1.msra.mxu0 0.0
      %424 = vmatprep.subr.mxu0 0.0
      %425 = vmatpush1.msra.mxu0 0.0
      %426 = vmatprep.subr.mxu0 0.0
      %427 = vmatpush1.msra.mxu0 0.0
      %428 = vmatprep.subr.mxu0 0.0
      %429 = vmatpush1.msra.mxu0 0.0
      %430 = vmatprep.subr.mxu0 0.0
      %431 = vmatpush1.msra.mxu0 0.0
      %432 = vmatprep.subr.mxu0 0.0
      %433 = vmatpush1.msra.mxu0 0.0
      %434 = vmatprep.subr.mxu0 0.0
      %435 = vmatpush1.msra.mxu0 0.0
      %436 = vmatprep.subr.mxu0 0.0
      %437 = vmatpush1.msra.mxu0 0.0
      %438 = vmatprep.subr.mxu0 0.0
      %439 = vmatpush1.msra.mxu0 0.0
      %440 = vmatprep.subr.mxu0 0.0
      %441 = vmatpush1.msra.mxu0 0.0
      %442 = vmatprep.subr.mxu0 0.0
      %443 = vmatpush1.msra.mxu0 0.0
      %444 = vmatprep.subr.mxu0 0.0
      %445 = vmatpush1.msra.mxu0 0.0
      %446 = vmatprep.subr.mxu0 0.0
      %447 = vmatpush1.msra.mxu0 0.0
      %448 = vmatprep.subr.mxu0 0.0
      %449 = vmatpush1.msra.mxu0 0.0
      %450 = vmatprep.subr.mxu0 0.0
      %451 = vmatpush1.msra.mxu0 0.0
      %452 = vmatprep.subr.mxu0 0.0
      %453 = vmatpush1.msra.mxu0 0.0
      %454 = vmatprep.subr.mxu0 0.0
      %455 = vmatpush1.msra.mxu0 0.0
      %456 = vmatprep.subr.mxu0 0.0
      %457 = vmatpush1.msra.mxu0 0.0
      %458 = vmatprep.subr.mxu0 0.0
      %459 = vmatpush1.msra.mxu0 0.0
      %460 = vmatprep.subr.mxu0 0.0
      %461 = vmatpush1.msra.mxu0 0.0
      %462 = vmatprep.subr.mxu0 0.0
      %463 = vmatpush1.msra.mxu0 0.0
      %464 = vmatprep.subr.mxu0 0.0
      %465 = vmatpush1.msra.mxu0 0.0
      %466 = vmatprep.subr.mxu0 0.0
      %467 = vmatpush1.msra.mxu0 0.0
      %468 = vmatprep.mubr.f32.mxu0 0.0
      %469 = vmatmul.mubr.f32.gmra.mrb[0].mxu0 %v399
      %v470 = vpop.f32.mrb[0].mxu0
      %v471 = vadd.f32 %v396, %v470
      %v472 = vpop.f32.mrb[0].mxu0
      %473 = vmatprep.mubr.f32.mxu0 0.0
      %474 = vmatmul.mubr.f32.gmra.mrb[0].mxu0 %v402
      %v475 = vpop.f32.mrb[0].mxu0
      %v476 = vadd.f32 %v396, %v475
      %v477 = vpop.f32.mrb[0].mxu0
      %478 = vdwg.mxu0
      %v479 = vadd.f32 %v471, %v254
      %v480 = vadd.f32 %v476, %v255
      %481 = vst.msk [vmem:[%s246] sm:$0xff] %vm276, %v479
      %482 = vst.msk [vmem:[%s246 + $0x8] sm:$0xff] %vm276, %v480
      %s483 = smul.u32 2, %s21
      %p484 = scmp.lt.s32.totalorder %s20, 1
      %s485 = scalar_select %p484, %s20, 1
      %p486 = scmp.lt.s32.totalorder %s483, 1
      %s487 = scalar_select %p486, %s483, 1
      %s488 = smul.addr %s485, 2
      %s489 = sadd.s32 %s487, %s488
      %s490 = smul.addr %s489, 8
      %s491 = scalar_lea.vmem %s5, %s490
      // Predicated region
      $region41: #{run_f32.20} parent=39 // pred_check
        %p492 = pneg %p158
      $region42: #{run_f32.20} parent=39 // pred_check_branch
        %494 = sbr.rel (%p492) target = $region44
      $region43: #{run_f32.20} parent=39 // pred_region
        %s495 = smul.u32 2, %s21
      $region44: #{run_f32.20} parent=39 // pred_fallthru
        _
    $region40: #{run_f32.20} parent=5 // pred_fallthru
      _
    %p496 = scmp.le.s32.totalorder 2, %s11
    // Predicated region
    $region45: #{run_f32.20} parent=5 // pred_check
      %p497 = pneg %p496
    $region46: #{run_f32.20} parent=5 // pred_check_branch
      %499 = sbr.rel (%p497) target = $region48
    $region47: #{run_f32.20} parent=5 // pred_region
      %s500 = ssub.s32 %s11, 2
      // Predicated region
      $region49: #{run_f32.20} parent=47 // pred_check
        %p501 = pneg %p164
      $region50: #{run_f32.20} parent=47 // pred_check_branch
        %503 = sbr.rel (%p501) target = $region52
      $region51: #{run_f32.20} parent=47 // pred_region
        %s504 = smul.u32 2, %s23
        %p505 = scmp.lt.s32.totalorder %s22, 1
        %s506 = scalar_select %p505, %s22, 1
        %p507 = scmp.lt.s32.totalorder %s504, 1
        %s508 = scalar_select %p507, %s504, 1
        %s509 = smul.addr %s506, 2
        %s510 = sadd.s32 %s508, %s509
        %s511 = smul.addr %s510, 8
        %s512 = scalar_lea.vmem %s5, %s511
      $region52: #{run_f32.20} parent=47 // pred_fallthru
        _
    $region48: #{run_f32.20} parent=5 // pred_fallthru
      _
  $region6: #{run_f32.20} parent=0 // loop_footer
    %s15 = sadd.s32 1, %s11
  $region7: #{run_f32.20} parent=0 // loop_footer_branch
    %10 = sbr.rel target = $region3
  $region8: #{run_f32.20} parent=0 // loop_exit
    _

// kernel: run_f32.23
$region0: #{run_f32.23}
  #allocation0 [shape = 'u32[]', space=smem, size = 0x4, offset = 0x4, fixed_abs, tag = 'smem constant byte address 0x4 - core index']
  #allocation1 [shape = 'u32[144,128]{1,0:T(1,128)}', space=vmem, size = 0x12000, scoped, tag = 'internal scratch']
  %s0 = inlined_call_operand.vmem [shape: f32[2,18,32], index: 0, kind: input, shape index: {}]
  %s1 = inlined_call_operand.vmem [shape: f32[96,64], index: 1, kind: input, shape index: {}]
  %s2 = inlined_call_operand.vmem [shape: f32[1,64], index: 2, kind: input, shape index: {}]
  %s3 = inlined_call_operand.vmem [shape: f32[2,16,64], index: 3, kind: output, shape index: {}]
  %s4 = sld [smem:[#allocation0]]
  $region45: #{run_f32.23} parent=0
    _
  %s6 = ssub.s32 1, %s4
  %s7 = scalar_select 0, %s6, %s4
  loop: start=0, step=1, limit=4
  $region2: #{run_f32.23} parent=0 // loop_pre_header
    _
  $region3: #{run_f32.23} parent=0 // loop_header
    %s9 = sphi 0, %s13
    %p10 = scmp.ge.s32.totalorder %s9, 4
    %s16 = sphi 0, %s28
    %s17 = sphi 0, %s24
    %s18 = sphi 0, %s16
    %s19 = sphi 0, %s17
    %s20 = sphi 0, %s18
    %s21 = sphi 0, %s19
    %s31 = sphi 0, %s33
    %s34 = sphi 0, %s31
    %s35 = sphi 0, %s34
    %s51 = sphi 0, %s35
    %s55 = sphi 0, %s55
    %s57 = sphi 0, %s55
    %s58 = sphi 0, %s57
    %s72 = sphi 0, %s58
    %s76 = sphi 0, %s76
    %s78 = sphi 0, %s76
    %s79 = sphi 0, %s78
    %s93 = sphi 0, %s79
    %s101 = sphi 0, %s103
    %s104 = sphi 0, %s101
    %s105 = sphi 0, %s104
    %s121 = sphi 0, %s105
  $region4: #{run_f32.23} parent=0 // loop_header_branch
    %12 = sbr.rel (%p10) target = $region8
  $region5: #{run_f32.23} parent=0 // loop_body
    %s14 = ssub.s32 %s9, 1
    %s15 = ssub.s32 %s9, 2
    %s22 = sadd.s32 1, %s17
    %p23 = scmp.ge.s32.totalorder %s22, 1
    %s24 = scalar_select %p23, 0, %s22
    %s25 = sadd.s32 1, %s16
    %s26 = scalar_select %p23, %s25, %s16
    %p27 = scmp.ge.s32.totalorder %s26, 2
    %s28 = scalar_select %p27, 0, %s26
    %s29 = ssub.s32 %s16, %s28
    %p30 = scmp.eq.s32.totalorder %s29, 0
    %s32 = sadd.s32 %s31, 1
    %s33 = scalar_select %p30, %s31, %s32
    %p36 = pneg %p30
    %p37 = scmp.eq.s32.totalorder %s9, 1
    %p38 = por %p36, %p37
    %p39 = scmp.ne.s32.totalorder %s31, %s34
    %p40 = scmp.eq.s32.totalorder %s9, 0
    %p41 = por %p39, %p40
    %p42 = scmp.ne.s32.totalorder %s31, %s34
    %p43 = scmp.eq.s32.totalorder %s14, 1
    %p44 = por %p42, %p43
    %p45 = scmp.ne.s32.totalorder %s34, %s35
    %p46 = scmp.eq.s32.totalorder %s14, 0
    %p47 = por %p45, %p46
    %p48 = scmp.ne.s32.totalorder %s34, %s35
    %p49 = scmp.eq.s32.totalorder %s15, 1
    %p50 = por %p48, %p49
    %p52 = scmp.ne.s32.totalorder %s35, %s51
    %p53 = scmp.eq.s32.totalorder %s15, 0
    %p54 = por %p52, %p53
    %s56 = sadd.s32 %s55, 1
    %p59 = scmp.eq.s32.totalorder %s9, 1
    %p60 = scmp.ne.s32.totalorder %s55, %s57
    %p61 = scmp.eq.s32.totalorder %s9, 0
    %p62 = por %p60, %p61
    %p63 = scmp.ne.s32.totalorder %s55, %s57
    %p64 = scmp.eq.s32.totalorder %s14, 1
    %p65 = por %p63, %p64
    %p66 = scmp.ne.s32.totalorder %s57, %s58
    %p67 = scmp.eq.s32.totalorder %s14, 0
    %p68 = por %p66, %p67
    %p69 = scmp.ne.s32.totalorder %s57, %s58
    %p70 = scmp.eq.s32.totalorder %s15, 1
    %p71 = por %p69, %p70
    %p73 = scmp.ne.s32.totalorder %s58, %s72
    %p74 = scmp.eq.s32.totalorder %s15, 0
    %p75 = por %p73, %p74
    %s77 = sadd.s32 %s76, 1
    %p80 = scmp.eq.s32.totalorder %s9, 1
    %p81 = scmp.ne.s32.totalorder %s76, %s78
    %p82 = scmp.eq.s32.totalorder %s9, 0
    %p83 = por %p81, %p82
    %p84 = scmp.ne.s32.totalorder %s76, %s78
    %p85 = scmp.eq.s32.totalorder %s14, 1
    %p86 = por %p84, %p85
    %p87 = scmp.ne.s32.totalorder %s78, %s79
    %p88 = scmp.eq.s32.totalorder %s14, 0
    %p89 = por %p87, %p88
    %p90 = scmp.ne.s32.totalorder %s78, %s79
    %p91 = scmp.eq.s32.totalorder %s15, 1
    %p92 = por %p90, %p91
    %p94 = scmp.ne.s32.totalorder %s79, %s93
    %p95 = scmp.eq.s32.totalorder %s15, 0
    %p96 = por %p94, %p95
    %s97 = ssub.s32 %s16, %s28
    %s98 = ssub.s32 %s17, %s24
    %s99 = sor.u32 %s97, %s98
    %p100 = scmp.eq.s32.totalorder %s99, 0
    %s102 = sadd.s32 %s101, 1
    %s103 = scalar_select %p100, %s101, %s102
    %p106 = pneg %p100
    %p107 = scmp.eq.s32.totalorder %s9, 1
    %p108 = por %p106, %p107
    %p109 = scmp.ne.s32.totalorder %s101, %s104
    %p110 = scmp.eq.s32.totalorder %s9, 0
    %p111 = por %p109, %p110
    %p112 = scmp.ne.s32.totalorder %s101, %s104
    %p113 = scmp.eq.s32.totalorder %s14, 1
    %p114 = por %p112, %p113
    %p115 = scmp.ne.s32.totalorder %s104, %s105
    %p116 = scmp.eq.s32.totalorder %s14, 0
    %p117 = por %p115, %p116
    %p118 = scmp.ne.s32.totalorder %s104, %s105
    %p119 = scmp.eq.s32.totalorder %s15, 1
    %p120 = por %p118, %p119
    %p122 = scmp.ne.s32.totalorder %s105, %s121
    %p123 = scmp.eq.s32.totalorder %s15, 0
    %p124 = por %p122, %p123
    %p125 = scmp.le.s32.totalorder 1, %s9
    %p126 = scmp.lt.s32.totalorder %s9, 3
    %p127 = pnand %p125, %p126
    %p128 = pneg %p127
    // Predicated region
    $region9: #{run_f32.23} parent=5 // pred_check
      _
    $region10: #{run_f32.23} parent=5 // pred_check_branch
      %130 = sbr.rel (%p127) target = $region12
    $region11: #{run_f32.23} parent=5 // pred_region
      %s131 = ssub.s32 %s9, 1
      // Predicated region
      $region13: #{run_f32.23} parent=11 // pred_check
        %p132 = pneg %p68
      $region14: #{run_f32.23} parent=11 // pred_check_branch
        %134 = sbr.rel (%p132) target = $region16
      $region15: #{run_f32.23} parent=11 // pred_region
        _
      $region16: #{run_f32.23} parent=11 // pred_fallthru
        _
      // Predicated region
      $region17: #{run_f32.23} parent=11 // pred_check
        %p135 = pneg %p89
      $region18: #{run_f32.23} parent=11 // pred_check_branch
        %137 = sbr.rel (%p135) target = $region20
      $region19: #{run_f32.23} parent=11 // pred_region
        _
      $region20: #{run_f32.23} parent=11 // pred_fallthru
        _
    $region12: #{run_f32.23} parent=5 // pred_fallthru
      _
    %p138 = scmp.lt.s32.totalorder %s9, 2
    // Predicated region
    $region21: #{run_f32.23} parent=5 // pred_check
      %p139 = pneg %p138
    $region22: #{run_f32.23} parent=5 // pred_check_branch
      %141 = sbr.rel (%p139) target = $region24
    $region23: #{run_f32.23} parent=5 // pred_region
      // Predicated region
      $region25: #{run_f32.23} parent=23 // pred_check
        %p142 = pneg %p41
      $region26: #{run_f32.23} parent=23 // pred_check_branch
        %144 = sbr.rel (%p142) target = $region28
      $region27: #{run_f32.23} parent=23 // pred_region
        %p145 = scmp.lt.s32.totalorder %s16, 1
        %s146 = scalar_select %p145, %s16, 1
        %s147 = smul.addr %s146, 3
        %s148 = smul.addr %s147, 8
        %s149 = scalar_lea.vmem %s0, %s148
      $region28: #{run_f32.23} parent=23 // pred_fallthru
        _
    $region24: #{run_f32.23} parent=5 // pred_fallthru
      _
    %p150 = scmp.le.s32.totalorder 1, %s9
    %p151 = scmp.lt.s32.totalorder %s9, 3
    %p152 = pnand %p150, %p151
    %p153 = pneg %p152
    // Predicated region
    $region29: #{run_f32.23} parent=5 // pred_check
      _
    $region30: #{run_f32.23} parent=5 // pred_check_branch
      %155 = sbr.rel (%p152) target = $region32
    $region31: #{run_f32.23} parent=5 // pred_region
      %s156 = ssub.s32 %s9, 1
      %p157 = scmp.lt.s32.totalorder %s18, 1
      %s158 = scalar_select %p157, %s18, 1
      %s159 = smul.addr %s158, 3
      %s160 = smul.addr %s159, 8
      %s161 = scalar_lea.vmem %s0, %s160
      %p162 = pneg %p47
      %p163 = pneg %p44
      %p164 = pneg %p68
      %p165 = pneg %p65
      %p166 = pneg %p89
      %p167 = pneg %p86
      %p168 = pneg %p117
      %p169 = pneg %p114
      %s170 = smul.u32 2, %s19
      %p171 = scmp.lt.s32.totalorder %s18, 1
      %s172 = scalar_select %p171, %s18, 1
      %p173 = scmp.lt.s32.totalorder %s170, 1
      %s174 = scalar_select %p173, %s170, 1
      %s175 = smul.addr %s172, 2
      %s176 = sadd.s32 %s174, %s175
      %s177 = smul.addr %s176, 8
      %s178 = scalar_lea.vmem %s3, %s177
      %p179 = scmp.lt.s32.totalorder %s18, 1
      %s180 = scalar_select %p179, %s18, 1
      %s181 = smul.addr %s180, 3
      %s182 = smul.addr %s181, 8
      %s183 = scalar_lea.vmem %s0, %s182
      %s184 = smul.u32 2, %s19
      %p185 = scmp.lt.s32.totalorder %s18, 1
      %s186 = scalar_select %p185, %s18, 1
      %p187 = scmp.lt.s32.totalorder %s184, 1
      %s188 = scalar_select %p187, %s184, 1
      %s189 = smul.addr %s186, 2
      %s190 = sadd.s32 %s188, %s189
      %s191 = smul.addr %s190, 8
      %s192 = scalar_lea.vmem %s3, %s191
      %s193 = smul.u32 2, %s19
      %s194 = smul.u32 %s19, 16
      %s195 = scalar_lea.vmem %s183, %s194
      %v196 = vld [vmem:[%s195] sm:$0xff]
      %v197 = vld [vmem:[%s195 + $0x8] sm:$0xff]
      %s198 = sadd.s32 %s194, 1
      %s199 = scalar_lea.vmem %s183, %s198
      %v200 = vld [vmem:[%s199] sm:$0xff]
      %v201 = vld [vmem:[%s199 + $0x8] sm:$0xff]
      %s202 = sadd.s32 %s194, 2
      %s203 = scalar_lea.vmem %s183, %s202
      %v204 = vld [vmem:[%s203] sm:$0xff]
      %v205 = vld [vmem:[%s203 + $0x8] sm:$0xff]
      %208 = vrot.lane.b32.xlu0 %v200, 32
      %v209 = vpop.permute.xlu0 %208
      %210 = vrot.lane.b32.xlu0 %v201, 32
      %v211 = vpop.permute.xlu0 %210
      %216 = vrot.lane.b32.xlu0 %v204, 64
      %v217 = vpop.permute.xlu0 %216
      %218 = vrot.lane.b32.xlu0 %v205, 64
      %v219 = vpop.permute.xlu0 %218
      %vm222 = vcmask 261120
      %v223 = vsel %vm222, %v196, %v209
      %v224 = vsel %vm222, %v197, %v211
      %vm225 = vcmask 523264
      %v226 = vsel %vm225, %v223, %v217
      %v227 = vsel %vm225, %v224, %v219
      %v228 = vld [vmem:[%s1] sm:$0xff]
      %v229 = vld [vmem:[%s1 + $0x8] sm:$0xff]
      %v230 = vld [vmem:[%s1 + $0x10] sm:$0xff]
      %v231 = vld [vmem:[%s1 + $0x18] sm:$0xff]
      %v232 = vld [vmem:[%s1 + $0x20] sm:$0xff]
      %v233 = vld [vmem:[%s1 + $0x28] sm:$0xff]
      %v234 = vld [vmem:[%s1 + $0x30] sm:$0xff]
      %v235 = vld [vmem:[%s1 + $0x38] sm:$0xff]
      %v236 = vld [vmem:[%s1 + $0x40] sm:$0xff]
      %v237 = vld [vmem:[%s1 + $0x48] sm:$0xff]
      %v238 = vld [vmem:[%s1 + $0x50] sm:$0xff]
      %v239 = vld [vmem:[%s1 + $0x58] sm:$0xff]
      %v240 = vld [vmem:[%s2] sm:$0x1]
      %v242 = vlaneseq
      %v243 = vshrl.u32 %v242, 7
      %v244 = vsub.s32 0, %v243
      %v245 = vrot.slane %v240, %v244
      %vm247 = vcmask 785408
      %v249 = vsel %vm247, %v226, 0
      %v252 = vsel %vm247, %v227, 0
      %254 = vmatprep.subr.mxu0 0.0
      %255 = vmatpush1.msra.mxu0 %v228
      %256 = vmatprep.subr.mxu0 0.0
      %257 = vmatpush1.msra.mxu0 %v229
      %258 = vmatprep.subr.mxu0 0.0
      %259 = vmatpush1.msra.mxu0 %v230
      %260 = vmatprep.subr.mxu0 0.0
      %261 = vmatpush1.msra.mxu0 %v231
      %262 = vmatprep.subr.mxu0 0.0
      %263 = vmatpush1.msra.mxu0 %v232
      %264 = vmatprep.subr.mxu0 0.0
      %265 = vmatpush1.msra.mxu0 %v233
      %266 = vmatprep.subr.mxu0 0.0
      %267 = vmatpush1.msra.mxu0 %v234
      %268 = vmatprep.subr.mxu0 0.0
      %269 = vmatpush1.msra.mxu0 %v235
      %270 = vmatprep.subr.mxu0 0.0
      %271 = vmatpush1.msra.mxu0 %v236
      %272 = vmatprep.subr.mxu0 0.0
      %273 = vmatpush1.msra.mxu0 %v237
      %274 = vmatprep.subr.mxu0 0.0
      %275 = vmatpush1.msra.mxu0 %v238
      %276 = vmatprep.subr.mxu0 0.0
      %277 = vmatpush1.msra.mxu0 %v239
      %278 = vmatprep.subr.mxu0 0.0
      %279 = vmatpush1.msra.mxu0 0.0
      %280 = vmatprep.subr.mxu0 0.0
      %281 = vmatpush1.msra.mxu0 0.0
      %282 = vmatprep.subr.mxu0 0.0
      %283 = vmatpush1.msra.mxu0 0.0
      %284 = vmatprep.subr.mxu0 0.0
      %285 = vmatpush1.msra.mxu0 0.0
      %286 = vmatprep.subr.mxu0 0.0
      %287 = vmatpush1.msra.mxu0 0.0
      %288 = vmatprep.subr.mxu0 0.0
      %289 = vmatpush1.msra.mxu0 0.0
      %290 = vmatprep.subr.mxu0 0.0
      %291 = vmatpush1.msra.mxu0 0.0
      %292 = vmatprep.subr.mxu0 0.0
      %293 = vmatpush1.msra.mxu0 0.0
      %294 = vmatprep.subr.mxu0 0.0
      %295 = vmatpush1.msra.mxu0 0.0
      %296 = vmatprep.subr.mxu0 0.0
      %297 = vmatpush1.msra.mxu0 0.0
      %298 = vmatprep.subr.mxu0 0.0
      %299 = vmatpush1.msra.mxu0 0.0
      %300 = vmatprep.subr.mxu0 0.0
      %301 = vmatpush1.msra.mxu0 0.0
      %302 = vmatprep.subr.mxu0 0.0
      %303 = vmatpush1.msra.mxu0 0.0
      %304 = vmatprep.subr.mxu0 0.0
      %305 = vmatpush1.msra.mxu0 0.0
      %306 = vmatprep.subr.mxu0 0.0
      %307 = vmatpush1.msra.mxu0 0.0
      %308 = vmatprep.subr.mxu0 0.0
      %309 = vmatpush1.msra.mxu0 0.0
      %310 = vmatprep.subr.mxu0 0.0
      %311 = vmatpush1.msra.mxu0 0.0
      %312 = vmatprep.subr.mxu0 0.0
      %313 = vmatpush1.msra.mxu0 0.0
      %314 = vmatprep.subr.mxu0 0.0
      %315 = vmatpush1.msra.mxu0 0.0
      %316 = vmatprep.subr.mxu0 0.0
      %317 = vmatpush1.msra.mxu0 0.0
      %318 = vmatprep.mubr.f32.mxu0 0.0
      %319 = vmatmul.mubr.f32.gmra.mrb[0].mxu0 %v249
      %v320 = vpop.f32.mrb[0].mxu0
      %v321 = vadd.f32 %v245, %v320
      %v322 = vpop.f32.mrb[0].mxu0
      %323 = vmatprep.mubr.f32.mxu0 0.0
      %324 = vmatmul.mubr.f32.gmra.mrb[0].mxu0 %v252
      %v325 = vpop.f32.mrb[0].mxu0
      %v326 = vadd.f32 %v245, %v325
      %v327 = vpop.f32.mrb[0].mxu0
      %328 = vdwg.mxu0
      %329 = vst.msk [vmem:[%s192] sm:$0xff] %vm225, %v321
      %330 = vst.msk [vmem:[%s192 + $0x8] sm:$0xff] %vm225, %v326
      %s331 = smul.u32 2, %s19
      %p332 = scmp.lt.s32.totalorder %s18, 1
      %s333 = scalar_select %p332, %s18, 1
      %p334 = scmp.lt.s32.totalorder %s331, 1
      %s335 = scalar_select %p334, %s331, 1
      %s336 = smul.addr %s333, 2
      %s337 = sadd.s32 %s335, %s336
      %s338 = smul.addr %s337, 8
      %s339 = scalar_lea.vmem %s3, %s338
      // Predicated region
      $region33: #{run_f32.23} parent=31 // pred_check
        %p340 = pneg %p114
      $region34: #{run_f32.23} parent=31 // pred_check_branch
        %342 = sbr.rel (%p340) target = $region36
      $region35: #{run_f32.23} parent=31 // pred_region
        %s343 = smul.u32 2, %s19
      $region36: #{run_f32.23} parent=31 // pred_fallthru
        _
    $region32: #{run_f32.23} parent=5 // pred_fallthru
      _
    %p344 = scmp.le.s32.totalorder 2, %s9
    // Predicated region
    $region37: #{run_f32.23} parent=5 // pred_check
      %p345 = pneg %p344
    $region38: #{run_f32.23} parent=5 // pred_check_branch
      %347 = sbr.rel (%p345) target = $region40
    $region39: #{run_f32.23} parent=5 // pred_region
      %s348 = ssub.s32 %s9, 2
      // Predicated region
      $region41: #{run_f32.23} parent=39 // pred_check
        %p349 = pneg %p120
      $region42: #{run_f32.23} parent=39 // pred_check_branch
        %351 = sbr.rel (%p349) target = $region44
      $region43: #{run_f32.23} parent=39 // pred_region
        %s352 = smul.u32 2, %s21
        %p353 = scmp.lt.s32.totalorder %s20, 1
        %s354 = scalar_select %p353, %s20, 1
        %p355 = scmp.lt.s32.totalorder %s352, 1
        %s356 = scalar_select %p355, %s352, 1
        %s357 = smul.addr %s354, 2
        %s358 = sadd.s32 %s356, %s357
        %s359 = smul.addr %s358, 8
        %s360 = scalar_lea.vmem %s3, %s359
      $region44: #{run_f32.23} parent=39 // pred_fallthru
        _
    $region40: #{run_f32.23} parent=5 // pred_fallthru
      _
  $region6: #{run_f32.23} parent=0 // loop_footer
    %s13 = sadd.s32 1, %s9
  $region7: #{run_f32.23} parent=0 // loop_footer_branch
    %8 = sbr.rel target = $region3
  $region8: #{run_f32.23} parent=0 // loop_exit
    _

// kernel: run_f32.24
$region0: #{run_f32.24}
  #allocation0 [shape = 'u32[]', space=smem, size = 0x4, offset = 0x4, fixed_abs, tag = 'smem constant byte address 0x4 - core index']
  #allocation1 [shape = 'u32[144,128]{1,0:T(1,128)}', space=vmem, size = 0x12000, scoped, tag = 'internal scratch']
  %s0 = inlined_call_operand.vmem [shape: f32[2,50,32], index: 0, kind: input, shape index: {}]
  %s1 = inlined_call_operand.vmem [shape: f32[96,32], index: 1, kind: input, shape index: {}]
  %s2 = inlined_call_operand.vmem [shape: f32[1,32], index: 2, kind: input, shape index: {}]
  %s3 = inlined_call_operand.vmem [shape: f32[32,32], index: 3, kind: input, shape index: {}]
  %s4 = inlined_call_operand.vmem [shape: f32[1,32], index: 4, kind: input, shape index: {}]
  %s5 = inlined_call_operand.vmem [shape: f32[2,32,32], index: 5, kind: output, shape index: {}]
  %s6 = sld [smem:[#allocation0]]
  $region53: #{run_f32.24} parent=0
    _
  %s8 = ssub.s32 1, %s6
  %s9 = scalar_select 0, %s8, %s6
  loop: start=0, step=1, limit=6
  $region2: #{run_f32.24} parent=0 // loop_pre_header
    _
  $region3: #{run_f32.24} parent=0 // loop_header
    %s11 = sphi 0, %s15
    %p12 = scmp.ge.s32.totalorder %s11, 6
    %s18 = sphi 0, %s30
    %s19 = sphi 0, %s26
    %s20 = sphi 0, %s18
    %s21 = sphi 0, %s19
    %s22 = sphi 0, %s20
    %s23 = sphi 0, %s21
    %s33 = sphi 0, %s35
    %s36 = sphi 0, %s33
    %s37 = sphi 0, %s36
    %s53 = sphi 0, %s37
    %s57 = sphi 0, %s57
    %s59 = sphi 0, %s57
    %s60 = sphi 0, %s59
    %s74 = sphi 0, %s60
    %s78 = sphi 0, %s78
    %s80 = sphi 0, %s78
    %s81 = sphi 0, %s80
    %s95 = sphi 0, %s81
    %s99 = sphi 0, %s99
    %s101 = sphi 0, %s99
    %s102 = sphi 0, %s101
    %s116 = sphi 0, %s102
    %s120 = sphi 0, %s120
    %s122 = sphi 0, %s120
    %s123 = sphi 0, %s122
    %s137 = sphi 0, %s123
    %s145 = sphi 0, %s147
    %s148 = sphi 0, %s145
    %s149 = sphi 0, %s148
    %s165 = sphi 0, %s149
  $region4: #{run_f32.24} parent=0 // loop_header_branch
    %14 = sbr.rel (%p12) target = $region8
  $region5: #{run_f32.24} parent=0 // loop_body
    %s16 = ssub.s32 %s11, 1
    %s17 = ssub.s32 %s11, 2
    %s24 = sadd.s32 1, %s19
    %p25 = scmp.ge.s32.totalorder %s24, 2
    %s26 = scalar_select %p25, 0, %s24
    %s27 = sadd.s32 1, %s18
    %s28 = scalar_select %p25, %s27, %s18
    %p29 = scmp.ge.s32.totalorder %s28, 2
    %s30 = scalar_select %p29, 0, %s28
    %s31 = ssub.s32 %s18, %s30
    %p32 = scmp.eq.s32.totalorder %s31, 0
    %s34 = sadd.s32 %s33, 1
    %s35 = scalar_select %p32, %s33, %s34
    %p38 = pneg %p32
    %p39 = scmp.eq.s32.totalorder %s11, 3
    %p40 = por %p38, %p39
    %p41 = scmp.ne.s32.totalorder %s33, %s36
    %p42 = scmp.eq.s32.totalorder %s11, 0
    %p43 = por %p41, %p42
    %p44 = scmp.ne.s32.totalorder %s33, %s36
    %p45 = scmp.eq.s32.totalorder %s16, 3
    %p46 = por %p44, %p45
    %p47 = scmp.ne.s32.totalorder %s36, %s37
    %p48 = scmp.eq.s32.totalorder %s16, 0
    %p49 = por %p47, %p48
    %p50 = scmp.ne.s32.totalorder %s36, %s37
    %p51 = scmp.eq.s32.totalorder %s17, 3
    %p52 = por %p50, %p51
    %p54 = scmp.ne.s32.totalorder %s37, %s53
    %p55 = scmp.eq.s32.totalorder %s17, 0
    %p56 = por %p54, %p55
    %s58 = sadd.s32 %s57, 1
    %p61 = scmp.eq.s32.totalorder %s11, 3
    %p62 = scmp.ne.s32.totalorder %s57, %s59
    %p63 = scmp.eq.s32.totalorder %s11, 0
    %p64 = por %p62, %p63
    %p65 = scmp.ne.s32.totalorder %s57, %s59
    %p66 = scmp.eq.s32.totalorder %s16, 3
    %p67 = por %p65, %p66
    %p68 = scmp.ne.s32.totalorder %s59, %s60
    %p69 = scmp.eq.s32.totalorder %s16, 0
    %p70 = por %p68, %p69
    %p71 = scmp.ne.s32.totalorder %s59, %s60
    %p72 = scmp.eq.s32.totalorder %s17, 3
    %p73 = por %p71, %p72
    %p75 = scmp.ne.s32.totalorder %s60, %s74
    %p76 = scmp.eq.s32.totalorder %s17, 0
    %p77 = por %p75, %p76
    %s79 = sadd.s32 %s78, 1
    %p82 = scmp.eq.s32.totalorder %s11, 3
    %p83 = scmp.ne.s32.totalorder %s78, %s80
    %p84 = scmp.eq.s32.totalorder %s11, 0
    %p85 = por %p83, %p84
    %p86 = scmp.ne.s32.totalorder %s78, %s80
    %p87 = scmp.eq.s32.totalorder %s16, 3
    %p88 = por %p86, %p87
    %p89 = scmp.ne.s32.totalorder %s80, %s81
    %p90 = scmp.eq.s32.totalorder %s16, 0
    %p91 = por %p89, %p90
    %p92 = scmp.ne.s32.totalorder %s80, %s81
    %p93 = scmp.eq.s32.totalorder %s17, 3
    %p94 = por %p92, %p93
    %p96 = scmp.ne.s32.totalorder %s81, %s95
    %p97 = scmp.eq.s32.totalorder %s17, 0
    %p98 = por %p96, %p97
    %s100 = sadd.s32 %s99, 1
    %p103 = scmp.eq.s32.totalorder %s11, 3
    %p104 = scmp.ne.s32.totalorder %s99, %s101
    %p105 = scmp.eq.s32.totalorder %s11, 0
    %p106 = por %p104, %p105
    %p107 = scmp.ne.s32.totalorder %s99, %s101
    %p108 = scmp.eq.s32.totalorder %s16, 3
    %p109 = por %p107, %p108
    %p110 = scmp.ne.s32.totalorder %s101, %s102
    %p111 = scmp.eq.s32.totalorder %s16, 0
    %p112 = por %p110, %p111
    %p113 = scmp.ne.s32.totalorder %s101, %s102
    %p114 = scmp.eq.s32.totalorder %s17, 3
    %p115 = por %p113, %p114
    %p117 = scmp.ne.s32.totalorder %s102, %s116
    %p118 = scmp.eq.s32.totalorder %s17, 0
    %p119 = por %p117, %p118
    %s121 = sadd.s32 %s120, 1
    %p124 = scmp.eq.s32.totalorder %s11, 3
    %p125 = scmp.ne.s32.totalorder %s120, %s122
    %p126 = scmp.eq.s32.totalorder %s11, 0
    %p127 = por %p125, %p126
    %p128 = scmp.ne.s32.totalorder %s120, %s122
    %p129 = scmp.eq.s32.totalorder %s16, 3
    %p130 = por %p128, %p129
    %p131 = scmp.ne.s32.totalorder %s122, %s123
    %p132 = scmp.eq.s32.totalorder %s16, 0
    %p133 = por %p131, %p132
    %p134 = scmp.ne.s32.totalorder %s122, %s123
    %p135 = scmp.eq.s32.totalorder %s17, 3
    %p136 = por %p134, %p135
    %p138 = scmp.ne.s32.totalorder %s123, %s137
    %p139 = scmp.eq.s32.totalorder %s17, 0
    %p140 = por %p138, %p139
    %s141 = ssub.s32 %s18, %s30
    %s142 = ssub.s32 %s19, %s26
    %s143 = sor.u32 %s141, %s142
    %p144 = scmp.eq.s32.totalorder %s143, 0
    %s146 = sadd.s32 %s145, 1
    %s147 = scalar_select %p144, %s145, %s146
    %p150 = pneg %p144
    %p151 = scmp.eq.s32.totalorder %s11, 3
    %p152 = por %p150, %p151
    %p153 = scmp.ne.s32.totalorder %s145, %s148
    %p154 = scmp.eq.s32.totalorder %s11, 0
    %p155 = por %p153, %p154
    %p156 = scmp.ne.s32.totalorder %s145, %s148
    %p157 = scmp.eq.s32.totalorder %s16, 3
    %p158 = por %p156, %p157
    %p159 = scmp.ne.s32.totalorder %s148, %s149
    %p160 = scmp.eq.s32.totalorder %s16, 0
    %p161 = por %p159, %p160
    %p162 = scmp.ne.s32.totalorder %s148, %s149
    %p163 = scmp.eq.s32.totalorder %s17, 3
    %p164 = por %p162, %p163
    %p166 = scmp.ne.s32.totalorder %s149, %s165
    %p167 = scmp.eq.s32.totalorder %s17, 0
    %p168 = por %p166, %p167
    %p169 = scmp.le.s32.totalorder 1, %s11
    %p170 = scmp.lt.s32.totalorder %s11, 5
    %p171 = pnand %p169, %p170
    %p172 = pneg %p171
    // Predicated region
    $region9: #{run_f32.24} parent=5 // pred_check
      _
    $region10: #{run_f32.24} parent=5 // pred_check_branch
      %174 = sbr.rel (%p171) target = $region12
    $region11: #{run_f32.24} parent=5 // pred_region
      %s175 = ssub.s32 %s11, 1
      // Predicated region
      $region13: #{run_f32.24} parent=11 // pred_check
        %p176 = pneg %p70
      $region14: #{run_f32.24} parent=11 // pred_check_branch
        %178 = sbr.rel (%p176) target = $region16
      $region15: #{run_f32.24} parent=11 // pred_region
        _
      $region16: #{run_f32.24} parent=11 // pred_fallthru
        _
      // Predicated region
      $region17: #{run_f32.24} parent=11 // pred_check
        %p179 = pneg %p91
      $region18: #{run_f32.24} parent=11 // pred_check_branch
        %181 = sbr.rel (%p179) target = $region20
      $region19: #{run_f32.24} parent=11 // pred_region
        _
      $region20: #{run_f32.24} parent=11 // pred_fallthru
        _
      // Predicated region
      $region21: #{run_f32.24} parent=11 // pred_check
        %p182 = pneg %p112
      $region22: #{run_f32.24} parent=11 // pred_check_branch
        %184 = sbr.rel (%p182) target = $region24
      $region23: #{run_f32.24} parent=11 // pred_region
        _
      $region24: #{run_f32.24} parent=11 // pred_fallthru
        _
      // Predicated region
      $region25: #{run_f32.24} parent=11 // pred_check
        %p185 = pneg %p133
      $region26: #{run_f32.24} parent=11 // pred_check_branch
        %187 = sbr.rel (%p185) target = $region28
      $region27: #{run_f32.24} parent=11 // pred_region
        _
      $region28: #{run_f32.24} parent=11 // pred_fallthru
        _
    $region12: #{run_f32.24} parent=5 // pred_fallthru
      _
    %p188 = scmp.lt.s32.totalorder %s11, 4
    // Predicated region
    $region29: #{run_f32.24} parent=5 // pred_check
      %p189 = pneg %p188
    $region30: #{run_f32.24} parent=5 // pred_check_branch
      %191 = sbr.rel (%p189) target = $region32
    $region31: #{run_f32.24} parent=5 // pred_region
      // Predicated region
      $region33: #{run_f32.24} parent=31 // pred_check
        %p192 = pneg %p43
      $region34: #{run_f32.24} parent=31 // pred_check_branch
        %194 = sbr.rel (%p192) target = $region36
      $region35: #{run_f32.24} parent=31 // pred_region
        %p195 = scmp.lt.s32.totalorder %s18, 1
        %s196 = scalar_select %p195, %s18, 1
        %s197 = smul.addr %s196, 7
        %s198 = smul.addr %s197, 8
        %s199 = scalar_lea.vmem %s0, %s198
      $region36: #{run_f32.24} parent=31 // pred_fallthru
        _
    $region32: #{run_f32.24} parent=5 // pred_fallthru
      _
    %p200 = scmp.le.s32.totalorder 1, %s11
    %p201 = scmp.lt.s32.totalorder %s11, 5
    %p202 = pnand %p200, %p201
    %p203 = pneg %p202
    // Predicated region
    $region37: #{run_f32.24} parent=5 // pred_check
      _
    $region38: #{run_f32.24} parent=5 // pred_check_branch
      %205 = sbr.rel (%p202) target = $region40
    $region39: #{run_f32.24} parent=5 // pred_region
      %s206 = ssub.s32 %s11, 1
      %p207 = scmp.lt.s32.totalorder %s20, 1
      %s208 = scalar_select %p207, %s20, 1
      %s209 = smul.addr %s208, 7
      %s210 = smul.addr %s209, 8
      %s211 = scalar_lea.vmem %s0, %s210
      %p212 = pneg %p49
      %p213 = pneg %p46
      %p214 = pneg %p70
      %p215 = pneg %p67
      %p216 = pneg %p91
      %p217 = pneg %p88
      %p218 = pneg %p112
      %p219 = pneg %p109
      %p220 = pneg %p133
      %p221 = pneg %p130
      %p222 = pneg %p161
      %p223 = pneg %p158
      %s224 = smul.u32 2, %s21
      %p225 = scmp.lt.s32.totalorder %s20, 1
      %s226 = scalar_select %p225, %s20, 1
      %p227 = scmp.lt.s32.totalorder %s224, 3
      %s228 = scalar_select %p227, %s224, 3
      %s229 = smul.addr %s226, 4
      %s230 = sadd.s32 %s228, %s229
      %s231 = smul.addr %s230, 8
      %s232 = scalar_lea.vmem %s5, %s231
      %p233 = scmp.lt.s32.totalorder %s20, 1
      %s234 = scalar_select %p233, %s20, 1
      %s235 = smul.addr %s234, 7
      %s236 = smul.addr %s235, 8
      %s237 = scalar_lea.vmem %s0, %s236
      %s238 = smul.u32 2, %s21
      %p239 = scmp.lt.s32.totalorder %s20, 1
      %s240 = scalar_select %p239, %s20, 1
      %p241 = scmp.lt.s32.totalorder %s238, 3
      %s242 = scalar_select %p241, %s238, 3
      %s243 = smul.addr %s240, 4
      %s244 = sadd.s32 %s242, %s243
      %s245 = smul.addr %s244, 8
      %s246 = scalar_lea.vmem %s5, %s245
      %s247 = smul.u32 2, %s21
      %s248 = smul.u32 %s21, 16
      %s249 = scalar_lea.vmem %s237, %s248
      %v250 = vld [vmem:[%s249] sm:$0xff]
      %v251 = vld [vmem:[%s249 + $0x8] sm:$0xff]
      %s252 = sadd.s32 %s248, 9
      %s253 = scalar_lea.vmem %s237, %s252
      %v254 = vld [vmem:[%s253] sm:$0xff]
      %v255 = vld [vmem:[%s253 + $0x8] sm:$0xff]
      %s256 = sadd.s32 %s248, 18
      %s257 = scalar_lea.vmem %s237, %s256
      %v258 = vld [vmem:[%s257] sm:$0xff]
      %v259 = vld [vmem:[%s257 + $0x8] sm:$0xff]
      %262 = vrot.lane.b32.xlu0 %v254, 32
      %v263 = vpop.permute.xlu0 %262
      %264 = vrot.lane.b32.xlu0 %v255, 32
      %v265 = vpop.permute.xlu0 %264
      %270 = vrot.lane.b32.xlu0 %v258, 64
      %v271 = vpop.permute.xlu0 %270
      %272 = vrot.lane.b32.xlu0 %v259, 64
      %v273 = vpop.permute.xlu0 %272
      %vm276 = vcmask 261120
      %v277 = vsel %vm276, %v250, %v263
      %v278 = vsel %vm276, %v251, %v265
      %vm279 = vcmask 523264
      %v280 = vsel %vm279, %v277, %v271
      %v281 = vsel %vm279, %v278, %v273
      %v282 = vmax.f32 %v280, 0.0
      %v283 = vmax.f32 %v281, 0.0
      %v284 = vld [vmem:[%s1] sm:$0xff]
      %v285 = vld [vmem:[%s1 + $0x8] sm:$0xff]
      %v286 = vld [vmem:[%s1 + $0x10] sm:$0xff]
      %v287 = vld [vmem:[%s1 + $0x18] sm:$0xff]
      %v288 = vld [vmem:[%s1 + $0x20] sm:$0xff]
      %v289 = vld [vmem:[%s1 + $0x28] sm:$0xff]
      %v290 = vld [vmem:[%s1 + $0x30] sm:$0xff]
      %v291 = vld [vmem:[%s1 + $0x38] sm:$0xff]
      %v292 = vld [vmem:[%s1 + $0x40] sm:$0xff]
      %v293 = vld [vmem:[%s1 + $0x48] sm:$0xff]
      %v294 = vld [vmem:[%s1 + $0x50] sm:$0xff]
      %v295 = vld [vmem:[%s1 + $0x58] sm:$0xff]
      %v296 = vld [vmem:[%s2] sm:$0x1]
      %v298 = vlaneseq
      %v299 = vshrl.u32 %v298, 7
      %v300 = vsub.s32 0, %v299
      %v301 = vrot.slane %v296, %v300
      %vm303 = vcmask 785408
      %v305 = vsel %vm303, %v282, 0
      %v308 = vsel %vm303, %v283, 0
      %310 = vmatprep.subr.mxu0 0.0
      %311 = vmatpush1.msra.mxu0 %v284
      %312 = vmatprep.subr.mxu0 0.0
      %313 = vmatpush1.msra.mxu0 %v285
      %314 = vmatprep.subr.mxu0 0.0
      %315 = vmatpush1.msra.mxu0 %v286
      %316 = vmatprep.subr.mxu0 0.0
      %317 = vmatpush1.msra.mxu0 %v287
      %318 = vmatprep.subr.mxu0 0.0
      %319 = vmatpush1.msra.mxu0 %v288
      %320 = vmatprep.subr.mxu0 0.0
      %321 = vmatpush1.msra.mxu0 %v289
      %322 = vmatprep.subr.mxu0 0.0
      %323 = vmatpush1.msra.mxu0 %v290
      %324 = vmatprep.subr.mxu0 0.0
      %325 = vmatpush1.msra.mxu0 %v291
      %326 = vmatprep.subr.mxu0 0.0
      %327 = vmatpush1.msra.mxu0 %v292
      %328 = vmatprep.subr.mxu0 0.0
      %329 = vmatpush1.msra.mxu0 %v293
      %330 = vmatprep.subr.mxu0 0.0
      %331 = vmatpush1.msra.mxu0 %v294
      %332 = vmatprep.subr.mxu0 0.0
      %333 = vmatpush1.msra.mxu0 %v295
      %334 = vmatprep.subr.mxu0 0.0
      %335 = vmatpush1.msra.mxu0 0.0
      %336 = vmatprep.subr.mxu0 0.0
      %337 = vmatpush1.msra.mxu0 0.0
      %338 = vmatprep.subr.mxu0 0.0
      %339 = vmatpush1.msra.mxu0 0.0
      %340 = vmatprep.subr.mxu0 0.0
      %341 = vmatpush1.msra.mxu0 0.0
      %342 = vmatprep.subr.mxu0 0.0
      %343 = vmatpush1.msra.mxu0 0.0
      %344 = vmatprep.subr.mxu0 0.0
      %345 = vmatpush1.msra.mxu0 0.0
      %346 = vmatprep.subr.mxu0 0.0
      %347 = vmatpush1.msra.mxu0 0.0
      %348 = vmatprep.subr.mxu0 0.0
      %349 = vmatpush1.msra.mxu0 0.0
      %350 = vmatprep.subr.mxu0 0.0
      %351 = vmatpush1.msra.mxu0 0.0
      %352 = vmatprep.subr.mxu0 0.0
      %353 = vmatpush1.msra.mxu0 0.0
      %354 = vmatprep.subr.mxu0 0.0
      %355 = vmatpush1.msra.mxu0 0.0
      %356 = vmatprep.subr.mxu0 0.0
      %357 = vmatpush1.msra.mxu0 0.0
      %358 = vmatprep.subr.mxu0 0.0
      %359 = vmatpush1.msra.mxu0 0.0
      %360 = vmatprep.subr.mxu0 0.0
      %361 = vmatpush1.msra.mxu0 0.0
      %362 = vmatprep.subr.mxu0 0.0
      %363 = vmatpush1.msra.mxu0 0.0
      %364 = vmatprep.subr.mxu0 0.0
      %365 = vmatpush1.msra.mxu0 0.0
      %366 = vmatprep.subr.mxu0 0.0
      %367 = vmatpush1.msra.mxu0 0.0
      %368 = vmatprep.subr.mxu0 0.0
      %369 = vmatpush1.msra.mxu0 0.0
      %370 = vmatprep.subr.mxu0 0.0
      %371 = vmatpush1.msra.mxu0 0.0
      %372 = vmatprep.subr.mxu0 0.0
      %373 = vmatpush1.msra.mxu0 0.0
      %374 = vmatprep.mubr.f32.mxu0 0.0
      %375 = vmatmul.mubr.f32.gmra.mrb[0].mxu0 %v305
      %v376 = vpop.f32.mrb[0].mxu0
      %v377 = vadd.f32 %v301, %v376
      %v378 = vpop.f32.mrb[0].mxu0
      %379 = vmatprep.mubr.f32.mxu0 0.0
      %380 = vmatmul.mubr.f32.gmra.mrb[0].mxu0 %v308
      %v381 = vpop.f32.mrb[0].mxu0
      %v382 = vadd.f32 %v301, %v381
      %v383 = vpop.f32.mrb[0].mxu0
      %384 = vdwg.mxu0
      %v385 = vmax.f32 %v377, 0.0
      %v386 = vmax.f32 %v382, 0.0
      %v387 = vld [vmem:[%s3] sm:$0xff]
      %v388 = vld [vmem:[%s3 + $0x8] sm:$0xff]
      %v389 = vld [vmem:[%s3 + $0x10] sm:$0xff]
      %v390 = vld [vmem:[%s3 + $0x18] sm:$0xff]
      %v391 = vld [vmem:[%s4] sm:$0x1]
      %v393 = vlaneseq
      %v394 = vshrl.u32 %v393, 7
      %v395 = vsub.s32 0, %v394
      %v396 = vrot.slane %v391, %v395
      %v399 = vsel %vm276, %v385, 0
      %v402 = vsel %vm276, %v386, 0
      %404 = vmatprep.subr.mxu0 0.0
      %405 = vmatpush1.msra.mxu0 %v387
      %406 = vmatprep.subr.mxu0 0.0
      %407 = vmatpush1.msra.mxu0 %v388
      %408 = vmatprep.subr.mxu0 0.0
      %409 = vmatpush1.msra.mxu0 %v389
      %410 = vmatprep.subr.mxu0 0.0
      %411 = vmatpush1.msra.mxu0 %v390
      %412 = vmatprep.subr.mxu0 0.0
      %413 = vmatpush1.msra.mxu0 0.0
      %414 = vmatprep.subr.mxu0 0.0
      %415 = vmatpush1.msra.mxu0 0.0
      %416 = vmatprep.subr.mxu0 0.0
      %417 = vmatpush1.msra.mxu0 0.0
      %418 = vmatprep.subr.mxu0 0.0
      %419 = vmatpush1.msra.mxu0 0.0
      %420 = vmatprep.subr.mxu0 0.0
      %421 = vmatpush1.msra.mxu0 0.0
      %422 = vmatprep.subr.mxu0 0.0
      %423 = vmatpush1.msra.mxu0 0.0
      %424 = vmatprep.subr.mxu0 0.0
      %425 = vmatpush1.msra.mxu0 0.0
      %426 = vmatprep.subr.mxu0 0.0
      %427 = vmatpush1.msra.mxu0 0.0
      %428 = vmatprep.subr.mxu0 0.0
      %429 = vmatpush1.msra.mxu0 0.0
      %430 = vmatprep.subr.mxu0 0.0
      %431 = vmatpush1.msra.mxu0 0.0
      %432 = vmatprep.subr.mxu0 0.0
      %433 = vmatpush1.msra.mxu0 0.0
      %434 = vmatprep.subr.mxu0 0.0
      %435 = vmatpush1.msra.mxu0 0.0
      %436 = vmatprep.subr.mxu0 0.0
      %437 = vmatpush1.msra.mxu0 0.0
      %438 = vmatprep.subr.mxu0 0.0
      %439 = vmatpush1.msra.mxu0 0.0
      %440 = vmatprep.subr.mxu0 0.0
      %441 = vmatpush1.msra.mxu0 0.0
      %442 = vmatprep.subr.mxu0 0.0
      %443 = vmatpush1.msra.mxu0 0.0
      %444 = vmatprep.subr.mxu0 0.0
      %445 = vmatpush1.msra.mxu0 0.0
      %446 = vmatprep.subr.mxu0 0.0
      %447 = vmatpush1.msra.mxu0 0.0
      %448 = vmatprep.subr.mxu0 0.0
      %449 = vmatpush1.msra.mxu0 0.0
      %450 = vmatprep.subr.mxu0 0.0
      %451 = vmatpush1.msra.mxu0 0.0
      %452 = vmatprep.subr.mxu0 0.0
      %453 = vmatpush1.msra.mxu0 0.0
      %454 = vmatprep.subr.mxu0 0.0
      %455 = vmatpush1.msra.mxu0 0.0
      %456 = vmatprep.subr.mxu0 0.0
      %457 = vmatpush1.msra.mxu0 0.0
      %458 = vmatprep.subr.mxu0 0.0
      %459 = vmatpush1.msra.mxu0 0.0
      %460 = vmatprep.subr.mxu0 0.0
      %461 = vmatpush1.msra.mxu0 0.0
      %462 = vmatprep.subr.mxu0 0.0
      %463 = vmatpush1.msra.mxu0 0.0
      %464 = vmatprep.subr.mxu0 0.0
      %465 = vmatpush1.msra.mxu0 0.0
      %466 = vmatprep.subr.mxu0 0.0
      %467 = vmatpush1.msra.mxu0 0.0
      %468 = vmatprep.mubr.f32.mxu0 0.0
      %469 = vmatmul.mubr.f32.gmra.mrb[0].mxu0 %v399
      %v470 = vpop.f32.mrb[0].mxu0
      %v471 = vadd.f32 %v396, %v470
      %v472 = vpop.f32.mrb[0].mxu0
      %473 = vmatprep.mubr.f32.mxu0 0.0
      %474 = vmatmul.mubr.f32.gmra.mrb[0].mxu0 %v402
      %v475 = vpop.f32.mrb[0].mxu0
      %v476 = vadd.f32 %v396, %v475
      %v477 = vpop.f32.mrb[0].mxu0
      %478 = vdwg.mxu0
      %v479 = vadd.f32 %v471, %v254
      %v480 = vadd.f32 %v476, %v255
      %481 = vst.msk [vmem:[%s246] sm:$0xff] %vm276, %v479
      %482 = vst.msk [vmem:[%s246 + $0x8] sm:$0xff] %vm276, %v480
      %s483 = smul.u32 2, %s21
      %p484 = scmp.lt.s32.totalorder %s20, 1
      %s485 = scalar_select %p484, %s20, 1
      %p486 = scmp.lt.s32.totalorder %s483, 3
      %s487 = scalar_select %p486, %s483, 3
      %s488 = smul.addr %s485, 4
      %s489 = sadd.s32 %s487, %s488
      %s490 = smul.addr %s489, 8
      %s491 = scalar_lea.vmem %s5, %s490
      // Predicated region
      $region41: #{run_f32.24} parent=39 // pred_check
        %p492 = pneg %p158
      $region42: #{run_f32.24} parent=39 // pred_check_branch
        %494 = sbr.rel (%p492) target = $region44
      $region43: #{run_f32.24} parent=39 // pred_region
        %s495 = smul.u32 2, %s21
      $region44: #{run_f32.24} parent=39 // pred_fallthru
        _
    $region40: #{run_f32.24} parent=5 // pred_fallthru
      _
    %p496 = scmp.le.s32.totalorder 2, %s11
    // Predicated region
    $region45: #{run_f32.24} parent=5 // pred_check
      %p497 = pneg %p496
    $region46: #{run_f32.24} parent=5 // pred_check_branch
      %499 = sbr.rel (%p497) target = $region48
    $region47: #{run_f32.24} parent=5 // pred_region
      %s500 = ssub.s32 %s11, 2
      // Predicated region
      $region49: #{run_f32.24} parent=47 // pred_check
        %p501 = pneg %p164
      $region50: #{run_f32.24} parent=47 // pred_check_branch
        %503 = sbr.rel (%p501) target = $region52
      $region51: #{run_f32.24} parent=47 // pred_region
        %s504 = smul.u32 2, %s23
        %p505 = scmp.lt.s32.totalorder %s22, 1
        %s506 = scalar_select %p505, %s22, 1
        %p507 = scmp.lt.s32.totalorder %s504, 3
        %s508 = scalar_select %p507, %s504, 3
        %s509 = smul.addr %s506, 4
        %s510 = sadd.s32 %s508, %s509
        %s511 = smul.addr %s510, 8
        %s512 = scalar_lea.vmem %s5, %s511
      $region52: #{run_f32.24} parent=47 // pred_fallthru
        _
    $region48: #{run_f32.24} parent=5 // pred_fallthru
      _
  $region6: #{run_f32.24} parent=0 // loop_footer
    %s15 = sadd.s32 1, %s11
  $region7: #{run_f32.24} parent=0 // loop_footer_branch
    %10 = sbr.rel target = $region3
  $region8: #{run_f32.24} parent=0 // loop_exit
    _

// kernel: run_f32.25
$region0: #{run_f32.25}
  #allocation0 [shape = 'u32[]', space=smem, size = 0x4, offset = 0x4, fixed_abs, tag = 'smem constant byte address 0x4 - core index']
  #allocation1 [shape = 'u32[144,128]{1,0:T(1,128)}', space=vmem, size = 0x12000, scoped, tag = 'internal scratch']
  %s0 = inlined_call_operand.vmem [shape: f32[2,38,32], index: 0, kind: input, shape index: {}]
  %s1 = inlined_call_operand.vmem [shape: f32[96,32], index: 1, kind: input, shape index: {}]
  %s2 = inlined_call_operand.vmem [shape: f32[1,32], index: 2, kind: input, shape index: {}]
  %s3 = inlined_call_operand.vmem [shape: f32[32,32], index: 3, kind: input, shape index: {}]
  %s4 = inlined_call_operand.vmem [shape: f32[1,32], index: 4, kind: input, shape index: {}]
  %s5 = inlined_call_operand.vmem [shape: f32[2,32,32], index: 5, kind: output, shape index: {}]
  %s6 = sld [smem:[#allocation0]]
  $region53: #{run_f32.25} parent=0
    _
  %s8 = ssub.s32 1, %s6
  %s9 = scalar_select 0, %s8, %s6
  loop: start=0, step=1, limit=6
  $region2: #{run_f32.25} parent=0 // loop_pre_header
    _
  $region3: #{run_f32.25} parent=0 // loop_header
    %s11 = sphi 0, %s15
    %p12 = scmp.ge.s32.totalorder %s11, 6
    %s18 = sphi 0, %s30
    %s19 = sphi 0, %s26
    %s20 = sphi 0, %s18
    %s21 = sphi 0, %s19
    %s22 = sphi 0, %s20
    %s23 = sphi 0, %s21
    %s33 = sphi 0, %s35
    %s36 = sphi 0, %s33
    %s37 = sphi 0, %s36
    %s53 = sphi 0, %s37
    %s57 = sphi 0, %s57
    %s59 = sphi 0, %s57
    %s60 = sphi 0, %s59
    %s74 = sphi 0, %s60
    %s78 = sphi 0, %s78
    %s80 = sphi 0, %s78
    %s81 = sphi 0, %s80
    %s95 = sphi 0, %s81
    %s99 = sphi 0, %s99
    %s101 = sphi 0, %s99
    %s102 = sphi 0, %s101
    %s116 = sphi 0, %s102
    %s120 = sphi 0, %s120
    %s122 = sphi 0, %s120
    %s123 = sphi 0, %s122
    %s137 = sphi 0, %s123
    %s145 = sphi 0, %s147
    %s148 = sphi 0, %s145
    %s149 = sphi 0, %s148
    %s165 = sphi 0, %s149
  $region4: #{run_f32.25} parent=0 // loop_header_branch
    %14 = sbr.rel (%p12) target = $region8
  $region5: #{run_f32.25} parent=0 // loop_body
    %s16 = ssub.s32 %s11, 1
    %s17 = ssub.s32 %s11, 2
    %s24 = sadd.s32 1, %s19
    %p25 = scmp.ge.s32.totalorder %s24, 2
    %s26 = scalar_select %p25, 0, %s24
    %s27 = sadd.s32 1, %s18
    %s28 = scalar_select %p25, %s27, %s18
    %p29 = scmp.ge.s32.totalorder %s28, 2
    %s30 = scalar_select %p29, 0, %s28
    %s31 = ssub.s32 %s18, %s30
    %p32 = scmp.eq.s32.totalorder %s31, 0
    %s34 = sadd.s32 %s33, 1
    %s35 = scalar_select %p32, %s33, %s34
    %p38 = pneg %p32
    %p39 = scmp.eq.s32.totalorder %s11, 3
    %p40 = por %p38, %p39
    %p41 = scmp.ne.s32.totalorder %s33, %s36
    %p42 = scmp.eq.s32.totalorder %s11, 0
    %p43 = por %p41, %p42
    %p44 = scmp.ne.s32.totalorder %s33, %s36
    %p45 = scmp.eq.s32.totalorder %s16, 3
    %p46 = por %p44, %p45
    %p47 = scmp.ne.s32.totalorder %s36, %s37
    %p48 = scmp.eq.s32.totalorder %s16, 0
    %p49 = por %p47, %p48
    %p50 = scmp.ne.s32.totalorder %s36, %s37
    %p51 = scmp.eq.s32.totalorder %s17, 3
    %p52 = por %p50, %p51
    %p54 = scmp.ne.s32.totalorder %s37, %s53
    %p55 = scmp.eq.s32.totalorder %s17, 0
    %p56 = por %p54, %p55
    %s58 = sadd.s32 %s57, 1
    %p61 = scmp.eq.s32.totalorder %s11, 3
    %p62 = scmp.ne.s32.totalorder %s57, %s59
    %p63 = scmp.eq.s32.totalorder %s11, 0
    %p64 = por %p62, %p63
    %p65 = scmp.ne.s32.totalorder %s57, %s59
    %p66 = scmp.eq.s32.totalorder %s16, 3
    %p67 = por %p65, %p66
    %p68 = scmp.ne.s32.totalorder %s59, %s60
    %p69 = scmp.eq.s32.totalorder %s16, 0
    %p70 = por %p68, %p69
    %p71 = scmp.ne.s32.totalorder %s59, %s60
    %p72 = scmp.eq.s32.totalorder %s17, 3
    %p73 = por %p71, %p72
    %p75 = scmp.ne.s32.totalorder %s60, %s74
    %p76 = scmp.eq.s32.totalorder %s17, 0
    %p77 = por %p75, %p76
    %s79 = sadd.s32 %s78, 1
    %p82 = scmp.eq.s32.totalorder %s11, 3
    %p83 = scmp.ne.s32.totalorder %s78, %s80
    %p84 = scmp.eq.s32.totalorder %s11, 0
    %p85 = por %p83, %p84
    %p86 = scmp.ne.s32.totalorder %s78, %s80
    %p87 = scmp.eq.s32.totalorder %s16, 3
    %p88 = por %p86, %p87
    %p89 = scmp.ne.s32.totalorder %s80, %s81
    %p90 = scmp.eq.s32.totalorder %s16, 0
    %p91 = por %p89, %p90
    %p92 = scmp.ne.s32.totalorder %s80, %s81
    %p93 = scmp.eq.s32.totalorder %s17, 3
    %p94 = por %p92, %p93
    %p96 = scmp.ne.s32.totalorder %s81, %s95
    %p97 = scmp.eq.s32.totalorder %s17, 0
    %p98 = por %p96, %p97
    %s100 = sadd.s32 %s99, 1
    %p103 = scmp.eq.s32.totalorder %s11, 3
    %p104 = scmp.ne.s32.totalorder %s99, %s101
    %p105 = scmp.eq.s32.totalorder %s11, 0
    %p106 = por %p104, %p105
    %p107 = scmp.ne.s32.totalorder %s99, %s101
    %p108 = scmp.eq.s32.totalorder %s16, 3
    %p109 = por %p107, %p108
    %p110 = scmp.ne.s32.totalorder %s101, %s102
    %p111 = scmp.eq.s32.totalorder %s16, 0
    %p112 = por %p110, %p111
    %p113 = scmp.ne.s32.totalorder %s101, %s102
    %p114 = scmp.eq.s32.totalorder %s17, 3
    %p115 = por %p113, %p114
    %p117 = scmp.ne.s32.totalorder %s102, %s116
    %p118 = scmp.eq.s32.totalorder %s17, 0
    %p119 = por %p117, %p118
    %s121 = sadd.s32 %s120, 1
    %p124 = scmp.eq.s32.totalorder %s11, 3
    %p125 = scmp.ne.s32.totalorder %s120, %s122
    %p126 = scmp.eq.s32.totalorder %s11, 0
    %p127 = por %p125, %p126
    %p128 = scmp.ne.s32.totalorder %s120, %s122
    %p129 = scmp.eq.s32.totalorder %s16, 3
    %p130 = por %p128, %p129
    %p131 = scmp.ne.s32.totalorder %s122, %s123
    %p132 = scmp.eq.s32.totalorder %s16, 0
    %p133 = por %p131, %p132
    %p134 = scmp.ne.s32.totalorder %s122, %s123
    %p135 = scmp.eq.s32.totalorder %s17, 3
    %p136 = por %p134, %p135
    %p138 = scmp.ne.s32.totalorder %s123, %s137
    %p139 = scmp.eq.s32.totalorder %s17, 0
    %p140 = por %p138, %p139
    %s141 = ssub.s32 %s18, %s30
    %s142 = ssub.s32 %s19, %s26
    %s143 = sor.u32 %s141, %s142
    %p144 = scmp.eq.s32.totalorder %s143, 0
    %s146 = sadd.s32 %s145, 1
    %s147 = scalar_select %p144, %s145, %s146
    %p150 = pneg %p144
    %p151 = scmp.eq.s32.totalorder %s11, 3
    %p152 = por %p150, %p151
    %p153 = scmp.ne.s32.totalorder %s145, %s148
    %p154 = scmp.eq.s32.totalorder %s11, 0
    %p155 = por %p153, %p154
    %p156 = scmp.ne.s32.totalorder %s145, %s148
    %p157 = scmp.eq.s32.totalorder %s16, 3
    %p158 = por %p156, %p157
    %p159 = scmp.ne.s32.totalorder %s148, %s149
    %p160 = scmp.eq.s32.totalorder %s16, 0
    %p161 = por %p159, %p160
    %p162 = scmp.ne.s32.totalorder %s148, %s149
    %p163 = scmp.eq.s32.totalorder %s17, 3
    %p164 = por %p162, %p163
    %p166 = scmp.ne.s32.totalorder %s149, %s165
    %p167 = scmp.eq.s32.totalorder %s17, 0
    %p168 = por %p166, %p167
    %p169 = scmp.le.s32.totalorder 1, %s11
    %p170 = scmp.lt.s32.totalorder %s11, 5
    %p171 = pnand %p169, %p170
    %p172 = pneg %p171
    // Predicated region
    $region9: #{run_f32.25} parent=5 // pred_check
      _
    $region10: #{run_f32.25} parent=5 // pred_check_branch
      %174 = sbr.rel (%p171) target = $region12
    $region11: #{run_f32.25} parent=5 // pred_region
      %s175 = ssub.s32 %s11, 1
      // Predicated region
      $region13: #{run_f32.25} parent=11 // pred_check
        %p176 = pneg %p70
      $region14: #{run_f32.25} parent=11 // pred_check_branch
        %178 = sbr.rel (%p176) target = $region16
      $region15: #{run_f32.25} parent=11 // pred_region
        _
      $region16: #{run_f32.25} parent=11 // pred_fallthru
        _
      // Predicated region
      $region17: #{run_f32.25} parent=11 // pred_check
        %p179 = pneg %p91
      $region18: #{run_f32.25} parent=11 // pred_check_branch
        %181 = sbr.rel (%p179) target = $region20
      $region19: #{run_f32.25} parent=11 // pred_region
        _
      $region20: #{run_f32.25} parent=11 // pred_fallthru
        _
      // Predicated region
      $region21: #{run_f32.25} parent=11 // pred_check
        %p182 = pneg %p112
      $region22: #{run_f32.25} parent=11 // pred_check_branch
        %184 = sbr.rel (%p182) target = $region24
      $region23: #{run_f32.25} parent=11 // pred_region
        _
      $region24: #{run_f32.25} parent=11 // pred_fallthru
        _
      // Predicated region
      $region25: #{run_f32.25} parent=11 // pred_check
        %p185 = pneg %p133
      $region26: #{run_f32.25} parent=11 // pred_check_branch
        %187 = sbr.rel (%p185) target = $region28
      $region27: #{run_f32.25} parent=11 // pred_region
        _
      $region28: #{run_f32.25} parent=11 // pred_fallthru
        _
    $region12: #{run_f32.25} parent=5 // pred_fallthru
      _
    %p188 = scmp.lt.s32.totalorder %s11, 4
    // Predicated region
    $region29: #{run_f32.25} parent=5 // pred_check
      %p189 = pneg %p188
    $region30: #{run_f32.25} parent=5 // pred_check_branch
      %191 = sbr.rel (%p189) target = $region32
    $region31: #{run_f32.25} parent=5 // pred_region
      // Predicated region
      $region33: #{run_f32.25} parent=31 // pred_check
        %p192 = pneg %p43
      $region34: #{run_f32.25} parent=31 // pred_check_branch
        %194 = sbr.rel (%p192) target = $region36
      $region35: #{run_f32.25} parent=31 // pred_region
        %p195 = scmp.lt.s32.totalorder %s18, 1
        %s196 = scalar_select %p195, %s18, 1
        %s197 = smul.addr %s196, 5
        %s198 = smul.addr %s197, 8
        %s199 = scalar_lea.vmem %s0, %s198
      $region36: #{run_f32.25} parent=31 // pred_fallthru
        _
    $region32: #{run_f32.25} parent=5 // pred_fallthru
      _
    %p200 = scmp.le.s32.totalorder 1, %s11
    %p201 = scmp.lt.s32.totalorder %s11, 5
    %p202 = pnand %p200, %p201
    %p203 = pneg %p202
    // Predicated region
    $region37: #{run_f32.25} parent=5 // pred_check
      _
    $region38: #{run_f32.25} parent=5 // pred_check_branch
      %205 = sbr.rel (%p202) target = $region40
    $region39: #{run_f32.25} parent=5 // pred_region
      %s206 = ssub.s32 %s11, 1
      %p207 = scmp.lt.s32.totalorder %s20, 1
      %s208 = scalar_select %p207, %s20, 1
      %s209 = smul.addr %s208, 5
      %s210 = smul.addr %s209, 8
      %s211 = scalar_lea.vmem %s0, %s210
      %p212 = pneg %p49
      %p213 = pneg %p46
      %p214 = pneg %p70
      %p215 = pneg %p67
      %p216 = pneg %p91
      %p217 = pneg %p88
      %p218 = pneg %p112
      %p219 = pneg %p109
      %p220 = pneg %p133
      %p221 = pneg %p130
      %p222 = pneg %p161
      %p223 = pneg %p158
      %s224 = smul.u32 2, %s21
      %p225 = scmp.lt.s32.totalorder %s20, 1
      %s226 = scalar_select %p225, %s20, 1
      %p227 = scmp.lt.s32.totalorder %s224, 3
      %s228 = scalar_select %p227, %s224, 3
      %s229 = smul.addr %s226, 4
      %s230 = sadd.s32 %s228, %s229
      %s231 = smul.addr %s230, 8
      %s232 = scalar_lea.vmem %s5, %s231
      %p233 = scmp.lt.s32.totalorder %s20, 1
      %s234 = scalar_select %p233, %s20, 1
      %s235 = smul.addr %s234, 5
      %s236 = smul.addr %s235, 8
      %s237 = scalar_lea.vmem %s0, %s236
      %s238 = smul.u32 2, %s21
      %p239 = scmp.lt.s32.totalorder %s20, 1
      %s240 = scalar_select %p239, %s20, 1
      %p241 = scmp.lt.s32.totalorder %s238, 3
      %s242 = scalar_select %p241, %s238, 3
      %s243 = smul.addr %s240, 4
      %s244 = sadd.s32 %s242, %s243
      %s245 = smul.addr %s244, 8
      %s246 = scalar_lea.vmem %s5, %s245
      %s247 = smul.u32 2, %s21
      %s248 = smul.u32 %s21, 16
      %s249 = scalar_lea.vmem %s237, %s248
      %v250 = vld [vmem:[%s249] sm:$0xff]
      %v251 = vld [vmem:[%s249 + $0x8] sm:$0xff]
      %s252 = sadd.s32 %s248, 3
      %s253 = scalar_lea.vmem %s237, %s252
      %v254 = vld [vmem:[%s253] sm:$0xff]
      %v255 = vld [vmem:[%s253 + $0x8] sm:$0xff]
      %s256 = sadd.s32 %s248, 6
      %s257 = scalar_lea.vmem %s237, %s256
      %v258 = vld [vmem:[%s257] sm:$0xff]
      %v259 = vld [vmem:[%s257 + $0x8] sm:$0xff]
      %262 = vrot.lane.b32.xlu0 %v254, 32
      %v263 = vpop.permute.xlu0 %262
      %264 = vrot.lane.b32.xlu0 %v255, 32
      %v265 = vpop.permute.xlu0 %264
      %270 = vrot.lane.b32.xlu0 %v258, 64
      %v271 = vpop.permute.xlu0 %270
      %272 = vrot.lane.b32.xlu0 %v259, 64
      %v273 = vpop.permute.xlu0 %272
      %vm276 = vcmask 261120
      %v277 = vsel %vm276, %v250, %v263
      %v278 = vsel %vm276, %v251, %v265
      %vm279 = vcmask 523264
      %v280 = vsel %vm279, %v277, %v271
      %v281 = vsel %vm279, %v278, %v273
      %v282 = vmax.f32 %v280, 0.0
      %v283 = vmax.f32 %v281, 0.0
      %v284 = vld [vmem:[%s1] sm:$0xff]
      %v285 = vld [vmem:[%s1 + $0x8] sm:$0xff]
      %v286 = vld [vmem:[%s1 + $0x10] sm:$0xff]
      %v287 = vld [vmem:[%s1 + $0x18] sm:$0xff]
      %v288 = vld [vmem:[%s1 + $0x20] sm:$0xff]
      %v289 = vld [vmem:[%s1 + $0x28] sm:$0xff]
      %v290 = vld [vmem:[%s1 + $0x30] sm:$0xff]
      %v291 = vld [vmem:[%s1 + $0x38] sm:$0xff]
      %v292 = vld [vmem:[%s1 + $0x40] sm:$0xff]
      %v293 = vld [vmem:[%s1 + $0x48] sm:$0xff]
      %v294 = vld [vmem:[%s1 + $0x50] sm:$0xff]
      %v295 = vld [vmem:[%s1 + $0x58] sm:$0xff]
      %v296 = vld [vmem:[%s2] sm:$0x1]
      %v298 = vlaneseq
      %v299 = vshrl.u32 %v298, 7
      %v300 = vsub.s32 0, %v299
      %v301 = vrot.slane %v296, %v300
      %vm303 = vcmask 785408
      %v305 = vsel %vm303, %v282, 0
      %v308 = vsel %vm303, %v283, 0
      %310 = vmatprep.subr.mxu0 0.0
      %311 = vmatpush1.msra.mxu0 %v284
      %312 = vmatprep.subr.mxu0 0.0
      %313 = vmatpush1.msra.mxu0 %v285
      %314 = vmatprep.subr.mxu0 0.0
      %315 = vmatpush1.msra.mxu0 %v286
      %316 = vmatprep.subr.mxu0 0.0
      %317 = vmatpush1.msra.mxu0 %v287
      %318 = vmatprep.subr.mxu0 0.0
      %319 = vmatpush1.msra.mxu0 %v288
      %320 = vmatprep.subr.mxu0 0.0
      %321 = vmatpush1.msra.mxu0 %v289
      %322 = vmatprep.subr.mxu0 0.0
      %323 = vmatpush1.msra.mxu0 %v290
      %324 = vmatprep.subr.mxu0 0.0
      %325 = vmatpush1.msra.mxu0 %v291
      %326 = vmatprep.subr.mxu0 0.0
      %327 = vmatpush1.msra.mxu0 %v292
      %328 = vmatprep.subr.mxu0 0.0
      %329 = vmatpush1.msra.mxu0 %v293
      %330 = vmatprep.subr.mxu0 0.0
      %331 = vmatpush1.msra.mxu0 %v294
      %332 = vmatprep.subr.mxu0 0.0
      %333 = vmatpush1.msra.mxu0 %v295
      %334 = vmatprep.subr.mxu0 0.0
      %335 = vmatpush1.msra.mxu0 0.0
      %336 = vmatprep.subr.mxu0 0.0
      %337 = vmatpush1.msra.mxu0 0.0
      %338 = vmatprep.subr.mxu0 0.0
      %339 = vmatpush1.msra.mxu0 0.0
      %340 = vmatprep.subr.mxu0 0.0
      %341 = vmatpush1.msra.mxu0 0.0
      %342 = vmatprep.subr.mxu0 0.0
      %343 = vmatpush1.msra.mxu0 0.0
      %344 = vmatprep.subr.mxu0 0.0
      %345 = vmatpush1.msra.mxu0 0.0
      %346 = vmatprep.subr.mxu0 0.0
      %347 = vmatpush1.msra.mxu0 0.0
      %348 = vmatprep.subr.mxu0 0.0
      %349 = vmatpush1.msra.mxu0 0.0
      %350 = vmatprep.subr.mxu0 0.0
      %351 = vmatpush1.msra.mxu0 0.0
      %352 = vmatprep.subr.mxu0 0.0
      %353 = vmatpush1.msra.mxu0 0.0
      %354 = vmatprep.subr.mxu0 0.0
      %355 = vmatpush1.msra.mxu0 0.0
      %356 = vmatprep.subr.mxu0 0.0
      %357 = vmatpush1.msra.mxu0 0.0
      %358 = vmatprep.subr.mxu0 0.0
      %359 = vmatpush1.msra.mxu0 0.0
      %360 = vmatprep.subr.mxu0 0.0
      %361 = vmatpush1.msra.mxu0 0.0
      %362 = vmatprep.subr.mxu0 0.0
      %363 = vmatpush1.msra.mxu0 0.0
      %364 = vmatprep.subr.mxu0 0.0
      %365 = vmatpush1.msra.mxu0 0.0
      %366 = vmatprep.subr.mxu0 0.0
      %367 = vmatpush1.msra.mxu0 0.0
      %368 = vmatprep.subr.mxu0 0.0
      %369 = vmatpush1.msra.mxu0 0.0
      %370 = vmatprep.subr.mxu0 0.0
      %371 = vmatpush1.msra.mxu0 0.0
      %372 = vmatprep.subr.mxu0 0.0
      %373 = vmatpush1.msra.mxu0 0.0
      %374 = vmatprep.mubr.f32.mxu0 0.0
      %375 = vmatmul.mubr.f32.gmra.mrb[0].mxu0 %v305
      %v376 = vpop.f32.mrb[0].mxu0
      %v377 = vadd.f32 %v301, %v376
      %v378 = vpop.f32.mrb[0].mxu0
      %379 = vmatprep.mubr.f32.mxu0 0.0
      %380 = vmatmul.mubr.f32.gmra.mrb[0].mxu0 %v308
      %v381 = vpop.f32.mrb[0].mxu0
      %v382 = vadd.f32 %v301, %v381
      %v383 = vpop.f32.mrb[0].mxu0
      %384 = vdwg.mxu0
      %v385 = vmax.f32 %v377, 0.0
      %v386 = vmax.f32 %v382, 0.0
      %v387 = vld [vmem:[%s3] sm:$0xff]
      %v388 = vld [vmem:[%s3 + $0x8] sm:$0xff]
      %v389 = vld [vmem:[%s3 + $0x10] sm:$0xff]
      %v390 = vld [vmem:[%s3 + $0x18] sm:$0xff]
      %v391 = vld [vmem:[%s4] sm:$0x1]
      %v393 = vlaneseq
      %v394 = vshrl.u32 %v393, 7
      %v395 = vsub.s32 0, %v394
      %v396 = vrot.slane %v391, %v395
      %v399 = vsel %vm276, %v385, 0
      %v402 = vsel %vm276, %v386, 0
      %404 = vmatprep.subr.mxu0 0.0
      %405 = vmatpush1.msra.mxu0 %v387
      %406 = vmatprep.subr.mxu0 0.0
      %407 = vmatpush1.msra.mxu0 %v388
      %408 = vmatprep.subr.mxu0 0.0
      %409 = vmatpush1.msra.mxu0 %v389
      %410 = vmatprep.subr.mxu0 0.0
      %411 = vmatpush1.msra.mxu0 %v390
      %412 = vmatprep.subr.mxu0 0.0
      %413 = vmatpush1.msra.mxu0 0.0
      %414 = vmatprep.subr.mxu0 0.0
      %415 = vmatpush1.msra.mxu0 0.0
      %416 = vmatprep.subr.mxu0 0.0
      %417 = vmatpush1.msra.mxu0 0.0
      %418 = vmatprep.subr.mxu0 0.0
      %419 = vmatpush1.msra.mxu0 0.0
      %420 = vmatprep.subr.mxu0 0.0
      %421 = vmatpush1.msra.mxu0 0.0
      %422 = vmatprep.subr.mxu0 0.0
      %423 = vmatpush1.msra.mxu0 0.0
      %424 = vmatprep.subr.mxu0 0.0
      %425 = vmatpush1.msra.mxu0 0.0
      %426 = vmatprep.subr.mxu0 0.0
      %427 = vmatpush1.msra.mxu0 0.0
      %428 = vmatprep.subr.mxu0 0.0
      %429 = vmatpush1.msra.mxu0 0.0
      %430 = vmatprep.subr.mxu0 0.0
      %431 = vmatpush1.msra.mxu0 0.0
      %432 = vmatprep.subr.mxu0 0.0
      %433 = vmatpush1.msra.mxu0 0.0
      %434 = vmatprep.subr.mxu0 0.0
      %435 = vmatpush1.msra.mxu0 0.0
      %436 = vmatprep.subr.mxu0 0.0
      %437 = vmatpush1.msra.mxu0 0.0
      %438 = vmatprep.subr.mxu0 0.0
      %439 = vmatpush1.msra.mxu0 0.0
      %440 = vmatprep.subr.mxu0 0.0
      %441 = vmatpush1.msra.mxu0 0.0
      %442 = vmatprep.subr.mxu0 0.0
      %443 = vmatpush1.msra.mxu0 0.0
      %444 = vmatprep.subr.mxu0 0.0
      %445 = vmatpush1.msra.mxu0 0.0
      %446 = vmatprep.subr.mxu0 0.0
      %447 = vmatpush1.msra.mxu0 0.0
      %448 = vmatprep.subr.mxu0 0.0
      %449 = vmatpush1.msra.mxu0 0.0
      %450 = vmatprep.subr.mxu0 0.0
      %451 = vmatpush1.msra.mxu0 0.0
      %452 = vmatprep.subr.mxu0 0.0
      %453 = vmatpush1.msra.mxu0 0.0
      %454 = vmatprep.subr.mxu0 0.0
      %455 = vmatpush1.msra.mxu0 0.0
      %456 = vmatprep.subr.mxu0 0.0
      %457 = vmatpush1.msra.mxu0 0.0
      %458 = vmatprep.subr.mxu0 0.0
      %459 = vmatpush1.msra.mxu0 0.0
      %460 = vmatprep.subr.mxu0 0.0
      %461 = vmatpush1.msra.mxu0 0.0
      %462 = vmatprep.subr.mxu0 0.0
      %463 = vmatpush1.msra.mxu0 0.0
      %464 = vmatprep.subr.mxu0 0.0
      %465 = vmatpush1.msra.mxu0 0.0
      %466 = vmatprep.subr.mxu0 0.0
      %467 = vmatpush1.msra.mxu0 0.0
      %468 = vmatprep.mubr.f32.mxu0 0.0
      %469 = vmatmul.mubr.f32.gmra.mrb[0].mxu0 %v399
      %v470 = vpop.f32.mrb[0].mxu0
      %v471 = vadd.f32 %v396, %v470
      %v472 = vpop.f32.mrb[0].mxu0
      %473 = vmatprep.mubr.f32.mxu0 0.0
      %474 = vmatmul.mubr.f32.gmra.mrb[0].mxu0 %v402
      %v475 = vpop.f32.mrb[0].mxu0
      %v476 = vadd.f32 %v396, %v475
      %v477 = vpop.f32.mrb[0].mxu0
      %478 = vdwg.mxu0
      %v479 = vadd.f32 %v471, %v254
      %v480 = vadd.f32 %v476, %v255
      %481 = vst.msk [vmem:[%s246] sm:$0xff] %vm276, %v479
      %482 = vst.msk [vmem:[%s246 + $0x8] sm:$0xff] %vm276, %v480
      %s483 = smul.u32 2, %s21
      %p484 = scmp.lt.s32.totalorder %s20, 1
      %s485 = scalar_select %p484, %s20, 1
      %p486 = scmp.lt.s32.totalorder %s483, 3
      %s487 = scalar_select %p486, %s483, 3
      %s488 = smul.addr %s485, 4
      %s489 = sadd.s32 %s487, %s488
      %s490 = smul.addr %s489, 8
      %s491 = scalar_lea.vmem %s5, %s490
      // Predicated region
      $region41: #{run_f32.25} parent=39 // pred_check
        %p492 = pneg %p158
      $region42: #{run_f32.25} parent=39 // pred_check_branch
        %494 = sbr.rel (%p492) target = $region44
      $region43: #{run_f32.25} parent=39 // pred_region
        %s495 = smul.u32 2, %s21
      $region44: #{run_f32.25} parent=39 // pred_fallthru
        _
    $region40: #{run_f32.25} parent=5 // pred_fallthru
      _
    %p496 = scmp.le.s32.totalorder 2, %s11
    // Predicated region
    $region45: #{run_f32.25} parent=5 // pred_check
      %p497 = pneg %p496
    $region46: #{run_f32.25} parent=5 // pred_check_branch
      %499 = sbr.rel (%p497) target = $region48
    $region47: #{run_f32.25} parent=5 // pred_region
      %s500 = ssub.s32 %s11, 2
      // Predicated region
      $region49: #{run_f32.25} parent=47 // pred_check
        %p501 = pneg %p164
      $region50: #{run_f32.25} parent=47 // pred_check_branch
        %503 = sbr.rel (%p501) target = $region52
      $region51: #{run_f32.25} parent=47 // pred_region
        %s504 = smul.u32 2, %s23
        %p505 = scmp.lt.s32.totalorder %s22, 1
        %s506 = scalar_select %p505, %s22, 1
        %p507 = scmp.lt.s32.totalorder %s504, 3
        %s508 = scalar_select %p507, %s504, 3
        %s509 = smul.addr %s506, 4
        %s510 = sadd.s32 %s508, %s509
        %s511 = smul.addr %s510, 8
        %s512 = scalar_lea.vmem %s5, %s511
      $region52: #{run_f32.25} parent=47 // pred_fallthru
        _
    $region48: #{run_f32.25} parent=5 // pred_fallthru
      _
  $region6: #{run_f32.25} parent=0 // loop_footer
    %s15 = sadd.s32 1, %s11
  $region7: #{run_f32.25} parent=0 // loop_footer_branch
    %10 = sbr.rel target = $region3
  $region8: #{run_f32.25} parent=0 // loop_exit
    _

// kernel: run_f32.26
$region0: #{run_f32.26}
  #allocation0 [shape = 'u32[]', space=smem, size = 0x4, offset = 0x4, fixed_abs, tag = 'smem constant byte address 0x4 - core index']
  #allocation1 [shape = 'u32[144,128]{1,0:T(1,128)}', space=vmem, size = 0x12000, scoped, tag = 'internal scratch']
  %s0 = inlined_call_operand.vmem [shape: f32[2,34,32], index: 0, kind: input, shape index: {}]
  %s1 = inlined_call_operand.vmem [shape: f32[96,32], index: 1, kind: input, shape index: {}]
  %s2 = inlined_call_operand.vmem [shape: f32[1,32], index: 2, kind: input, shape index: {}]
  %s3 = inlined_call_operand.vmem [shape: f32[32,32], index: 3, kind: input, shape index: {}]
  %s4 = inlined_call_operand.vmem [shape: f32[1,32], index: 4, kind: input, shape index: {}]
  %s5 = inlined_call_operand.vmem [shape: f32[2,32,32], index: 5, kind: output, shape index: {}]
  %s6 = sld [smem:[#allocation0]]
  $region53: #{run_f32.26} parent=0
    _
  %s8 = ssub.s32 1, %s6
  %s9 = scalar_select 0, %s8, %s6
  loop: start=0, step=1, limit=6
  $region2: #{run_f32.26} parent=0 // loop_pre_header
    _
  $region3: #{run_f32.26} parent=0 // loop_header
    %s11 = sphi 0, %s15
    %p12 = scmp.ge.s32.totalorder %s11, 6
    %s18 = sphi 0, %s30
    %s19 = sphi 0, %s26
    %s20 = sphi 0, %s18
    %s21 = sphi 0, %s19
    %s22 = sphi 0, %s20
    %s23 = sphi 0, %s21
    %s33 = sphi 0, %s35
    %s36 = sphi 0, %s33
    %s37 = sphi 0, %s36
    %s53 = sphi 0, %s37
    %s57 = sphi 0, %s57
    %s59 = sphi 0, %s57
    %s60 = sphi 0, %s59
    %s74 = sphi 0, %s60
    %s78 = sphi 0, %s78
    %s80 = sphi 0, %s78
    %s81 = sphi 0, %s80
    %s95 = sphi 0, %s81
    %s99 = sphi 0, %s99
    %s101 = sphi 0, %s99
    %s102 = sphi 0, %s101
    %s116 = sphi 0, %s102
    %s120 = sphi 0, %s120
    %s122 = sphi 0, %s120
    %s123 = sphi 0, %s122
    %s137 = sphi 0, %s123
    %s145 = sphi 0, %s147
    %s148 = sphi 0, %s145
    %s149 = sphi 0, %s148
    %s165 = sphi 0, %s149
  $region4: #{run_f32.26} parent=0 // loop_header_branch
    %14 = sbr.rel (%p12) target = $region8
  $region5: #{run_f32.26} parent=0 // loop_body
    %s16 = ssub.s32 %s11, 1
    %s17 = ssub.s32 %s11, 2
    %s24 = sadd.s32 1, %s19
    %p25 = scmp.ge.s32.totalorder %s24, 2
    %s26 = scalar_select %p25, 0, %s24
    %s27 = sadd.s32 1, %s18
    %s28 = scalar_select %p25, %s27, %s18
    %p29 = scmp.ge.s32.totalorder %s28, 2
    %s30 = scalar_select %p29, 0, %s28
    %s31 = ssub.s32 %s18, %s30
    %p32 = scmp.eq.s32.totalorder %s31, 0
    %s34 = sadd.s32 %s33, 1
    %s35 = scalar_select %p32, %s33, %s34
    %p38 = pneg %p32
    %p39 = scmp.eq.s32.totalorder %s11, 3
    %p40 = por %p38, %p39
    %p41 = scmp.ne.s32.totalorder %s33, %s36
    %p42 = scmp.eq.s32.totalorder %s11, 0
    %p43 = por %p41, %p42
    %p44 = scmp.ne.s32.totalorder %s33, %s36
    %p45 = scmp.eq.s32.totalorder %s16, 3
    %p46 = por %p44, %p45
    %p47 = scmp.ne.s32.totalorder %s36, %s37
    %p48 = scmp.eq.s32.totalorder %s16, 0
    %p49 = por %p47, %p48
    %p50 = scmp.ne.s32.totalorder %s36, %s37
    %p51 = scmp.eq.s32.totalorder %s17, 3
    %p52 = por %p50, %p51
    %p54 = scmp.ne.s32.totalorder %s37, %s53
    %p55 = scmp.eq.s32.totalorder %s17, 0
    %p56 = por %p54, %p55
    %s58 = sadd.s32 %s57, 1
    %p61 = scmp.eq.s32.totalorder %s11, 3
    %p62 = scmp.ne.s32.totalorder %s57, %s59
    %p63 = scmp.eq.s32.totalorder %s11, 0
    %p64 = por %p62, %p63
    %p65 = scmp.ne.s32.totalorder %s57, %s59
    %p66 = scmp.eq.s32.totalorder %s16, 3
    %p67 = por %p65, %p66
    %p68 = scmp.ne.s32.totalorder %s59, %s60
    %p69 = scmp.eq.s32.totalorder %s16, 0
    %p70 = por %p68, %p69
    %p71 = scmp.ne.s32.totalorder %s59, %s60
    %p72 = scmp.eq.s32.totalorder %s17, 3
    %p73 = por %p71, %p72
    %p75 = scmp.ne.s32.totalorder %s60, %s74
    %p76 = scmp.eq.s32.totalorder %s17, 0
    %p77 = por %p75, %p76
    %s79 = sadd.s32 %s78, 1
    %p82 = scmp.eq.s32.totalorder %s11, 3
    %p83 = scmp.ne.s32.totalorder %s78, %s80
    %p84 = scmp.eq.s32.totalorder %s11, 0
    %p85 = por %p83, %p84
    %p86 = scmp.ne.s32.totalorder %s78, %s80
    %p87 = scmp.eq.s32.totalorder %s16, 3
    %p88 = por %p86, %p87
    %p89 = scmp.ne.s32.totalorder %s80, %s81
    %p90 = scmp.eq.s32.totalorder %s16, 0
    %p91 = por %p89, %p90
    %p92 = scmp.ne.s32.totalorder %s80, %s81
    %p93 = scmp.eq.s32.totalorder %s17, 3
    %p94 = por %p92, %p93
    %p96 = scmp.ne.s32.totalorder %s81, %s95
    %p97 = scmp.eq.s32.totalorder %s17, 0
    %p98 = por %p96, %p97
    %s100 = sadd.s32 %s99, 1
    %p103 = scmp.eq.s32.totalorder %s11, 3
    %p104 = scmp.ne.s32.totalorder %s99, %s101
    %p105 = scmp.eq.s32.totalorder %s11, 0
    %p106 = por %p104, %p105
    %p107 = scmp.ne.s32.totalorder %s99, %s101
    %p108 = scmp.eq.s32.totalorder %s16, 3
    %p109 = por %p107, %p108
    %p110 = scmp.ne.s32.totalorder %s101, %s102
    %p111 = scmp.eq.s32.totalorder %s16, 0
    %p112 = por %p110, %p111
    %p113 = scmp.ne.s32.totalorder %s101, %s102
    %p114 = scmp.eq.s32.totalorder %s17, 3
    %p115 = por %p113, %p114
    %p117 = scmp.ne.s32.totalorder %s102, %s116
    %p118 = scmp.eq.s32.totalorder %s17, 0
    %p119 = por %p117, %p118
    %s121 = sadd.s32 %s120, 1
    %p124 = scmp.eq.s32.totalorder %s11, 3
    %p125 = scmp.ne.s32.totalorder %s120, %s122
    %p126 = scmp.eq.s32.totalorder %s11, 0
    %p127 = por %p125, %p126
    %p128 = scmp.ne.s32.totalorder %s120, %s122
    %p129 = scmp.eq.s32.totalorder %s16, 3
    %p130 = por %p128, %p129
    %p131 = scmp.ne.s32.totalorder %s122, %s123
    %p132 = scmp.eq.s32.totalorder %s16, 0
    %p133 = por %p131, %p132
    %p134 = scmp.ne.s32.totalorder %s122, %s123
    %p135 = scmp.eq.s32.totalorder %s17, 3
    %p136 = por %p134, %p135
    %p138 = scmp.ne.s32.totalorder %s123, %s137
    %p139 = scmp.eq.s32.totalorder %s17, 0
    %p140 = por %p138, %p139
    %s141 = ssub.s32 %s18, %s30
    %s142 = ssub.s32 %s19, %s26
    %s143 = sor.u32 %s141, %s142
    %p144 = scmp.eq.s32.totalorder %s143, 0
    %s146 = sadd.s32 %s145, 1
    %s147 = scalar_select %p144, %s145, %s146
    %p150 = pneg %p144
    %p151 = scmp.eq.s32.totalorder %s11, 3
    %p152 = por %p150, %p151
    %p153 = scmp.ne.s32.totalorder %s145, %s148
    %p154 = scmp.eq.s32.totalorder %s11, 0
    %p155 = por %p153, %p154
    %p156 = scmp.ne.s32.totalorder %s145, %s148
    %p157 = scmp.eq.s32.totalorder %s16, 3
    %p158 = por %p156, %p157
    %p159 = scmp.ne.s32.totalorder %s148, %s149
    %p160 = scmp.eq.s32.totalorder %s16, 0
    %p161 = por %p159, %p160
    %p162 = scmp.ne.s32.totalorder %s148, %s149
    %p163 = scmp.eq.s32.totalorder %s17, 3
    %p164 = por %p162, %p163
    %p166 = scmp.ne.s32.totalorder %s149, %s165
    %p167 = scmp.eq.s32.totalorder %s17, 0
    %p168 = por %p166, %p167
    %p169 = scmp.le.s32.totalorder 1, %s11
    %p170 = scmp.lt.s32.totalorder %s11, 5
    %p171 = pnand %p169, %p170
    %p172 = pneg %p171
    // Predicated region
    $region9: #{run_f32.26} parent=5 // pred_check
      _
    $region10: #{run_f32.26} parent=5 // pred_check_branch
      %174 = sbr.rel (%p171) target = $region12
    $region11: #{run_f32.26} parent=5 // pred_region
      %s175 = ssub.s32 %s11, 1
      // Predicated region
      $region13: #{run_f32.26} parent=11 // pred_check
        %p176 = pneg %p70
      $region14: #{run_f32.26} parent=11 // pred_check_branch
        %178 = sbr.rel (%p176) target = $region16
      $region15: #{run_f32.26} parent=11 // pred_region
        _
      $region16: #{run_f32.26} parent=11 // pred_fallthru
        _
      // Predicated region
      $region17: #{run_f32.26} parent=11 // pred_check
        %p179 = pneg %p91
      $region18: #{run_f32.26} parent=11 // pred_check_branch
        %181 = sbr.rel (%p179) target = $region20
      $region19: #{run_f32.26} parent=11 // pred_region
        _
      $region20: #{run_f32.26} parent=11 // pred_fallthru
        _
      // Predicated region
      $region21: #{run_f32.26} parent=11 // pred_check
        %p182 = pneg %p112
      $region22: #{run_f32.26} parent=11 // pred_check_branch
        %184 = sbr.rel (%p182) target = $region24
      $region23: #{run_f32.26} parent=11 // pred_region
        _
      $region24: #{run_f32.26} parent=11 // pred_fallthru
        _
      // Predicated region
      $region25: #{run_f32.26} parent=11 // pred_check
        %p185 = pneg %p133
      $region26: #{run_f32.26} parent=11 // pred_check_branch
        %187 = sbr.rel (%p185) target = $region28
      $region27: #{run_f32.26} parent=11 // pred_region
        _
      $region28: #{run_f32.26} parent=11 // pred_fallthru
        _
    $region12: #{run_f32.26} parent=5 // pred_fallthru
      _
    %p188 = scmp.lt.s32.totalorder %s11, 4
    // Predicated region
    $region29: #{run_f32.26} parent=5 // pred_check
      %p189 = pneg %p188
    $region30: #{run_f32.26} parent=5 // pred_check_branch
      %191 = sbr.rel (%p189) target = $region32
    $region31: #{run_f32.26} parent=5 // pred_region
      // Predicated region
      $region33: #{run_f32.26} parent=31 // pred_check
        %p192 = pneg %p43
      $region34: #{run_f32.26} parent=31 // pred_check_branch
        %194 = sbr.rel (%p192) target = $region36
      $region35: #{run_f32.26} parent=31 // pred_region
        %p195 = scmp.lt.s32.totalorder %s18, 1
        %s196 = scalar_select %p195, %s18, 1
        %s197 = smul.addr %s196, 5
        %s198 = smul.addr %s197, 8
        %s199 = scalar_lea.vmem %s0, %s198
      $region36: #{run_f32.26} parent=31 // pred_fallthru
        _
    $region32: #{run_f32.26} parent=5 // pred_fallthru
      _
    %p200 = scmp.le.s32.totalorder 1, %s11
    %p201 = scmp.lt.s32.totalorder %s11, 5
    %p202 = pnand %p200, %p201
    %p203 = pneg %p202
    // Predicated region
    $region37: #{run_f32.26} parent=5 // pred_check
      _
    $region38: #{run_f32.26} parent=5 // pred_check_branch
      %205 = sbr.rel (%p202) target = $region40
    $region39: #{run_f32.26} parent=5 // pred_region
      %s206 = ssub.s32 %s11, 1
      %p207 = scmp.lt.s32.totalorder %s20, 1
      %s208 = scalar_select %p207, %s20, 1
      %s209 = smul.addr %s208, 5
      %s210 = smul.addr %s209, 8
      %s211 = scalar_lea.vmem %s0, %s210
      %p212 = pneg %p49
      %p213 = pneg %p46
      %p214 = pneg %p70
      %p215 = pneg %p67
      %p216 = pneg %p91
      %p217 = pneg %p88
      %p218 = pneg %p112
      %p219 = pneg %p109
      %p220 = pneg %p133
      %p221 = pneg %p130
      %p222 = pneg %p161
      %p223 = pneg %p158
      %s224 = smul.u32 2, %s21
      %p225 = scmp.lt.s32.totalorder %s20, 1
      %s226 = scalar_select %p225, %s20, 1
      %p227 = scmp.lt.s32.totalorder %s224, 3
      %s228 = scalar_select %p227, %s224, 3
      %s229 = smul.addr %s226, 4
      %s230 = sadd.s32 %s228, %s229
      %s231 = smul.addr %s230, 8
      %s232 = scalar_lea.vmem %s5, %s231
      %p233 = scmp.lt.s32.totalorder %s20, 1
      %s234 = scalar_select %p233, %s20, 1
      %s235 = smul.addr %s234, 5
      %s236 = smul.addr %s235, 8
      %s237 = scalar_lea.vmem %s0, %s236
      %s238 = smul.u32 2, %s21
      %p239 = scmp.lt.s32.totalorder %s20, 1
      %s240 = scalar_select %p239, %s20, 1
      %p241 = scmp.lt.s32.totalorder %s238, 3
      %s242 = scalar_select %p241, %s238, 3
      %s243 = smul.addr %s240, 4
      %s244 = sadd.s32 %s242, %s243
      %s245 = smul.addr %s244, 8
      %s246 = scalar_lea.vmem %s5, %s245
      %s247 = smul.u32 2, %s21
      %s248 = smul.u32 %s21, 16
      %s249 = scalar_lea.vmem %s237, %s248
      %v250 = vld [vmem:[%s249] sm:$0xff]
      %v251 = vld [vmem:[%s249 + $0x8] sm:$0xff]
      %s252 = sadd.s32 %s248, 1
      %s253 = scalar_lea.vmem %s237, %s252
      %v254 = vld [vmem:[%s253] sm:$0xff]
      %v255 = vld [vmem:[%s253 + $0x8] sm:$0xff]
      %s256 = sadd.s32 %s248, 2
      %s257 = scalar_lea.vmem %s237, %s256
      %v258 = vld [vmem:[%s257] sm:$0xff]
      %v259 = vld [vmem:[%s257 + $0x8] sm:$0xff]
      %262 = vrot.lane.b32.xlu0 %v254, 32
      %v263 = vpop.permute.xlu0 %262
      %264 = vrot.lane.b32.xlu0 %v255, 32
      %v265 = vpop.permute.xlu0 %264
      %270 = vrot.lane.b32.xlu0 %v258, 64
      %v271 = vpop.permute.xlu0 %270
      %272 = vrot.lane.b32.xlu0 %v259, 64
      %v273 = vpop.permute.xlu0 %272
      %vm276 = vcmask 261120
      %v277 = vsel %vm276, %v250, %v263
      %v278 = vsel %vm276, %v251, %v265
      %vm279 = vcmask 523264
      %v280 = vsel %vm279, %v277, %v271
      %v281 = vsel %vm279, %v278, %v273
      %v282 = vmax.f32 %v280, 0.0
      %v283 = vmax.f32 %v281, 0.0
      %v284 = vld [vmem:[%s1] sm:$0xff]
      %v285 = vld [vmem:[%s1 + $0x8] sm:$0xff]
      %v286 = vld [vmem:[%s1 + $0x10] sm:$0xff]
      %v287 = vld [vmem:[%s1 + $0x18] sm:$0xff]
      %v288 = vld [vmem:[%s1 + $0x20] sm:$0xff]
      %v289 = vld [vmem:[%s1 + $0x28] sm:$0xff]
      %v290 = vld [vmem:[%s1 + $0x30] sm:$0xff]
      %v291 = vld [vmem:[%s1 + $0x38] sm:$0xff]
      %v292 = vld [vmem:[%s1 + $0x40] sm:$0xff]
      %v293 = vld [vmem:[%s1 + $0x48] sm:$0xff]
      %v294 = vld [vmem:[%s1 + $0x50] sm:$0xff]
      %v295 = vld [vmem:[%s1 + $0x58] sm:$0xff]
      %v296 = vld [vmem:[%s2] sm:$0x1]
      %v298 = vlaneseq
      %v299 = vshrl.u32 %v298, 7
      %v300 = vsub.s32 0, %v299
      %v301 = vrot.slane %v296, %v300
      %vm303 = vcmask 785408
      %v305 = vsel %vm303, %v282, 0
      %v308 = vsel %vm303, %v283, 0
      %310 = vmatprep.subr.mxu0 0.0
      %311 = vmatpush1.msra.mxu0 %v284
      %312 = vmatprep.subr.mxu0 0.0
      %313 = vmatpush1.msra.mxu0 %v285
      %314 = vmatprep.subr.mxu0 0.0
      %315 = vmatpush1.msra.mxu0 %v286
      %316 = vmatprep.subr.mxu0 0.0
      %317 = vmatpush1.msra.mxu0 %v287
      %318 = vmatprep.subr.mxu0 0.0
      %319 = vmatpush1.msra.mxu0 %v288
      %320 = vmatprep.subr.mxu0 0.0
      %321 = vmatpush1.msra.mxu0 %v289
      %322 = vmatprep.subr.mxu0 0.0
      %323 = vmatpush1.msra.mxu0 %v290
      %324 = vmatprep.subr.mxu0 0.0
      %325 = vmatpush1.msra.mxu0 %v291
      %326 = vmatprep.subr.mxu0 0.0
      %327 = vmatpush1.msra.mxu0 %v292
      %328 = vmatprep.subr.mxu0 0.0
      %329 = vmatpush1.msra.mxu0 %v293
      %330 = vmatprep.subr.mxu0 0.0
      %331 = vmatpush1.msra.mxu0 %v294
      %332 = vmatprep.subr.mxu0 0.0
      %333 = vmatpush1.msra.mxu0 %v295
      %334 = vmatprep.subr.mxu0 0.0
      %335 = vmatpush1.msra.mxu0 0.0
      %336 = vmatprep.subr.mxu0 0.0
      %337 = vmatpush1.msra.mxu0 0.0
      %338 = vmatprep.subr.mxu0 0.0
      %339 = vmatpush1.msra.mxu0 0.0
      %340 = vmatprep.subr.mxu0 0.0
      %341 = vmatpush1.msra.mxu0 0.0
      %342 = vmatprep.subr.mxu0 0.0
      %343 = vmatpush1.msra.mxu0 0.0
      %344 = vmatprep.subr.mxu0 0.0
      %345 = vmatpush1.msra.mxu0 0.0
      %346 = vmatprep.subr.mxu0 0.0
      %347 = vmatpush1.msra.mxu0 0.0
      %348 = vmatprep.subr.mxu0 0.0
      %349 = vmatpush1.msra.mxu0 0.0
      %350 = vmatprep.subr.mxu0 0.0
      %351 = vmatpush1.msra.mxu0 0.0
      %352 = vmatprep.subr.mxu0 0.0
      %353 = vmatpush1.msra.mxu0 0.0
      %354 = vmatprep.subr.mxu0 0.0
      %355 = vmatpush1.msra.mxu0 0.0
      %356 = vmatprep.subr.mxu0 0.0
      %357 = vmatpush1.msra.mxu0 0.0
      %358 = vmatprep.subr.mxu0 0.0
      %359 = vmatpush1.msra.mxu0 0.0
      %360 = vmatprep.subr.mxu0 0.0
      %361 = vmatpush1.msra.mxu0 0.0
      %362 = vmatprep.subr.mxu0 0.0
      %363 = vmatpush1.msra.mxu0 0.0
      %364 = vmatprep.subr.mxu0 0.0
      %365 = vmatpush1.msra.mxu0 0.0
      %366 = vmatprep.subr.mxu0 0.0
      %367 = vmatpush1.msra.mxu0 0.0
      %368 = vmatprep.subr.mxu0 0.0
      %369 = vmatpush1.msra.mxu0 0.0
      %370 = vmatprep.subr.mxu0 0.0
      %371 = vmatpush1.msra.mxu0 0.0
      %372 = vmatprep.subr.mxu0 0.0
      %373 = vmatpush1.msra.mxu0 0.0
      %374 = vmatprep.mubr.f32.mxu0 0.0
      %375 = vmatmul.mubr.f32.gmra.mrb[0].mxu0 %v305
      %v376 = vpop.f32.mrb[0].mxu0
      %v377 = vadd.f32 %v301, %v376
      %v378 = vpop.f32.mrb[0].mxu0
      %379 = vmatprep.mubr.f32.mxu0 0.0
      %380 = vmatmul.mubr.f32.gmra.mrb[0].mxu0 %v308
      %v381 = vpop.f32.mrb[0].mxu0
      %v382 = vadd.f32 %v301, %v381
      %v383 = vpop.f32.mrb[0].mxu0
      %384 = vdwg.mxu0
      %v385 = vmax.f32 %v377, 0.0
      %v386 = vmax.f32 %v382, 0.0
      %v387 = vld [vmem:[%s3] sm:$0xff]
      %v388 = vld [vmem:[%s3 + $0x8] sm:$0xff]
      %v389 = vld [vmem:[%s3 + $0x10] sm:$0xff]
      %v390 = vld [vmem:[%s3 + $0x18] sm:$0xff]
      %v391 = vld [vmem:[%s4] sm:$0x1]
      %v393 = vlaneseq
      %v394 = vshrl.u32 %v393, 7
      %v395 = vsub.s32 0, %v394
      %v396 = vrot.slane %v391, %v395
      %v399 = vsel %vm276, %v385, 0
      %v402 = vsel %vm276, %v386, 0
      %404 = vmatprep.subr.mxu0 0.0
      %405 = vmatpush1.msra.mxu0 %v387
      %406 = vmatprep.subr.mxu0 0.0
      %407 = vmatpush1.msra.mxu0 %v388
      %408 = vmatprep.subr.mxu0 0.0
      %409 = vmatpush1.msra.mxu0 %v389
      %410 = vmatprep.subr.mxu0 0.0
      %411 = vmatpush1.msra.mxu0 %v390
      %412 = vmatprep.subr.mxu0 0.0
      %413 = vmatpush1.msra.mxu0 0.0
      %414 = vmatprep.subr.mxu0 0.0
      %415 = vmatpush1.msra.mxu0 0.0
      %416 = vmatprep.subr.mxu0 0.0
      %417 = vmatpush1.msra.mxu0 0.0
      %418 = vmatprep.subr.mxu0 0.0
      %419 = vmatpush1.msra.mxu0 0.0
      %420 = vmatprep.subr.mxu0 0.0
      %421 = vmatpush1.msra.mxu0 0.0
      %422 = vmatprep.subr.mxu0 0.0
      %423 = vmatpush1.msra.mxu0 0.0
      %424 = vmatprep.subr.mxu0 0.0
      %425 = vmatpush1.msra.mxu0 0.0
      %426 = vmatprep.subr.mxu0 0.0
      %427 = vmatpush1.msra.mxu0 0.0
      %428 = vmatprep.subr.mxu0 0.0
      %429 = vmatpush1.msra.mxu0 0.0
      %430 = vmatprep.subr.mxu0 0.0
      %431 = vmatpush1.msra.mxu0 0.0
      %432 = vmatprep.subr.mxu0 0.0
      %433 = vmatpush1.msra.mxu0 0.0
      %434 = vmatprep.subr.mxu0 0.0
      %435 = vmatpush1.msra.mxu0 0.0
      %436 = vmatprep.subr.mxu0 0.0
      %437 = vmatpush1.msra.mxu0 0.0
      %438 = vmatprep.subr.mxu0 0.0
      %439 = vmatpush1.msra.mxu0 0.0
      %440 = vmatprep.subr.mxu0 0.0
      %441 = vmatpush1.msra.mxu0 0.0
      %442 = vmatprep.subr.mxu0 0.0
      %443 = vmatpush1.msra.mxu0 0.0
      %444 = vmatprep.subr.mxu0 0.0
      %445 = vmatpush1.msra.mxu0 0.0
      %446 = vmatprep.subr.mxu0 0.0
      %447 = vmatpush1.msra.mxu0 0.0
      %448 = vmatprep.subr.mxu0 0.0
      %449 = vmatpush1.msra.mxu0 0.0
      %450 = vmatprep.subr.mxu0 0.0
      %451 = vmatpush1.msra.mxu0 0.0
      %452 = vmatprep.subr.mxu0 0.0
      %453 = vmatpush1.msra.mxu0 0.0
      %454 = vmatprep.subr.mxu0 0.0
      %455 = vmatpush1.msra.mxu0 0.0
      %456 = vmatprep.subr.mxu0 0.0
      %457 = vmatpush1.msra.mxu0 0.0
      %458 = vmatprep.subr.mxu0 0.0
      %459 = vmatpush1.msra.mxu0 0.0
      %460 = vmatprep.subr.mxu0 0.0
      %461 = vmatpush1.msra.mxu0 0.0
      %462 = vmatprep.subr.mxu0 0.0
      %463 = vmatpush1.msra.mxu0 0.0
      %464 = vmatprep.subr.mxu0 0.0
      %465 = vmatpush1.msra.mxu0 0.0
      %466 = vmatprep.subr.mxu0 0.0
      %467 = vmatpush1.msra.mxu0 0.0
      %468 = vmatprep.mubr.f32.mxu0 0.0
      %469 = vmatmul.mubr.f32.gmra.mrb[0].mxu0 %v399
      %v470 = vpop.f32.mrb[0].mxu0
      %v471 = vadd.f32 %v396, %v470
      %v472 = vpop.f32.mrb[0].mxu0
      %473 = vmatprep.mubr.f32.mxu0 0.0
      %474 = vmatmul.mubr.f32.gmra.mrb[0].mxu0 %v402
      %v475 = vpop.f32.mrb[0].mxu0
      %v476 = vadd.f32 %v396, %v475
      %v477 = vpop.f32.mrb[0].mxu0
      %478 = vdwg.mxu0
      %v479 = vadd.f32 %v471, %v254
      %v480 = vadd.f32 %v476, %v255
      %481 = vst.msk [vmem:[%s246] sm:$0xff] %vm276, %v479
      %482 = vst.msk [vmem:[%s246 + $0x8] sm:$0xff] %vm276, %v480
      %s483 = smul.u32 2, %s21
      %p484 = scmp.lt.s32.totalorder %s20, 1
      %s485 = scalar_select %p484, %s20, 1
      %p486 = scmp.lt.s32.totalorder %s483, 3
      %s487 = scalar_select %p486, %s483, 3
      %s488 = smul.addr %s485, 4
      %s489 = sadd.s32 %s487, %s488
      %s490 = smul.addr %s489, 8
      %s491 = scalar_lea.vmem %s5, %s490
      // Predicated region
      $region41: #{run_f32.26} parent=39 // pred_check
        %p492 = pneg %p158
      $region42: #{run_f32.26} parent=39 // pred_check_branch
        %494 = sbr.rel (%p492) target = $region44
      $region43: #{run_f32.26} parent=39 // pred_region
        %s495 = smul.u32 2, %s21
      $region44: #{run_f32.26} parent=39 // pred_fallthru
        _
    $region40: #{run_f32.26} parent=5 // pred_fallthru
      _
    %p496 = scmp.le.s32.totalorder 2, %s11
    // Predicated region
    $region45: #{run_f32.26} parent=5 // pred_check
      %p497 = pneg %p496
    $region46: #{run_f32.26} parent=5 // pred_check_branch
      %499 = sbr.rel (%p497) target = $region48
    $region47: #{run_f32.26} parent=5 // pred_region
      %s500 = ssub.s32 %s11, 2
      // Predicated region
      $region49: #{run_f32.26} parent=47 // pred_check
        %p501 = pneg %p164
      $region50: #{run_f32.26} parent=47 // pred_check_branch
        %503 = sbr.rel (%p501) target = $region52
      $region51: #{run_f32.26} parent=47 // pred_region
        %s504 = smul.u32 2, %s23
        %p505 = scmp.lt.s32.totalorder %s22, 1
        %s506 = scalar_select %p505, %s22, 1
        %p507 = scmp.lt.s32.totalorder %s504, 3
        %s508 = scalar_select %p507, %s504, 3
        %s509 = smul.addr %s506, 4
        %s510 = sadd.s32 %s508, %s509
        %s511 = smul.addr %s510, 8
        %s512 = scalar_lea.vmem %s5, %s511
      $region52: #{run_f32.26} parent=47 // pred_fallthru
        _
    $region48: #{run_f32.26} parent=5 // pred_fallthru
      _
  $region6: #{run_f32.26} parent=0 // loop_footer
    %s15 = sadd.s32 1, %s11
  $region7: #{run_f32.26} parent=0 // loop_footer_branch
    %10 = sbr.rel target = $region3
  $region8: #{run_f32.26} parent=0 // loop_exit
    _

// kernel: run_f32.27
$region0: #{run_f32.27}
  #allocation0 [shape = 'u32[]', space=smem, size = 0x4, offset = 0x4, fixed_abs, tag = 'smem constant byte address 0x4 - core index']
  #allocation1 [shape = 'u32[144,128]{1,0:T(1,128)}', space=vmem, size = 0x12000, scoped, tag = 'internal scratch']
  %s0 = inlined_call_operand.vmem [shape: f32[2,34,32], index: 0, kind: input, shape index: {}]
  %s1 = inlined_call_operand.vmem [shape: f32[96,64], index: 1, kind: input, shape index: {}]
  %s2 = inlined_call_operand.vmem [shape: f32[1,64], index: 2, kind: input, shape index: {}]
  %s3 = inlined_call_operand.vmem [shape: f32[2,32,64], index: 3, kind: output, shape index: {}]
  %s4 = sld [smem:[#allocation0]]
  $region45: #{run_f32.27} parent=0
    _
  %s6 = ssub.s32 1, %s4
  %s7 = scalar_select 0, %s6, %s4
  loop: start=0, step=1, limit=6
  $region2: #{run_f32.27} parent=0 // loop_pre_header
    _
  $region3: #{run_f32.27} parent=0 // loop_header
    %s9 = sphi 0, %s13
    %p10 = scmp.ge.s32.totalorder %s9, 6
    %s16 = sphi 0, %s28
    %s17 = sphi 0, %s24
    %s18 = sphi 0, %s16
    %s19 = sphi 0, %s17
    %s20 = sphi 0, %s18
    %s21 = sphi 0, %s19
    %s31 = sphi 0, %s33
    %s34 = sphi 0, %s31
    %s35 = sphi 0, %s34
    %s51 = sphi 0, %s35
    %s55 = sphi 0, %s55
    %s57 = sphi 0, %s55
    %s58 = sphi 0, %s57
    %s72 = sphi 0, %s58
    %s76 = sphi 0, %s76
    %s78 = sphi 0, %s76
    %s79 = sphi 0, %s78
    %s93 = sphi 0, %s79
    %s101 = sphi 0, %s103
    %s104 = sphi 0, %s101
    %s105 = sphi 0, %s104
    %s121 = sphi 0, %s105
  $region4: #{run_f32.27} parent=0 // loop_header_branch
    %12 = sbr.rel (%p10) target = $region8
  $region5: #{run_f32.27} parent=0 // loop_body
    %s14 = ssub.s32 %s9, 1
    %s15 = ssub.s32 %s9, 2
    %s22 = sadd.s32 1, %s17
    %p23 = scmp.ge.s32.totalorder %s22, 2
    %s24 = scalar_select %p23, 0, %s22
    %s25 = sadd.s32 1, %s16
    %s26 = scalar_select %p23, %s25, %s16
    %p27 = scmp.ge.s32.totalorder %s26, 2
    %s28 = scalar_select %p27, 0, %s26
    %s29 = ssub.s32 %s16, %s28
    %p30 = scmp.eq.s32.totalorder %s29, 0
    %s32 = sadd.s32 %s31, 1
    %s33 = scalar_select %p30, %s31, %s32
    %p36 = pneg %p30
    %p37 = scmp.eq.s32.totalorder %s9, 3
    %p38 = por %p36, %p37
    %p39 = scmp.ne.s32.totalorder %s31, %s34
    %p40 = scmp.eq.s32.totalorder %s9, 0
    %p41 = por %p39, %p40
    %p42 = scmp.ne.s32.totalorder %s31, %s34
    %p43 = scmp.eq.s32.totalorder %s14, 3
    %p44 = por %p42, %p43
    %p45 = scmp.ne.s32.totalorder %s34, %s35
    %p46 = scmp.eq.s32.totalorder %s14, 0
    %p47 = por %p45, %p46
    %p48 = scmp.ne.s32.totalorder %s34, %s35
    %p49 = scmp.eq.s32.totalorder %s15, 3
    %p50 = por %p48, %p49
    %p52 = scmp.ne.s32.totalorder %s35, %s51
    %p53 = scmp.eq.s32.totalorder %s15, 0
    %p54 = por %p52, %p53
    %s56 = sadd.s32 %s55, 1
    %p59 = scmp.eq.s32.totalorder %s9, 3
    %p60 = scmp.ne.s32.totalorder %s55, %s57
    %p61 = scmp.eq.s32.totalorder %s9, 0
    %p62 = por %p60, %p61
    %p63 = scmp.ne.s32.totalorder %s55, %s57
    %p64 = scmp.eq.s32.totalorder %s14, 3
    %p65 = por %p63, %p64
    %p66 = scmp.ne.s32.totalorder %s57, %s58
    %p67 = scmp.eq.s32.totalorder %s14, 0
    %p68 = por %p66, %p67
    %p69 = scmp.ne.s32.totalorder %s57, %s58
    %p70 = scmp.eq.s32.totalorder %s15, 3
    %p71 = por %p69, %p70
    %p73 = scmp.ne.s32.totalorder %s58, %s72
    %p74 = scmp.eq.s32.totalorder %s15, 0
    %p75 = por %p73, %p74
    %s77 = sadd.s32 %s76, 1
    %p80 = scmp.eq.s32.totalorder %s9, 3
    %p81 = scmp.ne.s32.totalorder %s76, %s78
    %p82 = scmp.eq.s32.totalorder %s9, 0
    %p83 = por %p81, %p82
    %p84 = scmp.ne.s32.totalorder %s76, %s78
    %p85 = scmp.eq.s32.totalorder %s14, 3
    %p86 = por %p84, %p85
    %p87 = scmp.ne.s32.totalorder %s78, %s79
    %p88 = scmp.eq.s32.totalorder %s14, 0
    %p89 = por %p87, %p88
    %p90 = scmp.ne.s32.totalorder %s78, %s79
    %p91 = scmp.eq.s32.totalorder %s15, 3
    %p92 = por %p90, %p91
    %p94 = scmp.ne.s32.totalorder %s79, %s93
    %p95 = scmp.eq.s32.totalorder %s15, 0
    %p96 = por %p94, %p95
    %s97 = ssub.s32 %s16, %s28
    %s98 = ssub.s32 %s17, %s24
    %s99 = sor.u32 %s97, %s98
    %p100 = scmp.eq.s32.totalorder %s99, 0
    %s102 = sadd.s32 %s101, 1
    %s103 = scalar_select %p100, %s101, %s102
    %p106 = pneg %p100
    %p107 = scmp.eq.s32.totalorder %s9, 3
    %p108 = por %p106, %p107
    %p109 = scmp.ne.s32.totalorder %s101, %s104
    %p110 = scmp.eq.s32.totalorder %s9, 0
    %p111 = por %p109, %p110
    %p112 = scmp.ne.s32.totalorder %s101, %s104
    %p113 = scmp.eq.s32.totalorder %s14, 3
    %p114 = por %p112, %p113
    %p115 = scmp.ne.s32.totalorder %s104, %s105
    %p116 = scmp.eq.s32.totalorder %s14, 0
    %p117 = por %p115, %p116
    %p118 = scmp.ne.s32.totalorder %s104, %s105
    %p119 = scmp.eq.s32.totalorder %s15, 3
    %p120 = por %p118, %p119
    %p122 = scmp.ne.s32.totalorder %s105, %s121
    %p123 = scmp.eq.s32.totalorder %s15, 0
    %p124 = por %p122, %p123
    %p125 = scmp.le.s32.totalorder 1, %s9
    %p126 = scmp.lt.s32.totalorder %s9, 5
    %p127 = pnand %p125, %p126
    %p128 = pneg %p127
    // Predicated region
    $region9: #{run_f32.27} parent=5 // pred_check
      _
    $region10: #{run_f32.27} parent=5 // pred_check_branch
      %130 = sbr.rel (%p127) target = $region12
    $region11: #{run_f32.27} parent=5 // pred_region
      %s131 = ssub.s32 %s9, 1
      // Predicated region
      $region13: #{run_f32.27} parent=11 // pred_check
        %p132 = pneg %p68
      $region14: #{run_f32.27} parent=11 // pred_check_branch
        %134 = sbr.rel (%p132) target = $region16
      $region15: #{run_f32.27} parent=11 // pred_region
        _
      $region16: #{run_f32.27} parent=11 // pred_fallthru
        _
      // Predicated region
      $region17: #{run_f32.27} parent=11 // pred_check
        %p135 = pneg %p89
      $region18: #{run_f32.27} parent=11 // pred_check_branch
        %137 = sbr.rel (%p135) target = $region20
      $region19: #{run_f32.27} parent=11 // pred_region
        _
      $region20: #{run_f32.27} parent=11 // pred_fallthru
        _
    $region12: #{run_f32.27} parent=5 // pred_fallthru
      _
    %p138 = scmp.lt.s32.totalorder %s9, 4
    // Predicated region
    $region21: #{run_f32.27} parent=5 // pred_check
      %p139 = pneg %p138
    $region22: #{run_f32.27} parent=5 // pred_check_branch
      %141 = sbr.rel (%p139) target = $region24
    $region23: #{run_f32.27} parent=5 // pred_region
      // Predicated region
      $region25: #{run_f32.27} parent=23 // pred_check
        %p142 = pneg %p41
      $region26: #{run_f32.27} parent=23 // pred_check_branch
        %144 = sbr.rel (%p142) target = $region28
      $region27: #{run_f32.27} parent=23 // pred_region
        %p145 = scmp.lt.s32.totalorder %s16, 1
        %s146 = scalar_select %p145, %s16, 1
        %s147 = smul.addr %s146, 5
        %s148 = smul.addr %s147, 8
        %s149 = scalar_lea.vmem %s0, %s148
      $region28: #{run_f32.27} parent=23 // pred_fallthru
        _
    $region24: #{run_f32.27} parent=5 // pred_fallthru
      _
    %p150 = scmp.le.s32.totalorder 1, %s9
    %p151 = scmp.lt.s32.totalorder %s9, 5
    %p152 = pnand %p150, %p151
    %p153 = pneg %p152
    // Predicated region
    $region29: #{run_f32.27} parent=5 // pred_check
      _
    $region30: #{run_f32.27} parent=5 // pred_check_branch
      %155 = sbr.rel (%p152) target = $region32
    $region31: #{run_f32.27} parent=5 // pred_region
      %s156 = ssub.s32 %s9, 1
      %p157 = scmp.lt.s32.totalorder %s18, 1
      %s158 = scalar_select %p157, %s18, 1
      %s159 = smul.addr %s158, 5
      %s160 = smul.addr %s159, 8
      %s161 = scalar_lea.vmem %s0, %s160
      %p162 = pneg %p47
      %p163 = pneg %p44
      %p164 = pneg %p68
      %p165 = pneg %p65
      %p166 = pneg %p89
      %p167 = pneg %p86
      %p168 = pneg %p117
      %p169 = pneg %p114
      %s170 = smul.u32 2, %s19
      %p171 = scmp.lt.s32.totalorder %s18, 1
      %s172 = scalar_select %p171, %s18, 1
      %p173 = scmp.lt.s32.totalorder %s170, 3
      %s174 = scalar_select %p173, %s170, 3
      %s175 = smul.addr %s172, 4
      %s176 = sadd.s32 %s174, %s175
      %s177 = smul.addr %s176, 8
      %s178 = scalar_lea.vmem %s3, %s177
      %p179 = scmp.lt.s32.totalorder %s18, 1
      %s180 = scalar_select %p179, %s18, 1
      %s181 = smul.addr %s180, 5
      %s182 = smul.addr %s181, 8
      %s183 = scalar_lea.vmem %s0, %s182
      %s184 = smul.u32 2, %s19
      %p185 = scmp.lt.s32.totalorder %s18, 1
      %s186 = scalar_select %p185, %s18, 1
      %p187 = scmp.lt.s32.totalorder %s184, 3
      %s188 = scalar_select %p187, %s184, 3
      %s189 = smul.addr %s186, 4
      %s190 = sadd.s32 %s188, %s189
      %s191 = smul.addr %s190, 8
      %s192 = scalar_lea.vmem %s3, %s191
      %s193 = smul.u32 2, %s19
      %s194 = smul.u32 %s19, 16
      %s195 = scalar_lea.vmem %s183, %s194
      %v196 = vld [vmem:[%s195] sm:$0xff]
      %v197 = vld [vmem:[%s195 + $0x8] sm:$0xff]
      %s198 = sadd.s32 %s194, 1
      %s199 = scalar_lea.vmem %s183, %s198
      %v200 = vld [vmem:[%s199] sm:$0xff]
      %v201 = vld [vmem:[%s199 + $0x8] sm:$0xff]
      %s202 = sadd.s32 %s194, 2
      %s203 = scalar_lea.vmem %s183, %s202
      %v204 = vld [vmem:[%s203] sm:$0xff]
      %v205 = vld [vmem:[%s203 + $0x8] sm:$0xff]
      %208 = vrot.lane.b32.xlu0 %v200, 32
      %v209 = vpop.permute.xlu0 %208
      %210 = vrot.lane.b32.xlu0 %v201, 32
      %v211 = vpop.permute.xlu0 %210
      %216 = vrot.lane.b32.xlu0 %v204, 64
      %v217 = vpop.permute.xlu0 %216
      %218 = vrot.lane.b32.xlu0 %v205, 64
      %v219 = vpop.permute.xlu0 %218
      %vm222 = vcmask 261120
      %v223 = vsel %vm222, %v196, %v209
      %v224 = vsel %vm222, %v197, %v211
      %vm225 = vcmask 523264
      %v226 = vsel %vm225, %v223, %v217
      %v227 = vsel %vm225, %v224, %v219
      %v228 = vld [vmem:[%s1] sm:$0xff]
      %v229 = vld [vmem:[%s1 + $0x8] sm:$0xff]
      %v230 = vld [vmem:[%s1 + $0x10] sm:$0xff]
      %v231 = vld [vmem:[%s1 + $0x18] sm:$0xff]
      %v232 = vld [vmem:[%s1 + $0x20] sm:$0xff]
      %v233 = vld [vmem:[%s1 + $0x28] sm:$0xff]
      %v234 = vld [vmem:[%s1 + $0x30] sm:$0xff]
      %v235 = vld [vmem:[%s1 + $0x38] sm:$0xff]
      %v236 = vld [vmem:[%s1 + $0x40] sm:$0xff]
      %v237 = vld [vmem:[%s1 + $0x48] sm:$0xff]
      %v238 = vld [vmem:[%s1 + $0x50] sm:$0xff]
      %v239 = vld [vmem:[%s1 + $0x58] sm:$0xff]
      %v240 = vld [vmem:[%s2] sm:$0x1]
      %v242 = vlaneseq
      %v243 = vshrl.u32 %v242, 7
      %v244 = vsub.s32 0, %v243
      %v245 = vrot.slane %v240, %v244
      %vm247 = vcmask 785408
      %v249 = vsel %vm247, %v226, 0
      %v252 = vsel %vm247, %v227, 0
      %254 = vmatprep.subr.mxu0 0.0
      %255 = vmatpush1.msra.mxu0 %v228
      %256 = vmatprep.subr.mxu0 0.0
      %257 = vmatpush1.msra.mxu0 %v229
      %258 = vmatprep.subr.mxu0 0.0
      %259 = vmatpush1.msra.mxu0 %v230
      %260 = vmatprep.subr.mxu0 0.0
      %261 = vmatpush1.msra.mxu0 %v231
      %262 = vmatprep.subr.mxu0 0.0
      %263 = vmatpush1.msra.mxu0 %v232
      %264 = vmatprep.subr.mxu0 0.0
      %265 = vmatpush1.msra.mxu0 %v233
      %266 = vmatprep.subr.mxu0 0.0
      %267 = vmatpush1.msra.mxu0 %v234
      %268 = vmatprep.subr.mxu0 0.0
      %269 = vmatpush1.msra.mxu0 %v235
      %270 = vmatprep.subr.mxu0 0.0
      %271 = vmatpush1.msra.mxu0 %v236
      %272 = vmatprep.subr.mxu0 0.0
      %273 = vmatpush1.msra.mxu0 %v237
      %274 = vmatprep.subr.mxu0 0.0
      %275 = vmatpush1.msra.mxu0 %v238
      %276 = vmatprep.subr.mxu0 0.0
      %277 = vmatpush1.msra.mxu0 %v239
      %278 = vmatprep.subr.mxu0 0.0
      %279 = vmatpush1.msra.mxu0 0.0
      %280 = vmatprep.subr.mxu0 0.0
      %281 = vmatpush1.msra.mxu0 0.0
      %282 = vmatprep.subr.mxu0 0.0
      %283 = vmatpush1.msra.mxu0 0.0
      %284 = vmatprep.subr.mxu0 0.0
      %285 = vmatpush1.msra.mxu0 0.0
      %286 = vmatprep.subr.mxu0 0.0
      %287 = vmatpush1.msra.mxu0 0.0
      %288 = vmatprep.subr.mxu0 0.0
      %289 = vmatpush1.msra.mxu0 0.0
      %290 = vmatprep.subr.mxu0 0.0
      %291 = vmatpush1.msra.mxu0 0.0
      %292 = vmatprep.subr.mxu0 0.0
      %293 = vmatpush1.msra.mxu0 0.0
      %294 = vmatprep.subr.mxu0 0.0
      %295 = vmatpush1.msra.mxu0 0.0
      %296 = vmatprep.subr.mxu0 0.0
      %297 = vmatpush1.msra.mxu0 0.0
      %298 = vmatprep.subr.mxu0 0.0
      %299 = vmatpush1.msra.mxu0 0.0
      %300 = vmatprep.subr.mxu0 0.0
      %301 = vmatpush1.msra.mxu0 0.0
      %302 = vmatprep.subr.mxu0 0.0
      %303 = vmatpush1.msra.mxu0 0.0
      %304 = vmatprep.subr.mxu0 0.0
      %305 = vmatpush1.msra.mxu0 0.0
      %306 = vmatprep.subr.mxu0 0.0
      %307 = vmatpush1.msra.mxu0 0.0
      %308 = vmatprep.subr.mxu0 0.0
      %309 = vmatpush1.msra.mxu0 0.0
      %310 = vmatprep.subr.mxu0 0.0
      %311 = vmatpush1.msra.mxu0 0.0
      %312 = vmatprep.subr.mxu0 0.0
      %313 = vmatpush1.msra.mxu0 0.0
      %314 = vmatprep.subr.mxu0 0.0
      %315 = vmatpush1.msra.mxu0 0.0
      %316 = vmatprep.subr.mxu0 0.0
      %317 = vmatpush1.msra.mxu0 0.0
      %318 = vmatprep.mubr.f32.mxu0 0.0
      %319 = vmatmul.mubr.f32.gmra.mrb[0].mxu0 %v249
      %v320 = vpop.f32.mrb[0].mxu0
      %v321 = vadd.f32 %v245, %v320
      %v322 = vpop.f32.mrb[0].mxu0
      %323 = vmatprep.mubr.f32.mxu0 0.0
      %324 = vmatmul.mubr.f32.gmra.mrb[0].mxu0 %v252
      %v325 = vpop.f32.mrb[0].mxu0
      %v326 = vadd.f32 %v245, %v325
      %v327 = vpop.f32.mrb[0].mxu0
      %328 = vdwg.mxu0
      %329 = vst.msk [vmem:[%s192] sm:$0xff] %vm225, %v321
      %330 = vst.msk [vmem:[%s192 + $0x8] sm:$0xff] %vm225, %v326
      %s331 = smul.u32 2, %s19
      %p332 = scmp.lt.s32.totalorder %s18, 1
      %s333 = scalar_select %p332, %s18, 1
      %p334 = scmp.lt.s32.totalorder %s331, 3
      %s335 = scalar_select %p334, %s331, 3
      %s336 = smul.addr %s333, 4
      %s337 = sadd.s32 %s335, %s336
      %s338 = smul.addr %s337, 8
      %s339 = scalar_lea.vmem %s3, %s338
      // Predicated region
      $region33: #{run_f32.27} parent=31 // pred_check
        %p340 = pneg %p114
      $region34: #{run_f32.27} parent=31 // pred_check_branch
        %342 = sbr.rel (%p340) target = $region36
      $region35: #{run_f32.27} parent=31 // pred_region
        %s343 = smul.u32 2, %s19
      $region36: #{run_f32.27} parent=31 // pred_fallthru
        _
    $region32: #{run_f32.27} parent=5 // pred_fallthru
      _
    %p344 = scmp.le.s32.totalorder 2, %s9
    // Predicated region
    $region37: #{run_f32.27} parent=5 // pred_check
      %p345 = pneg %p344
    $region38: #{run_f32.27} parent=5 // pred_check_branch
      %347 = sbr.rel (%p345) target = $region40
    $region39: #{run_f32.27} parent=5 // pred_region
      %s348 = ssub.s32 %s9, 2
      // Predicated region
      $region41: #{run_f32.27} parent=39 // pred_check
        %p349 = pneg %p120
      $region42: #{run_f32.27} parent=39 // pred_check_branch
        %351 = sbr.rel (%p349) target = $region44
      $region43: #{run_f32.27} parent=39 // pred_region
        %s352 = smul.u32 2, %s21
        %p353 = scmp.lt.s32.totalorder %s20, 1
        %s354 = scalar_select %p353, %s20, 1
        %p355 = scmp.lt.s32.totalorder %s352, 3
        %s356 = scalar_select %p355, %s352, 3
        %s357 = smul.addr %s354, 4
        %s358 = sadd.s32 %s356, %s357
        %s359 = smul.addr %s358, 8
        %s360 = scalar_lea.vmem %s3, %s359
      $region44: #{run_f32.27} parent=39 // pred_fallthru
        _
    $region40: #{run_f32.27} parent=5 // pred_fallthru
      _
  $region6: #{run_f32.27} parent=0 // loop_footer
    %s13 = sadd.s32 1, %s9
  $region7: #{run_f32.27} parent=0 // loop_footer_branch
    %8 = sbr.rel target = $region3
  $region8: #{run_f32.27} parent=0 // loop_exit
    _

// kernel: run_f32.28
$region0: #{run_f32.28}
  #allocation0 [shape = 'u32[]', space=smem, size = 0x4, offset = 0x4, fixed_abs, tag = 'smem constant byte address 0x4 - core index']
  #allocation1 [shape = 'u32[144,128]{1,0:T(1,128)}', space=vmem, size = 0x12000, scoped, tag = 'internal scratch']
  %s0 = inlined_call_operand.vmem [shape: f32[2,80,32], index: 0, kind: input, shape index: {}]
  %s1 = inlined_call_operand.vmem [shape: f32[32,32], index: 1, kind: input, shape index: {}]
  %s2 = inlined_call_operand.vmem [shape: f32[1,32], index: 2, kind: input, shape index: {}]
  %s3 = inlined_call_operand.vmem [shape: f32[2,80,32], index: 3, kind: output, shape index: {}]
  %s4 = sld [smem:[#allocation0]]
  $region45: #{run_f32.28} parent=0
    _
  %s6 = ssub.s32 1, %s4
  %s7 = scalar_select 0, %s6, %s4
  loop: start=0, step=1, limit=12
  $region2: #{run_f32.28} parent=0 // loop_pre_header
    _
  $region3: #{run_f32.28} parent=0 // loop_header
    %s9 = sphi 0, %s13
    %p10 = scmp.ge.s32.totalorder %s9, 12
    %s16 = sphi 0, %s28
    %s17 = sphi 0, %s24
    %s18 = sphi 0, %s16
    %s19 = sphi 0, %s17
    %s20 = sphi 0, %s18
    %s21 = sphi 0, %s19
    %s31 = sphi 0, %s33
    %s34 = sphi 0, %s31
    %s35 = sphi 0, %s34
    %s51 = sphi 0, %s35
    %s55 = sphi 0, %s55
    %s57 = sphi 0, %s55
    %s58 = sphi 0, %s57
    %s72 = sphi 0, %s58
    %s76 = sphi 0, %s76
    %s78 = sphi 0, %s76
    %s79 = sphi 0, %s78
    %s93 = sphi 0, %s79
    %s101 = sphi 0, %s103
    %s104 = sphi 0, %s101
    %s105 = sphi 0, %s104
    %s121 = sphi 0, %s105
  $region4: #{run_f32.28} parent=0 // loop_header_branch
    %12 = sbr.rel (%p10) target = $region8
  $region5: #{run_f32.28} parent=0 // loop_body
    %s14 = ssub.s32 %s9, 1
    %s15 = ssub.s32 %s9, 2
    %s22 = sadd.s32 1, %s17
    %p23 = scmp.ge.s32.totalorder %s22, 5
    %s24 = scalar_select %p23, 0, %s22
    %s25 = sadd.s32 1, %s16
    %s26 = scalar_select %p23, %s25, %s16
    %p27 = scmp.ge.s32.totalorder %s26, 2
    %s28 = scalar_select %p27, 0, %s26
    %s29 = ssub.s32 %s16, %s28
    %p30 = scmp.eq.s32.totalorder %s29, 0
    %s32 = sadd.s32 %s31, 1
    %s33 = scalar_select %p30, %s31, %s32
    %p36 = pneg %p30
    %p37 = scmp.eq.s32.totalorder %s9, 9
    %p38 = por %p36, %p37
    %p39 = scmp.ne.s32.totalorder %s31, %s34
    %p40 = scmp.eq.s32.totalorder %s9, 0
    %p41 = por %p39, %p40
    %p42 = scmp.ne.s32.totalorder %s31, %s34
    %p43 = scmp.eq.s32.totalorder %s14, 9
    %p44 = por %p42, %p43
    %p45 = scmp.ne.s32.totalorder %s34, %s35
    %p46 = scmp.eq.s32.totalorder %s14, 0
    %p47 = por %p45, %p46
    %p48 = scmp.ne.s32.totalorder %s34, %s35
    %p49 = scmp.eq.s32.totalorder %s15, 9
    %p50 = por %p48, %p49
    %p52 = scmp.ne.s32.totalorder %s35, %s51
    %p53 = scmp.eq.s32.totalorder %s15, 0
    %p54 = por %p52, %p53
    %s56 = sadd.s32 %s55, 1
    %p59 = scmp.eq.s32.totalorder %s9, 9
    %p60 = scmp.ne.s32.totalorder %s55, %s57
    %p61 = scmp.eq.s32.totalorder %s9, 0
    %p62 = por %p60, %p61
    %p63 = scmp.ne.s32.totalorder %s55, %s57
    %p64 = scmp.eq.s32.totalorder %s14, 9
    %p65 = por %p63, %p64
    %p66 = scmp.ne.s32.totalorder %s57, %s58
    %p67 = scmp.eq.s32.totalorder %s14, 0
    %p68 = por %p66, %p67
    %p69 = scmp.ne.s32.totalorder %s57, %s58
    %p70 = scmp.eq.s32.totalorder %s15, 9
    %p71 = por %p69, %p70
    %p73 = scmp.ne.s32.totalorder %s58, %s72
    %p74 = scmp.eq.s32.totalorder %s15, 0
    %p75 = por %p73, %p74
    %s77 = sadd.s32 %s76, 1
    %p80 = scmp.eq.s32.totalorder %s9, 9
    %p81 = scmp.ne.s32.totalorder %s76, %s78
    %p82 = scmp.eq.s32.totalorder %s9, 0
    %p83 = por %p81, %p82
    %p84 = scmp.ne.s32.totalorder %s76, %s78
    %p85 = scmp.eq.s32.totalorder %s14, 9
    %p86 = por %p84, %p85
    %p87 = scmp.ne.s32.totalorder %s78, %s79
    %p88 = scmp.eq.s32.totalorder %s14, 0
    %p89 = por %p87, %p88
    %p90 = scmp.ne.s32.totalorder %s78, %s79
    %p91 = scmp.eq.s32.totalorder %s15, 9
    %p92 = por %p90, %p91
    %p94 = scmp.ne.s32.totalorder %s79, %s93
    %p95 = scmp.eq.s32.totalorder %s15, 0
    %p96 = por %p94, %p95
    %s97 = ssub.s32 %s16, %s28
    %s98 = ssub.s32 %s17, %s24
    %s99 = sor.u32 %s97, %s98
    %p100 = scmp.eq.s32.totalorder %s99, 0
    %s102 = sadd.s32 %s101, 1
    %s103 = scalar_select %p100, %s101, %s102
    %p106 = pneg %p100
    %p107 = scmp.eq.s32.totalorder %s9, 9
    %p108 = por %p106, %p107
    %p109 = scmp.ne.s32.totalorder %s101, %s104
    %p110 = scmp.eq.s32.totalorder %s9, 0
    %p111 = por %p109, %p110
    %p112 = scmp.ne.s32.totalorder %s101, %s104
    %p113 = scmp.eq.s32.totalorder %s14, 9
    %p114 = por %p112, %p113
    %p115 = scmp.ne.s32.totalorder %s104, %s105
    %p116 = scmp.eq.s32.totalorder %s14, 0
    %p117 = por %p115, %p116
    %p118 = scmp.ne.s32.totalorder %s104, %s105
    %p119 = scmp.eq.s32.totalorder %s15, 9
    %p120 = por %p118, %p119
    %p122 = scmp.ne.s32.totalorder %s105, %s121
    %p123 = scmp.eq.s32.totalorder %s15, 0
    %p124 = por %p122, %p123
    %p125 = scmp.le.s32.totalorder 1, %s9
    %p126 = scmp.lt.s32.totalorder %s9, 11
    %p127 = pnand %p125, %p126
    %p128 = pneg %p127
    // Predicated region
    $region9: #{run_f32.28} parent=5 // pred_check
      _
    $region10: #{run_f32.28} parent=5 // pred_check_branch
      %130 = sbr.rel (%p127) target = $region12
    $region11: #{run_f32.28} parent=5 // pred_region
      %s131 = ssub.s32 %s9, 1
      // Predicated region
      $region13: #{run_f32.28} parent=11 // pred_check
        %p132 = pneg %p68
      $region14: #{run_f32.28} parent=11 // pred_check_branch
        %134 = sbr.rel (%p132) target = $region16
      $region15: #{run_f32.28} parent=11 // pred_region
        _
      $region16: #{run_f32.28} parent=11 // pred_fallthru
        _
      // Predicated region
      $region17: #{run_f32.28} parent=11 // pred_check
        %p135 = pneg %p89
      $region18: #{run_f32.28} parent=11 // pred_check_branch
        %137 = sbr.rel (%p135) target = $region20
      $region19: #{run_f32.28} parent=11 // pred_region
        _
      $region20: #{run_f32.28} parent=11 // pred_fallthru
        _
    $region12: #{run_f32.28} parent=5 // pred_fallthru
      _
    %p138 = scmp.lt.s32.totalorder %s9, 10
    // Predicated region
    $region21: #{run_f32.28} parent=5 // pred_check
      %p139 = pneg %p138
    $region22: #{run_f32.28} parent=5 // pred_check_branch
      %141 = sbr.rel (%p139) target = $region24
    $region23: #{run_f32.28} parent=5 // pred_region
      // Predicated region
      $region25: #{run_f32.28} parent=23 // pred_check
        %p142 = pneg %p41
      $region26: #{run_f32.28} parent=23 // pred_check_branch
        %144 = sbr.rel (%p142) target = $region28
      $region27: #{run_f32.28} parent=23 // pred_region
        %p145 = scmp.lt.s32.totalorder %s16, 1
        %s146 = scalar_select %p145, %s16, 1
        %s147 = smul.addr %s146, 10
        %s148 = smul.addr %s147, 8
        %s149 = scalar_lea.vmem %s0, %s148
      $region28: #{run_f32.28} parent=23 // pred_fallthru
        _
    $region24: #{run_f32.28} parent=5 // pred_fallthru
      _
    %p150 = scmp.le.s32.totalorder 1, %s9
    %p151 = scmp.lt.s32.totalorder %s9, 11
    %p152 = pnand %p150, %p151
    %p153 = pneg %p152
    // Predicated region
    $region29: #{run_f32.28} parent=5 // pred_check
      _
    $region30: #{run_f32.28} parent=5 // pred_check_branch
      %155 = sbr.rel (%p152) target = $region32
    $region31: #{run_f32.28} parent=5 // pred_region
      %s156 = ssub.s32 %s9, 1
      %p157 = scmp.lt.s32.totalorder %s18, 1
      %s158 = scalar_select %p157, %s18, 1
      %s159 = smul.addr %s158, 10
      %s160 = smul.addr %s159, 8
      %s161 = scalar_lea.vmem %s0, %s160
      %p162 = pneg %p47
      %p163 = pneg %p44
      %p164 = pneg %p68
      %p165 = pneg %p65
      %p166 = pneg %p89
      %p167 = pneg %p86
      %p168 = pneg %p117
      %p169 = pneg %p114
      %s170 = smul.u32 2, %s19
      %p171 = scmp.lt.s32.totalorder %s18, 1
      %s172 = scalar_select %p171, %s18, 1
      %p173 = scmp.lt.s32.totalorder %s170, 9
      %s174 = scalar_select %p173, %s170, 9
      %s175 = smul.addr %s172, 10
      %s176 = sadd.s32 %s174, %s175
      %s177 = smul.addr %s176, 8
      %s178 = scalar_lea.vmem %s3, %s177
      %p179 = scmp.lt.s32.totalorder %s18, 1
      %s180 = scalar_select %p179, %s18, 1
      %s181 = smul.addr %s180, 10
      %s182 = smul.addr %s181, 8
      %s183 = scalar_lea.vmem %s0, %s182
      %s184 = smul.u32 2, %s19
      %p185 = scmp.lt.s32.totalorder %s18, 1
      %s186 = scalar_select %p185, %s18, 1
      %p187 = scmp.lt.s32.totalorder %s184, 9
      %s188 = scalar_select %p187, %s184, 9
      %s189 = smul.addr %s186, 10
      %s190 = sadd.s32 %s188, %s189
      %s191 = smul.addr %s190, 8
      %s192 = scalar_lea.vmem %s3, %s191
      %s193 = smul.u32 2, %s19
      %s194 = smul.u32 %s19, 16
      %s195 = scalar_lea.vmem %s183, %s194
      %v196 = vld [vmem:[%s195] sm:$0xff]
      %v197 = vld [vmem:[%s195 + $0x8] sm:$0xff]
      %v198 = vld [vmem:[%s1] sm:$0xff]
      %v199 = vld [vmem:[%s1 + $0x8] sm:$0xff]
      %v200 = vld [vmem:[%s1 + $0x10] sm:$0xff]
      %v201 = vld [vmem:[%s1 + $0x18] sm:$0xff]
      %v202 = vld [vmem:[%s2] sm:$0x1]
      %v204 = vlaneseq
      %v205 = vshrl.u32 %v204, 7
      %v206 = vsub.s32 0, %v205
      %v207 = vrot.slane %v202, %v206
      %vm209 = vcmask 261120
      %v211 = vsel %vm209, %v196, 0
      %v214 = vsel %vm209, %v197, 0
      %216 = vmatprep.subr.mxu0 0.0
      %217 = vmatpush1.msra.mxu0 %v198
      %218 = vmatprep.subr.mxu0 0.0
      %219 = vmatpush1.msra.mxu0 %v199
      %220 = vmatprep.subr.mxu0 0.0
      %221 = vmatpush1.msra.mxu0 %v200
      %222 = vmatprep.subr.mxu0 0.0
      %223 = vmatpush1.msra.mxu0 %v201
      %224 = vmatprep.subr.mxu0 0.0
      %225 = vmatpush1.msra.mxu0 0.0
      %226 = vmatprep.subr.mxu0 0.0
      %227 = vmatpush1.msra.mxu0 0.0
      %228 = vmatprep.subr.mxu0 0.0
      %229 = vmatpush1.msra.mxu0 0.0
      %230 = vmatprep.subr.mxu0 0.0
      %231 = vmatpush1.msra.mxu0 0.0
      %232 = vmatprep.subr.mxu0 0.0
      %233 = vmatpush1.msra.mxu0 0.0
      %234 = vmatprep.subr.mxu0 0.0
      %235 = vmatpush1.msra.mxu0 0.0
      %236 = vmatprep.subr.mxu0 0.0
      %237 = vmatpush1.msra.mxu0 0.0
      %238 = vmatprep.subr.mxu0 0.0
      %239 = vmatpush1.msra.mxu0 0.0
      %240 = vmatprep.subr.mxu0 0.0
      %241 = vmatpush1.msra.mxu0 0.0
      %242 = vmatprep.subr.mxu0 0.0
      %243 = vmatpush1.msra.mxu0 0.0
      %244 = vmatprep.subr.mxu0 0.0
      %245 = vmatpush1.msra.mxu0 0.0
      %246 = vmatprep.subr.mxu0 0.0
      %247 = vmatpush1.msra.mxu0 0.0
      %248 = vmatprep.subr.mxu0 0.0
      %249 = vmatpush1.msra.mxu0 0.0
      %250 = vmatprep.subr.mxu0 0.0
      %251 = vmatpush1.msra.mxu0 0.0
      %252 = vmatprep.subr.mxu0 0.0
      %253 = vmatpush1.msra.mxu0 0.0
      %254 = vmatprep.subr.mxu0 0.0
      %255 = vmatpush1.msra.mxu0 0.0
      %256 = vmatprep.subr.mxu0 0.0
      %257 = vmatpush1.msra.mxu0 0.0
      %258 = vmatprep.subr.mxu0 0.0
      %259 = vmatpush1.msra.mxu0 0.0
      %260 = vmatprep.subr.mxu0 0.0
      %261 = vmatpush1.msra.mxu0 0.0
      %262 = vmatprep.subr.mxu0 0.0
      %263 = vmatpush1.msra.mxu0 0.0
      %264 = vmatprep.subr.mxu0 0.0
      %265 = vmatpush1.msra.mxu0 0.0
      %266 = vmatprep.subr.mxu0 0.0
      %267 = vmatpush1.msra.mxu0 0.0
      %268 = vmatprep.subr.mxu0 0.0
      %269 = vmatpush1.msra.mxu0 0.0
      %270 = vmatprep.subr.mxu0 0.0
      %271 = vmatpush1.msra.mxu0 0.0
      %272 = vmatprep.subr.mxu0 0.0
      %273 = vmatpush1.msra.mxu0 0.0
      %274 = vmatprep.subr.mxu0 0.0
      %275 = vmatpush1.msra.mxu0 0.0
      %276 = vmatprep.subr.mxu0 0.0
      %277 = vmatpush1.msra.mxu0 0.0
      %278 = vmatprep.subr.mxu0 0.0
      %279 = vmatpush1.msra.mxu0 0.0
      %280 = vmatprep.mubr.f32.mxu0 0.0
      %281 = vmatmul.mubr.f32.gmra.mrb[0].mxu0 %v211
      %v282 = vpop.f32.mrb[0].mxu0
      %v283 = vadd.f32 %v207, %v282
      %v284 = vpop.f32.mrb[0].mxu0
      %285 = vmatprep.mubr.f32.mxu0 0.0
      %286 = vmatmul.mubr.f32.gmra.mrb[0].mxu0 %v214
      %v287 = vpop.f32.mrb[0].mxu0
      %v288 = vadd.f32 %v207, %v287
      %v289 = vpop.f32.mrb[0].mxu0
      %290 = vdwg.mxu0
      %v291 = vmax.f32 %v283, 0.0
      %v292 = vmax.f32 %v288, 0.0
      %293 = vst.msk [vmem:[%s192] sm:$0xff] %vm209, %v291
      %294 = vst.msk [vmem:[%s192 + $0x8] sm:$0xff] %vm209, %v292
      %s295 = smul.u32 2, %s19
      %p296 = scmp.lt.s32.totalorder %s18, 1
      %s297 = scalar_select %p296, %s18, 1
      %p298 = scmp.lt.s32.totalorder %s295, 9
      %s299 = scalar_select %p298, %s295, 9
      %s300 = smul.addr %s297, 10
      %s301 = sadd.s32 %s299, %s300
      %s302 = smul.addr %s301, 8
      %s303 = scalar_lea.vmem %s3, %s302
      // Predicated region
      $region33: #{run_f32.28} parent=31 // pred_check
        %p304 = pneg %p114
      $region34: #{run_f32.28} parent=31 // pred_check_branch
        %306 = sbr.rel (%p304) target = $region36
      $region35: #{run_f32.28} parent=31 // pred_region
        %s307 = smul.u32 2, %s19
      $region36: #{run_f32.28} parent=31 // pred_fallthru
        _
    $region32: #{run_f32.28} parent=5 // pred_fallthru
      _
    %p308 = scmp.le.s32.totalorder 2, %s9
    // Predicated region
    $region37: #{run_f32.28} parent=5 // pred_check
      %p309 = pneg %p308
    $region38: #{run_f32.28} parent=5 // pred_check_branch
      %311 = sbr.rel (%p309) target = $region40
    $region39: #{run_f32.28} parent=5 // pred_region
      %s312 = ssub.s32 %s9, 2
      // Predicated region
      $region41: #{run_f32.28} parent=39 // pred_check
        %p313 = pneg %p120
      $region42: #{run_f32.28} parent=39 // pred_check_branch
        %315 = sbr.rel (%p313) target = $region44
      $region43: #{run_f32.28} parent=39 // pred_region
        %s316 = smul.u32 2, %s21
        %p317 = scmp.lt.s32.totalorder %s20, 1
        %s318 = scalar_select %p317, %s20, 1
        %p319 = scmp.lt.s32.totalorder %s316, 9
        %s320 = scalar_select %p319, %s316, 9
        %s321 = smul.addr %s318, 10
        %s322 = sadd.s32 %s320, %s321
        %s323 = smul.addr %s322, 8
        %s324 = scalar_lea.vmem %s3, %s323
      $region44: #{run_f32.28} parent=39 // pred_fallthru
        _
    $region40: #{run_f32.28} parent=5 // pred_fallthru
      _
  $region6: #{run_f32.28} parent=0 // loop_footer
    %s13 = sadd.s32 1, %s9
  $region7: #{run_f32.28} parent=0 // loop_footer_branch
    %8 = sbr.rel target = $region3
  $region8: #{run_f32.28} parent=0 // loop_exit
    _

// kernel: run_f32.29
$region0: #{run_f32.29}
  #allocation0 [shape = 'u32[]', space=smem, size = 0x4, offset = 0x4, fixed_abs, tag = 'smem constant byte address 0x4 - core index']
  #allocation1 [shape = 'u32[144,128]{1,0:T(1,128)}', space=vmem, size = 0x12000, scoped, tag = 'internal scratch']
  %s0 = inlined_call_operand.vmem [shape: f32[2,80,32], index: 0, kind: input, shape index: {}]
  %s1 = inlined_call_operand.vmem [shape: f32[32,128], index: 1, kind: input, shape index: {}]
  %s2 = inlined_call_operand.vmem [shape: f32[1,128], index: 2, kind: input, shape index: {}]
  %s3 = inlined_call_operand.vmem [shape: f32[2,80,128], index: 3, kind: output, shape index: {}]
  %s4 = sld [smem:[#allocation0]]
  $region45: #{run_f32.29} parent=0
    _
  %s6 = ssub.s32 1, %s4
  %s7 = scalar_select 0, %s6, %s4
  loop: start=0, step=1, limit=12
  $region2: #{run_f32.29} parent=0 // loop_pre_header
    _
  $region3: #{run_f32.29} parent=0 // loop_header
    %s9 = sphi 0, %s13
    %p10 = scmp.ge.s32.totalorder %s9, 12
    %s16 = sphi 0, %s28
    %s17 = sphi 0, %s24
    %s18 = sphi 0, %s16
    %s19 = sphi 0, %s17
    %s20 = sphi 0, %s18
    %s21 = sphi 0, %s19
    %s31 = sphi 0, %s33
    %s34 = sphi 0, %s31
    %s35 = sphi 0, %s34
    %s51 = sphi 0, %s35
    %s55 = sphi 0, %s55
    %s57 = sphi 0, %s55
    %s58 = sphi 0, %s57
    %s72 = sphi 0, %s58
    %s76 = sphi 0, %s76
    %s78 = sphi 0, %s76
    %s79 = sphi 0, %s78
    %s93 = sphi 0, %s79
    %s101 = sphi 0, %s103
    %s104 = sphi 0, %s101
    %s105 = sphi 0, %s104
    %s121 = sphi 0, %s105
  $region4: #{run_f32.29} parent=0 // loop_header_branch
    %12 = sbr.rel (%p10) target = $region8
  $region5: #{run_f32.29} parent=0 // loop_body
    %s14 = ssub.s32 %s9, 1
    %s15 = ssub.s32 %s9, 2
    %s22 = sadd.s32 1, %s17
    %p23 = scmp.ge.s32.totalorder %s22, 5
    %s24 = scalar_select %p23, 0, %s22
    %s25 = sadd.s32 1, %s16
    %s26 = scalar_select %p23, %s25, %s16
    %p27 = scmp.ge.s32.totalorder %s26, 2
    %s28 = scalar_select %p27, 0, %s26
    %s29 = ssub.s32 %s16, %s28
    %p30 = scmp.eq.s32.totalorder %s29, 0
    %s32 = sadd.s32 %s31, 1
    %s33 = scalar_select %p30, %s31, %s32
    %p36 = pneg %p30
    %p37 = scmp.eq.s32.totalorder %s9, 9
    %p38 = por %p36, %p37
    %p39 = scmp.ne.s32.totalorder %s31, %s34
    %p40 = scmp.eq.s32.totalorder %s9, 0
    %p41 = por %p39, %p40
    %p42 = scmp.ne.s32.totalorder %s31, %s34
    %p43 = scmp.eq.s32.totalorder %s14, 9
    %p44 = por %p42, %p43
    %p45 = scmp.ne.s32.totalorder %s34, %s35
    %p46 = scmp.eq.s32.totalorder %s14, 0
    %p47 = por %p45, %p46
    %p48 = scmp.ne.s32.totalorder %s34, %s35
    %p49 = scmp.eq.s32.totalorder %s15, 9
    %p50 = por %p48, %p49
    %p52 = scmp.ne.s32.totalorder %s35, %s51
    %p53 = scmp.eq.s32.totalorder %s15, 0
    %p54 = por %p52, %p53
    %s56 = sadd.s32 %s55, 1
    %p59 = scmp.eq.s32.totalorder %s9, 9
    %p60 = scmp.ne.s32.totalorder %s55, %s57
    %p61 = scmp.eq.s32.totalorder %s9, 0
    %p62 = por %p60, %p61
    %p63 = scmp.ne.s32.totalorder %s55, %s57
    %p64 = scmp.eq.s32.totalorder %s14, 9
    %p65 = por %p63, %p64
    %p66 = scmp.ne.s32.totalorder %s57, %s58
    %p67 = scmp.eq.s32.totalorder %s14, 0
    %p68 = por %p66, %p67
    %p69 = scmp.ne.s32.totalorder %s57, %s58
    %p70 = scmp.eq.s32.totalorder %s15, 9
    %p71 = por %p69, %p70
    %p73 = scmp.ne.s32.totalorder %s58, %s72
    %p74 = scmp.eq.s32.totalorder %s15, 0
    %p75 = por %p73, %p74
    %s77 = sadd.s32 %s76, 1
    %p80 = scmp.eq.s32.totalorder %s9, 9
    %p81 = scmp.ne.s32.totalorder %s76, %s78
    %p82 = scmp.eq.s32.totalorder %s9, 0
    %p83 = por %p81, %p82
    %p84 = scmp.ne.s32.totalorder %s76, %s78
    %p85 = scmp.eq.s32.totalorder %s14, 9
    %p86 = por %p84, %p85
    %p87 = scmp.ne.s32.totalorder %s78, %s79
    %p88 = scmp.eq.s32.totalorder %s14, 0
    %p89 = por %p87, %p88
    %p90 = scmp.ne.s32.totalorder %s78, %s79
    %p91 = scmp.eq.s32.totalorder %s15, 9
    %p92 = por %p90, %p91
    %p94 = scmp.ne.s32.totalorder %s79, %s93
    %p95 = scmp.eq.s32.totalorder %s15, 0
    %p96 = por %p94, %p95
    %s97 = ssub.s32 %s16, %s28
    %s98 = ssub.s32 %s17, %s24
    %s99 = sor.u32 %s97, %s98
    %p100 = scmp.eq.s32.totalorder %s99, 0
    %s102 = sadd.s32 %s101, 1
    %s103 = scalar_select %p100, %s101, %s102
    %p106 = pneg %p100
    %p107 = scmp.eq.s32.totalorder %s9, 9
    %p108 = por %p106, %p107
    %p109 = scmp.ne.s32.totalorder %s101, %s104
    %p110 = scmp.eq.s32.totalorder %s9, 0
    %p111 = por %p109, %p110
    %p112 = scmp.ne.s32.totalorder %s101, %s104
    %p113 = scmp.eq.s32.totalorder %s14, 9
    %p114 = por %p112, %p113
    %p115 = scmp.ne.s32.totalorder %s104, %s105
    %p116 = scmp.eq.s32.totalorder %s14, 0
    %p117 = por %p115, %p116
    %p118 = scmp.ne.s32.totalorder %s104, %s105
    %p119 = scmp.eq.s32.totalorder %s15, 9
    %p120 = por %p118, %p119
    %p122 = scmp.ne.s32.totalorder %s105, %s121
    %p123 = scmp.eq.s32.totalorder %s15, 0
    %p124 = por %p122, %p123
    %p125 = scmp.le.s32.totalorder 1, %s9
    %p126 = scmp.lt.s32.totalorder %s9, 11
    %p127 = pnand %p125, %p126
    %p128 = pneg %p127
    // Predicated region
    $region9: #{run_f32.29} parent=5 // pred_check
      _
    $region10: #{run_f32.29} parent=5 // pred_check_branch
      %130 = sbr.rel (%p127) target = $region12
    $region11: #{run_f32.29} parent=5 // pred_region
      %s131 = ssub.s32 %s9, 1
      // Predicated region
      $region13: #{run_f32.29} parent=11 // pred_check
        %p132 = pneg %p68
      $region14: #{run_f32.29} parent=11 // pred_check_branch
        %134 = sbr.rel (%p132) target = $region16
      $region15: #{run_f32.29} parent=11 // pred_region
        _
      $region16: #{run_f32.29} parent=11 // pred_fallthru
        _
      // Predicated region
      $region17: #{run_f32.29} parent=11 // pred_check
        %p135 = pneg %p89
      $region18: #{run_f32.29} parent=11 // pred_check_branch
        %137 = sbr.rel (%p135) target = $region20
      $region19: #{run_f32.29} parent=11 // pred_region
        _
      $region20: #{run_f32.29} parent=11 // pred_fallthru
        _
    $region12: #{run_f32.29} parent=5 // pred_fallthru
      _
    %p138 = scmp.lt.s32.totalorder %s9, 10
    // Predicated region
    $region21: #{run_f32.29} parent=5 // pred_check
      %p139 = pneg %p138
    $region22: #{run_f32.29} parent=5 // pred_check_branch
      %141 = sbr.rel (%p139) target = $region24
    $region23: #{run_f32.29} parent=5 // pred_region
      // Predicated region
      $region25: #{run_f32.29} parent=23 // pred_check
        %p142 = pneg %p41
      $region26: #{run_f32.29} parent=23 // pred_check_branch
        %144 = sbr.rel (%p142) target = $region28
      $region27: #{run_f32.29} parent=23 // pred_region
        %p145 = scmp.lt.s32.totalorder %s16, 1
        %s146 = scalar_select %p145, %s16, 1
        %s147 = smul.addr %s146, 10
        %s148 = smul.addr %s147, 8
        %s149 = scalar_lea.vmem %s0, %s148
      $region28: #{run_f32.29} parent=23 // pred_fallthru
        _
    $region24: #{run_f32.29} parent=5 // pred_fallthru
      _
    %p150 = scmp.le.s32.totalorder 1, %s9
    %p151 = scmp.lt.s32.totalorder %s9, 11
    %p152 = pnand %p150, %p151
    %p153 = pneg %p152
    // Predicated region
    $region29: #{run_f32.29} parent=5 // pred_check
      _
    $region30: #{run_f32.29} parent=5 // pred_check_branch
      %155 = sbr.rel (%p152) target = $region32
    $region31: #{run_f32.29} parent=5 // pred_region
      %s156 = ssub.s32 %s9, 1
      %p157 = scmp.lt.s32.totalorder %s18, 1
      %s158 = scalar_select %p157, %s18, 1
      %s159 = smul.addr %s158, 10
      %s160 = smul.addr %s159, 8
      %s161 = scalar_lea.vmem %s0, %s160
      %p162 = pneg %p47
      %p163 = pneg %p44
      %p164 = pneg %p68
      %p165 = pneg %p65
      %p166 = pneg %p89
      %p167 = pneg %p86
      %p168 = pneg %p117
      %p169 = pneg %p114
      %s170 = smul.u32 2, %s19
      %p171 = scmp.lt.s32.totalorder %s18, 1
      %s172 = scalar_select %p171, %s18, 1
      %p173 = scmp.lt.s32.totalorder %s170, 9
      %s174 = scalar_select %p173, %s170, 9
      %s175 = smul.addr %s172, 10
      %s176 = sadd.s32 %s174, %s175
      %s177 = smul.addr %s176, 8
      %s178 = scalar_lea.vmem %s3, %s177
      %p179 = scmp.lt.s32.totalorder %s18, 1
      %s180 = scalar_select %p179, %s18, 1
      %s181 = smul.addr %s180, 10
      %s182 = smul.addr %s181, 8
      %s183 = scalar_lea.vmem %s0, %s182
      %s184 = smul.u32 2, %s19
      %p185 = scmp.lt.s32.totalorder %s18, 1
      %s186 = scalar_select %p185, %s18, 1
      %p187 = scmp.lt.s32.totalorder %s184, 9
      %s188 = scalar_select %p187, %s184, 9
      %s189 = smul.addr %s186, 10
      %s190 = sadd.s32 %s188, %s189
      %s191 = smul.addr %s190, 8
      %s192 = scalar_lea.vmem %s3, %s191
      %s193 = smul.u32 2, %s19
      %s194 = smul.u32 %s19, 16
      %s195 = scalar_lea.vmem %s183, %s194
      %v196 = vld [vmem:[%s195] sm:$0xff]
      %v197 = vld [vmem:[%s195 + $0x8] sm:$0xff]
      %v198 = vld [vmem:[%s1] sm:$0xff]
      %v199 = vld [vmem:[%s1 + $0x8] sm:$0xff]
      %v200 = vld [vmem:[%s1 + $0x10] sm:$0xff]
      %v201 = vld [vmem:[%s1 + $0x18] sm:$0xff]
      %v202 = vld [vmem:[%s2] sm:$0x1]
      %v204 = vlaneseq
      %v205 = vshrl.u32 %v204, 7
      %v206 = vsub.s32 0, %v205
      %v207 = vrot.slane %v202, %v206
      %vm209 = vcmask 261120
      %v211 = vsel %vm209, %v196, 0
      %v214 = vsel %vm209, %v197, 0
      %216 = vmatprep.subr.mxu0 0.0
      %217 = vmatpush1.msra.mxu0 %v198
      %218 = vmatprep.subr.mxu0 0.0
      %219 = vmatpush1.msra.mxu0 %v199
      %220 = vmatprep.subr.mxu0 0.0
      %221 = vmatpush1.msra.mxu0 %v200
      %222 = vmatprep.subr.mxu0 0.0
      %223 = vmatpush1.msra.mxu0 %v201
      %224 = vmatprep.subr.mxu0 0.0
      %225 = vmatpush1.msra.mxu0 0.0
      %226 = vmatprep.subr.mxu0 0.0
      %227 = vmatpush1.msra.mxu0 0.0
      %228 = vmatprep.subr.mxu0 0.0
      %229 = vmatpush1.msra.mxu0 0.0
      %230 = vmatprep.subr.mxu0 0.0
      %231 = vmatpush1.msra.mxu0 0.0
      %232 = vmatprep.subr.mxu0 0.0
      %233 = vmatpush1.msra.mxu0 0.0
      %234 = vmatprep.subr.mxu0 0.0
      %235 = vmatpush1.msra.mxu0 0.0
      %236 = vmatprep.subr.mxu0 0.0
      %237 = vmatpush1.msra.mxu0 0.0
      %238 = vmatprep.subr.mxu0 0.0
      %239 = vmatpush1.msra.mxu0 0.0
      %240 = vmatprep.subr.mxu0 0.0
      %241 = vmatpush1.msra.mxu0 0.0
      %242 = vmatprep.subr.mxu0 0.0
      %243 = vmatpush1.msra.mxu0 0.0
      %244 = vmatprep.subr.mxu0 0.0
      %245 = vmatpush1.msra.mxu0 0.0
      %246 = vmatprep.subr.mxu0 0.0
      %247 = vmatpush1.msra.mxu0 0.0
      %248 = vmatprep.subr.mxu0 0.0
      %249 = vmatpush1.msra.mxu0 0.0
      %250 = vmatprep.subr.mxu0 0.0
      %251 = vmatpush1.msra.mxu0 0.0
      %252 = vmatprep.subr.mxu0 0.0
      %253 = vmatpush1.msra.mxu0 0.0
      %254 = vmatprep.subr.mxu0 0.0
      %255 = vmatpush1.msra.mxu0 0.0
      %256 = vmatprep.subr.mxu0 0.0
      %257 = vmatpush1.msra.mxu0 0.0
      %258 = vmatprep.subr.mxu0 0.0
      %259 = vmatpush1.msra.mxu0 0.0
      %260 = vmatprep.subr.mxu0 0.0
      %261 = vmatpush1.msra.mxu0 0.0
      %262 = vmatprep.subr.mxu0 0.0
      %263 = vmatpush1.msra.mxu0 0.0
      %264 = vmatprep.subr.mxu0 0.0
      %265 = vmatpush1.msra.mxu0 0.0
      %266 = vmatprep.subr.mxu0 0.0
      %267 = vmatpush1.msra.mxu0 0.0
      %268 = vmatprep.subr.mxu0 0.0
      %269 = vmatpush1.msra.mxu0 0.0
      %270 = vmatprep.subr.mxu0 0.0
      %271 = vmatpush1.msra.mxu0 0.0
      %272 = vmatprep.subr.mxu0 0.0
      %273 = vmatpush1.msra.mxu0 0.0
      %274 = vmatprep.subr.mxu0 0.0
      %275 = vmatpush1.msra.mxu0 0.0
      %276 = vmatprep.subr.mxu0 0.0
      %277 = vmatpush1.msra.mxu0 0.0
      %278 = vmatprep.subr.mxu0 0.0
      %279 = vmatpush1.msra.mxu0 0.0
      %280 = vmatprep.mubr.f32.mxu0 0.0
      %281 = vmatmul.mubr.f32.gmra.mrb[0].mxu0 %v211
      %v282 = vpop.f32.mrb[0].mxu0
      %v283 = vadd.f32 %v207, %v282
      %v284 = vpop.f32.mrb[0].mxu0
      %285 = vmatprep.mubr.f32.mxu0 0.0
      %286 = vmatmul.mubr.f32.gmra.mrb[0].mxu0 %v214
      %v287 = vpop.f32.mrb[0].mxu0
      %v288 = vadd.f32 %v207, %v287
      %v289 = vpop.f32.mrb[0].mxu0
      %290 = vdwg.mxu0
      %291 = vst [vmem:[%s192] sm:$0xff] %v283
      %292 = vst [vmem:[%s192 + $0x8] sm:$0xff] %v288
      %s293 = smul.u32 2, %s19
      %p294 = scmp.lt.s32.totalorder %s18, 1
      %s295 = scalar_select %p294, %s18, 1
      %p296 = scmp.lt.s32.totalorder %s293, 9
      %s297 = scalar_select %p296, %s293, 9
      %s298 = smul.addr %s295, 10
      %s299 = sadd.s32 %s297, %s298
      %s300 = smul.addr %s299, 8
      %s301 = scalar_lea.vmem %s3, %s300
      // Predicated region
      $region33: #{run_f32.29} parent=31 // pred_check
        %p302 = pneg %p114
      $region34: #{run_f32.29} parent=31 // pred_check_branch
        %304 = sbr.rel (%p302) target = $region36
      $region35: #{run_f32.29} parent=31 // pred_region
        %s305 = smul.u32 2, %s19
      $region36: #{run_f32.29} parent=31 // pred_fallthru
        _
    $region32: #{run_f32.29} parent=5 // pred_fallthru
      _
    %p306 = scmp.le.s32.totalorder 2, %s9
    // Predicated region
    $region37: #{run_f32.29} parent=5 // pred_check
      %p307 = pneg %p306
    $region38: #{run_f32.29} parent=5 // pred_check_branch
      %309 = sbr.rel (%p307) target = $region40
    $region39: #{run_f32.29} parent=5 // pred_region
      %s310 = ssub.s32 %s9, 2
      // Predicated region
      $region41: #{run_f32.29} parent=39 // pred_check
        %p311 = pneg %p120
      $region42: #{run_f32.29} parent=39 // pred_check_branch
        %313 = sbr.rel (%p311) target = $region44
      $region43: #{run_f32.29} parent=39 // pred_region
        %s314 = smul.u32 2, %s21
        %p315 = scmp.lt.s32.totalorder %s20, 1
        %s316 = scalar_select %p315, %s20, 1
        %p317 = scmp.lt.s32.totalorder %s314, 9
        %s318 = scalar_select %p317, %s314, 9
        %s319 = smul.addr %s316, 10
        %s320 = sadd.s32 %s318, %s319
        %s321 = smul.addr %s320, 8
        %s322 = scalar_lea.vmem %s3, %s321
      $region44: #{run_f32.29} parent=39 // pred_fallthru
        _
    $region40: #{run_f32.29} parent=5 // pred_fallthru
      _
  $region6: #{run_f32.29} parent=0 // loop_footer
    %s13 = sadd.s32 1, %s9
  $region7: #{run_f32.29} parent=0 // loop_footer_branch
    %8 = sbr.rel target = $region3
  $region8: #{run_f32.29} parent=0 // loop_exit
    _

</llo_original>
